<compile_context>
chip_gen: v6e
topology: v6e:2x2x1
jax: 0.10.0
libtpu: 0.0.40
codegen_flags: <defaults>
</compile_context>

<pallas_src>
import functools

import jax
import jax.numpy as jnp
from jax.experimental import pallas as pl
from jax.experimental.pallas import tpu as pltpu

# ---- small, module-consistent shapes -------------------------------------
N = 8            # local contrastive batch size
D = 32           # CLIP embedding dim
P = 16           # num_pairs (512 in the module; shrunk for the demo)
DX = 128         # reference (DINO) feature dim
DY = 128         # model image-feature dim
M = DX + DY      # size of the block matrix V (keep a multiple of 256 on v6e/v7x)
POWER_ITERS_COLD = 1000   # power_method(b=None)
POWER_ITERS_WARM = 20     # power_method(b=cached eigvec)
_EPS = 1e-30     # guards rsqrt against exactly-degenerate (all-zero) inputs


def _frob_normalize(mat):
    """Frobenius-normalize a matrix (positive scale => power-method direction
    preserved; the final loss is scale-invariant)."""
    return mat * jax.lax.rsqrt(jnp.sum(mat * mat, keepdims=True) + _EPS)


# ---------------------------------------------------------------------------
# Fused kernel: CLIP contrastive loss + alignment loss ('op' norm branch)
# ---------------------------------------------------------------------------
def _fused_loss_kernel(scale_ref, img_ref, txt_ref, x_ref, y_ref,
                       br0_ref, bl0_ref,
                       scalars_ref, br_ref, bl_ref,
                       v_scr, base_scr, *, num_iters):
    # ------------------------------------------------------------------ CLIP
    scale = scale_ref[0]                                   # scalar from SMEM
    img = img_ref[...].astype(jnp.float32)                 # (N, D)
    txt = txt_ref[...].astype(jnp.float32)                 # (N, D)
    # logits_per_image = scale * img @ txt.T (trans_b contraction); the text-side
    # cross-entropy uses axis=0 reductions on the same matrix (no transpose).
    logits = scale * jax.lax.dot_general(
        img, txt, (((1,), (1,)), ((), ())), preferred_element_type=jnp.float32)

    n = logits.shape[0]
    row = jax.lax.broadcasted_iota(jnp.int32, (n, n), 0)
    col = jax.lax.broadcasted_iota(jnp.int32, (n, n), 1)
    diag = jnp.sum(jnp.where(row == col, logits, 0.0), keepdims=True)        # (1,1)

    m_row = jnp.max(logits, axis=1, keepdims=True)
    lse_row = m_row + jnp.log(jnp.sum(jnp.exp(logits - m_row), axis=1, keepdims=True))
    m_col = jnp.max(logits, axis=0, keepdims=True)
    lse_col = m_col + jnp.log(jnp.sum(jnp.exp(logits - m_col), axis=0, keepdims=True))
    sum_lse = jnp.sum(lse_row, keepdims=True) + jnp.sum(lse_col, keepdims=True)
    # (CE_image + CE_text) / 2, mean reduction over n rows.
    clip_total = 0.5 * (sum_lse - 2.0 * diag) * (1.0 / n)                     # (1,1)

    # ------------------------------------------------------------- alignment
    x = x_ref[...].astype(jnp.float32)                     # (P, DX) reference
    y = y_ref[...].astype(jnp.float32)                     # (P, DY) model feats
    inv_p = 1.0 / x.shape[0]
    xn = x * jax.lax.rsqrt(jnp.sum(x * x, axis=-1, keepdims=True) + _EPS)
    yn = y * jax.lax.rsqrt(jnp.sum(y * y, axis=-1, keepdims=True) + _EPS)

    # Single Gram matmul. Fold the row-block sign and the 1/P scale into the LHS
    # columns (cheap (P,D) scale passes) so V = z_lhs^T z directly:
    #   V = (1/P) [[Vx^T Vx, Vx^T Vy], [-Vy^T Vx, -Vy^T Vy]]
    z = jnp.concatenate([xn, yn], axis=-1)                         # (P, M)
    z_lhs = jnp.concatenate([xn * inv_p, yn * (-inv_p)], axis=-1)  # (P, M)
    v = jax.lax.dot_general(
        z_lhs, z, (((0,), (0,)), ((), ())), preferred_element_type=jnp.float32)
    v_scr[...] = v                                          # f32, reused at the end
    base_scr[...] = _frob_normalize(v).astype(base_scr.dtype)   # bf16 squaring base

    br = br0_ref[...].astype(jnp.float32)                   # (1, M) right carry
    bl = bl0_ref[...].astype(jnp.float32)                   # (1, M) left  carry

    # Binary exponentiation of V; every selected power is applied directly to the
    # vector carries (the base_k = c_k * V^(2^k) commute), so no W accumulator and
    # no (M,M) f32 scratch for it.  n normalized power iterations == direction of
    # V^n b0, so this matches power_method(..., num_iterations=n) semantics.
    exp = int(num_iters)
    sq_since_norm = 0
    while exp > 0:                       # static Python unroll (~9 matmuls @1000)
        if exp & 1:
            base = base_scr[...]                                     # bf16 (M, M)
            # right eigvec of V:  col V^(2^k) @ b  ==  row  b @ base^T
            br_new = jax.lax.dot_general(
                br.astype(base.dtype), base, (((1,), (1,)), ((), ())),
                preferred_element_type=jnp.float32)
            # left eigvec (power method on V^T):  row  b @ base
            bl_new = jax.lax.dot_general(
                bl.astype(base.dtype), base, (((1,), (0,)), ((), ())),
                preferred_element_type=jnp.float32)
            br = br_new * jax.lax.rsqrt(jnp.sum(br_new * br_new, keepdims=True) + _EPS)
            bl = bl_new * jax.lax.rsqrt(jnp.sum(bl_new * bl_new, keepdims=True) + _EPS)
        exp >>= 1
        if exp > 0:
            sq = jax.lax.dot_general(                  # bf16 x bf16 -> f32 accumulate
                base_scr[...], base_scr[...], (((1,), (0,)), ((), ())),
                preferred_element_type=jnp.float32)
            sq_since_norm += 1
            if sq_since_norm >= 2:       # ||A||_F <= 1 always; renorm every 2nd sq
                sq = _frob_normalize(sq)
                sq_since_norm = 0
            base_scr[...] = sq.astype(base_scr.dtype)

    br_ref[...] = br.astype(br_ref.dtype)
    bl_ref[...] = bl.astype(bl_ref.dtype)

    # align_loss = | l^T V r / (l^T r) |   (V read back in full f32 precision)
    lV = jax.lax.dot_general(
        bl, v_scr[...], (((1,), (0,)), ((), ())), preferred_element_type=jnp.float32)
    num = jnp.sum(lV * br, keepdims=True)                    # (1,1)
    den = jnp.sum(bl * br, keepdims=True)                    # (1,1)
    # NOTE: den ~ 0 if left/right dominant eigvecs are near-orthogonal; the
    # reference PyTorch code has the same caveat.
    align = jnp.abs(num * pl.reciprocal(den, approx=True))   # (1,1)

    # Pack both scalar losses into one lane-dense (1, 128) row (single unmasked
    # store, no 1-lane output DMAs): lane0 = clip total, lane1 = align loss.
    lane = jax.lax.broadcasted_iota(jnp.int32, (1, 128), 1)
    scalars_ref[...] = (jnp.where(lane == 0, clip_total, 0.0)
                        + jnp.where(lane == 1, align, 0.0)).astype(scalars_ref.dtype)


def fused_alignment_clip_losses(image_features, text_features, logit_scale,
                                ref_x, model_y, b_r0, b_l0, *, num_iters):
    n, d = image_features.shape
    p, dx = ref_x.shape
    _, dy = model_y.shape
    m = dx + dy
    scale = jnp.asarray(logit_scale, jnp.float32).reshape((1,))
    vspec = pl.BlockSpec(memory_space=pltpu.MemorySpace.VMEM)

    # Rough cost / VMEM budgeting (matters at production M ~ 1.5-2K, not the demo).
    num_iters = int(num_iters)
    n_sq = max(num_iters.bit_length() - 1, 0)
    n_apply = bin(num_iters).count("1")
    flops = (2 * n * n * d                  # CLIP logits
             + 2 * p * m * m                # Gram (V build)
             + 2 * n_sq * m * m * m         # repeated squaring
             + 4 * n_apply * m * m          # vector applications (br & bl)
             + 2 * m * m)                   # final bl @ V
    in_bytes = sum(int(a.size) * a.dtype.itemsize for a in
                   (image_features, text_features, ref_x, model_y, b_r0, b_l0)) + 4
    out_bytes = (128 + 2 * m) * 4
    scratch_bytes = m * m * 4 + m * m * 2   # V (f32) + squaring base (bf16)
    vmem_limit = int(min(64 << 20,          # stay within v7x physical VMEM
                         max(32 << 20, 2 * (scratch_bytes + in_bytes + out_bytes))))

    scalars, b_r, b_l = pl.pallas_call(
        functools.partial(_fused_loss_kernel, num_iters=num_iters),
        out_shape=(
            jax.ShapeDtypeStruct((1, 128), jnp.float32),   # [clip, align] packed row
            jax.ShapeDtypeStruct((1, m), jnp.float32),     # right eigvec
            jax.ShapeDtypeStruct((1, m), jnp.float32),     # left  eigvec
        ),
        # No grid: single invocation, whole arrays resident in VMEM/SMEM.
        in_specs=[
            pl.BlockSpec(memory_space=pltpu.MemorySpace.SMEM),   # logit_scale
            vspec, vspec,                                        # img / txt feats
            vspec, vspec,                                        # ref_x / model_y
            vspec, vspec,                                        # b_r0 / b_l0
        ],
        out_specs=(vspec, vspec, vspec),
        scratch_shapes=[
            pltpu.VMEM((m, m), jnp.float32),     # V (full precision, reused at end)
            pltpu.VMEM((m, m), jnp.bfloat16),    # squaring base V^(2^k)
        ],
        compiler_params=pltpu.CompilerParams(vmem_limit_bytes=vmem_limit),
        cost_estimate=pl.CostEstimate(flops=int(flops),
                                      transcendentals=int(2 * n * n + 16),
                                      bytes_accessed=int(in_bytes + out_bytes)),
    )(scale, image_features, text_features, ref_x, model_y, b_r0, b_l0)
    return scalars[0, 0], scalars[0, 1], b_r, b_l


def clip_contrastive_loss(image_features, text_features, logit_scale):
    # Used only when compute_align_loss=False.  The CLIP loss alone is an (N,D)
    # matmul + (N,N) softmax — launch overhead would dominate a dedicated Pallas
    # kernel, so let XLA fuse it directly.
    logits = logit_scale * image_features @ text_features.T
    lse_row = jax.nn.logsumexp(logits, axis=1)
    lse_col = jax.nn.logsumexp(logits, axis=0)
    diag = jnp.diagonal(logits)
    return 0.5 * (jnp.mean(lse_row - diag) + jnp.mean(lse_col - diag))


# ---------------------------------------------------------------------------
# Module wrapper (mirrors AlignmentClipLoss.forward, world_size == 1)
# ---------------------------------------------------------------------------
class AlignmentClipLoss:
    def __init__(self, clip_loss_weight, custom_loss_weight):
        # NOTE: as in the reference, these weights are stored but forward() uses
        # the hardcoded 0.5 factors ("if True or self.clip_loss_weight > 0").
        self.clip_loss_weight = clip_loss_weight
        self.custom_loss_weight = custom_loss_weight
        self.right_eigvec = None   # cached (1, M) eigenvector state
        self.left_eigvec = None

    def forward(self, image_features, text_features, logit_scale,
                ref_features, model_image_features, rng_key,
                output_dict=False, compute_align_loss=True):
        if compute_align_loss:
            m = ref_features.shape[1] + model_image_features.shape[1]
            if self.right_eigvec is None or self.left_eigvec is None:
                # power_method(b=None): uniform random start, 1000 iterations
                kr, kl = jax.random.split(rng_key)
                b_r0 = jax.random.uniform(kr, (1, m), jnp.float32)
                b_l0 = jax.random.uniform(kl, (1, m), jnp.float32)
                num_iters = POWER_ITERS_COLD
            else:
                # power_method(b=cached): warm start, 20 iterations
                b_r0, b_l0 = self.right_eigvec, self.left_eigvec
                num_iters = POWER_ITERS_WARM

            clip_total, align, b_r, b_l = fused_alignment_clip_losses(
                image_features, text_features, logit_scale,
                ref_features, model_image_features, b_r0, b_l0,
                num_iters=num_iters)
            # eigenvector caching across calls
            self.right_eigvec, self.left_eigvec = b_r, b_l

            clip_loss = 0.5 * clip_total          # 0.5 * ClipLoss.forward(...)
            custom_loss = 0.5 * align             # 1 * align_loss, then * 0.5
        else:
            clip_loss = 0.5 * clip_contrastive_loss(
                image_features, text_features, logit_scale)
            custom_loss = jnp.zeros((), dtype=image_features.dtype)

        if output_dict:
            return {'contrastive_loss': clip_loss, 'custom_loss': custom_loss}
        return clip_loss, custom_loss


# ---------------------------------------------------------------------------
if __name__ == "__main__":
    key = jax.random.PRNGKey(0)
    k1, k2, k3, k4, k5 = jax.random.split(key, 5)

    # CLIP-style unit-norm embeddings (f32).
    image_features = jax.random.normal(k1, (N, D), jnp.float32)
    text_features = jax.random.normal(k2, (N, D), jnp.float32)
    image_features = image_features / jnp.linalg.norm(image_features, axis=-1, keepdims=True)
    text_features = text_features / jnp.linalg.norm(text_features, axis=-1, keepdims=True)
    logit_scale = jnp.float32(1.0 / 0.07)

    # Synthetic stand-ins for the DINO .npz reference features and the model's
    # image features on the sampled pairs (see TODO(synk) at top).  Passed in
    # native bf16 (no wrapper-side f32 pre-cast — cast happens in-kernel).
    ref_features = jax.random.normal(k3, (P, DX), jnp.float32).astype(jnp.bfloat16)
    model_image_features = jax.random.normal(k4, (P, DY), jnp.float32).astype(jnp.bfloat16)

    loss_mod = AlignmentClipLoss(clip_loss_weight=1.0, custom_loss_weight=1.0)
    clip_loss, custom_loss = loss_mod.forward(
        image_features, text_features, logit_scale,
        ref_features, model_image_features, k5,
        output_dict=False, compute_align_loss=True)

    jax.block_until_ready((clip_loss, custom_loss,
                           loss_mod.right_eigvec, loss_mod.left_eigvec))

    # Sanity checks: finiteness + CLIP branch against a pure-JAX reference.
    clip_ref = 0.5 * clip_contrastive_loss(image_features, text_features, logit_scale)
    assert jnp.isfinite(clip_loss) and jnp.isfinite(custom_loss)
    assert jnp.all(jnp.isfinite(loss_mod.right_eigvec))
    assert jnp.all(jnp.isfinite(loss_mod.left_eigvec))
    assert jnp.abs(clip_loss - clip_ref) < 5e-3 * jnp.maximum(1.0, jnp.abs(clip_ref))
    print("KERNEL_OK")
</pallas_src>

<mosaic_0001>
module attributes {stable_mosaic.version = 11 : i64} {
  func.func @_fused_loss_kernel(%arg0: memref<1xf32, #tpu.memory_space<smem>>, %arg1: memref<8x32xf32, #tpu.memory_space<vmem>>, %arg2: memref<8x32xf32, #tpu.memory_space<vmem>>, %arg3: memref<16x128xbf16, #tpu.memory_space<vmem>>, %arg4: memref<16x128xbf16, #tpu.memory_space<vmem>>, %arg5: memref<1x256xf32, #tpu.memory_space<vmem>>, %arg6: memref<1x256xf32, #tpu.memory_space<vmem>>, %arg7: memref<1x128xf32, #tpu.memory_space<vmem>>, %arg8: memref<1x256xf32, #tpu.memory_space<vmem>>, %arg9: memref<1x256xf32, #tpu.memory_space<vmem>>, %arg10: memref<256x256xf32, #tpu.memory_space<vmem>>, %arg11: memref<256x256xbf16, #tpu.memory_space<vmem>>) attributes {dimension_semantics = [], scalar_prefetch = 0 : i64, scratch_operands = 2 : i64, tpu.core_type = #tpu.core_type<tc>} {
    %c0 = arith.constant 0 : index
    %0 = memref.load %arg0[%c0] : memref<1xf32, #tpu.memory_space<smem>>
    %c0_0 = arith.constant 0 : index
    %c0_1 = arith.constant 0 : index
    %1 = vector.load %arg1[%c0_0, %c0_1] : memref<8x32xf32, #tpu.memory_space<vmem>>, vector<8x32xf32>
    %c0_2 = arith.constant 0 : index
    %c0_3 = arith.constant 0 : index
    %2 = vector.load %arg2[%c0_2, %c0_3] : memref<8x32xf32, #tpu.memory_space<vmem>>, vector<8x32xf32>
    %cst = arith.constant dense<0.000000e+00> : vector<8x8xf32>
    %3 = tpu.matmul %1, %2, %cst {dimension_numbers = #tpu.dot_dimension_numbers<[1], [1], [0], [0], [0, 0, 1, 0], [], []>} : vector<8x32xf32>, vector<8x32xf32>, vector<8x8xf32> -> vector<8x8xf32>
    %4 = vector.broadcast %0 : f32 to vector<8x8xf32>
    %5 = arith.mulf %4, %3 : vector<8x8xf32>
    %6 = tpu.iota {dimensions = array<i32: 0>} : vector<8x8xi32>
    %7 = tpu.iota {dimensions = array<i32: 1>} : vector<8x8xi32>
    %8 = arith.cmpi eq, %6, %7 : vector<8x8xi32>
    %cst_4 = arith.constant 0.000000e+00 : f32
    %9 = vector.broadcast %cst_4 : f32 to vector<8x8xf32>
    %10 = arith.select %8, %5, %9 : vector<8x8xi1>, vector<8x8xf32>
    %11 = vector.shape_cast %10 : vector<8x8xf32> to vector<1x8x8xf32>
    %cst_5 = arith.constant dense<0.000000e+00> : vector<1xf32>
    %12 = vector.multi_reduction <add>, %11, %cst_5 [1, 2] : vector<1x8x8xf32> to vector<1xf32>
    %13 = vector.shape_cast %12 : vector<1xf32> to vector<1x1x1xf32>
    %14 = vector.extract %13[0, 0, 0] : f32 from vector<1x1x1xf32>
    %15 = vector.broadcast %14 : f32 to vector<1x1xf32>
    %cst_6 = arith.constant dense<0xFF800000> : vector<8xf32>
    %16 = vector.multi_reduction <maximumf>, %5, %cst_6 [1] : vector<8x8xf32> to vector<8xf32>
    %17 = vector.shape_cast %16 : vector<8xf32> to vector<8x1xf32>
    %18 = vector.broadcast %17 : vector<8x1xf32> to vector<8x8xf32>
    %19 = arith.subf %5, %18 : vector<8x8xf32>
    %20 = math.exp %19 : vector<8x8xf32>
    %cst_7 = arith.constant dense<0.000000e+00> : vector<8xf32>
    %21 = vector.multi_reduction <add>, %20, %cst_7 [1] : vector<8x8xf32> to vector<8xf32>
    %22 = vector.shape_cast %21 : vector<8xf32> to vector<8x1xf32>
    %23 = math.log %22 : vector<8x1xf32>
    %24 = arith.addf %17, %23 : vector<8x1xf32>
    %cst_8 = arith.constant dense<0xFF800000> : vector<8xf32>
    %25 = vector.multi_reduction <maximumf>, %5, %cst_8 [0] : vector<8x8xf32> to vector<8xf32>
    %26 = vector.shape_cast %25 : vector<8xf32> to vector<1x8xf32>
    %27 = vector.broadcast %26 : vector<1x8xf32> to vector<8x8xf32>
    %28 = arith.subf %5, %27 : vector<8x8xf32>
    %29 = math.exp %28 : vector<8x8xf32>
    %cst_9 = arith.constant dense<0.000000e+00> : vector<8xf32>
    %30 = vector.multi_reduction <add>, %29, %cst_9 [0] : vector<8x8xf32> to vector<8xf32>
    %31 = vector.shape_cast %30 : vector<8xf32> to vector<1x8xf32>
    %32 = math.log %31 : vector<1x8xf32>
    %33 = arith.addf %26, %32 : vector<1x8xf32>
    %34 = vector.shape_cast %24 : vector<8x1xf32> to vector<1x8x1xf32>
    %cst_10 = arith.constant dense<0.000000e+00> : vector<1xf32>
    %35 = vector.multi_reduction <add>, %34, %cst_10 [1, 2] : vector<1x8x1xf32> to vector<1xf32>
    %36 = vector.shape_cast %35 : vector<1xf32> to vector<1x1x1xf32>
    %37 = vector.extract %36[0, 0, 0] : f32 from vector<1x1x1xf32>
    %38 = vector.broadcast %37 : f32 to vector<1x1xf32>
    %39 = vector.shape_cast %33 : vector<1x8xf32> to vector<1x1x8xf32>
    %cst_11 = arith.constant dense<0.000000e+00> : vector<1xf32>
    %40 = vector.multi_reduction <add>, %39, %cst_11 [1, 2] : vector<1x1x8xf32> to vector<1xf32>
    %41 = vector.shape_cast %40 : vector<1xf32> to vector<1x1x1xf32>
    %42 = vector.extract %41[0, 0, 0] : f32 from vector<1x1x1xf32>
    %43 = vector.broadcast %42 : f32 to vector<1x1xf32>
    %44 = arith.addf %38, %43 : vector<1x1xf32>
    %cst_12 = arith.constant 2.000000e+00 : f32
    %45 = vector.broadcast %cst_12 : f32 to vector<1x1xf32>
    %46 = arith.mulf %45, %15 : vector<1x1xf32>
    %47 = arith.subf %44, %46 : vector<1x1xf32>
    %cst_13 = arith.constant 5.000000e-01 : f32
    %48 = vector.broadcast %cst_13 : f32 to vector<1x1xf32>
    %49 = arith.mulf %48, %47 : vector<1x1xf32>
    %cst_14 = arith.constant 1.250000e-01 : f32
    %50 = vector.broadcast %cst_14 : f32 to vector<1x1xf32>
    %51 = arith.mulf %49, %50 : vector<1x1xf32>
    %c0_15 = arith.constant 0 : index
    %c0_16 = arith.constant 0 : index
    %52 = vector.load %arg3[%c0_15, %c0_16] : memref<16x128xbf16, #tpu.memory_space<vmem>>, vector<16x128xbf16>
    %53 = arith.extf %52 : vector<16x128xbf16> to vector<16x128xf32>
    %c0_17 = arith.constant 0 : index
    %c0_18 = arith.constant 0 : index
    %54 = vector.load %arg4[%c0_17, %c0_18] : memref<16x128xbf16, #tpu.memory_space<vmem>>, vector<16x128xbf16>
    %55 = arith.extf %54 : vector<16x128xbf16> to vector<16x128xf32>
    %56 = arith.mulf %53, %53 : vector<16x128xf32>
    %cst_19 = arith.constant dense<0.000000e+00> : vector<16xf32>
    %57 = vector.multi_reduction <add>, %56, %cst_19 [1] : vector<16x128xf32> to vector<16xf32>
    %58 = vector.shape_cast %57 : vector<16xf32> to vector<16x1xf32>
    %cst_20 = arith.constant 1.000000e-30 : f32
    %59 = vector.broadcast %cst_20 : f32 to vector<16x1xf32>
    %60 = arith.addf %58, %59 : vector<16x1xf32>
    %61 = math.rsqrt %60 : vector<16x1xf32>
    %62 = vector.broadcast %61 : vector<16x1xf32> to vector<16x128xf32>
    %63 = arith.mulf %53, %62 : vector<16x128xf32>
    %64 = arith.mulf %55, %55 : vector<16x128xf32>
    %cst_21 = arith.constant dense<0.000000e+00> : vector<16xf32>
    %65 = vector.multi_reduction <add>, %64, %cst_21 [1] : vector<16x128xf32> to vector<16xf32>
    %66 = vector.shape_cast %65 : vector<16xf32> to vector<16x1xf32>
    %cst_22 = arith.constant 1.000000e-30 : f32
    %67 = vector.broadcast %cst_22 : f32 to vector<16x1xf32>
    %68 = arith.addf %66, %67 : vector<16x1xf32>
    %69 = math.rsqrt %68 : vector<16x1xf32>
    %70 = vector.broadcast %69 : vector<16x1xf32> to vector<16x128xf32>
    %71 = arith.mulf %55, %70 : vector<16x128xf32>
    %72 = tpu.concatenate %63, %71 in 1 : vector<16x128xf32>, vector<16x128xf32> -> vector<16x256xf32>
    %cst_23 = arith.constant 6.250000e-02 : f32
    %73 = vector.broadcast %cst_23 : f32 to vector<16x128xf32>
    %74 = arith.mulf %63, %73 : vector<16x128xf32>
    %cst_24 = arith.constant -6.250000e-02 : f32
    %75 = vector.broadcast %cst_24 : f32 to vector<16x128xf32>
    %76 = arith.mulf %71, %75 : vector<16x128xf32>
    %77 = tpu.concatenate %74, %76 in 1 : vector<16x128xf32>, vector<16x128xf32> -> vector<16x256xf32>
    %cst_25 = arith.constant dense<0.000000e+00> : vector<256x256xf32>
    %78 = tpu.matmul %77, %72, %cst_25 {dimension_numbers = #tpu.dot_dimension_numbers<[0], [0], [1], [1], [0, 1, 1, 1], [], []>} : vector<16x256xf32>, vector<16x256xf32>, vector<256x256xf32> -> vector<256x256xf32>
    %c0_26 = arith.constant 0 : index
    %c0_27 = arith.constant 0 : index
    %79 = vector.load %arg10[%c0_26, %c0_27] : memref<256x256xf32, #tpu.memory_space<vmem>>, vector<256x256xf32>
    tpu.vector_store %arg10[%c0_26, %c0_27], %78 {strides = array<i32>} : memref<256x256xf32, #tpu.memory_space<vmem>>, vector<256x256xf32>,
    %80 = arith.mulf %78, %78 : vector<256x256xf32>
    %81 = vector.shape_cast %80 : vector<256x256xf32> to vector<1x256x256xf32>
    %cst_28 = arith.constant dense<0.000000e+00> : vector<1xf32>
    %82 = vector.multi_reduction <add>, %81, %cst_28 [1, 2] : vector<1x256x256xf32> to vector<1xf32>
    %83 = vector.shape_cast %82 : vector<1xf32> to vector<1x1x1xf32>
    %84 = vector.extract %83[0, 0, 0] : f32 from vector<1x1x1xf32>
    %85 = vector.broadcast %84 : f32 to vector<1x1xf32>
    %cst_29 = arith.constant 1.000000e-30 : f32
    %86 = vector.broadcast %cst_29 : f32 to vector<1x1xf32>
    %87 = arith.addf %85, %86 : vector<1x1xf32>
    %88 = math.rsqrt %87 : vector<1x1xf32>
    %89 = vector.broadcast %88 : vector<1x1xf32> to vector<256x256xf32>
    %90 = arith.mulf %78, %89 : vector<256x256xf32>
    %91 = arith.truncf %90 : vector<256x256xf32> to vector<256x256xbf16>
    %c0_30 = arith.constant 0 : index
    %c0_31 = arith.constant 0 : index
    %92 = vector.load %arg11[%c0_30, %c0_31] : memref<256x256xbf16, #tpu.memory_space<vmem>>, vector<256x256xbf16>
    tpu.vector_store %arg11[%c0_30, %c0_31], %91 {strides = array<i32>} : memref<256x256xbf16, #tpu.memory_space<vmem>>, vector<256x256xbf16>,
    %c0_32 = arith.constant 0 : index
    %c0_33 = arith.constant 0 : index
    %93 = vector.load %arg5[%c0_32, %c0_33] : memref<1x256xf32, #tpu.memory_space<vmem>>, vector<1x256xf32>
    %c0_34 = arith.constant 0 : index
    %c0_35 = arith.constant 0 : index
    %94 = vector.load %arg6[%c0_34, %c0_35] : memref<1x256xf32, #tpu.memory_space<vmem>>, vector<1x256xf32>
    %c0_36 = arith.constant 0 : index
    %c0_37 = arith.constant 0 : index
    %95 = vector.load %arg11[%c0_36, %c0_37] : memref<256x256xbf16, #tpu.memory_space<vmem>>, vector<256x256xbf16>
    %c0_38 = arith.constant 0 : index
    %c0_39 = arith.constant 0 : index
    %96 = vector.load %arg11[%c0_38, %c0_39] : memref<256x256xbf16, #tpu.memory_space<vmem>>, vector<256x256xbf16>
    %cst_40 = arith.constant dense<0.000000e+00> : vector<256x256xf32>
    %97 = tpu.matmul %95, %96, %cst_40 {dimension_numbers = #tpu.dot_dimension_numbers<[1], [0], [0], [1], [0, 0, 1, 1], [], []>} : vector<256x256xbf16>, vector<256x256xbf16>, vector<256x256xf32> -> vector<256x256xf32>
    %98 = arith.truncf %97 : vector<256x256xf32> to vector<256x256xbf16>
    %c0_41 = arith.constant 0 : index
    %c0_42 = arith.constant 0 : index
    %99 = vector.load %arg11[%c0_41, %c0_42] : memref<256x256xbf16, #tpu.memory_space<vmem>>, vector<256x256xbf16>
    tpu.vector_store %arg11[%c0_41, %c0_42], %98 {strides = array<i32>} : memref<256x256xbf16, #tpu.memory_space<vmem>>, vector<256x256xbf16>,
    %c0_43 = arith.constant 0 : index
    %c0_44 = arith.constant 0 : index
    %100 = vector.load %arg11[%c0_43, %c0_44] : memref<256x256xbf16, #tpu.memory_space<vmem>>, vector<256x256xbf16>
    %c0_45 = arith.constant 0 : index
    %c0_46 = arith.constant 0 : index
    %101 = vector.load %arg11[%c0_45, %c0_46] : memref<256x256xbf16, #tpu.memory_space<vmem>>, vector<256x256xbf16>
    %cst_47 = arith.constant dense<0.000000e+00> : vector<256x256xf32>
    %102 = tpu.matmul %100, %101, %cst_47 {dimension_numbers = #tpu.dot_dimension_numbers<[1], [0], [0], [1], [0, 0, 1, 1], [], []>} : vector<256x256xbf16>, vector<256x256xbf16>, vector<256x256xf32> -> vector<256x256xf32>
    %103 = arith.mulf %102, %102 : vector<256x256xf32>
    %104 = vector.shape_cast %103 : vector<256x256xf32> to vector<1x256x256xf32>
    %cst_48 = arith.constant dense<0.000000e+00> : vector<1xf32>
    %105 = vector.multi_reduction <add>, %104, %cst_48 [1, 2] : vector<1x256x256xf32> to vector<1xf32>
    %106 = vector.shape_cast %105 : vector<1xf32> to vector<1x1x1xf32>
    %107 = vector.extract %106[0, 0, 0] : f32 from vector<1x1x1xf32>
    %108 = vector.broadcast %107 : f32 to vector<1x1xf32>
    %cst_49 = arith.constant 1.000000e-30 : f32
    %109 = vector.broadcast %cst_49 : f32 to vector<1x1xf32>
    %110 = arith.addf %108, %109 : vector<1x1xf32>
    %111 = math.rsqrt %110 : vector<1x1xf32>
    %112 = vector.broadcast %111 : vector<1x1xf32> to vector<256x256xf32>
    %113 = arith.mulf %102, %112 : vector<256x256xf32>
    %114 = arith.truncf %113 : vector<256x256xf32> to vector<256x256xbf16>
    %c0_50 = arith.constant 0 : index
    %c0_51 = arith.constant 0 : index
    %115 = vector.load %arg11[%c0_50, %c0_51] : memref<256x256xbf16, #tpu.memory_space<vmem>>, vector<256x256xbf16>
    tpu.vector_store %arg11[%c0_50, %c0_51], %114 {strides = array<i32>} : memref<256x256xbf16, #tpu.memory_space<vmem>>, vector<256x256xbf16>,
    %c0_52 = arith.constant 0 : index
    %c0_53 = arith.constant 0 : index
    %116 = vector.load %arg11[%c0_52, %c0_53] : memref<256x256xbf16, #tpu.memory_space<vmem>>, vector<256x256xbf16>
    %c0_54 = arith.constant 0 : index
    %c0_55 = arith.constant 0 : index
    %117 = vector.load %arg11[%c0_54, %c0_55] : memref<256x256xbf16, #tpu.memory_space<vmem>>, vector<256x256xbf16>
    %cst_56 = arith.constant dense<0.000000e+00> : vector<256x256xf32>
    %118 = tpu.matmul %116, %117, %cst_56 {dimension_numbers = #tpu.dot_dimension_numbers<[1], [0], [0], [1], [0, 0, 1, 1], [], []>} : vector<256x256xbf16>, vector<256x256xbf16>, vector<256x256xf32> -> vector<256x256xf32>
    %119 = arith.truncf %118 : vector<256x256xf32> to vector<256x256xbf16>
    %c0_57 = arith.constant 0 : index
    %c0_58 = arith.constant 0 : index
    %120 = vector.load %arg11[%c0_57, %c0_58] : memref<256x256xbf16, #tpu.memory_space<vmem>>, vector<256x256xbf16>
    tpu.vector_store %arg11[%c0_57, %c0_58], %119 {strides = array<i32>} : memref<256x256xbf16, #tpu.memory_space<vmem>>, vector<256x256xbf16>,
    %c0_59 = arith.constant 0 : index
    %c0_60 = arith.constant 0 : index
    %121 = vector.load %arg11[%c0_59, %c0_60] : memref<256x256xbf16, #tpu.memory_space<vmem>>, vector<256x256xbf16>
    %122 = arith.truncf %93 : vector<1x256xf32> to vector<1x256xbf16>
    %cst_61 = arith.constant dense<0.000000e+00> : vector<1x256xf32>
    %123 = tpu.matmul %122, %121, %cst_61 {dimension_numbers = #tpu.dot_dimension_numbers<[1], [1], [0], [0], [0, 0, 1, 0], [], []>} : vector<1x256xbf16>, vector<256x256xbf16>, vector<1x256xf32> -> vector<1x256xf32>
    %124 = arith.truncf %94 : vector<1x256xf32> to vector<1x256xbf16>
    %cst_62 = arith.constant dense<0.000000e+00> : vector<1x256xf32>
    %125 = tpu.matmul %124, %121, %cst_62 {dimension_numbers = #tpu.dot_dimension_numbers<[1], [0], [0], [1], [0, 0, 1, 1], [], []>} : vector<1x256xbf16>, vector<256x256xbf16>, vector<1x256xf32> -> vector<1x256xf32>
    %126 = arith.mulf %123, %123 : vector<1x256xf32>
    %127 = vector.shape_cast %126 : vector<1x256xf32> to vector<1x1x256xf32>
    %cst_63 = arith.constant dense<0.000000e+00> : vector<1xf32>
    %128 = vector.multi_reduction <add>, %127, %cst_63 [1, 2] : vector<1x1x256xf32> to vector<1xf32>
    %129 = vector.shape_cast %128 : vector<1xf32> to vector<1x1x1xf32>
    %130 = vector.extract %129[0, 0, 0] : f32 from vector<1x1x1xf32>
    %131 = vector.broadcast %130 : f32 to vector<1x1xf32>
    %cst_64 = arith.constant 1.000000e-30 : f32
    %132 = vector.broadcast %cst_64 : f32 to vector<1x1xf32>
    %133 = arith.addf %131, %132 : vector<1x1xf32>
    %134 = math.rsqrt %133 : vector<1x1xf32>
    %135 = vector.broadcast %134 : vector<1x1xf32> to vector<1x256xf32>
    %136 = arith.mulf %123, %135 : vector<1x256xf32>
    %137 = arith.mulf %125, %125 : vector<1x256xf32>
    %138 = vector.shape_cast %137 : vector<1x256xf32> to vector<1x1x256xf32>
    %cst_65 = arith.constant dense<0.000000e+00> : vector<1xf32>
    %139 = vector.multi_reduction <add>, %138, %cst_65 [1, 2] : vector<1x1x256xf32> to vector<1xf32>
    %140 = vector.shape_cast %139 : vector<1xf32> to vector<1x1x1xf32>
    %141 = vector.extract %140[0, 0, 0] : f32 from vector<1x1x1xf32>
    %142 = vector.broadcast %141 : f32 to vector<1x1xf32>
    %cst_66 = arith.constant 1.000000e-30 : f32
    %143 = vector.broadcast %cst_66 : f32 to vector<1x1xf32>
    %144 = arith.addf %142, %143 : vector<1x1xf32>
    %145 = math.rsqrt %144 : vector<1x1xf32>
    %146 = vector.broadcast %145 : vector<1x1xf32> to vector<1x256xf32>
    %147 = arith.mulf %125, %146 : vector<1x256xf32>
    %c0_67 = arith.constant 0 : index
    %c0_68 = arith.constant 0 : index
    %148 = vector.load %arg11[%c0_67, %c0_68] : memref<256x256xbf16, #tpu.memory_space<vmem>>, vector<256x256xbf16>
    %c0_69 = arith.constant 0 : index
    %c0_70 = arith.constant 0 : index
    %149 = vector.load %arg11[%c0_69, %c0_70] : memref<256x256xbf16, #tpu.memory_space<vmem>>, vector<256x256xbf16>
    %cst_71 = arith.constant dense<0.000000e+00> : vector<256x256xf32>
    %150 = tpu.matmul %148, %149, %cst_71 {dimension_numbers = #tpu.dot_dimension_numbers<[1], [0], [0], [1], [0, 0, 1, 1], [], []>} : vector<256x256xbf16>, vector<256x256xbf16>, vector<256x256xf32> -> vector<256x256xf32>
    %151 = arith.mulf %150, %150 : vector<256x256xf32>
    %152 = vector.shape_cast %151 : vector<256x256xf32> to vector<1x256x256xf32>
    %cst_72 = arith.constant dense<0.000000e+00> : vector<1xf32>
    %153 = vector.multi_reduction <add>, %152, %cst_72 [1, 2] : vector<1x256x256xf32> to vector<1xf32>
    %154 = vector.shape_cast %153 : vector<1xf32> to vector<1x1x1xf32>
    %155 = vector.extract %154[0, 0, 0] : f32 from vector<1x1x1xf32>
    %156 = vector.broadcast %155 : f32 to vector<1x1xf32>
    %cst_73 = arith.constant 1.000000e-30 : f32
    %157 = vector.broadcast %cst_73 : f32 to vector<1x1xf32>
    %158 = arith.addf %156, %157 : vector<1x1xf32>
    %159 = math.rsqrt %158 : vector<1x1xf32>
    %160 = vector.broadcast %159 : vector<1x1xf32> to vector<256x256xf32>
    %161 = arith.mulf %150, %160 : vector<256x256xf32>
    %162 = arith.truncf %161 : vector<256x256xf32> to vector<256x256xbf16>
    %c0_74 = arith.constant 0 : index
    %c0_75 = arith.constant 0 : index
    %163 = vector.load %arg11[%c0_74, %c0_75] : memref<256x256xbf16, #tpu.memory_space<vmem>>, vector<256x256xbf16>
    tpu.vector_store %arg11[%c0_74, %c0_75], %162 {strides = array<i32>} : memref<256x256xbf16, #tpu.memory_space<vmem>>, vector<256x256xbf16>,
    %c0_76 = arith.constant 0 : index
    %c0_77 = arith.constant 0 : index
    %164 = vector.load %arg11[%c0_76, %c0_77] : memref<256x256xbf16, #tpu.memory_space<vmem>>, vector<256x256xbf16>
    %c0_78 = arith.constant 0 : index
    %c0_79 = arith.constant 0 : index
    %165 = vector.load %arg11[%c0_78, %c0_79] : memref<256x256xbf16, #tpu.memory_space<vmem>>, vector<256x256xbf16>
    %cst_80 = arith.constant dense<0.000000e+00> : vector<256x256xf32>
    %166 = tpu.matmul %164, %165, %cst_80 {dimension_numbers = #tpu.dot_dimension_numbers<[1], [0], [0], [1], [0, 0, 1, 1], [], []>} : vector<256x256xbf16>, vector<256x256xbf16>, vector<256x256xf32> -> vector<256x256xf32>
    %167 = arith.truncf %166 : vector<256x256xf32> to vector<256x256xbf16>
    %c0_81 = arith.constant 0 : index
    %c0_82 = arith.constant 0 : index
    %168 = vector.load %arg11[%c0_81, %c0_82] : memref<256x256xbf16, #tpu.memory_space<vmem>>, vector<256x256xbf16>
    tpu.vector_store %arg11[%c0_81, %c0_82], %167 {strides = array<i32>} : memref<256x256xbf16, #tpu.memory_space<vmem>>, vector<256x256xbf16>,
    %c0_83 = arith.constant 0 : index
    %c0_84 = arith.constant 0 : index
    %169 = vector.load %arg11[%c0_83, %c0_84] : memref<256x256xbf16, #tpu.memory_space<vmem>>, vector<256x256xbf16>
    %170 = arith.truncf %136 : vector<1x256xf32> to vector<1x256xbf16>
    %cst_85 = arith.constant dense<0.000000e+00> : vector<1x256xf32>
    %171 = tpu.matmul %170, %169, %cst_85 {dimension_numbers = #tpu.dot_dimension_numbers<[1], [1], [0], [0], [0, 0, 1, 0], [], []>} : vector<1x256xbf16>, vector<256x256xbf16>, vector<1x256xf32> -> vector<1x256xf32>
    %172 = arith.truncf %147 : vector<1x256xf32> to vector<1x256xbf16>
    %cst_86 = arith.constant dense<0.000000e+00> : vector<1x256xf32>
    %173 = tpu.matmul %172, %169, %cst_86 {dimension_numbers = #tpu.dot_dimension_numbers<[1], [0], [0], [1], [0, 0, 1, 1], [], []>} : vector<1x256xbf16>, vector<256x256xbf16>, vector<1x256xf32> -> vector<1x256xf32>
    %174 = arith.mulf %171, %171 : vector<1x256xf32>
    %175 = vector.shape_cast %174 : vector<1x256xf32> to vector<1x1x256xf32>
    %cst_87 = arith.constant dense<0.000000e+00> : vector<1xf32>
    %176 = vector.multi_reduction <add>, %175, %cst_87 [1, 2] : vector<1x1x256xf32> to vector<1xf32>
    %177 = vector.shape_cast %176 : vector<1xf32> to vector<1x1x1xf32>
    %178 = vector.extract %177[0, 0, 0] : f32 from vector<1x1x1xf32>
    %179 = vector.broadcast %178 : f32 to vector<1x1xf32>
    %cst_88 = arith.constant 1.000000e-30 : f32
    %180 = vector.broadcast %cst_88 : f32 to vector<1x1xf32>
    %181 = arith.addf %179, %180 : vector<1x1xf32>
    %182 = math.rsqrt %181 : vector<1x1xf32>
    %183 = vector.broadcast %182 : vector<1x1xf32> to vector<1x256xf32>
    %184 = arith.mulf %171, %183 : vector<1x256xf32>
    %185 = arith.mulf %173, %173 : vector<1x256xf32>
    %186 = vector.shape_cast %185 : vector<1x256xf32> to vector<1x1x256xf32>
    %cst_89 = arith.constant dense<0.000000e+00> : vector<1xf32>
    %187 = vector.multi_reduction <add>, %186, %cst_89 [1, 2] : vector<1x1x256xf32> to vector<1xf32>
    %188 = vector.shape_cast %187 : vector<1xf32> to vector<1x1x1xf32>
    %189 = vector.extract %188[0, 0, 0] : f32 from vector<1x1x1xf32>
    %190 = vector.broadcast %189 : f32 to vector<1x1xf32>
    %cst_90 = arith.constant 1.000000e-30 : f32
    %191 = vector.broadcast %cst_90 : f32 to vector<1x1xf32>
    %192 = arith.addf %190, %191 : vector<1x1xf32>
    %193 = math.rsqrt %192 : vector<1x1xf32>
    %194 = vector.broadcast %193 : vector<1x1xf32> to vector<1x256xf32>
    %195 = arith.mulf %173, %194 : vector<1x256xf32>
    %c0_91 = arith.constant 0 : index
    %c0_92 = arith.constant 0 : index
    %196 = vector.load %arg11[%c0_91, %c0_92] : memref<256x256xbf16, #tpu.memory_space<vmem>>, vector<256x256xbf16>
    %c0_93 = arith.constant 0 : index
    %c0_94 = arith.constant 0 : index
    %197 = vector.load %arg11[%c0_93, %c0_94] : memref<256x256xbf16, #tpu.memory_space<vmem>>, vector<256x256xbf16>
    %cst_95 = arith.constant dense<0.000000e+00> : vector<256x256xf32>
    %198 = tpu.matmul %196, %197, %cst_95 {dimension_numbers = #tpu.dot_dimension_numbers<[1], [0], [0], [1], [0, 0, 1, 1], [], []>} : vector<256x256xbf16>, vector<256x256xbf16>, vector<256x256xf32> -> vector<256x256xf32>
    %199 = arith.mulf %198, %198 : vector<256x256xf32>
    %200 = vector.shape_cast %199 : vector<256x256xf32> to vector<1x256x256xf32>
    %cst_96 = arith.constant dense<0.000000e+00> : vector<1xf32>
    %201 = vector.multi_reduction <add>, %200, %cst_96 [1, 2] : vector<1x256x256xf32> to vector<1xf32>
    %202 = vector.shape_cast %201 : vector<1xf32> to vector<1x1x1xf32>
    %203 = vector.extract %202[0, 0, 0] : f32 from vector<1x1x1xf32>
    %204 = vector.broadcast %203 : f32 to vector<1x1xf32>
    %cst_97 = arith.constant 1.000000e-30 : f32
    %205 = vector.broadcast %cst_97 : f32 to vector<1x1xf32>
    %206 = arith.addf %204, %205 : vector<1x1xf32>
    %207 = math.rsqrt %206 : vector<1x1xf32>
    %208 = vector.broadcast %207 : vector<1x1xf32> to vector<256x256xf32>
    %209 = arith.mulf %198, %208 : vector<256x256xf32>
    %210 = arith.truncf %209 : vector<256x256xf32> to vector<256x256xbf16>
    %c0_98 = arith.constant 0 : index
    %c0_99 = arith.constant 0 : index
    %211 = vector.load %arg11[%c0_98, %c0_99] : memref<256x256xbf16, #tpu.memory_space<vmem>>, vector<256x256xbf16>
    tpu.vector_store %arg11[%c0_98, %c0_99], %210 {strides = array<i32>} : memref<256x256xbf16, #tpu.memory_space<vmem>>, vector<256x256xbf16>,
    %c0_100 = arith.constant 0 : index
    %c0_101 = arith.constant 0 : index
    %212 = vector.load %arg11[%c0_100, %c0_101] : memref<256x256xbf16, #tpu.memory_space<vmem>>, vector<256x256xbf16>
    %213 = arith.truncf %184 : vector<1x256xf32> to vector<1x256xbf16>
    %cst_102 = arith.constant dense<0.000000e+00> : vector<1x256xf32>
    %214 = tpu.matmul %213, %212, %cst_102 {dimension_numbers = #tpu.dot_dimension_numbers<[1], [1], [0], [0], [0, 0, 1, 0], [], []>} : vector<1x256xbf16>, vector<256x256xbf16>, vector<1x256xf32> -> vector<1x256xf32>
    %215 = arith.truncf %195 : vector<1x256xf32> to vector<1x256xbf16>
    %cst_103 = arith.constant dense<0.000000e+00> : vector<1x256xf32>
    %216 = tpu.matmul %215, %212, %cst_103 {dimension_numbers = #tpu.dot_dimension_numbers<[1], [0], [0], [1], [0, 0, 1, 1], [], []>} : vector<1x256xbf16>, vector<256x256xbf16>, vector<1x256xf32> -> vector<1x256xf32>
    %217 = arith.mulf %214, %214 : vector<1x256xf32>
    %218 = vector.shape_cast %217 : vector<1x256xf32> to vector<1x1x256xf32>
    %cst_104 = arith.constant dense<0.000000e+00> : vector<1xf32>
    %219 = vector.multi_reduction <add>, %218, %cst_104 [1, 2] : vector<1x1x256xf32> to vector<1xf32>
    %220 = vector.shape_cast %219 : vector<1xf32> to vector<1x1x1xf32>
    %221 = vector.extract %220[0, 0, 0] : f32 from vector<1x1x1xf32>
    %222 = vector.broadcast %221 : f32 to vector<1x1xf32>
    %cst_105 = arith.constant 1.000000e-30 : f32
    %223 = vector.broadcast %cst_105 : f32 to vector<1x1xf32>
    %224 = arith.addf %222, %223 : vector<1x1xf32>
    %225 = math.rsqrt %224 : vector<1x1xf32>
    %226 = vector.broadcast %225 : vector<1x1xf32> to vector<1x256xf32>
    %227 = arith.mulf %214, %226 : vector<1x256xf32>
    %228 = arith.mulf %216, %216 : vector<1x256xf32>
    %229 = vector.shape_cast %228 : vector<1x256xf32> to vector<1x1x256xf32>
    %cst_106 = arith.constant dense<0.000000e+00> : vector<1xf32>
    %230 = vector.multi_reduction <add>, %229, %cst_106 [1, 2] : vector<1x1x256xf32> to vector<1xf32>
    %231 = vector.shape_cast %230 : vector<1xf32> to vector<1x1x1xf32>
    %232 = vector.extract %231[0, 0, 0] : f32 from vector<1x1x1xf32>
    %233 = vector.broadcast %232 : f32 to vector<1x1xf32>
    %cst_107 = arith.constant 1.000000e-30 : f32
    %234 = vector.broadcast %cst_107 : f32 to vector<1x1xf32>
    %235 = arith.addf %233, %234 : vector<1x1xf32>
    %236 = math.rsqrt %235 : vector<1x1xf32>
    %237 = vector.broadcast %236 : vector<1x1xf32> to vector<1x256xf32>
    %238 = arith.mulf %216, %237 : vector<1x256xf32>
    %c0_108 = arith.constant 0 : index
    %c0_109 = arith.constant 0 : index
    %239 = vector.load %arg11[%c0_108, %c0_109] : memref<256x256xbf16, #tpu.memory_space<vmem>>, vector<256x256xbf16>
    %c0_110 = arith.constant 0 : index
    %c0_111 = arith.constant 0 : index
    %240 = vector.load %arg11[%c0_110, %c0_111] : memref<256x256xbf16, #tpu.memory_space<vmem>>, vector<256x256xbf16>
    %cst_112 = arith.constant dense<0.000000e+00> : vector<256x256xf32>
    %241 = tpu.matmul %239, %240, %cst_112 {dimension_numbers = #tpu.dot_dimension_numbers<[1], [0], [0], [1], [0, 0, 1, 1], [], []>} : vector<256x256xbf16>, vector<256x256xbf16>, vector<256x256xf32> -> vector<256x256xf32>
    %242 = arith.truncf %241 : vector<256x256xf32> to vector<256x256xbf16>
    %c0_113 = arith.constant 0 : index
    %c0_114 = arith.constant 0 : index
    %243 = vector.load %arg11[%c0_113, %c0_114] : memref<256x256xbf16, #tpu.memory_space<vmem>>, vector<256x256xbf16>
    tpu.vector_store %arg11[%c0_113, %c0_114], %242 {strides = array<i32>} : memref<256x256xbf16, #tpu.memory_space<vmem>>, vector<256x256xbf16>,
    %c0_115 = arith.constant 0 : index
    %c0_116 = arith.constant 0 : index
    %244 = vector.load %arg11[%c0_115, %c0_116] : memref<256x256xbf16, #tpu.memory_space<vmem>>, vector<256x256xbf16>
    %245 = arith.truncf %227 : vector<1x256xf32> to vector<1x256xbf16>
    %cst_117 = arith.constant dense<0.000000e+00> : vector<1x256xf32>
    %246 = tpu.matmul %245, %244, %cst_117 {dimension_numbers = #tpu.dot_dimension_numbers<[1], [1], [0], [0], [0, 0, 1, 0], [], []>} : vector<1x256xbf16>, vector<256x256xbf16>, vector<1x256xf32> -> vector<1x256xf32>
    %247 = arith.truncf %238 : vector<1x256xf32> to vector<1x256xbf16>
    %cst_118 = arith.constant dense<0.000000e+00> : vector<1x256xf32>
    %248 = tpu.matmul %247, %244, %cst_118 {dimension_numbers = #tpu.dot_dimension_numbers<[1], [0], [0], [1], [0, 0, 1, 1], [], []>} : vector<1x256xbf16>, vector<256x256xbf16>, vector<1x256xf32> -> vector<1x256xf32>
    %249 = arith.mulf %246, %246 : vector<1x256xf32>
    %250 = vector.shape_cast %249 : vector<1x256xf32> to vector<1x1x256xf32>
    %cst_119 = arith.constant dense<0.000000e+00> : vector<1xf32>
    %251 = vector.multi_reduction <add>, %250, %cst_119 [1, 2] : vector<1x1x256xf32> to vector<1xf32>
    %252 = vector.shape_cast %251 : vector<1xf32> to vector<1x1x1xf32>
    %253 = vector.extract %252[0, 0, 0] : f32 from vector<1x1x1xf32>
    %254 = vector.broadcast %253 : f32 to vector<1x1xf32>
    %cst_120 = arith.constant 1.000000e-30 : f32
    %255 = vector.broadcast %cst_120 : f32 to vector<1x1xf32>
    %256 = arith.addf %254, %255 : vector<1x1xf32>
    %257 = math.rsqrt %256 : vector<1x1xf32>
    %258 = vector.broadcast %257 : vector<1x1xf32> to vector<1x256xf32>
    %259 = arith.mulf %246, %258 : vector<1x256xf32>
    %260 = arith.mulf %248, %248 : vector<1x256xf32>
    %261 = vector.shape_cast %260 : vector<1x256xf32> to vector<1x1x256xf32>
    %cst_121 = arith.constant dense<0.000000e+00> : vector<1xf32>
    %262 = vector.multi_reduction <add>, %261, %cst_121 [1, 2] : vector<1x1x256xf32> to vector<1xf32>
    %263 = vector.shape_cast %262 : vector<1xf32> to vector<1x1x1xf32>
    %264 = vector.extract %263[0, 0, 0] : f32 from vector<1x1x1xf32>
    %265 = vector.broadcast %264 : f32 to vector<1x1xf32>
    %cst_122 = arith.constant 1.000000e-30 : f32
    %266 = vector.broadcast %cst_122 : f32 to vector<1x1xf32>
    %267 = arith.addf %265, %266 : vector<1x1xf32>
    %268 = math.rsqrt %267 : vector<1x1xf32>
    %269 = vector.broadcast %268 : vector<1x1xf32> to vector<1x256xf32>
    %270 = arith.mulf %248, %269 : vector<1x256xf32>
    %c0_123 = arith.constant 0 : index
    %c0_124 = arith.constant 0 : index
    %271 = vector.load %arg11[%c0_123, %c0_124] : memref<256x256xbf16, #tpu.memory_space<vmem>>, vector<256x256xbf16>
    %c0_125 = arith.constant 0 : index
    %c0_126 = arith.constant 0 : index
    %272 = vector.load %arg11[%c0_125, %c0_126] : memref<256x256xbf16, #tpu.memory_space<vmem>>, vector<256x256xbf16>
    %cst_127 = arith.constant dense<0.000000e+00> : vector<256x256xf32>
    %273 = tpu.matmul %271, %272, %cst_127 {dimension_numbers = #tpu.dot_dimension_numbers<[1], [0], [0], [1], [0, 0, 1, 1], [], []>} : vector<256x256xbf16>, vector<256x256xbf16>, vector<256x256xf32> -> vector<256x256xf32>
    %274 = arith.mulf %273, %273 : vector<256x256xf32>
    %275 = vector.shape_cast %274 : vector<256x256xf32> to vector<1x256x256xf32>
    %cst_128 = arith.constant dense<0.000000e+00> : vector<1xf32>
    %276 = vector.multi_reduction <add>, %275, %cst_128 [1, 2] : vector<1x256x256xf32> to vector<1xf32>
    %277 = vector.shape_cast %276 : vector<1xf32> to vector<1x1x1xf32>
    %278 = vector.extract %277[0, 0, 0] : f32 from vector<1x1x1xf32>
    %279 = vector.broadcast %278 : f32 to vector<1x1xf32>
    %cst_129 = arith.constant 1.000000e-30 : f32
    %280 = vector.broadcast %cst_129 : f32 to vector<1x1xf32>
    %281 = arith.addf %279, %280 : vector<1x1xf32>
    %282 = math.rsqrt %281 : vector<1x1xf32>
    %283 = vector.broadcast %282 : vector<1x1xf32> to vector<256x256xf32>
    %284 = arith.mulf %273, %283 : vector<256x256xf32>
    %285 = arith.truncf %284 : vector<256x256xf32> to vector<256x256xbf16>
    %c0_130 = arith.constant 0 : index
    %c0_131 = arith.constant 0 : index
    %286 = vector.load %arg11[%c0_130, %c0_131] : memref<256x256xbf16, #tpu.memory_space<vmem>>, vector<256x256xbf16>
    tpu.vector_store %arg11[%c0_130, %c0_131], %285 {strides = array<i32>} : memref<256x256xbf16, #tpu.memory_space<vmem>>, vector<256x256xbf16>,
    %c0_132 = arith.constant 0 : index
    %c0_133 = arith.constant 0 : index
    %287 = vector.load %arg11[%c0_132, %c0_133] : memref<256x256xbf16, #tpu.memory_space<vmem>>, vector<256x256xbf16>
    %288 = arith.truncf %259 : vector<1x256xf32> to vector<1x256xbf16>
    %cst_134 = arith.constant dense<0.000000e+00> : vector<1x256xf32>
    %289 = tpu.matmul %288, %287, %cst_134 {dimension_numbers = #tpu.dot_dimension_numbers<[1], [1], [0], [0], [0, 0, 1, 0], [], []>} : vector<1x256xbf16>, vector<256x256xbf16>, vector<1x256xf32> -> vector<1x256xf32>
    %290 = arith.truncf %270 : vector<1x256xf32> to vector<1x256xbf16>
    %cst_135 = arith.constant dense<0.000000e+00> : vector<1x256xf32>
    %291 = tpu.matmul %290, %287, %cst_135 {dimension_numbers = #tpu.dot_dimension_numbers<[1], [0], [0], [1], [0, 0, 1, 1], [], []>} : vector<1x256xbf16>, vector<256x256xbf16>, vector<1x256xf32> -> vector<1x256xf32>
    %292 = arith.mulf %289, %289 : vector<1x256xf32>
    %293 = vector.shape_cast %292 : vector<1x256xf32> to vector<1x1x256xf32>
    %cst_136 = arith.constant dense<0.000000e+00> : vector<1xf32>
    %294 = vector.multi_reduction <add>, %293, %cst_136 [1, 2] : vector<1x1x256xf32> to vector<1xf32>
    %295 = vector.shape_cast %294 : vector<1xf32> to vector<1x1x1xf32>
    %296 = vector.extract %295[0, 0, 0] : f32 from vector<1x1x1xf32>
    %297 = vector.broadcast %296 : f32 to vector<1x1xf32>
    %cst_137 = arith.constant 1.000000e-30 : f32
    %298 = vector.broadcast %cst_137 : f32 to vector<1x1xf32>
    %299 = arith.addf %297, %298 : vector<1x1xf32>
    %300 = math.rsqrt %299 : vector<1x1xf32>
    %301 = vector.broadcast %300 : vector<1x1xf32> to vector<1x256xf32>
    %302 = arith.mulf %289, %301 : vector<1x256xf32>
    %303 = arith.mulf %291, %291 : vector<1x256xf32>
    %304 = vector.shape_cast %303 : vector<1x256xf32> to vector<1x1x256xf32>
    %cst_138 = arith.constant dense<0.000000e+00> : vector<1xf32>
    %305 = vector.multi_reduction <add>, %304, %cst_138 [1, 2] : vector<1x1x256xf32> to vector<1xf32>
    %306 = vector.shape_cast %305 : vector<1xf32> to vector<1x1x1xf32>
    %307 = vector.extract %306[0, 0, 0] : f32 from vector<1x1x1xf32>
    %308 = vector.broadcast %307 : f32 to vector<1x1xf32>
    %cst_139 = arith.constant 1.000000e-30 : f32
    %309 = vector.broadcast %cst_139 : f32 to vector<1x1xf32>
    %310 = arith.addf %308, %309 : vector<1x1xf32>
    %311 = math.rsqrt %310 : vector<1x1xf32>
    %312 = vector.broadcast %311 : vector<1x1xf32> to vector<1x256xf32>
    %313 = arith.mulf %291, %312 : vector<1x256xf32>
    %c0_140 = arith.constant 0 : index
    %c0_141 = arith.constant 0 : index
    %314 = vector.load %arg11[%c0_140, %c0_141] : memref<256x256xbf16, #tpu.memory_space<vmem>>, vector<256x256xbf16>
    %c0_142 = arith.constant 0 : index
    %c0_143 = arith.constant 0 : index
    %315 = vector.load %arg11[%c0_142, %c0_143] : memref<256x256xbf16, #tpu.memory_space<vmem>>, vector<256x256xbf16>
    %cst_144 = arith.constant dense<0.000000e+00> : vector<256x256xf32>
    %316 = tpu.matmul %314, %315, %cst_144 {dimension_numbers = #tpu.dot_dimension_numbers<[1], [0], [0], [1], [0, 0, 1, 1], [], []>} : vector<256x256xbf16>, vector<256x256xbf16>, vector<256x256xf32> -> vector<256x256xf32>
    %317 = arith.truncf %316 : vector<256x256xf32> to vector<256x256xbf16>
    %c0_145 = arith.constant 0 : index
    %c0_146 = arith.constant 0 : index
    %318 = vector.load %arg11[%c0_145, %c0_146] : memref<256x256xbf16, #tpu.memory_space<vmem>>, vector<256x256xbf16>
    tpu.vector_store %arg11[%c0_145, %c0_146], %317 {strides = array<i32>} : memref<256x256xbf16, #tpu.memory_space<vmem>>, vector<256x256xbf16>,
    %c0_147 = arith.constant 0 : index
    %c0_148 = arith.constant 0 : index
    %319 = vector.load %arg11[%c0_147, %c0_148] : memref<256x256xbf16, #tpu.memory_space<vmem>>, vector<256x256xbf16>
    %320 = arith.truncf %302 : vector<1x256xf32> to vector<1x256xbf16>
    %cst_149 = arith.constant dense<0.000000e+00> : vector<1x256xf32>
    %321 = tpu.matmul %320, %319, %cst_149 {dimension_numbers = #tpu.dot_dimension_numbers<[1], [1], [0], [0], [0, 0, 1, 0], [], []>} : vector<1x256xbf16>, vector<256x256xbf16>, vector<1x256xf32> -> vector<1x256xf32>
    %322 = arith.truncf %313 : vector<1x256xf32> to vector<1x256xbf16>
    %cst_150 = arith.constant dense<0.000000e+00> : vector<1x256xf32>
    %323 = tpu.matmul %322, %319, %cst_150 {dimension_numbers = #tpu.dot_dimension_numbers<[1], [0], [0], [1], [0, 0, 1, 1], [], []>} : vector<1x256xbf16>, vector<256x256xbf16>, vector<1x256xf32> -> vector<1x256xf32>
    %324 = arith.mulf %321, %321 : vector<1x256xf32>
    %325 = vector.shape_cast %324 : vector<1x256xf32> to vector<1x1x256xf32>
    %cst_151 = arith.constant dense<0.000000e+00> : vector<1xf32>
    %326 = vector.multi_reduction <add>, %325, %cst_151 [1, 2] : vector<1x1x256xf32> to vector<1xf32>
    %327 = vector.shape_cast %326 : vector<1xf32> to vector<1x1x1xf32>
    %328 = vector.extract %327[0, 0, 0] : f32 from vector<1x1x1xf32>
    %329 = vector.broadcast %328 : f32 to vector<1x1xf32>
    %cst_152 = arith.constant 1.000000e-30 : f32
    %330 = vector.broadcast %cst_152 : f32 to vector<1x1xf32>
    %331 = arith.addf %329, %330 : vector<1x1xf32>
    %332 = math.rsqrt %331 : vector<1x1xf32>
    %333 = vector.broadcast %332 : vector<1x1xf32> to vector<1x256xf32>
    %334 = arith.mulf %321, %333 : vector<1x256xf32>
    %335 = arith.mulf %323, %323 : vector<1x256xf32>
    %336 = vector.shape_cast %335 : vector<1x256xf32> to vector<1x1x256xf32>
    %cst_153 = arith.constant dense<0.000000e+00> : vector<1xf32>
    %337 = vector.multi_reduction <add>, %336, %cst_153 [1, 2] : vector<1x1x256xf32> to vector<1xf32>
    %338 = vector.shape_cast %337 : vector<1xf32> to vector<1x1x1xf32>
    %339 = vector.extract %338[0, 0, 0] : f32 from vector<1x1x1xf32>
    %340 = vector.broadcast %339 : f32 to vector<1x1xf32>
    %cst_154 = arith.constant 1.000000e-30 : f32
    %341 = vector.broadcast %cst_154 : f32 to vector<1x1xf32>
    %342 = arith.addf %340, %341 : vector<1x1xf32>
    %343 = math.rsqrt %342 : vector<1x1xf32>
    %344 = vector.broadcast %343 : vector<1x1xf32> to vector<1x256xf32>
    %345 = arith.mulf %323, %344 : vector<1x256xf32>
    %c0_155 = arith.constant 0 : index
    %c0_156 = arith.constant 0 : index
    %346 = vector.load %arg8[%c0_155, %c0_156] : memref<1x256xf32, #tpu.memory_space<vmem>>, vector<1x256xf32>
    tpu.vector_store %arg8[%c0_155, %c0_156], %334 {strides = array<i32>} : memref<1x256xf32, #tpu.memory_space<vmem>>, vector<1x256xf32>,
    %c0_157 = arith.constant 0 : index
    %c0_158 = arith.constant 0 : index
    %347 = vector.load %arg9[%c0_157, %c0_158] : memref<1x256xf32, #tpu.memory_space<vmem>>, vector<1x256xf32>
    tpu.vector_store %arg9[%c0_157, %c0_158], %345 {strides = array<i32>} : memref<1x256xf32, #tpu.memory_space<vmem>>, vector<1x256xf32>,
    %c0_159 = arith.constant 0 : index
    %c0_160 = arith.constant 0 : index
    %348 = vector.load %arg10[%c0_159, %c0_160] : memref<256x256xf32, #tpu.memory_space<vmem>>, vector<256x256xf32>
    %cst_161 = arith.constant dense<0.000000e+00> : vector<1x256xf32>
    %349 = tpu.matmul %345, %348, %cst_161 {dimension_numbers = #tpu.dot_dimension_numbers<[1], [0], [0], [1], [0, 0, 1, 1], [], []>} : vector<1x256xf32>, vector<256x256xf32>, vector<1x256xf32> -> vector<1x256xf32>
    %350 = arith.mulf %349, %334 : vector<1x256xf32>
    %351 = vector.shape_cast %350 : vector<1x256xf32> to vector<1x1x256xf32>
    %cst_162 = arith.constant dense<0.000000e+00> : vector<1xf32>
    %352 = vector.multi_reduction <add>, %351, %cst_162 [1, 2] : vector<1x1x256xf32> to vector<1xf32>
    %353 = vector.shape_cast %352 : vector<1xf32> to vector<1x1x1xf32>
    %354 = vector.extract %353[0, 0, 0] : f32 from vector<1x1x1xf32>
    %355 = vector.broadcast %354 : f32 to vector<1x1xf32>
    %356 = arith.mulf %345, %334 : vector<1x256xf32>
    %357 = vector.shape_cast %356 : vector<1x256xf32> to vector<1x1x256xf32>
    %cst_163 = arith.constant dense<0.000000e+00> : vector<1xf32>
    %358 = vector.multi_reduction <add>, %357, %cst_163 [1, 2] : vector<1x1x256xf32> to vector<1xf32>
    %359 = vector.shape_cast %358 : vector<1xf32> to vector<1x1x1xf32>
    %360 = vector.extract %359[0, 0, 0] : f32 from vector<1x1x1xf32>
    %361 = vector.broadcast %360 : f32 to vector<1x1xf32>
    %362 = tpu.reciprocal %361 {approx = true} : vector<1x1xf32> -> vector<1x1xf32>
    %363 = arith.mulf %355, %362 : vector<1x1xf32>
    %364 = math.absf %363 : vector<1x1xf32>
    %365 = tpu.iota {dimensions = array<i32: 1>} : vector<1x128xi32>
    %c0_i32 = arith.constant 0 : i32
    %366 = vector.broadcast %c0_i32 : i32 to vector<1x128xi32>
    %367 = arith.cmpi eq, %365, %366 : vector<1x128xi32>
    %cst_164 = arith.constant 0.000000e+00 : f32
    %368 = vector.shape_cast %51 : vector<1x1xf32> to vector<1x1xf32>
    %369 = vector.broadcast %368 : vector<1x1xf32> to vector<1x128xf32>
    %370 = vector.broadcast %cst_164 : f32 to vector<1x128xf32>
    %371 = arith.select %367, %369, %370 : vector<1x128xi1>, vector<1x128xf32>
    %c1_i32 = arith.constant 1 : i32
    %372 = vector.broadcast %c1_i32 : i32 to vector<1x128xi32>
    %373 = arith.cmpi eq, %365, %372 : vector<1x128xi32>
    %cst_165 = arith.constant 0.000000e+00 : f32
    %374 = vector.shape_cast %364 : vector<1x1xf32> to vector<1x1xf32>
    %375 = vector.broadcast %374 : vector<1x1xf32> to vector<1x128xf32>
    %376 = vector.broadcast %cst_165 : f32 to vector<1x128xf32>
    %377 = arith.select %373, %375, %376 : vector<1x128xi1>, vector<1x128xf32>
    %378 = arith.addf %371, %377 : vector<1x128xf32>
    %c0_166 = arith.constant 0 : index
    %c0_167 = arith.constant 0 : index
    %379 = vector.load %arg7[%c0_166, %c0_167] : memref<1x128xf32, #tpu.memory_space<vmem>>, vector<1x128xf32>
    tpu.vector_store %arg7[%c0_166, %c0_167], %378 {strides = array<i32>} : memref<1x128xf32, #tpu.memory_space<vmem>>, vector<1x128xf32>,
    return
  }
}

</mosaic_0001>

<llo_original>
// kernel: tpu_custom_call.1
$region0: #{tpu_custom_call.1}
  #allocation0 [shape = 'u32[]', space=smem, size = 0x4, offset = 0x4, fixed_abs, tag = 'smem constant byte address 0x4 - core index']
  #allocation1 [shape = 'u32[144,128]{1,0:T(1,128)}', space=vmem, size = 0x12000, scoped, tag = 'internal scratch']
  #allocation2 [shape = 'f32[256,256]{1,0:T(8,128)}', space=vmem, size = 0x40000, scoped, tag = 'scratch operand']
  #allocation3 [shape = 'bf16[256,256]{1,0:T(8,128)(2,1)}', space=vmem, size = 0x20000, scoped, tag = 'scratch operand']
  #allocation4 [shape = 'f32[1]{0:T(128)S(6)}', space=smem, size = 0x200, scoped, tag = 'scoped memory for tpu_custom_call.1']
  %s0 = inlined_call_operand.<no memory space> [shape: f32[1], index: 0, kind: input, shape index: {}]
  %s1 = inlined_call_operand.hbm [shape: f32[8,32], index: 1, kind: input, shape index: {}]
  %s2 = inlined_call_operand.hbm [shape: f32[8,32], index: 2, kind: input, shape index: {}]
  %s3 = inlined_call_operand.hbm [shape: bf16[16,128], index: 3, kind: input, shape index: {}]
  %s4 = inlined_call_operand.hbm [shape: bf16[16,128], index: 4, kind: input, shape index: {}]
  %s5 = inlined_call_operand.vmem [shape: f32[1,256], index: 5, kind: input, shape index: {}]
  %s6 = inlined_call_operand.vmem [shape: f32[1,256], index: 6, kind: input, shape index: {}]
  %s7 = inlined_call_operand.hbm [shape: f32[1,128], index: 7, kind: output, shape index: {0}]
  %s8 = inlined_call_operand.hbm [shape: f32[1,256], index: 8, kind: output, shape index: {1}]
  %s9 = inlined_call_operand.hbm [shape: f32[1,256], index: 9, kind: output, shape index: {2}]
  %10 = xla_tuple %s7, %s8, %s9
  %s11 = sld [smem:[#allocation0]]
  $region70: #{tpu_custom_call.1} parent=0
    _
  %s13 = ssub.s32 1, %s11
  %s14 = scalar_select 0, %s13, %s11
  %15 = sst [smem:[#allocation4]] %s0
  $region1: #{tpu_custom_call.1} parent=0
    #allocation5 [shape = 'u8[4096]{0}', space=vmem, size = 0x1000, scoped, tag = 'input window, operand 1, single buffered']
    #allocation6 [shape = 's32[1]{0}', space=sflag, size = 0x4, scoped, tag = 'scoped memory for tpu_custom_call.1']
    #allocation7 [shape = 's32[1]{0}', space=sflag, size = 0x4, scoped, tag = 'scoped memory for tpu_custom_call.1']
    #allocation8 [shape = 'u8[4096]{0}', space=vmem, size = 0x1000, scoped, tag = 'input window, operand 2, single buffered']
    #allocation9 [shape = 's32[1]{0}', space=sflag, size = 0x4, scoped, tag = 'scoped memory for tpu_custom_call.1']
    #allocation10 [shape = 'u8[4096]{0}', space=vmem, size = 0x1000, scoped, tag = 'input window, operand 3, single buffered']
    #allocation11 [shape = 'u8[4096]{0}', space=vmem, size = 0x1000, scoped, tag = 'input window, operand 4, single buffered']
    #allocation12 [shape = 's32[1]{0}', space=sflag, size = 0x4, scoped, tag = 'scoped memory for tpu_custom_call.1']
    #allocation13 [shape = 'u8[512]{0}', space=vmem, size = 0x400, scoped, tag = 'output window, operand 0, single buffered']
    #allocation14 [shape = 'u8[1024]{0}', space=vmem, size = 0x400, scoped, tag = 'output window, operand 1, single buffered']
    #allocation15 [shape = 's32[1]{0}', space=sflag, size = 0x4, scoped, tag = 'scoped memory for tpu_custom_call.1']
    #allocation16 [shape = 'u8[1024]{0}', space=vmem, size = 0x400, scoped, tag = 'output window, operand 2, single buffered']
    %16 = vsyncpa [#allocation6], 0
    %17 = vsyncpa [#allocation9], 0
    %18 = vsyncpa [#allocation12], 0
    %19 = vsyncpa [#allocation7], 0
    %20 = vsyncpa [#allocation15], 0
    // Predicated region
    $region2: #{tpu_custom_call.1} parent=1 // pred_check
      _
    $region3: #{tpu_custom_call.1} parent=1 // pred_check_branch
      %22 = sbr.rel (0) target = $region5
    $region4: #{tpu_custom_call.1} parent=1 // pred_region
      _
    $region5: #{tpu_custom_call.1} parent=1 // pred_fallthru
      _
    // Predicated region
    $region6: #{tpu_custom_call.1} parent=1 // pred_check
      _
    $region7: #{tpu_custom_call.1} parent=1 // pred_check_branch
      %24 = sbr.rel (0) target = $region9
    $region8: #{tpu_custom_call.1} parent=1 // pred_region
      %s26 = ssub.s32 128, 128
      %27 = vsyncadd [#allocation6], %s26
      %s29 = sshll.u32 [#allocation5], 4
      %s30 = int_to_ptr.vmem [resolvable:$true] %s29
      %32 = dma.hbm_to_vmem [thread:$0]  %s1, 128, %s30, [#allocation6]
    $region9: #{tpu_custom_call.1} parent=1 // pred_fallthru
      _
    // Predicated region
    $region10: #{tpu_custom_call.1} parent=1 // pred_check
      _
    $region11: #{tpu_custom_call.1} parent=1 // pred_check_branch
      %34 = sbr.rel (0) target = $region13
    $region12: #{tpu_custom_call.1} parent=1 // pred_region
      %s36 = ssub.s32 128, 128
      %37 = vsyncadd [#allocation9], %s36
      %s39 = sshll.u32 [#allocation8], 4
      %s40 = int_to_ptr.vmem [resolvable:$true] %s39
      %42 = dma.hbm_to_vmem [thread:$0]  %s2, 128, %s40, [#allocation9]
    $region13: #{tpu_custom_call.1} parent=1 // pred_fallthru
      _
    // Predicated region
    $region14: #{tpu_custom_call.1} parent=1 // pred_check
      _
    $region15: #{tpu_custom_call.1} parent=1 // pred_check_branch
      %44 = sbr.rel (0) target = $region17
    $region16: #{tpu_custom_call.1} parent=1 // pred_region
      %s46 = ssub.s32 128, 128
      %47 = vsyncadd [#allocation9], %s46
      %s48 = sshll.u32 [#allocation10], 4
      %s49 = int_to_ptr.vmem [resolvable:$true] %s48
      %54 = dma.hbm_to_vmem [thread:$0]  %s3, 128, %s49, [#allocation9], 64, 64, 4
    $region17: #{tpu_custom_call.1} parent=1 // pred_fallthru
      _
    // Predicated region
    $region18: #{tpu_custom_call.1} parent=1 // pred_check
      _
    $region19: #{tpu_custom_call.1} parent=1 // pred_check_branch
      %56 = sbr.rel (0) target = $region21
    $region20: #{tpu_custom_call.1} parent=1 // pred_region
      %s58 = ssub.s32 128, 128
      %59 = vsyncadd [#allocation12], %s58
      %s60 = sshll.u32 [#allocation11], 4
      %s61 = int_to_ptr.vmem [resolvable:$true] %s60
      %66 = dma.hbm_to_vmem [thread:$0]  %s4, 128, %s61, [#allocation12], 64, 64, 4
    $region21: #{tpu_custom_call.1} parent=1 // pred_fallthru
      _
    // Predicated region
    $region22: #{tpu_custom_call.1} parent=1 // pred_check
      _
    $region23: #{tpu_custom_call.1} parent=1 // pred_check_branch
      %68 = sbr.rel (0) target = $region25
    $region24: #{tpu_custom_call.1} parent=1 // pred_region
      _
    $region25: #{tpu_custom_call.1} parent=1 // pred_fallthru
      _
    // Predicated region
    $region26: #{tpu_custom_call.1} parent=1 // pred_check
      _
    $region27: #{tpu_custom_call.1} parent=1 // pred_check_branch
      %70 = sbr.rel (0) target = $region29
    $region28: #{tpu_custom_call.1} parent=1 // pred_region
      _
    $region29: #{tpu_custom_call.1} parent=1 // pred_fallthru
      _
    // Predicated region
    $region30: #{tpu_custom_call.1} parent=1 // pred_check
      _
    $region31: #{tpu_custom_call.1} parent=1 // pred_check_branch
      %72 = sbr.rel (0) target = $region33
    $region32: #{tpu_custom_call.1} parent=1 // pred_region
      %73 = dma.done [#allocation6], 128
    $region33: #{tpu_custom_call.1} parent=1 // pred_fallthru
      _
    // Predicated region
    $region34: #{tpu_custom_call.1} parent=1 // pred_check
      _
    $region35: #{tpu_custom_call.1} parent=1 // pred_check_branch
      %75 = sbr.rel (0) target = $region37
    $region36: #{tpu_custom_call.1} parent=1 // pred_region
      %76 = dma.done [#allocation9], 128
    $region37: #{tpu_custom_call.1} parent=1 // pred_fallthru
      _
    // Predicated region
    $region38: #{tpu_custom_call.1} parent=1 // pred_check
      _
    $region39: #{tpu_custom_call.1} parent=1 // pred_check_branch
      %78 = sbr.rel (0) target = $region41
    $region40: #{tpu_custom_call.1} parent=1 // pred_region
      %79 = dma.done [#allocation9], 128
    $region41: #{tpu_custom_call.1} parent=1 // pred_fallthru
      _
    // Predicated region
    $region42: #{tpu_custom_call.1} parent=1 // pred_check
      _
    $region43: #{tpu_custom_call.1} parent=1 // pred_check_branch
      %81 = sbr.rel (0) target = $region45
    $region44: #{tpu_custom_call.1} parent=1 // pred_region
      %82 = dma.done [#allocation12], 128
    $region45: #{tpu_custom_call.1} parent=1 // pred_fallthru
      _
    %s83 = sld [smem:[#allocation4]]
    %v84 = vld [vmem:[#allocation5] sm:$0xff]
    %v85 = vld [vmem:[#allocation8] sm:$0xff]
    %vm86 = vcmask 261120
    %v88 = vsel %vm86, %v84, 0
    %v91 = vsel %vm86, %v85, 0
    %93 = vmatprep.subr.mxu0 0.0
    %94 = vmatpush1.xpose.msra.mxu0 0.0
    %95 = vmatprep.subr.mxu0 0.0
    %96 = vmatpush1.xpose.msra.mxu0 0.0
    %97 = vmatprep.subr.mxu0 0.0
    %98 = vmatpush1.xpose.msra.mxu0 0.0
    %99 = vmatprep.subr.mxu0 0.0
    %100 = vmatpush1.xpose.msra.mxu0 0.0
    %101 = vmatprep.subr.mxu0 0.0
    %102 = vmatpush1.xpose.msra.mxu0 0.0
    %103 = vmatprep.subr.mxu0 0.0
    %104 = vmatpush1.xpose.msra.mxu0 0.0
    %105 = vmatprep.subr.mxu0 0.0
    %106 = vmatpush1.xpose.msra.mxu0 0.0
    %107 = vmatprep.subr.mxu0 0.0
    %108 = vmatpush1.xpose.msra.mxu0 0.0
    %109 = vmatprep.subr.mxu0 0.0
    %110 = vmatpush1.xpose.msra.mxu0 0.0
    %111 = vmatprep.subr.mxu0 0.0
    %112 = vmatpush1.xpose.msra.mxu0 0.0
    %113 = vmatprep.subr.mxu0 0.0
    %114 = vmatpush1.xpose.msra.mxu0 0.0
    %115 = vmatprep.subr.mxu0 0.0
    %116 = vmatpush1.xpose.msra.mxu0 0.0
    %117 = vmatprep.subr.mxu0 0.0
    %118 = vmatpush1.xpose.msra.mxu0 0.0
    %119 = vmatprep.subr.mxu0 0.0
    %120 = vmatpush1.xpose.msra.mxu0 0.0
    %121 = vmatprep.subr.mxu0 0.0
    %122 = vmatpush1.xpose.msra.mxu0 0.0
    %123 = vmatprep.subr.mxu0 0.0
    %124 = vmatpush1.xpose.msra.mxu0 %v91
    %125 = vmatprep.subr.mxu0 0.0
    %126 = vmatpush2.xpose.msra.mxu0 0.0
    %127 = vmatprep.subr.mxu0 0.0
    %128 = vmatpush2.xpose.msra.mxu0 0.0
    %129 = vmatprep.subr.mxu0 0.0
    %130 = vmatpush2.xpose.msra.mxu0 0.0
    %131 = vmatprep.subr.mxu0 0.0
    %132 = vmatpush2.xpose.msra.mxu0 0.0
    %133 = vmatprep.subr.mxu0 0.0
    %134 = vmatpush2.xpose.msra.mxu0 0.0
    %135 = vmatprep.subr.mxu0 0.0
    %136 = vmatpush2.xpose.msra.mxu0 0.0
    %137 = vmatprep.subr.mxu0 0.0
    %138 = vmatpush2.xpose.msra.mxu0 0.0
    %139 = vmatprep.subr.mxu0 0.0
    %140 = vmatpush2.xpose.msra.mxu0 0.0
    %141 = vmatprep.subr.mxu0 0.0
    %142 = vmatpush2.xpose.msra.mxu0 0.0
    %143 = vmatprep.subr.mxu0 0.0
    %144 = vmatpush2.xpose.msra.mxu0 0.0
    %145 = vmatprep.subr.mxu0 0.0
    %146 = vmatpush2.xpose.msra.mxu0 0.0
    %147 = vmatprep.subr.mxu0 0.0
    %148 = vmatpush2.xpose.msra.mxu0 0.0
    %149 = vmatprep.subr.mxu0 0.0
    %150 = vmatpush2.xpose.msra.mxu0 0.0
    %151 = vmatprep.subr.mxu0 0.0
    %152 = vmatpush2.xpose.msra.mxu0 0.0
    %153 = vmatprep.subr.mxu0 0.0
    %154 = vmatpush2.xpose.msra.mxu0 0.0
    %155 = vmatprep.subr.mxu0 0.0
    %156 = vmatpush2.xpose.msra.mxu0 0.0
    %157 = vmatprep.mubr.f32.mxu0 0.0
    %158 = vmatmul.mubr.f32.gmra.mxu0 %v88
    %v159 = vpop.f32.mrf.mxu0
    %v160 = vadd.f32 0.0, %v159
    %v161 = vpop.f32.mrf.mxu0
    %162 = vdwg.mxu0
    %v163 = vstv %s83
    %v164 = vmul.f32 %v163, %v160
    %v165 = vlaneseq
    %v166 = vshrl.u32 %v165, 7
    %v167 = vlaneseq
    %v168 = vand.u32 %v167, 127
    %vm169 = vcmp.eq.s32.totalorder %v166, %v168
    %v170 = vsel %vm169, %v164, 0.0
    %vm171 = vcmask 64512
    %v172 = vsel %vm171, %v170, 0.0
    %173 = vadd.xlane.f32.xlu0 %v172
    %v174 = vpop.xlane.xlu0 %173
    %v175 = vrot.slane %v174, 4
    %v176 = vadd.f32 %v174, %v175
    %v177 = vrot.slane %v176, 2
    %v178 = vadd.f32 %v176, %v177
    %v179 = vrot.slane %v178, 1
    %v180 = vadd.f32 %v178, %v179
    %s181 = vtos %v180
    %v182 = vstv %s181
    %v183 = vsel %vm171, %v164, -inf
    %184 = vmax.xlane.f32.xlu0 %v183
    %v185 = vpop.xlane.xlu0 %184
    %v186 = vsub.f32 %v164, %v185
    %v187 = vmul.f32 %v186, 1.442695
    %v188 = vpow.pop %v187
    %v189 = vsel %vm171, %v188, 0.0
    %190 = vadd.xlane.f32.xlu0 %v189
    %v191 = vpop.xlane.xlu0 %190
    %v192 = vlog2.pop %v191
    %v193 = vmul.f32 %v192, 0.6931472
    %v194 = vadd.f32 %v185, %v193
    %v195 = vrot.slane %v183, 4
    %v196 = vmax.f32 %v183, %v195
    %v197 = vrot.slane %v196, 2
    %v198 = vmax.f32 %v196, %v197
    %v199 = vrot.slane %v198, 1
    %v200 = vmax.f32 %v198, %v199
    %v201 = vsub.f32 %v164, %v200
    %v202 = vmul.f32 %v201, 1.442695
    %v203 = vpow.pop %v202
    %v204 = vsel %vm171, %v203, 0.0
    %v205 = vrot.slane %v204, 4
    %v206 = vadd.f32 %v204, %v205
    %v207 = vrot.slane %v206, 2
    %v208 = vadd.f32 %v206, %v207
    %v209 = vrot.slane %v208, 1
    %v210 = vadd.f32 %v208, %v209
    %v211 = vlog2.pop %v210
    %v212 = vmul.f32 %v211, 0.6931472
    %v213 = vadd.f32 %v200, %v212
    %vm214 = vcmask 7168
    %v215 = vsel %vm214, %v194, 0.0
    %216 = vadd.xlane.f32.xlu0 %v215
    %v217 = vpop.xlane.xlu0 %216
    %v218 = vrot.slane %v217, 4
    %v219 = vadd.f32 %v217, %v218
    %v220 = vrot.slane %v219, 2
    %v221 = vadd.f32 %v219, %v220
    %v222 = vrot.slane %v221, 1
    %v223 = vadd.f32 %v221, %v222
    %s224 = vtos %v223
    %v225 = vstv %s224
    %vm226 = vcmask 57344
    %v227 = vsel %vm226, %v213, 0.0
    %228 = vadd.xlane.f32.xlu0 %v227
    %v229 = vpop.xlane.xlu0 %228
    %v230 = vrot.slane %v229, 4
    %v231 = vadd.f32 %v229, %v230
    %v232 = vrot.slane %v231, 2
    %v233 = vadd.f32 %v231, %v232
    %v234 = vrot.slane %v233, 1
    %v235 = vadd.f32 %v233, %v234
    %s236 = vtos %v235
    %v237 = vstv %s236
    %v238 = vadd.f32 %v225, %v237
    %v239 = vmul.f32 %v182, 2.0
    %v240 = vsub.f32 %v238, %v239
    %v241 = vmul.f32 %v240, 0.5
    %v242 = vmul.f32 %v241, 0.125
    %v243 = vld [vmem:[#allocation10] sm:$0xf]
    %v244 = vld [vmem:[#allocation10 + $0x4] sm:$0xf]
    %v245 = vunpack.c.l.bf16 %v243
    %v246 = vunpack.c.l.bf16 %v244
    %v247 = vld [vmem:[#allocation11] sm:$0xf]
    %v248 = vld [vmem:[#allocation11 + $0x4] sm:$0xf]
    %v249 = vunpack.c.l.bf16 %v247
    %v250 = vunpack.c.l.bf16 %v248
    %v251 = vmul.f32 %v245, %v245
    %v252 = vmul.f32 %v246, %v246
    %253 = vadd.xlane.f32.xlu0 %v251
    %v254 = vpop.xlane.xlu0 %253
    %255 = vadd.xlane.f32.xlu0 %v252
    %v256 = vpop.xlane.xlu0 %255
    %v257 = vadd.f32 %v254, 1e-30
    %v258 = vadd.f32 %v256, 1e-30
    %v259 = vrsqrt.pop %v257
    %v260 = vrsqrt.pop %v258
    %v261 = vmul.f32 %v245, %v259
    %v262 = vmul.f32 %v246, %v260
    %v263 = vmul.f32 %v249, %v249
    %v264 = vmul.f32 %v250, %v250
    %265 = vadd.xlane.f32.xlu0 %v263
    %v266 = vpop.xlane.xlu0 %265
    %267 = vadd.xlane.f32.xlu0 %v264
    %v268 = vpop.xlane.xlu0 %267
    %v269 = vadd.f32 %v266, 1e-30
    %v270 = vadd.f32 %v268, 1e-30
    %v271 = vrsqrt.pop %v269
    %v272 = vrsqrt.pop %v270
    %v273 = vmul.f32 %v249, %v271
    %v274 = vmul.f32 %v250, %v272
    %v275 = vmul.f32 %v261, 0.0625
    %v276 = vmul.f32 %v262, 0.0625
    %v277 = vmul.f32 %v273, -0.0625
    %v278 = vmul.f32 %v274, -0.0625
    %279 = vxpose.xlu0.b32.start [1/16] %v275, 128
    %280 = vxpose.xlu0.b32.cont [2/16] %v276, 128
    %281 = vxpose.xlu0.b32.cont [3/16] 0.0, 128
    %282 = vxpose.xlu0.b32.cont [4/16] 0.0, 128
    %283 = vxpose.xlu0.b32.cont [5/16] 0.0, 128
    %284 = vxpose.xlu0.b32.cont [6/16] 0.0, 128
    %285 = vxpose.xlu0.b32.cont [7/16] 0.0, 128
    %286 = vxpose.xlu0.b32.cont [8/16] 0.0, 128
    %287 = vxpose.xlu0.b32.cont [9/16] 0.0, 128
    %288 = vxpose.xlu0.b32.cont [10/16] 0.0, 128
    %289 = vxpose.xlu0.b32.cont [11/16] 0.0, 128
    %290 = vxpose.xlu0.b32.cont [12/16] 0.0, 128
    %291 = vxpose.xlu0.b32.cont [13/16] 0.0, 128
    %292 = vxpose.xlu0.b32.cont [14/16] 0.0, 128
    %293 = vxpose.xlu0.b32.cont [15/16] 0.0, 128
    %294 = vxpose.xlu0.b32.end [16/16] 0.0, 128
    %v295 = vpop.trf.xlu0
    %v296 = vpop.trf.xlu0
    %v297 = vpop.trf.xlu0
    %v298 = vpop.trf.xlu0
    %v299 = vpop.trf.xlu0
    %v300 = vpop.trf.xlu0
    %v301 = vpop.trf.xlu0
    %v302 = vpop.trf.xlu0
    %v303 = vpop.trf.xlu0
    %v304 = vpop.trf.xlu0
    %v305 = vpop.trf.xlu0
    %v306 = vpop.trf.xlu0
    %v307 = vpop.trf.xlu0
    %v308 = vpop.trf.xlu0
    %v309 = vpop.trf.xlu0
    %v310 = vpop.trf.xlu0
    %311 = vxpose.xlu0.b32.start [1/16] %v277, 128
    %312 = vxpose.xlu0.b32.cont [2/16] %v278, 128
    %313 = vxpose.xlu0.b32.cont [3/16] 0.0, 128
    %314 = vxpose.xlu0.b32.cont [4/16] 0.0, 128
    %315 = vxpose.xlu0.b32.cont [5/16] 0.0, 128
    %316 = vxpose.xlu0.b32.cont [6/16] 0.0, 128
    %317 = vxpose.xlu0.b32.cont [7/16] 0.0, 128
    %318 = vxpose.xlu0.b32.cont [8/16] 0.0, 128
    %319 = vxpose.xlu0.b32.cont [9/16] 0.0, 128
    %320 = vxpose.xlu0.b32.cont [10/16] 0.0, 128
    %321 = vxpose.xlu0.b32.cont [11/16] 0.0, 128
    %322 = vxpose.xlu0.b32.cont [12/16] 0.0, 128
    %323 = vxpose.xlu0.b32.cont [13/16] 0.0, 128
    %324 = vxpose.xlu0.b32.cont [14/16] 0.0, 128
    %325 = vxpose.xlu0.b32.cont [15/16] 0.0, 128
    %326 = vxpose.xlu0.b32.end [16/16] 0.0, 128
    %v327 = vpop.trf.xlu0
    %v328 = vpop.trf.xlu0
    %v329 = vpop.trf.xlu0
    %v330 = vpop.trf.xlu0
    %v331 = vpop.trf.xlu0
    %v332 = vpop.trf.xlu0
    %v333 = vpop.trf.xlu0
    %v334 = vpop.trf.xlu0
    %v335 = vpop.trf.xlu0
    %v336 = vpop.trf.xlu0
    %v337 = vpop.trf.xlu0
    %v338 = vpop.trf.xlu0
    %v339 = vpop.trf.xlu0
    %v340 = vpop.trf.xlu0
    %v341 = vpop.trf.xlu0
    %v342 = vpop.trf.xlu0
    %vm343 = vcmask 130048
    %v345 = vsel %vm343, %v295, 0
    %v348 = vsel %vm343, %v296, 0
    %v351 = vsel %vm343, %v297, 0
    %v354 = vsel %vm343, %v298, 0
    %v357 = vsel %vm343, %v299, 0
    %v360 = vsel %vm343, %v300, 0
    %v363 = vsel %vm343, %v301, 0
    %v366 = vsel %vm343, %v302, 0
    %v369 = vsel %vm343, %v303, 0
    %v372 = vsel %vm343, %v304, 0
    %v375 = vsel %vm343, %v305, 0
    %v378 = vsel %vm343, %v306, 0
    %v381 = vsel %vm343, %v307, 0
    %v384 = vsel %vm343, %v308, 0
    %v387 = vsel %vm343, %v309, 0
    %v390 = vsel %vm343, %v310, 0
    %v393 = vsel %vm343, %v327, 0
    %v396 = vsel %vm343, %v328, 0
    %v399 = vsel %vm343, %v329, 0
    %v402 = vsel %vm343, %v330, 0
    %v405 = vsel %vm343, %v331, 0
    %v408 = vsel %vm343, %v332, 0
    %v411 = vsel %vm343, %v333, 0
    %v414 = vsel %vm343, %v334, 0
    %v417 = vsel %vm343, %v335, 0
    %v420 = vsel %vm343, %v336, 0
    %v423 = vsel %vm343, %v337, 0
    %v426 = vsel %vm343, %v338, 0
    %v429 = vsel %vm343, %v339, 0
    %v432 = vsel %vm343, %v340, 0
    %v435 = vsel %vm343, %v341, 0
    %v438 = vsel %vm343, %v342, 0
    %440 = vmatprep.subr.mxu0 0.0
    %441 = vmatpush1.msra.mxu0 0.0
    %442 = vmatprep.subr.mxu0 0.0
    %443 = vmatpush1.msra.mxu0 0.0
    %444 = vmatprep.subr.mxu0 0.0
    %445 = vmatpush1.msra.mxu0 0.0
    %446 = vmatprep.subr.mxu0 0.0
    %447 = vmatpush1.msra.mxu0 0.0
    %448 = vmatprep.subr.mxu0 0.0
    %449 = vmatpush1.msra.mxu0 0.0
    %450 = vmatprep.subr.mxu0 0.0
    %451 = vmatpush1.msra.mxu0 0.0
    %452 = vmatprep.subr.mxu0 0.0
    %453 = vmatpush1.msra.mxu0 0.0
    %454 = vmatprep.subr.mxu0 0.0
    %455 = vmatpush1.msra.mxu0 0.0
    %456 = vmatprep.subr.mxu0 0.0
    %457 = vmatpush1.msra.mxu0 0.0
    %458 = vmatprep.subr.mxu0 0.0
    %459 = vmatpush1.msra.mxu0 0.0
    %460 = vmatprep.subr.mxu0 0.0
    %461 = vmatpush1.msra.mxu0 0.0
    %462 = vmatprep.subr.mxu0 0.0
    %463 = vmatpush1.msra.mxu0 0.0
    %464 = vmatprep.subr.mxu0 0.0
    %465 = vmatpush1.msra.mxu0 0.0
    %466 = vmatprep.subr.mxu0 0.0
    %467 = vmatpush1.msra.mxu0 0.0
    %468 = vmatprep.subr.mxu0 %v274
    %469 = vmatpush1.msra.mxu0 %v262
    %470 = vmatprep.subr.mxu0 %v273
    %471 = vmatpush1.msra.mxu0 %v261
    %472 = vmatprep.subr.mxu0 0.0
    %473 = vmatpush2.msra.mxu0 0.0
    %474 = vmatprep.subr.mxu0 0.0
    %475 = vmatpush2.msra.mxu0 0.0
    %476 = vmatprep.subr.mxu0 0.0
    %477 = vmatpush2.msra.mxu0 0.0
    %478 = vmatprep.subr.mxu0 0.0
    %479 = vmatpush2.msra.mxu0 0.0
    %480 = vmatprep.subr.mxu0 0.0
    %481 = vmatpush2.msra.mxu0 0.0
    %482 = vmatprep.subr.mxu0 0.0
    %483 = vmatpush2.msra.mxu0 0.0
    %484 = vmatprep.subr.mxu0 0.0
    %485 = vmatpush2.msra.mxu0 0.0
    %486 = vmatprep.subr.mxu0 0.0
    %487 = vmatpush2.msra.mxu0 0.0
    %488 = vmatprep.subr.mxu0 0.0
    %489 = vmatpush2.msra.mxu0 0.0
    %490 = vmatprep.subr.mxu0 0.0
    %491 = vmatpush2.msra.mxu0 0.0
    %492 = vmatprep.subr.mxu0 0.0
    %493 = vmatpush2.msra.mxu0 0.0
    %494 = vmatprep.subr.mxu0 0.0
    %495 = vmatpush2.msra.mxu0 0.0
    %496 = vmatprep.subr.mxu0 0.0
    %497 = vmatpush2.msra.mxu0 0.0
    %498 = vmatprep.subr.mxu0 0.0
    %499 = vmatpush2.msra.mxu0 0.0
    %500 = vmatprep.subr.mxu0 0.0
    %501 = vmatpush2.msra.mxu0 0.0
    %502 = vmatprep.subr.mxu0 0.0
    %503 = vmatpush2.msra.mxu0 0.0
    %504 = vmatprep.mubr.f32.mxu0 0.0
    %505 = vmatmul.mubr.f32.gmra.mxu0 %v345
    %v506 = vpop.f32.mrf.mxu0
    %v507 = vadd.f32 0.0, %v506
    %v508 = vpop.f32.mrf.mxu0
    %v509 = vadd.f32 0.0, %v508
    %510 = vmatprep.mubr.f32.mxu0 0.0
    %511 = vmatmul.mubr.f32.gmra.mxu0 %v348
    %v512 = vpop.f32.mrf.mxu0
    %v513 = vadd.f32 0.0, %v512
    %v514 = vpop.f32.mrf.mxu0
    %v515 = vadd.f32 0.0, %v514
    %516 = vmatprep.mubr.f32.mxu0 0.0
    %517 = vmatmul.mubr.f32.gmra.mxu0 %v351
    %v518 = vpop.f32.mrf.mxu0
    %v519 = vadd.f32 0.0, %v518
    %v520 = vpop.f32.mrf.mxu0
    %v521 = vadd.f32 0.0, %v520
    %522 = vmatprep.mubr.f32.mxu0 0.0
    %523 = vmatmul.mubr.f32.gmra.mxu0 %v354
    %v524 = vpop.f32.mrf.mxu0
    %v525 = vadd.f32 0.0, %v524
    %v526 = vpop.f32.mrf.mxu0
    %v527 = vadd.f32 0.0, %v526
    %528 = vmatprep.mubr.f32.mxu0 0.0
    %529 = vmatmul.mubr.f32.gmra.mxu0 %v357
    %v530 = vpop.f32.mrf.mxu0
    %v531 = vadd.f32 0.0, %v530
    %v532 = vpop.f32.mrf.mxu0
    %v533 = vadd.f32 0.0, %v532
    %534 = vmatprep.mubr.f32.mxu0 0.0
    %535 = vmatmul.mubr.f32.gmra.mxu0 %v360
    %v536 = vpop.f32.mrf.mxu0
    %v537 = vadd.f32 0.0, %v536
    %v538 = vpop.f32.mrf.mxu0
    %v539 = vadd.f32 0.0, %v538
    %540 = vmatprep.mubr.f32.mxu0 0.0
    %541 = vmatmul.mubr.f32.gmra.mxu0 %v363
    %v542 = vpop.f32.mrf.mxu0
    %v543 = vadd.f32 0.0, %v542
    %v544 = vpop.f32.mrf.mxu0
    %v545 = vadd.f32 0.0, %v544
    %546 = vmatprep.mubr.f32.mxu0 0.0
    %547 = vmatmul.mubr.f32.gmra.mxu0 %v366
    %v548 = vpop.f32.mrf.mxu0
    %v549 = vadd.f32 0.0, %v548
    %v550 = vpop.f32.mrf.mxu0
    %v551 = vadd.f32 0.0, %v550
    %552 = vmatprep.mubr.f32.mxu0 0.0
    %553 = vmatmul.mubr.f32.gmra.mxu0 %v369
    %v554 = vpop.f32.mrf.mxu0
    %v555 = vadd.f32 0.0, %v554
    %v556 = vpop.f32.mrf.mxu0
    %v557 = vadd.f32 0.0, %v556
    %558 = vmatprep.mubr.f32.mxu0 0.0
    %559 = vmatmul.mubr.f32.gmra.mxu0 %v372
    %v560 = vpop.f32.mrf.mxu0
    %v561 = vadd.f32 0.0, %v560
    %v562 = vpop.f32.mrf.mxu0
    %v563 = vadd.f32 0.0, %v562
    %564 = vmatprep.mubr.f32.mxu0 0.0
    %565 = vmatmul.mubr.f32.gmra.mxu0 %v375
    %v566 = vpop.f32.mrf.mxu0
    %v567 = vadd.f32 0.0, %v566
    %v568 = vpop.f32.mrf.mxu0
    %v569 = vadd.f32 0.0, %v568
    %570 = vmatprep.mubr.f32.mxu0 0.0
    %571 = vmatmul.mubr.f32.gmra.mxu0 %v378
    %v572 = vpop.f32.mrf.mxu0
    %v573 = vadd.f32 0.0, %v572
    %v574 = vpop.f32.mrf.mxu0
    %v575 = vadd.f32 0.0, %v574
    %576 = vmatprep.mubr.f32.mxu0 0.0
    %577 = vmatmul.mubr.f32.gmra.mxu0 %v381
    %v578 = vpop.f32.mrf.mxu0
    %v579 = vadd.f32 0.0, %v578
    %v580 = vpop.f32.mrf.mxu0
    %v581 = vadd.f32 0.0, %v580
    %582 = vmatprep.mubr.f32.mxu0 0.0
    %583 = vmatmul.mubr.f32.gmra.mxu0 %v384
    %v584 = vpop.f32.mrf.mxu0
    %v585 = vadd.f32 0.0, %v584
    %v586 = vpop.f32.mrf.mxu0
    %v587 = vadd.f32 0.0, %v586
    %588 = vmatprep.mubr.f32.mxu0 0.0
    %589 = vmatmul.mubr.f32.gmra.mxu0 %v387
    %v590 = vpop.f32.mrf.mxu0
    %v591 = vadd.f32 0.0, %v590
    %v592 = vpop.f32.mrf.mxu0
    %v593 = vadd.f32 0.0, %v592
    %594 = vmatprep.mubr.f32.mxu0 0.0
    %595 = vmatmul.mubr.f32.gmra.mxu0 %v390
    %v596 = vpop.f32.mrf.mxu0
    %v597 = vadd.f32 0.0, %v596
    %v598 = vpop.f32.mrf.mxu0
    %v599 = vadd.f32 0.0, %v598
    %600 = vmatprep.mubr.f32.mxu0 0.0
    %601 = vmatmul.mubr.f32.gmra.mxu0 %v393
    %v602 = vpop.f32.mrf.mxu0
    %v603 = vadd.f32 0.0, %v602
    %v604 = vpop.f32.mrf.mxu0
    %v605 = vadd.f32 0.0, %v604
    %606 = vmatprep.mubr.f32.mxu0 0.0
    %607 = vmatmul.mubr.f32.gmra.mxu0 %v396
    %v608 = vpop.f32.mrf.mxu0
    %v609 = vadd.f32 0.0, %v608
    %v610 = vpop.f32.mrf.mxu0
    %v611 = vadd.f32 0.0, %v610
    %612 = vmatprep.mubr.f32.mxu0 0.0
    %613 = vmatmul.mubr.f32.gmra.mxu0 %v399
    %v614 = vpop.f32.mrf.mxu0
    %v615 = vadd.f32 0.0, %v614
    %v616 = vpop.f32.mrf.mxu0
    %v617 = vadd.f32 0.0, %v616
    %618 = vmatprep.mubr.f32.mxu0 0.0
    %619 = vmatmul.mubr.f32.gmra.mxu0 %v402
    %v620 = vpop.f32.mrf.mxu0
    %v621 = vadd.f32 0.0, %v620
    %v622 = vpop.f32.mrf.mxu0
    %v623 = vadd.f32 0.0, %v622
    %624 = vmatprep.mubr.f32.mxu0 0.0
    %625 = vmatmul.mubr.f32.gmra.mxu0 %v405
    %v626 = vpop.f32.mrf.mxu0
    %v627 = vadd.f32 0.0, %v626
    %v628 = vpop.f32.mrf.mxu0
    %v629 = vadd.f32 0.0, %v628
    %630 = vmatprep.mubr.f32.mxu0 0.0
    %631 = vmatmul.mubr.f32.gmra.mxu0 %v408
    %v632 = vpop.f32.mrf.mxu0
    %v633 = vadd.f32 0.0, %v632
    %v634 = vpop.f32.mrf.mxu0
    %v635 = vadd.f32 0.0, %v634
    %636 = vmatprep.mubr.f32.mxu0 0.0
    %637 = vmatmul.mubr.f32.gmra.mxu0 %v411
    %v638 = vpop.f32.mrf.mxu0
    %v639 = vadd.f32 0.0, %v638
    %v640 = vpop.f32.mrf.mxu0
    %v641 = vadd.f32 0.0, %v640
    %642 = vmatprep.mubr.f32.mxu0 0.0
    %643 = vmatmul.mubr.f32.gmra.mxu0 %v414
    %v644 = vpop.f32.mrf.mxu0
    %v645 = vadd.f32 0.0, %v644
    %v646 = vpop.f32.mrf.mxu0
    %v647 = vadd.f32 0.0, %v646
    %648 = vmatprep.mubr.f32.mxu0 0.0
    %649 = vmatmul.mubr.f32.gmra.mxu0 %v417
    %v650 = vpop.f32.mrf.mxu0
    %v651 = vadd.f32 0.0, %v650
    %v652 = vpop.f32.mrf.mxu0
    %v653 = vadd.f32 0.0, %v652
    %654 = vmatprep.mubr.f32.mxu0 0.0
    %655 = vmatmul.mubr.f32.gmra.mxu0 %v420
    %v656 = vpop.f32.mrf.mxu0
    %v657 = vadd.f32 0.0, %v656
    %v658 = vpop.f32.mrf.mxu0
    %v659 = vadd.f32 0.0, %v658
    %660 = vmatprep.mubr.f32.mxu0 0.0
    %661 = vmatmul.mubr.f32.gmra.mxu0 %v423
    %v662 = vpop.f32.mrf.mxu0
    %v663 = vadd.f32 0.0, %v662
    %v664 = vpop.f32.mrf.mxu0
    %v665 = vadd.f32 0.0, %v664
    %666 = vmatprep.mubr.f32.mxu0 0.0
    %667 = vmatmul.mubr.f32.gmra.mxu0 %v426
    %v668 = vpop.f32.mrf.mxu0
    %v669 = vadd.f32 0.0, %v668
    %v670 = vpop.f32.mrf.mxu0
    %v671 = vadd.f32 0.0, %v670
    %672 = vmatprep.mubr.f32.mxu0 0.0
    %673 = vmatmul.mubr.f32.gmra.mxu0 %v429
    %v674 = vpop.f32.mrf.mxu0
    %v675 = vadd.f32 0.0, %v674
    %v676 = vpop.f32.mrf.mxu0
    %v677 = vadd.f32 0.0, %v676
    %678 = vmatprep.mubr.f32.mxu0 0.0
    %679 = vmatmul.mubr.f32.gmra.mxu0 %v432
    %v680 = vpop.f32.mrf.mxu0
    %v681 = vadd.f32 0.0, %v680
    %v682 = vpop.f32.mrf.mxu0
    %v683 = vadd.f32 0.0, %v682
    %684 = vmatprep.mubr.f32.mxu0 0.0
    %685 = vmatmul.mubr.f32.gmra.mxu0 %v435
    %v686 = vpop.f32.mrf.mxu0
    %v687 = vadd.f32 0.0, %v686
    %v688 = vpop.f32.mrf.mxu0
    %v689 = vadd.f32 0.0, %v688
    %690 = vmatprep.mubr.f32.mxu0 0.0
    %691 = vmatmul.mubr.f32.gmra.mxu0 %v438
    %v692 = vpop.f32.mrf.mxu0
    %v693 = vadd.f32 0.0, %v692
    %v694 = vpop.f32.mrf.mxu0
    %v695 = vadd.f32 0.0, %v694
    %696 = vdwg.mxu0
    %697 = vst [vmem:[#allocation2] sm:$0xff] %v507
    %698 = vst [vmem:[#allocation2 + $0x8] sm:$0xff] %v509
    %699 = vst [vmem:[#allocation2 + $0x10] sm:$0xff] %v513
    %700 = vst [vmem:[#allocation2 + $0x18] sm:$0xff] %v515
    %701 = vst [vmem:[#allocation2 + $0x20] sm:$0xff] %v519
    %702 = vst [vmem:[#allocation2 + $0x28] sm:$0xff] %v521
    %703 = vst [vmem:[#allocation2 + $0x30] sm:$0xff] %v525
    %704 = vst [vmem:[#allocation2 + $0x38] sm:$0xff] %v527
    %705 = vst [vmem:[#allocation2 + $0x40] sm:$0xff] %v531
    %706 = vst [vmem:[#allocation2 + $0x48] sm:$0xff] %v533
    %707 = vst [vmem:[#allocation2 + $0x50] sm:$0xff] %v537
    %708 = vst [vmem:[#allocation2 + $0x58] sm:$0xff] %v539
    %709 = vst [vmem:[#allocation2 + $0x60] sm:$0xff] %v543
    %710 = vst [vmem:[#allocation2 + $0x68] sm:$0xff] %v545
    %711 = vst [vmem:[#allocation2 + $0x70] sm:$0xff] %v549
    %712 = vst [vmem:[#allocation2 + $0x78] sm:$0xff] %v551
    %713 = vst [vmem:[#allocation2 + $0x80] sm:$0xff] %v555
    %714 = vst [vmem:[#allocation2 + $0x88] sm:$0xff] %v557
    %715 = vst [vmem:[#allocation2 + $0x90] sm:$0xff] %v561
    %716 = vst [vmem:[#allocation2 + $0x98] sm:$0xff] %v563
    %717 = vst [vmem:[#allocation2 + $0xa0] sm:$0xff] %v567
    %718 = vst [vmem:[#allocation2 + $0xa8] sm:$0xff] %v569
    %719 = vst [vmem:[#allocation2 + $0xb0] sm:$0xff] %v573
    %720 = vst [vmem:[#allocation2 + $0xb8] sm:$0xff] %v575
    %721 = vst [vmem:[#allocation2 + $0xc0] sm:$0xff] %v579
    %722 = vst [vmem:[#allocation2 + $0xc8] sm:$0xff] %v581
    %723 = vst [vmem:[#allocation2 + $0xd0] sm:$0xff] %v585
    %724 = vst [vmem:[#allocation2 + $0xd8] sm:$0xff] %v587
    %725 = vst [vmem:[#allocation2 + $0xe0] sm:$0xff] %v591
    %726 = vst [vmem:[#allocation2 + $0xe8] sm:$0xff] %v593
    %727 = vst [vmem:[#allocation2 + $0xf0] sm:$0xff] %v597
    %728 = vst [vmem:[#allocation2 + $0xf8] sm:$0xff] %v599
    %729 = vst [vmem:[#allocation2 + $0x100] sm:$0xff] %v603
    %730 = vst [vmem:[#allocation2 + $0x108] sm:$0xff] %v605
    %731 = vst [vmem:[#allocation2 + $0x110] sm:$0xff] %v609
    %732 = vst [vmem:[#allocation2 + $0x118] sm:$0xff] %v611
    %733 = vst [vmem:[#allocation2 + $0x120] sm:$0xff] %v615
    %734 = vst [vmem:[#allocation2 + $0x128] sm:$0xff] %v617
    %735 = vst [vmem:[#allocation2 + $0x130] sm:$0xff] %v621
    %736 = vst [vmem:[#allocation2 + $0x138] sm:$0xff] %v623
    %737 = vst [vmem:[#allocation2 + $0x140] sm:$0xff] %v627
    %738 = vst [vmem:[#allocation2 + $0x148] sm:$0xff] %v629
    %739 = vst [vmem:[#allocation2 + $0x150] sm:$0xff] %v633
    %740 = vst [vmem:[#allocation2 + $0x158] sm:$0xff] %v635
    %741 = vst [vmem:[#allocation2 + $0x160] sm:$0xff] %v639
    %742 = vst [vmem:[#allocation2 + $0x168] sm:$0xff] %v641
    %743 = vst [vmem:[#allocation2 + $0x170] sm:$0xff] %v645
    %744 = vst [vmem:[#allocation2 + $0x178] sm:$0xff] %v647
    %745 = vst [vmem:[#allocation2 + $0x180] sm:$0xff] %v651
    %746 = vst [vmem:[#allocation2 + $0x188] sm:$0xff] %v653
    %747 = vst [vmem:[#allocation2 + $0x190] sm:$0xff] %v657
    %748 = vst [vmem:[#allocation2 + $0x198] sm:$0xff] %v659
    %749 = vst [vmem:[#allocation2 + $0x1a0] sm:$0xff] %v663
    %750 = vst [vmem:[#allocation2 + $0x1a8] sm:$0xff] %v665
    %751 = vst [vmem:[#allocation2 + $0x1b0] sm:$0xff] %v669
    %752 = vst [vmem:[#allocation2 + $0x1b8] sm:$0xff] %v671
    %753 = vst [vmem:[#allocation2 + $0x1c0] sm:$0xff] %v675
    %754 = vst [vmem:[#allocation2 + $0x1c8] sm:$0xff] %v677
    %755 = vst [vmem:[#allocation2 + $0x1d0] sm:$0xff] %v681
    %756 = vst [vmem:[#allocation2 + $0x1d8] sm:$0xff] %v683
    %757 = vst [vmem:[#allocation2 + $0x1e0] sm:$0xff] %v687
    %758 = vst [vmem:[#allocation2 + $0x1e8] sm:$0xff] %v689
    %759 = vst [vmem:[#allocation2 + $0x1f0] sm:$0xff] %v693
    %760 = vst [vmem:[#allocation2 + $0x1f8] sm:$0xff] %v695
    %v761 = vmul.f32 %v507, %v507
    %v762 = vmul.f32 %v509, %v509
    %v763 = vmul.f32 %v513, %v513
    %v764 = vmul.f32 %v515, %v515
    %v765 = vmul.f32 %v519, %v519
    %v766 = vmul.f32 %v521, %v521
    %v767 = vmul.f32 %v525, %v525
    %v768 = vmul.f32 %v527, %v527
    %v769 = vmul.f32 %v531, %v531
    %v770 = vmul.f32 %v533, %v533
    %v771 = vmul.f32 %v537, %v537
    %v772 = vmul.f32 %v539, %v539
    %v773 = vmul.f32 %v543, %v543
    %v774 = vmul.f32 %v545, %v545
    %v775 = vmul.f32 %v549, %v549
    %v776 = vmul.f32 %v551, %v551
    %v777 = vmul.f32 %v555, %v555
    %v778 = vmul.f32 %v557, %v557
    %v779 = vmul.f32 %v561, %v561
    %v780 = vmul.f32 %v563, %v563
    %v781 = vmul.f32 %v567, %v567
    %v782 = vmul.f32 %v569, %v569
    %v783 = vmul.f32 %v573, %v573
    %v784 = vmul.f32 %v575, %v575
    %v785 = vmul.f32 %v579, %v579
    %v786 = vmul.f32 %v581, %v581
    %v787 = vmul.f32 %v585, %v585
    %v788 = vmul.f32 %v587, %v587
    %v789 = vmul.f32 %v591, %v591
    %v790 = vmul.f32 %v593, %v593
    %v791 = vmul.f32 %v597, %v597
    %v792 = vmul.f32 %v599, %v599
    %v793 = vmul.f32 %v603, %v603
    %v794 = vmul.f32 %v605, %v605
    %v795 = vmul.f32 %v609, %v609
    %v796 = vmul.f32 %v611, %v611
    %v797 = vmul.f32 %v615, %v615
    %v798 = vmul.f32 %v617, %v617
    %v799 = vmul.f32 %v621, %v621
    %v800 = vmul.f32 %v623, %v623
    %v801 = vmul.f32 %v627, %v627
    %v802 = vmul.f32 %v629, %v629
    %v803 = vmul.f32 %v633, %v633
    %v804 = vmul.f32 %v635, %v635
    %v805 = vmul.f32 %v639, %v639
    %v806 = vmul.f32 %v641, %v641
    %v807 = vmul.f32 %v645, %v645
    %v808 = vmul.f32 %v647, %v647
    %v809 = vmul.f32 %v651, %v651
    %v810 = vmul.f32 %v653, %v653
    %v811 = vmul.f32 %v657, %v657
    %v812 = vmul.f32 %v659, %v659
    %v813 = vmul.f32 %v663, %v663
    %v814 = vmul.f32 %v665, %v665
    %v815 = vmul.f32 %v669, %v669
    %v816 = vmul.f32 %v671, %v671
    %v817 = vmul.f32 %v675, %v675
    %v818 = vmul.f32 %v677, %v677
    %v819 = vmul.f32 %v681, %v681
    %v820 = vmul.f32 %v683, %v683
    %v821 = vmul.f32 %v687, %v687
    %v822 = vmul.f32 %v689, %v689
    %v823 = vmul.f32 %v693, %v693
    %v824 = vmul.f32 %v695, %v695
    %v825 = vadd.f32 %v761, %v762
    %v826 = vadd.f32 %v825, %v763
    %v827 = vadd.f32 %v826, %v764
    %v828 = vadd.f32 %v827, %v765
    %v829 = vadd.f32 %v828, %v766
    %v830 = vadd.f32 %v829, %v767
    %v831 = vadd.f32 %v830, %v768
    %v832 = vadd.f32 %v831, %v769
    %v833 = vadd.f32 %v832, %v770
    %v834 = vadd.f32 %v833, %v771
    %v835 = vadd.f32 %v834, %v772
    %v836 = vadd.f32 %v835, %v773
    %v837 = vadd.f32 %v836, %v774
    %v838 = vadd.f32 %v837, %v775
    %v839 = vadd.f32 %v838, %v776
    %v840 = vadd.f32 %v839, %v777
    %v841 = vadd.f32 %v840, %v778
    %v842 = vadd.f32 %v841, %v779
    %v843 = vadd.f32 %v842, %v780
    %v844 = vadd.f32 %v843, %v781
    %v845 = vadd.f32 %v844, %v782
    %v846 = vadd.f32 %v845, %v783
    %v847 = vadd.f32 %v846, %v784
    %v848 = vadd.f32 %v847, %v785
    %v849 = vadd.f32 %v848, %v786
    %v850 = vadd.f32 %v849, %v787
    %v851 = vadd.f32 %v850, %v788
    %v852 = vadd.f32 %v851, %v789
    %v853 = vadd.f32 %v852, %v790
    %v854 = vadd.f32 %v853, %v791
    %v855 = vadd.f32 %v854, %v792
    %v856 = vadd.f32 %v855, %v793
    %v857 = vadd.f32 %v856, %v794
    %v858 = vadd.f32 %v857, %v795
    %v859 = vadd.f32 %v858, %v796
    %v860 = vadd.f32 %v859, %v797
    %v861 = vadd.f32 %v860, %v798
    %v862 = vadd.f32 %v861, %v799
    %v863 = vadd.f32 %v862, %v800
    %v864 = vadd.f32 %v863, %v801
    %v865 = vadd.f32 %v864, %v802
    %v866 = vadd.f32 %v865, %v803
    %v867 = vadd.f32 %v866, %v804
    %v868 = vadd.f32 %v867, %v805
    %v869 = vadd.f32 %v868, %v806
    %v870 = vadd.f32 %v869, %v807
    %v871 = vadd.f32 %v870, %v808
    %v872 = vadd.f32 %v871, %v809
    %v873 = vadd.f32 %v872, %v810
    %v874 = vadd.f32 %v873, %v811
    %v875 = vadd.f32 %v874, %v812
    %v876 = vadd.f32 %v875, %v813
    %v877 = vadd.f32 %v876, %v814
    %v878 = vadd.f32 %v877, %v815
    %v879 = vadd.f32 %v878, %v816
    %v880 = vadd.f32 %v879, %v817
    %v881 = vadd.f32 %v880, %v818
    %v882 = vadd.f32 %v881, %v819
    %v883 = vadd.f32 %v882, %v820
    %v884 = vadd.f32 %v883, %v821
    %v885 = vadd.f32 %v884, %v822
    %v886 = vadd.f32 %v885, %v823
    %v887 = vadd.f32 %v886, %v824
    %888 = vadd.xlane.f32.xlu0 %v887
    %v889 = vpop.xlane.xlu0 %888
    %v890 = vrot.slane %v889, 4
    %v891 = vadd.f32 %v889, %v890
    %v892 = vrot.slane %v891, 2
    %v893 = vadd.f32 %v891, %v892
    %v894 = vrot.slane %v893, 1
    %v895 = vadd.f32 %v893, %v894
    %s896 = vtos %v895
    %v897 = vstv %s896
    %v898 = vadd.f32 %v897, 1e-30
    %v899 = vrsqrt.pop %v898
    %v900 = vmul.f32 %v507, %v899
    %v901 = vmul.f32 %v509, %v899
    %v902 = vmul.f32 %v513, %v899
    %v903 = vmul.f32 %v515, %v899
    %v904 = vmul.f32 %v519, %v899
    %v905 = vmul.f32 %v521, %v899
    %v906 = vmul.f32 %v525, %v899
    %v907 = vmul.f32 %v527, %v899
    %v908 = vmul.f32 %v531, %v899
    %v909 = vmul.f32 %v533, %v899
    %v910 = vmul.f32 %v537, %v899
    %v911 = vmul.f32 %v539, %v899
    %v912 = vmul.f32 %v543, %v899
    %v913 = vmul.f32 %v545, %v899
    %v914 = vmul.f32 %v549, %v899
    %v915 = vmul.f32 %v551, %v899
    %v916 = vmul.f32 %v555, %v899
    %v917 = vmul.f32 %v557, %v899
    %v918 = vmul.f32 %v561, %v899
    %v919 = vmul.f32 %v563, %v899
    %v920 = vmul.f32 %v567, %v899
    %v921 = vmul.f32 %v569, %v899
    %v922 = vmul.f32 %v573, %v899
    %v923 = vmul.f32 %v575, %v899
    %v924 = vmul.f32 %v579, %v899
    %v925 = vmul.f32 %v581, %v899
    %v926 = vmul.f32 %v585, %v899
    %v927 = vmul.f32 %v587, %v899
    %v928 = vmul.f32 %v591, %v899
    %v929 = vmul.f32 %v593, %v899
    %v930 = vmul.f32 %v597, %v899
    %v931 = vmul.f32 %v599, %v899
    %v932 = vmul.f32 %v603, %v899
    %v933 = vmul.f32 %v605, %v899
    %v934 = vmul.f32 %v609, %v899
    %v935 = vmul.f32 %v611, %v899
    %v936 = vmul.f32 %v615, %v899
    %v937 = vmul.f32 %v617, %v899
    %v938 = vmul.f32 %v621, %v899
    %v939 = vmul.f32 %v623, %v899
    %v940 = vmul.f32 %v627, %v899
    %v941 = vmul.f32 %v629, %v899
    %v942 = vmul.f32 %v633, %v899
    %v943 = vmul.f32 %v635, %v899
    %v944 = vmul.f32 %v639, %v899
    %v945 = vmul.f32 %v641, %v899
    %v946 = vmul.f32 %v645, %v899
    %v947 = vmul.f32 %v647, %v899
    %v948 = vmul.f32 %v651, %v899
    %v949 = vmul.f32 %v653, %v899
    %v950 = vmul.f32 %v657, %v899
    %v951 = vmul.f32 %v659, %v899
    %v952 = vmul.f32 %v663, %v899
    %v953 = vmul.f32 %v665, %v899
    %v954 = vmul.f32 %v669, %v899
    %v955 = vmul.f32 %v671, %v899
    %v956 = vmul.f32 %v675, %v899
    %v957 = vmul.f32 %v677, %v899
    %v958 = vmul.f32 %v681, %v899
    %v959 = vmul.f32 %v683, %v899
    %v960 = vmul.f32 %v687, %v899
    %v961 = vmul.f32 %v689, %v899
    %v962 = vmul.f32 %v693, %v899
    %v963 = vmul.f32 %v695, %v899
    %v964 = vpack.c.bf16 %v902, %v900
    %v965 = vpack.c.bf16 %v903, %v901
    %v966 = vpack.c.bf16 %v906, %v904
    %v967 = vpack.c.bf16 %v907, %v905
    %v968 = vpack.c.bf16 %v910, %v908
    %v969 = vpack.c.bf16 %v911, %v909
    %v970 = vpack.c.bf16 %v914, %v912
    %v971 = vpack.c.bf16 %v915, %v913
    %v972 = vpack.c.bf16 %v918, %v916
    %v973 = vpack.c.bf16 %v919, %v917
    %v974 = vpack.c.bf16 %v922, %v920
    %v975 = vpack.c.bf16 %v923, %v921
    %v976 = vpack.c.bf16 %v926, %v924
    %v977 = vpack.c.bf16 %v927, %v925
    %v978 = vpack.c.bf16 %v930, %v928
    %v979 = vpack.c.bf16 %v931, %v929
    %v980 = vpack.c.bf16 %v934, %v932
    %v981 = vpack.c.bf16 %v935, %v933
    %v982 = vpack.c.bf16 %v938, %v936
    %v983 = vpack.c.bf16 %v939, %v937
    %v984 = vpack.c.bf16 %v942, %v940
    %v985 = vpack.c.bf16 %v943, %v941
    %v986 = vpack.c.bf16 %v946, %v944
    %v987 = vpack.c.bf16 %v947, %v945
    %v988 = vpack.c.bf16 %v950, %v948
    %v989 = vpack.c.bf16 %v951, %v949
    %v990 = vpack.c.bf16 %v954, %v952
    %v991 = vpack.c.bf16 %v955, %v953
    %v992 = vpack.c.bf16 %v958, %v956
    %v993 = vpack.c.bf16 %v959, %v957
    %v994 = vpack.c.bf16 %v962, %v960
    %v995 = vpack.c.bf16 %v963, %v961
    %v1028 = vunpack.c.l.b16 %v964
    %v1029 = vunpack.c.l.b16 %v965
    %v1030 = vunpack.c.h.b16 %v964
    %v1031 = vunpack.c.h.b16 %v965
    %v1032 = vunpack.c.l.b16 %v966
    %v1033 = vunpack.c.l.b16 %v967
    %v1034 = vunpack.c.h.b16 %v966
    %v1035 = vunpack.c.h.b16 %v967
    %v1036 = vunpack.c.l.b16 %v968
    %v1037 = vunpack.c.l.b16 %v969
    %v1038 = vunpack.c.h.b16 %v968
    %v1039 = vunpack.c.h.b16 %v969
    %v1040 = vunpack.c.l.b16 %v970
    %v1041 = vunpack.c.l.b16 %v971
    %v1042 = vunpack.c.h.b16 %v970
    %v1043 = vunpack.c.h.b16 %v971
    %v1044 = vunpack.c.l.b16 %v972
    %v1045 = vunpack.c.l.b16 %v973
    %v1046 = vunpack.c.h.b16 %v972
    %v1047 = vunpack.c.h.b16 %v973
    %v1048 = vunpack.c.l.b16 %v974
    %v1049 = vunpack.c.l.b16 %v975
    %v1050 = vunpack.c.h.b16 %v974
    %v1051 = vunpack.c.h.b16 %v975
    %v1052 = vunpack.c.l.b16 %v976
    %v1053 = vunpack.c.l.b16 %v977
    %v1054 = vunpack.c.h.b16 %v976
    %v1055 = vunpack.c.h.b16 %v977
    %v1056 = vunpack.c.l.b16 %v978
    %v1057 = vunpack.c.l.b16 %v979
    %v1058 = vunpack.c.h.b16 %v978
    %v1059 = vunpack.c.h.b16 %v979
    %v1060 = vunpack.c.l.b16 %v980
    %v1061 = vunpack.c.l.b16 %v981
    %v1062 = vunpack.c.h.b16 %v980
    %v1063 = vunpack.c.h.b16 %v981
    %v1064 = vunpack.c.l.b16 %v982
    %v1065 = vunpack.c.l.b16 %v983
    %v1066 = vunpack.c.h.b16 %v982
    %v1067 = vunpack.c.h.b16 %v983
    %v1068 = vunpack.c.l.b16 %v984
    %v1069 = vunpack.c.l.b16 %v985
    %v1070 = vunpack.c.h.b16 %v984
    %v1071 = vunpack.c.h.b16 %v985
    %v1072 = vunpack.c.l.b16 %v986
    %v1073 = vunpack.c.l.b16 %v987
    %v1074 = vunpack.c.h.b16 %v986
    %v1075 = vunpack.c.h.b16 %v987
    %v1076 = vunpack.c.l.b16 %v988
    %v1077 = vunpack.c.l.b16 %v989
    %v1078 = vunpack.c.h.b16 %v988
    %v1079 = vunpack.c.h.b16 %v989
    %v1080 = vunpack.c.l.b16 %v990
    %v1081 = vunpack.c.l.b16 %v991
    %v1082 = vunpack.c.h.b16 %v990
    %v1083 = vunpack.c.h.b16 %v991
    %v1084 = vunpack.c.l.b16 %v992
    %v1085 = vunpack.c.l.b16 %v993
    %v1086 = vunpack.c.h.b16 %v992
    %v1087 = vunpack.c.h.b16 %v993
    %v1088 = vunpack.c.l.b16 %v994
    %v1089 = vunpack.c.l.b16 %v995
    %v1090 = vunpack.c.h.b16 %v994
    %v1091 = vunpack.c.h.b16 %v995
    %v1092 = vpack.c.b16 %v1029, %v1028
    %v1093 = vpack.c.b16 %v1031, %v1030
    %v1094 = vpack.c.b16 %v1033, %v1032
    %v1095 = vpack.c.b16 %v1035, %v1034
    %v1096 = vpack.c.b16 %v1037, %v1036
    %v1097 = vpack.c.b16 %v1039, %v1038
    %v1098 = vpack.c.b16 %v1041, %v1040
    %v1099 = vpack.c.b16 %v1043, %v1042
    %v1100 = vpack.c.b16 %v1045, %v1044
    %v1101 = vpack.c.b16 %v1047, %v1046
    %v1102 = vpack.c.b16 %v1049, %v1048
    %v1103 = vpack.c.b16 %v1051, %v1050
    %v1104 = vpack.c.b16 %v1053, %v1052
    %v1105 = vpack.c.b16 %v1055, %v1054
    %v1106 = vpack.c.b16 %v1057, %v1056
    %v1107 = vpack.c.b16 %v1059, %v1058
    %v1108 = vpack.c.b16 %v1061, %v1060
    %v1109 = vpack.c.b16 %v1063, %v1062
    %v1110 = vpack.c.b16 %v1065, %v1064
    %v1111 = vpack.c.b16 %v1067, %v1066
    %v1112 = vpack.c.b16 %v1069, %v1068
    %v1113 = vpack.c.b16 %v1071, %v1070
    %v1114 = vpack.c.b16 %v1073, %v1072
    %v1115 = vpack.c.b16 %v1075, %v1074
    %v1116 = vpack.c.b16 %v1077, %v1076
    %v1117 = vpack.c.b16 %v1079, %v1078
    %v1118 = vpack.c.b16 %v1081, %v1080
    %v1119 = vpack.c.b16 %v1083, %v1082
    %v1120 = vpack.c.b16 %v1085, %v1084
    %v1121 = vpack.c.b16 %v1087, %v1086
    %v1122 = vpack.c.b16 %v1089, %v1088
    %v1123 = vpack.c.b16 %v1091, %v1090
    %1156 = vst [vmem:[#allocation3] sm:$0xff] %v1092
    %1157 = vst [vmem:[#allocation3 + $0x8] sm:$0xff] %v1093
    %1158 = vst [vmem:[#allocation3 + $0x10] sm:$0xff] %v1094
    %1159 = vst [vmem:[#allocation3 + $0x18] sm:$0xff] %v1095
    %1160 = vst [vmem:[#allocation3 + $0x20] sm:$0xff] %v1096
    %1161 = vst [vmem:[#allocation3 + $0x28] sm:$0xff] %v1097
    %1162 = vst [vmem:[#allocation3 + $0x30] sm:$0xff] %v1098
    %1163 = vst [vmem:[#allocation3 + $0x38] sm:$0xff] %v1099
    %1164 = vst [vmem:[#allocation3 + $0x40] sm:$0xff] %v1100
    %1165 = vst [vmem:[#allocation3 + $0x48] sm:$0xff] %v1101
    %1166 = vst [vmem:[#allocation3 + $0x50] sm:$0xff] %v1102
    %1167 = vst [vmem:[#allocation3 + $0x58] sm:$0xff] %v1103
    %1168 = vst [vmem:[#allocation3 + $0x60] sm:$0xff] %v1104
    %1169 = vst [vmem:[#allocation3 + $0x68] sm:$0xff] %v1105
    %1170 = vst [vmem:[#allocation3 + $0x70] sm:$0xff] %v1106
    %1171 = vst [vmem:[#allocation3 + $0x78] sm:$0xff] %v1107
    %1172 = vst [vmem:[#allocation3 + $0x80] sm:$0xff] %v1108
    %1173 = vst [vmem:[#allocation3 + $0x88] sm:$0xff] %v1109
    %1174 = vst [vmem:[#allocation3 + $0x90] sm:$0xff] %v1110
    %1175 = vst [vmem:[#allocation3 + $0x98] sm:$0xff] %v1111
    %1176 = vst [vmem:[#allocation3 + $0xa0] sm:$0xff] %v1112
    %1177 = vst [vmem:[#allocation3 + $0xa8] sm:$0xff] %v1113
    %1178 = vst [vmem:[#allocation3 + $0xb0] sm:$0xff] %v1114
    %1179 = vst [vmem:[#allocation3 + $0xb8] sm:$0xff] %v1115
    %1180 = vst [vmem:[#allocation3 + $0xc0] sm:$0xff] %v1116
    %1181 = vst [vmem:[#allocation3 + $0xc8] sm:$0xff] %v1117
    %1182 = vst [vmem:[#allocation3 + $0xd0] sm:$0xff] %v1118
    %1183 = vst [vmem:[#allocation3 + $0xd8] sm:$0xff] %v1119
    %1184 = vst [vmem:[#allocation3 + $0xe0] sm:$0xff] %v1120
    %1185 = vst [vmem:[#allocation3 + $0xe8] sm:$0xff] %v1121
    %1186 = vst [vmem:[#allocation3 + $0xf0] sm:$0xff] %v1122
    %1187 = vst [vmem:[#allocation3 + $0xf8] sm:$0xff] %v1123
    %v1188 = vld [vmem:[%s5] sm:$0x3]
    %v1189 = vld [vmem:[%s6] sm:$0x3]
    %v1190 = vld [vmem:[#allocation3] sm:$0xff]
    %v1191 = vld [vmem:[#allocation3 + $0x8] sm:$0xff]
    %v1192 = vld [vmem:[#allocation3 + $0x10] sm:$0xff]
    %v1193 = vld [vmem:[#allocation3 + $0x18] sm:$0xff]
    %v1194 = vld [vmem:[#allocation3 + $0x20] sm:$0xff]
    %v1195 = vld [vmem:[#allocation3 + $0x28] sm:$0xff]
    %v1196 = vld [vmem:[#allocation3 + $0x30] sm:$0xff]
    %v1197 = vld [vmem:[#allocation3 + $0x38] sm:$0xff]
    %v1198 = vld [vmem:[#allocation3 + $0x40] sm:$0xff]
    %v1199 = vld [vmem:[#allocation3 + $0x48] sm:$0xff]
    %v1200 = vld [vmem:[#allocation3 + $0x50] sm:$0xff]
    %v1201 = vld [vmem:[#allocation3 + $0x58] sm:$0xff]
    %v1202 = vld [vmem:[#allocation3 + $0x60] sm:$0xff]
    %v1203 = vld [vmem:[#allocation3 + $0x68] sm:$0xff]
    %v1204 = vld [vmem:[#allocation3 + $0x70] sm:$0xff]
    %v1205 = vld [vmem:[#allocation3 + $0x78] sm:$0xff]
    %v1206 = vld [vmem:[#allocation3 + $0x80] sm:$0xff]
    %v1207 = vld [vmem:[#allocation3 + $0x88] sm:$0xff]
    %v1208 = vld [vmem:[#allocation3 + $0x90] sm:$0xff]
    %v1209 = vld [vmem:[#allocation3 + $0x98] sm:$0xff]
    %v1210 = vld [vmem:[#allocation3 + $0xa0] sm:$0xff]
    %v1211 = vld [vmem:[#allocation3 + $0xa8] sm:$0xff]
    %v1212 = vld [vmem:[#allocation3 + $0xb0] sm:$0xff]
    %v1213 = vld [vmem:[#allocation3 + $0xb8] sm:$0xff]
    %v1214 = vld [vmem:[#allocation3 + $0xc0] sm:$0xff]
    %v1215 = vld [vmem:[#allocation3 + $0xc8] sm:$0xff]
    %v1216 = vld [vmem:[#allocation3 + $0xd0] sm:$0xff]
    %v1217 = vld [vmem:[#allocation3 + $0xd8] sm:$0xff]
    %v1218 = vld [vmem:[#allocation3 + $0xe0] sm:$0xff]
    %v1219 = vld [vmem:[#allocation3 + $0xe8] sm:$0xff]
    %v1220 = vld [vmem:[#allocation3 + $0xf0] sm:$0xff]
    %v1221 = vld [vmem:[#allocation3 + $0xf8] sm:$0xff]
    %v1254 = vunpack.c.l.b16 %v1190
    %v1255 = vunpack.c.h.b16 %v1190
    %v1256 = vunpack.c.l.b16 %v1191
    %v1257 = vunpack.c.h.b16 %v1191
    %v1258 = vunpack.c.l.b16 %v1192
    %v1259 = vunpack.c.h.b16 %v1192
    %v1260 = vunpack.c.l.b16 %v1193
    %v1261 = vunpack.c.h.b16 %v1193
    %v1262 = vunpack.c.l.b16 %v1194
    %v1263 = vunpack.c.h.b16 %v1194
    %v1264 = vunpack.c.l.b16 %v1195
    %v1265 = vunpack.c.h.b16 %v1195
    %v1266 = vunpack.c.l.b16 %v1196
    %v1267 = vunpack.c.h.b16 %v1196
    %v1268 = vunpack.c.l.b16 %v1197
    %v1269 = vunpack.c.h.b16 %v1197
    %v1270 = vunpack.c.l.b16 %v1198
    %v1271 = vunpack.c.h.b16 %v1198
    %v1272 = vunpack.c.l.b16 %v1199
    %v1273 = vunpack.c.h.b16 %v1199
    %v1274 = vunpack.c.l.b16 %v1200
    %v1275 = vunpack.c.h.b16 %v1200
    %v1276 = vunpack.c.l.b16 %v1201
    %v1277 = vunpack.c.h.b16 %v1201
    %v1278 = vunpack.c.l.b16 %v1202
    %v1279 = vunpack.c.h.b16 %v1202
    %v1280 = vunpack.c.l.b16 %v1203
    %v1281 = vunpack.c.h.b16 %v1203
    %v1282 = vunpack.c.l.b16 %v1204
    %v1283 = vunpack.c.h.b16 %v1204
    %v1284 = vunpack.c.l.b16 %v1205
    %v1285 = vunpack.c.h.b16 %v1205
    %v1286 = vunpack.c.l.b16 %v1206
    %v1287 = vunpack.c.h.b16 %v1206
    %v1288 = vunpack.c.l.b16 %v1207
    %v1289 = vunpack.c.h.b16 %v1207
    %v1290 = vunpack.c.l.b16 %v1208
    %v1291 = vunpack.c.h.b16 %v1208
    %v1292 = vunpack.c.l.b16 %v1209
    %v1293 = vunpack.c.h.b16 %v1209
    %v1294 = vunpack.c.l.b16 %v1210
    %v1295 = vunpack.c.h.b16 %v1210
    %v1296 = vunpack.c.l.b16 %v1211
    %v1297 = vunpack.c.h.b16 %v1211
    %v1298 = vunpack.c.l.b16 %v1212
    %v1299 = vunpack.c.h.b16 %v1212
    %v1300 = vunpack.c.l.b16 %v1213
    %v1301 = vunpack.c.h.b16 %v1213
    %v1302 = vunpack.c.l.b16 %v1214
    %v1303 = vunpack.c.h.b16 %v1214
    %v1304 = vunpack.c.l.b16 %v1215
    %v1305 = vunpack.c.h.b16 %v1215
    %v1306 = vunpack.c.l.b16 %v1216
    %v1307 = vunpack.c.h.b16 %v1216
    %v1308 = vunpack.c.l.b16 %v1217
    %v1309 = vunpack.c.h.b16 %v1217
    %v1310 = vunpack.c.l.b16 %v1218
    %v1311 = vunpack.c.h.b16 %v1218
    %v1312 = vunpack.c.l.b16 %v1219
    %v1313 = vunpack.c.h.b16 %v1219
    %v1314 = vunpack.c.l.b16 %v1220
    %v1315 = vunpack.c.h.b16 %v1220
    %v1316 = vunpack.c.l.b16 %v1221
    %v1317 = vunpack.c.h.b16 %v1221
    %v1318 = vpack.c.b16 %v1256, %v1254
    %v1319 = vpack.c.b16 %v1257, %v1255
    %v1320 = vpack.c.b16 %v1260, %v1258
    %v1321 = vpack.c.b16 %v1261, %v1259
    %v1322 = vpack.c.b16 %v1264, %v1262
    %v1323 = vpack.c.b16 %v1265, %v1263
    %v1324 = vpack.c.b16 %v1268, %v1266
    %v1325 = vpack.c.b16 %v1269, %v1267
    %v1326 = vpack.c.b16 %v1272, %v1270
    %v1327 = vpack.c.b16 %v1273, %v1271
    %v1328 = vpack.c.b16 %v1276, %v1274
    %v1329 = vpack.c.b16 %v1277, %v1275
    %v1330 = vpack.c.b16 %v1280, %v1278
    %v1331 = vpack.c.b16 %v1281, %v1279
    %v1332 = vpack.c.b16 %v1284, %v1282
    %v1333 = vpack.c.b16 %v1285, %v1283
    %v1334 = vpack.c.b16 %v1288, %v1286
    %v1335 = vpack.c.b16 %v1289, %v1287
    %v1336 = vpack.c.b16 %v1292, %v1290
    %v1337 = vpack.c.b16 %v1293, %v1291
    %v1338 = vpack.c.b16 %v1296, %v1294
    %v1339 = vpack.c.b16 %v1297, %v1295
    %v1340 = vpack.c.b16 %v1300, %v1298
    %v1341 = vpack.c.b16 %v1301, %v1299
    %v1342 = vpack.c.b16 %v1304, %v1302
    %v1343 = vpack.c.b16 %v1305, %v1303
    %v1344 = vpack.c.b16 %v1308, %v1306
    %v1345 = vpack.c.b16 %v1309, %v1307
    %v1346 = vpack.c.b16 %v1312, %v1310
    %v1347 = vpack.c.b16 %v1313, %v1311
    %v1348 = vpack.c.b16 %v1316, %v1314
    %v1349 = vpack.c.b16 %v1317, %v1315
    %1382 = vmatprep.subr.bf16.mxu0 %v1333
    %1383 = vmatpush1.bf16.msra.mxu0 %v1332
    %1384 = vmatprep.subr.bf16.mxu0 %v1331
    %1385 = vmatpush1.bf16.msra.mxu0 %v1330
    %1386 = vmatprep.subr.bf16.mxu0 %v1329
    %1387 = vmatpush1.bf16.msra.mxu0 %v1328
    %1388 = vmatprep.subr.bf16.mxu0 %v1327
    %1389 = vmatpush1.bf16.msra.mxu0 %v1326
    %1390 = vmatprep.subr.bf16.mxu0 %v1325
    %1391 = vmatpush1.bf16.msra.mxu0 %v1324
    %1392 = vmatprep.subr.bf16.mxu0 %v1323
    %1393 = vmatpush1.bf16.msra.mxu0 %v1322
    %1394 = vmatprep.subr.bf16.mxu0 %v1321
    %1395 = vmatpush1.bf16.msra.mxu0 %v1320
    %1396 = vmatprep.subr.bf16.mxu0 %v1319
    %1397 = vmatpush1.bf16.msra.mxu0 %v1318
    %1398 = vmatprep.subr.bf16.mxu0 %v1349
    %1399 = vmatpush2.bf16.msra.mxu0 %v1348
    %1400 = vmatprep.subr.bf16.mxu0 %v1347
    %1401 = vmatpush2.bf16.msra.mxu0 %v1346
    %1402 = vmatprep.subr.bf16.mxu0 %v1345
    %1403 = vmatpush2.bf16.msra.mxu0 %v1344
    %1404 = vmatprep.subr.bf16.mxu0 %v1343
    %1405 = vmatpush2.bf16.msra.mxu0 %v1342
    %1406 = vmatprep.subr.bf16.mxu0 %v1341
    %1407 = vmatpush2.bf16.msra.mxu0 %v1340
    %1408 = vmatprep.subr.bf16.mxu0 %v1339
    %1409 = vmatpush2.bf16.msra.mxu0 %v1338
    %1410 = vmatprep.subr.bf16.mxu0 %v1337
    %1411 = vmatpush2.bf16.msra.mxu0 %v1336
    %1412 = vmatprep.subr.bf16.mxu0 %v1335
    %1413 = vmatpush2.bf16.msra.mxu0 %v1334
    %1414 = vmatprep.mubr.bf16.mxu0 %v1319
    %1415 = vmatmul.mubr.bf16.gmra.mxu0 %v1318
    %v1416 = vpop.f32.mrf.mxu0
    %v1417 = vadd.f32 0.0, %v1416
    %v1418 = vpop.f32.mrf.mxu0
    %v1419 = vadd.f32 0.0, %v1418
    %v1420 = vpop.f32.mrf.mxu0
    %v1421 = vadd.f32 0.0, %v1420
    %v1422 = vpop.f32.mrf.mxu0
    %v1423 = vadd.f32 0.0, %v1422
    %1424 = vmatprep.mubr.bf16.mxu0 %v1321
    %1425 = vmatmul.mubr.bf16.gmra.mxu0 %v1320
    %v1426 = vpop.f32.mrf.mxu0
    %v1427 = vadd.f32 0.0, %v1426
    %v1428 = vpop.f32.mrf.mxu0
    %v1429 = vadd.f32 0.0, %v1428
    %v1430 = vpop.f32.mrf.mxu0
    %v1431 = vadd.f32 0.0, %v1430
    %v1432 = vpop.f32.mrf.mxu0
    %v1433 = vadd.f32 0.0, %v1432
    %1434 = vmatprep.mubr.bf16.mxu0 %v1323
    %1435 = vmatmul.mubr.bf16.gmra.mxu0 %v1322
    %v1436 = vpop.f32.mrf.mxu0
    %v1437 = vadd.f32 0.0, %v1436
    %v1438 = vpop.f32.mrf.mxu0
    %v1439 = vadd.f32 0.0, %v1438
    %v1440 = vpop.f32.mrf.mxu0
    %v1441 = vadd.f32 0.0, %v1440
    %v1442 = vpop.f32.mrf.mxu0
    %v1443 = vadd.f32 0.0, %v1442
    %1444 = vmatprep.mubr.bf16.mxu0 %v1325
    %1445 = vmatmul.mubr.bf16.gmra.mxu0 %v1324
    %v1446 = vpop.f32.mrf.mxu0
    %v1447 = vadd.f32 0.0, %v1446
    %v1448 = vpop.f32.mrf.mxu0
    %v1449 = vadd.f32 0.0, %v1448
    %v1450 = vpop.f32.mrf.mxu0
    %v1451 = vadd.f32 0.0, %v1450
    %v1452 = vpop.f32.mrf.mxu0
    %v1453 = vadd.f32 0.0, %v1452
    %1454 = vmatprep.mubr.bf16.mxu0 %v1327
    %1455 = vmatmul.mubr.bf16.gmra.mxu0 %v1326
    %v1456 = vpop.f32.mrf.mxu0
    %v1457 = vadd.f32 0.0, %v1456
    %v1458 = vpop.f32.mrf.mxu0
    %v1459 = vadd.f32 0.0, %v1458
    %v1460 = vpop.f32.mrf.mxu0
    %v1461 = vadd.f32 0.0, %v1460
    %v1462 = vpop.f32.mrf.mxu0
    %v1463 = vadd.f32 0.0, %v1462
    %1464 = vmatprep.mubr.bf16.mxu0 %v1329
    %1465 = vmatmul.mubr.bf16.gmra.mxu0 %v1328
    %v1466 = vpop.f32.mrf.mxu0
    %v1467 = vadd.f32 0.0, %v1466
    %v1468 = vpop.f32.mrf.mxu0
    %v1469 = vadd.f32 0.0, %v1468
    %v1470 = vpop.f32.mrf.mxu0
    %v1471 = vadd.f32 0.0, %v1470
    %v1472 = vpop.f32.mrf.mxu0
    %v1473 = vadd.f32 0.0, %v1472
    %1474 = vmatprep.mubr.bf16.mxu0 %v1331
    %1475 = vmatmul.mubr.bf16.gmra.mxu0 %v1330
    %v1476 = vpop.f32.mrf.mxu0
    %v1477 = vadd.f32 0.0, %v1476
    %v1478 = vpop.f32.mrf.mxu0
    %v1479 = vadd.f32 0.0, %v1478
    %v1480 = vpop.f32.mrf.mxu0
    %v1481 = vadd.f32 0.0, %v1480
    %v1482 = vpop.f32.mrf.mxu0
    %v1483 = vadd.f32 0.0, %v1482
    %1484 = vmatprep.mubr.bf16.mxu0 %v1333
    %1485 = vmatmul.mubr.bf16.gmra.mxu0 %v1332
    %v1486 = vpop.f32.mrf.mxu0
    %v1487 = vadd.f32 0.0, %v1486
    %v1488 = vpop.f32.mrf.mxu0
    %v1489 = vadd.f32 0.0, %v1488
    %v1490 = vpop.f32.mrf.mxu0
    %v1491 = vadd.f32 0.0, %v1490
    %v1492 = vpop.f32.mrf.mxu0
    %v1493 = vadd.f32 0.0, %v1492
    %1494 = vmatprep.mubr.bf16.mxu0 %v1335
    %1495 = vmatmul.mubr.bf16.gmra.mxu0 %v1334
    %v1496 = vpop.f32.mrf.mxu0
    %v1497 = vadd.f32 0.0, %v1496
    %v1498 = vpop.f32.mrf.mxu0
    %v1499 = vadd.f32 0.0, %v1498
    %v1500 = vpop.f32.mrf.mxu0
    %v1501 = vadd.f32 0.0, %v1500
    %v1502 = vpop.f32.mrf.mxu0
    %v1503 = vadd.f32 0.0, %v1502
    %1504 = vmatprep.mubr.bf16.mxu0 %v1337
    %1505 = vmatmul.mubr.bf16.gmra.mxu0 %v1336
    %v1506 = vpop.f32.mrf.mxu0
    %v1507 = vadd.f32 0.0, %v1506
    %v1508 = vpop.f32.mrf.mxu0
    %v1509 = vadd.f32 0.0, %v1508
    %v1510 = vpop.f32.mrf.mxu0
    %v1511 = vadd.f32 0.0, %v1510
    %v1512 = vpop.f32.mrf.mxu0
    %v1513 = vadd.f32 0.0, %v1512
    %1514 = vmatprep.mubr.bf16.mxu0 %v1339
    %1515 = vmatmul.mubr.bf16.gmra.mxu0 %v1338
    %v1516 = vpop.f32.mrf.mxu0
    %v1517 = vadd.f32 0.0, %v1516
    %v1518 = vpop.f32.mrf.mxu0
    %v1519 = vadd.f32 0.0, %v1518
    %v1520 = vpop.f32.mrf.mxu0
    %v1521 = vadd.f32 0.0, %v1520
    %v1522 = vpop.f32.mrf.mxu0
    %v1523 = vadd.f32 0.0, %v1522
    %1524 = vmatprep.mubr.bf16.mxu0 %v1341
    %1525 = vmatmul.mubr.bf16.gmra.mxu0 %v1340
    %v1526 = vpop.f32.mrf.mxu0
    %v1527 = vadd.f32 0.0, %v1526
    %v1528 = vpop.f32.mrf.mxu0
    %v1529 = vadd.f32 0.0, %v1528
    %v1530 = vpop.f32.mrf.mxu0
    %v1531 = vadd.f32 0.0, %v1530
    %v1532 = vpop.f32.mrf.mxu0
    %v1533 = vadd.f32 0.0, %v1532
    %1534 = vmatprep.mubr.bf16.mxu0 %v1343
    %1535 = vmatmul.mubr.bf16.gmra.mxu0 %v1342
    %v1536 = vpop.f32.mrf.mxu0
    %v1537 = vadd.f32 0.0, %v1536
    %v1538 = vpop.f32.mrf.mxu0
    %v1539 = vadd.f32 0.0, %v1538
    %v1540 = vpop.f32.mrf.mxu0
    %v1541 = vadd.f32 0.0, %v1540
    %v1542 = vpop.f32.mrf.mxu0
    %v1543 = vadd.f32 0.0, %v1542
    %1544 = vmatprep.mubr.bf16.mxu0 %v1345
    %1545 = vmatmul.mubr.bf16.gmra.mxu0 %v1344
    %v1546 = vpop.f32.mrf.mxu0
    %v1547 = vadd.f32 0.0, %v1546
    %v1548 = vpop.f32.mrf.mxu0
    %v1549 = vadd.f32 0.0, %v1548
    %v1550 = vpop.f32.mrf.mxu0
    %v1551 = vadd.f32 0.0, %v1550
    %v1552 = vpop.f32.mrf.mxu0
    %v1553 = vadd.f32 0.0, %v1552
    %1554 = vmatprep.mubr.bf16.mxu0 %v1347
    %1555 = vmatmul.mubr.bf16.gmra.mxu0 %v1346
    %v1556 = vpop.f32.mrf.mxu0
    %v1557 = vadd.f32 0.0, %v1556
    %v1558 = vpop.f32.mrf.mxu0
    %v1559 = vadd.f32 0.0, %v1558
    %v1560 = vpop.f32.mrf.mxu0
    %v1561 = vadd.f32 0.0, %v1560
    %v1562 = vpop.f32.mrf.mxu0
    %v1563 = vadd.f32 0.0, %v1562
    %1564 = vmatprep.mubr.bf16.mxu0 %v1349
    %1565 = vmatmul.mubr.bf16.gmra.mxu0 %v1348
    %v1566 = vpop.f32.mrf.mxu0
    %v1567 = vadd.f32 0.0, %v1566
    %v1568 = vpop.f32.mrf.mxu0
    %v1569 = vadd.f32 0.0, %v1568
    %v1570 = vpop.f32.mrf.mxu0
    %v1571 = vadd.f32 0.0, %v1570
    %v1572 = vpop.f32.mrf.mxu0
    %v1573 = vadd.f32 0.0, %v1572
    %1574 = vdwg.mxu0
    %v1575 = vpack.c.bf16 %v1421, %v1417
    %v1576 = vpack.c.bf16 %v1423, %v1419
    %v1577 = vpack.c.bf16 %v1431, %v1427
    %v1578 = vpack.c.bf16 %v1433, %v1429
    %v1579 = vpack.c.bf16 %v1441, %v1437
    %v1580 = vpack.c.bf16 %v1443, %v1439
    %v1581 = vpack.c.bf16 %v1451, %v1447
    %v1582 = vpack.c.bf16 %v1453, %v1449
    %v1583 = vpack.c.bf16 %v1461, %v1457
    %v1584 = vpack.c.bf16 %v1463, %v1459
    %v1585 = vpack.c.bf16 %v1471, %v1467
    %v1586 = vpack.c.bf16 %v1473, %v1469
    %v1587 = vpack.c.bf16 %v1481, %v1477
    %v1588 = vpack.c.bf16 %v1483, %v1479
    %v1589 = vpack.c.bf16 %v1491, %v1487
    %v1590 = vpack.c.bf16 %v1493, %v1489
    %v1591 = vpack.c.bf16 %v1501, %v1497
    %v1592 = vpack.c.bf16 %v1503, %v1499
    %v1593 = vpack.c.bf16 %v1511, %v1507
    %v1594 = vpack.c.bf16 %v1513, %v1509
    %v1595 = vpack.c.bf16 %v1521, %v1517
    %v1596 = vpack.c.bf16 %v1523, %v1519
    %v1597 = vpack.c.bf16 %v1531, %v1527
    %v1598 = vpack.c.bf16 %v1533, %v1529
    %v1599 = vpack.c.bf16 %v1541, %v1537
    %v1600 = vpack.c.bf16 %v1543, %v1539
    %v1601 = vpack.c.bf16 %v1551, %v1547
    %v1602 = vpack.c.bf16 %v1553, %v1549
    %v1603 = vpack.c.bf16 %v1561, %v1557
    %v1604 = vpack.c.bf16 %v1563, %v1559
    %v1605 = vpack.c.bf16 %v1571, %v1567
    %v1606 = vpack.c.bf16 %v1573, %v1569
    %v1639 = vunpack.c.l.b16 %v1575
    %v1640 = vunpack.c.l.b16 %v1576
    %v1641 = vunpack.c.h.b16 %v1575
    %v1642 = vunpack.c.h.b16 %v1576
    %v1643 = vunpack.c.l.b16 %v1577
    %v1644 = vunpack.c.l.b16 %v1578
    %v1645 = vunpack.c.h.b16 %v1577
    %v1646 = vunpack.c.h.b16 %v1578
    %v1647 = vunpack.c.l.b16 %v1579
    %v1648 = vunpack.c.l.b16 %v1580
    %v1649 = vunpack.c.h.b16 %v1579
    %v1650 = vunpack.c.h.b16 %v1580
    %v1651 = vunpack.c.l.b16 %v1581
    %v1652 = vunpack.c.l.b16 %v1582
    %v1653 = vunpack.c.h.b16 %v1581
    %v1654 = vunpack.c.h.b16 %v1582
    %v1655 = vunpack.c.l.b16 %v1583
    %v1656 = vunpack.c.l.b16 %v1584
    %v1657 = vunpack.c.h.b16 %v1583
    %v1658 = vunpack.c.h.b16 %v1584
    %v1659 = vunpack.c.l.b16 %v1585
    %v1660 = vunpack.c.l.b16 %v1586
    %v1661 = vunpack.c.h.b16 %v1585
    %v1662 = vunpack.c.h.b16 %v1586
    %v1663 = vunpack.c.l.b16 %v1587
    %v1664 = vunpack.c.l.b16 %v1588
    %v1665 = vunpack.c.h.b16 %v1587
    %v1666 = vunpack.c.h.b16 %v1588
    %v1667 = vunpack.c.l.b16 %v1589
    %v1668 = vunpack.c.l.b16 %v1590
    %v1669 = vunpack.c.h.b16 %v1589
    %v1670 = vunpack.c.h.b16 %v1590
    %v1671 = vunpack.c.l.b16 %v1591
    %v1672 = vunpack.c.l.b16 %v1592
    %v1673 = vunpack.c.h.b16 %v1591
    %v1674 = vunpack.c.h.b16 %v1592
    %v1675 = vunpack.c.l.b16 %v1593
    %v1676 = vunpack.c.l.b16 %v1594
    %v1677 = vunpack.c.h.b16 %v1593
    %v1678 = vunpack.c.h.b16 %v1594
    %v1679 = vunpack.c.l.b16 %v1595
    %v1680 = vunpack.c.l.b16 %v1596
    %v1681 = vunpack.c.h.b16 %v1595
    %v1682 = vunpack.c.h.b16 %v1596
    %v1683 = vunpack.c.l.b16 %v1597
    %v1684 = vunpack.c.l.b16 %v1598
    %v1685 = vunpack.c.h.b16 %v1597
    %v1686 = vunpack.c.h.b16 %v1598
    %v1687 = vunpack.c.l.b16 %v1599
    %v1688 = vunpack.c.l.b16 %v1600
    %v1689 = vunpack.c.h.b16 %v1599
    %v1690 = vunpack.c.h.b16 %v1600
    %v1691 = vunpack.c.l.b16 %v1601
    %v1692 = vunpack.c.l.b16 %v1602
    %v1693 = vunpack.c.h.b16 %v1601
    %v1694 = vunpack.c.h.b16 %v1602
    %v1695 = vunpack.c.l.b16 %v1603
    %v1696 = vunpack.c.l.b16 %v1604
    %v1697 = vunpack.c.h.b16 %v1603
    %v1698 = vunpack.c.h.b16 %v1604
    %v1699 = vunpack.c.l.b16 %v1605
    %v1700 = vunpack.c.l.b16 %v1606
    %v1701 = vunpack.c.h.b16 %v1605
    %v1702 = vunpack.c.h.b16 %v1606
    %v1703 = vpack.c.b16 %v1640, %v1639
    %v1704 = vpack.c.b16 %v1642, %v1641
    %v1705 = vpack.c.b16 %v1644, %v1643
    %v1706 = vpack.c.b16 %v1646, %v1645
    %v1707 = vpack.c.b16 %v1648, %v1647
    %v1708 = vpack.c.b16 %v1650, %v1649
    %v1709 = vpack.c.b16 %v1652, %v1651
    %v1710 = vpack.c.b16 %v1654, %v1653
    %v1711 = vpack.c.b16 %v1656, %v1655
    %v1712 = vpack.c.b16 %v1658, %v1657
    %v1713 = vpack.c.b16 %v1660, %v1659
    %v1714 = vpack.c.b16 %v1662, %v1661
    %v1715 = vpack.c.b16 %v1664, %v1663
    %v1716 = vpack.c.b16 %v1666, %v1665
    %v1717 = vpack.c.b16 %v1668, %v1667
    %v1718 = vpack.c.b16 %v1670, %v1669
    %v1719 = vpack.c.b16 %v1672, %v1671
    %v1720 = vpack.c.b16 %v1674, %v1673
    %v1721 = vpack.c.b16 %v1676, %v1675
    %v1722 = vpack.c.b16 %v1678, %v1677
    %v1723 = vpack.c.b16 %v1680, %v1679
    %v1724 = vpack.c.b16 %v1682, %v1681
    %v1725 = vpack.c.b16 %v1684, %v1683
    %v1726 = vpack.c.b16 %v1686, %v1685
    %v1727 = vpack.c.b16 %v1688, %v1687
    %v1728 = vpack.c.b16 %v1690, %v1689
    %v1729 = vpack.c.b16 %v1692, %v1691
    %v1730 = vpack.c.b16 %v1694, %v1693
    %v1731 = vpack.c.b16 %v1696, %v1695
    %v1732 = vpack.c.b16 %v1698, %v1697
    %v1733 = vpack.c.b16 %v1700, %v1699
    %v1734 = vpack.c.b16 %v1702, %v1701
    %1767 = vst [vmem:[#allocation3] sm:$0xff] %v1703
    %1768 = vst [vmem:[#allocation3 + $0x8] sm:$0xff] %v1704
    %1769 = vst [vmem:[#allocation3 + $0x10] sm:$0xff] %v1705
    %1770 = vst [vmem:[#allocation3 + $0x18] sm:$0xff] %v1706
    %1771 = vst [vmem:[#allocation3 + $0x20] sm:$0xff] %v1707
    %1772 = vst [vmem:[#allocation3 + $0x28] sm:$0xff] %v1708
    %1773 = vst [vmem:[#allocation3 + $0x30] sm:$0xff] %v1709
    %1774 = vst [vmem:[#allocation3 + $0x38] sm:$0xff] %v1710
    %1775 = vst [vmem:[#allocation3 + $0x40] sm:$0xff] %v1711
    %1776 = vst [vmem:[#allocation3 + $0x48] sm:$0xff] %v1712
    %1777 = vst [vmem:[#allocation3 + $0x50] sm:$0xff] %v1713
    %1778 = vst [vmem:[#allocation3 + $0x58] sm:$0xff] %v1714
    %1779 = vst [vmem:[#allocation3 + $0x60] sm:$0xff] %v1715
    %1780 = vst [vmem:[#allocation3 + $0x68] sm:$0xff] %v1716
    %1781 = vst [vmem:[#allocation3 + $0x70] sm:$0xff] %v1717
    %1782 = vst [vmem:[#allocation3 + $0x78] sm:$0xff] %v1718
    %1783 = vst [vmem:[#allocation3 + $0x80] sm:$0xff] %v1719
    %1784 = vst [vmem:[#allocation3 + $0x88] sm:$0xff] %v1720
    %1785 = vst [vmem:[#allocation3 + $0x90] sm:$0xff] %v1721
    %1786 = vst [vmem:[#allocation3 + $0x98] sm:$0xff] %v1722
    %1787 = vst [vmem:[#allocation3 + $0xa0] sm:$0xff] %v1723
    %1788 = vst [vmem:[#allocation3 + $0xa8] sm:$0xff] %v1724
    %1789 = vst [vmem:[#allocation3 + $0xb0] sm:$0xff] %v1725
    %1790 = vst [vmem:[#allocation3 + $0xb8] sm:$0xff] %v1726
    %1791 = vst [vmem:[#allocation3 + $0xc0] sm:$0xff] %v1727
    %1792 = vst [vmem:[#allocation3 + $0xc8] sm:$0xff] %v1728
    %1793 = vst [vmem:[#allocation3 + $0xd0] sm:$0xff] %v1729
    %1794 = vst [vmem:[#allocation3 + $0xd8] sm:$0xff] %v1730
    %1795 = vst [vmem:[#allocation3 + $0xe0] sm:$0xff] %v1731
    %1796 = vst [vmem:[#allocation3 + $0xe8] sm:$0xff] %v1732
    %1797 = vst [vmem:[#allocation3 + $0xf0] sm:$0xff] %v1733
    %1798 = vst [vmem:[#allocation3 + $0xf8] sm:$0xff] %v1734
    %v1799 = vld [vmem:[#allocation3] sm:$0xff]
    %v1800 = vld [vmem:[#allocation3 + $0x8] sm:$0xff]
    %v1801 = vld [vmem:[#allocation3 + $0x10] sm:$0xff]
    %v1802 = vld [vmem:[#allocation3 + $0x18] sm:$0xff]
    %v1803 = vld [vmem:[#allocation3 + $0x20] sm:$0xff]
    %v1804 = vld [vmem:[#allocation3 + $0x28] sm:$0xff]
    %v1805 = vld [vmem:[#allocation3 + $0x30] sm:$0xff]
    %v1806 = vld [vmem:[#allocation3 + $0x38] sm:$0xff]
    %v1807 = vld [vmem:[#allocation3 + $0x40] sm:$0xff]
    %v1808 = vld [vmem:[#allocation3 + $0x48] sm:$0xff]
    %v1809 = vld [vmem:[#allocation3 + $0x50] sm:$0xff]
    %v1810 = vld [vmem:[#allocation3 + $0x58] sm:$0xff]
    %v1811 = vld [vmem:[#allocation3 + $0x60] sm:$0xff]
    %v1812 = vld [vmem:[#allocation3 + $0x68] sm:$0xff]
    %v1813 = vld [vmem:[#allocation3 + $0x70] sm:$0xff]
    %v1814 = vld [vmem:[#allocation3 + $0x78] sm:$0xff]
    %v1815 = vld [vmem:[#allocation3 + $0x80] sm:$0xff]
    %v1816 = vld [vmem:[#allocation3 + $0x88] sm:$0xff]
    %v1817 = vld [vmem:[#allocation3 + $0x90] sm:$0xff]
    %v1818 = vld [vmem:[#allocation3 + $0x98] sm:$0xff]
    %v1819 = vld [vmem:[#allocation3 + $0xa0] sm:$0xff]
    %v1820 = vld [vmem:[#allocation3 + $0xa8] sm:$0xff]
    %v1821 = vld [vmem:[#allocation3 + $0xb0] sm:$0xff]
    %v1822 = vld [vmem:[#allocation3 + $0xb8] sm:$0xff]
    %v1823 = vld [vmem:[#allocation3 + $0xc0] sm:$0xff]
    %v1824 = vld [vmem:[#allocation3 + $0xc8] sm:$0xff]
    %v1825 = vld [vmem:[#allocation3 + $0xd0] sm:$0xff]
    %v1826 = vld [vmem:[#allocation3 + $0xd8] sm:$0xff]
    %v1827 = vld [vmem:[#allocation3 + $0xe0] sm:$0xff]
    %v1828 = vld [vmem:[#allocation3 + $0xe8] sm:$0xff]
    %v1829 = vld [vmem:[#allocation3 + $0xf0] sm:$0xff]
    %v1830 = vld [vmem:[#allocation3 + $0xf8] sm:$0xff]
    %v1863 = vunpack.c.l.b16 %v1799
    %v1864 = vunpack.c.h.b16 %v1799
    %v1865 = vunpack.c.l.b16 %v1800
    %v1866 = vunpack.c.h.b16 %v1800
    %v1867 = vunpack.c.l.b16 %v1801
    %v1868 = vunpack.c.h.b16 %v1801
    %v1869 = vunpack.c.l.b16 %v1802
    %v1870 = vunpack.c.h.b16 %v1802
    %v1871 = vunpack.c.l.b16 %v1803
    %v1872 = vunpack.c.h.b16 %v1803
    %v1873 = vunpack.c.l.b16 %v1804
    %v1874 = vunpack.c.h.b16 %v1804
    %v1875 = vunpack.c.l.b16 %v1805
    %v1876 = vunpack.c.h.b16 %v1805
    %v1877 = vunpack.c.l.b16 %v1806
    %v1878 = vunpack.c.h.b16 %v1806
    %v1879 = vunpack.c.l.b16 %v1807
    %v1880 = vunpack.c.h.b16 %v1807
    %v1881 = vunpack.c.l.b16 %v1808
    %v1882 = vunpack.c.h.b16 %v1808
    %v1883 = vunpack.c.l.b16 %v1809
    %v1884 = vunpack.c.h.b16 %v1809
    %v1885 = vunpack.c.l.b16 %v1810
    %v1886 = vunpack.c.h.b16 %v1810
    %v1887 = vunpack.c.l.b16 %v1811
    %v1888 = vunpack.c.h.b16 %v1811
    %v1889 = vunpack.c.l.b16 %v1812
    %v1890 = vunpack.c.h.b16 %v1812
    %v1891 = vunpack.c.l.b16 %v1813
    %v1892 = vunpack.c.h.b16 %v1813
    %v1893 = vunpack.c.l.b16 %v1814
    %v1894 = vunpack.c.h.b16 %v1814
    %v1895 = vunpack.c.l.b16 %v1815
    %v1896 = vunpack.c.h.b16 %v1815
    %v1897 = vunpack.c.l.b16 %v1816
    %v1898 = vunpack.c.h.b16 %v1816
    %v1899 = vunpack.c.l.b16 %v1817
    %v1900 = vunpack.c.h.b16 %v1817
    %v1901 = vunpack.c.l.b16 %v1818
    %v1902 = vunpack.c.h.b16 %v1818
    %v1903 = vunpack.c.l.b16 %v1819
    %v1904 = vunpack.c.h.b16 %v1819
    %v1905 = vunpack.c.l.b16 %v1820
    %v1906 = vunpack.c.h.b16 %v1820
    %v1907 = vunpack.c.l.b16 %v1821
    %v1908 = vunpack.c.h.b16 %v1821
    %v1909 = vunpack.c.l.b16 %v1822
    %v1910 = vunpack.c.h.b16 %v1822
    %v1911 = vunpack.c.l.b16 %v1823
    %v1912 = vunpack.c.h.b16 %v1823
    %v1913 = vunpack.c.l.b16 %v1824
    %v1914 = vunpack.c.h.b16 %v1824
    %v1915 = vunpack.c.l.b16 %v1825
    %v1916 = vunpack.c.h.b16 %v1825
    %v1917 = vunpack.c.l.b16 %v1826
    %v1918 = vunpack.c.h.b16 %v1826
    %v1919 = vunpack.c.l.b16 %v1827
    %v1920 = vunpack.c.h.b16 %v1827
    %v1921 = vunpack.c.l.b16 %v1828
    %v1922 = vunpack.c.h.b16 %v1828
    %v1923 = vunpack.c.l.b16 %v1829
    %v1924 = vunpack.c.h.b16 %v1829
    %v1925 = vunpack.c.l.b16 %v1830
    %v1926 = vunpack.c.h.b16 %v1830
    %v1927 = vpack.c.b16 %v1865, %v1863
    %v1928 = vpack.c.b16 %v1866, %v1864
    %v1929 = vpack.c.b16 %v1869, %v1867
    %v1930 = vpack.c.b16 %v1870, %v1868
    %v1931 = vpack.c.b16 %v1873, %v1871
    %v1932 = vpack.c.b16 %v1874, %v1872
    %v1933 = vpack.c.b16 %v1877, %v1875
    %v1934 = vpack.c.b16 %v1878, %v1876
    %v1935 = vpack.c.b16 %v1881, %v1879
    %v1936 = vpack.c.b16 %v1882, %v1880
    %v1937 = vpack.c.b16 %v1885, %v1883
    %v1938 = vpack.c.b16 %v1886, %v1884
    %v1939 = vpack.c.b16 %v1889, %v1887
    %v1940 = vpack.c.b16 %v1890, %v1888
    %v1941 = vpack.c.b16 %v1893, %v1891
    %v1942 = vpack.c.b16 %v1894, %v1892
    %v1943 = vpack.c.b16 %v1897, %v1895
    %v1944 = vpack.c.b16 %v1898, %v1896
    %v1945 = vpack.c.b16 %v1901, %v1899
    %v1946 = vpack.c.b16 %v1902, %v1900
    %v1947 = vpack.c.b16 %v1905, %v1903
    %v1948 = vpack.c.b16 %v1906, %v1904
    %v1949 = vpack.c.b16 %v1909, %v1907
    %v1950 = vpack.c.b16 %v1910, %v1908
    %v1951 = vpack.c.b16 %v1913, %v1911
    %v1952 = vpack.c.b16 %v1914, %v1912
    %v1953 = vpack.c.b16 %v1917, %v1915
    %v1954 = vpack.c.b16 %v1918, %v1916
    %v1955 = vpack.c.b16 %v1921, %v1919
    %v1956 = vpack.c.b16 %v1922, %v1920
    %v1957 = vpack.c.b16 %v1925, %v1923
    %v1958 = vpack.c.b16 %v1926, %v1924
    %1991 = vmatprep.subr.bf16.mxu0 %v1942
    %1992 = vmatpush1.bf16.msra.mxu0 %v1941
    %1993 = vmatprep.subr.bf16.mxu0 %v1940
    %1994 = vmatpush1.bf16.msra.mxu0 %v1939
    %1995 = vmatprep.subr.bf16.mxu0 %v1938
    %1996 = vmatpush1.bf16.msra.mxu0 %v1937
    %1997 = vmatprep.subr.bf16.mxu0 %v1936
    %1998 = vmatpush1.bf16.msra.mxu0 %v1935
    %1999 = vmatprep.subr.bf16.mxu0 %v1934
    %2000 = vmatpush1.bf16.msra.mxu0 %v1933
    %2001 = vmatprep.subr.bf16.mxu0 %v1932
    %2002 = vmatpush1.bf16.msra.mxu0 %v1931
    %2003 = vmatprep.subr.bf16.mxu0 %v1930
    %2004 = vmatpush1.bf16.msra.mxu0 %v1929
    %2005 = vmatprep.subr.bf16.mxu0 %v1928
    %2006 = vmatpush1.bf16.msra.mxu0 %v1927
    %2007 = vmatprep.subr.bf16.mxu0 %v1958
    %2008 = vmatpush2.bf16.msra.mxu0 %v1957
    %2009 = vmatprep.subr.bf16.mxu0 %v1956
    %2010 = vmatpush2.bf16.msra.mxu0 %v1955
    %2011 = vmatprep.subr.bf16.mxu0 %v1954
    %2012 = vmatpush2.bf16.msra.mxu0 %v1953
    %2013 = vmatprep.subr.bf16.mxu0 %v1952
    %2014 = vmatpush2.bf16.msra.mxu0 %v1951
    %2015 = vmatprep.subr.bf16.mxu0 %v1950
    %2016 = vmatpush2.bf16.msra.mxu0 %v1949
    %2017 = vmatprep.subr.bf16.mxu0 %v1948
    %2018 = vmatpush2.bf16.msra.mxu0 %v1947
    %2019 = vmatprep.subr.bf16.mxu0 %v1946
    %2020 = vmatpush2.bf16.msra.mxu0 %v1945
    %2021 = vmatprep.subr.bf16.mxu0 %v1944
    %2022 = vmatpush2.bf16.msra.mxu0 %v1943
    %2023 = vmatprep.mubr.bf16.mxu0 %v1928
    %2024 = vmatmul.mubr.bf16.gmra.mxu0 %v1927
    %v2025 = vpop.f32.mrf.mxu0
    %v2026 = vadd.f32 0.0, %v2025
    %v2027 = vpop.f32.mrf.mxu0
    %v2028 = vadd.f32 0.0, %v2027
    %v2029 = vpop.f32.mrf.mxu0
    %v2030 = vadd.f32 0.0, %v2029
    %v2031 = vpop.f32.mrf.mxu0
    %v2032 = vadd.f32 0.0, %v2031
    %2033 = vmatprep.mubr.bf16.mxu0 %v1930
    %2034 = vmatmul.mubr.bf16.gmra.mxu0 %v1929
    %v2035 = vpop.f32.mrf.mxu0
    %v2036 = vadd.f32 0.0, %v2035
    %v2037 = vpop.f32.mrf.mxu0
    %v2038 = vadd.f32 0.0, %v2037
    %v2039 = vpop.f32.mrf.mxu0
    %v2040 = vadd.f32 0.0, %v2039
    %v2041 = vpop.f32.mrf.mxu0
    %v2042 = vadd.f32 0.0, %v2041
    %2043 = vmatprep.mubr.bf16.mxu0 %v1932
    %2044 = vmatmul.mubr.bf16.gmra.mxu0 %v1931
    %v2045 = vpop.f32.mrf.mxu0
    %v2046 = vadd.f32 0.0, %v2045
    %v2047 = vpop.f32.mrf.mxu0
    %v2048 = vadd.f32 0.0, %v2047
    %v2049 = vpop.f32.mrf.mxu0
    %v2050 = vadd.f32 0.0, %v2049
    %v2051 = vpop.f32.mrf.mxu0
    %v2052 = vadd.f32 0.0, %v2051
    %2053 = vmatprep.mubr.bf16.mxu0 %v1934
    %2054 = vmatmul.mubr.bf16.gmra.mxu0 %v1933
    %v2055 = vpop.f32.mrf.mxu0
    %v2056 = vadd.f32 0.0, %v2055
    %v2057 = vpop.f32.mrf.mxu0
    %v2058 = vadd.f32 0.0, %v2057
    %v2059 = vpop.f32.mrf.mxu0
    %v2060 = vadd.f32 0.0, %v2059
    %v2061 = vpop.f32.mrf.mxu0
    %v2062 = vadd.f32 0.0, %v2061
    %2063 = vmatprep.mubr.bf16.mxu0 %v1936
    %2064 = vmatmul.mubr.bf16.gmra.mxu0 %v1935
    %v2065 = vpop.f32.mrf.mxu0
    %v2066 = vadd.f32 0.0, %v2065
    %v2067 = vpop.f32.mrf.mxu0
    %v2068 = vadd.f32 0.0, %v2067
    %v2069 = vpop.f32.mrf.mxu0
    %v2070 = vadd.f32 0.0, %v2069
    %v2071 = vpop.f32.mrf.mxu0
    %v2072 = vadd.f32 0.0, %v2071
    %2073 = vmatprep.mubr.bf16.mxu0 %v1938
    %2074 = vmatmul.mubr.bf16.gmra.mxu0 %v1937
    %v2075 = vpop.f32.mrf.mxu0
    %v2076 = vadd.f32 0.0, %v2075
    %v2077 = vpop.f32.mrf.mxu0
    %v2078 = vadd.f32 0.0, %v2077
    %v2079 = vpop.f32.mrf.mxu0
    %v2080 = vadd.f32 0.0, %v2079
    %v2081 = vpop.f32.mrf.mxu0
    %v2082 = vadd.f32 0.0, %v2081
    %2083 = vmatprep.mubr.bf16.mxu0 %v1940
    %2084 = vmatmul.mubr.bf16.gmra.mxu0 %v1939
    %v2085 = vpop.f32.mrf.mxu0
    %v2086 = vadd.f32 0.0, %v2085
    %v2087 = vpop.f32.mrf.mxu0
    %v2088 = vadd.f32 0.0, %v2087
    %v2089 = vpop.f32.mrf.mxu0
    %v2090 = vadd.f32 0.0, %v2089
    %v2091 = vpop.f32.mrf.mxu0
    %v2092 = vadd.f32 0.0, %v2091
    %2093 = vmatprep.mubr.bf16.mxu0 %v1942
    %2094 = vmatmul.mubr.bf16.gmra.mxu0 %v1941
    %v2095 = vpop.f32.mrf.mxu0
    %v2096 = vadd.f32 0.0, %v2095
    %v2097 = vpop.f32.mrf.mxu0
    %v2098 = vadd.f32 0.0, %v2097
    %v2099 = vpop.f32.mrf.mxu0
    %v2100 = vadd.f32 0.0, %v2099
    %v2101 = vpop.f32.mrf.mxu0
    %v2102 = vadd.f32 0.0, %v2101
    %2103 = vmatprep.mubr.bf16.mxu0 %v1944
    %2104 = vmatmul.mubr.bf16.gmra.mxu0 %v1943
    %v2105 = vpop.f32.mrf.mxu0
    %v2106 = vadd.f32 0.0, %v2105
    %v2107 = vpop.f32.mrf.mxu0
    %v2108 = vadd.f32 0.0, %v2107
    %v2109 = vpop.f32.mrf.mxu0
    %v2110 = vadd.f32 0.0, %v2109
    %v2111 = vpop.f32.mrf.mxu0
    %v2112 = vadd.f32 0.0, %v2111
    %2113 = vmatprep.mubr.bf16.mxu0 %v1946
    %2114 = vmatmul.mubr.bf16.gmra.mxu0 %v1945
    %v2115 = vpop.f32.mrf.mxu0
    %v2116 = vadd.f32 0.0, %v2115
    %v2117 = vpop.f32.mrf.mxu0
    %v2118 = vadd.f32 0.0, %v2117
    %v2119 = vpop.f32.mrf.mxu0
    %v2120 = vadd.f32 0.0, %v2119
    %v2121 = vpop.f32.mrf.mxu0
    %v2122 = vadd.f32 0.0, %v2121
    %2123 = vmatprep.mubr.bf16.mxu0 %v1948
    %2124 = vmatmul.mubr.bf16.gmra.mxu0 %v1947
    %v2125 = vpop.f32.mrf.mxu0
    %v2126 = vadd.f32 0.0, %v2125
    %v2127 = vpop.f32.mrf.mxu0
    %v2128 = vadd.f32 0.0, %v2127
    %v2129 = vpop.f32.mrf.mxu0
    %v2130 = vadd.f32 0.0, %v2129
    %v2131 = vpop.f32.mrf.mxu0
    %v2132 = vadd.f32 0.0, %v2131
    %2133 = vmatprep.mubr.bf16.mxu0 %v1950
    %2134 = vmatmul.mubr.bf16.gmra.mxu0 %v1949
    %v2135 = vpop.f32.mrf.mxu0
    %v2136 = vadd.f32 0.0, %v2135
    %v2137 = vpop.f32.mrf.mxu0
    %v2138 = vadd.f32 0.0, %v2137
    %v2139 = vpop.f32.mrf.mxu0
    %v2140 = vadd.f32 0.0, %v2139
    %v2141 = vpop.f32.mrf.mxu0
    %v2142 = vadd.f32 0.0, %v2141
    %2143 = vmatprep.mubr.bf16.mxu0 %v1952
    %2144 = vmatmul.mubr.bf16.gmra.mxu0 %v1951
    %v2145 = vpop.f32.mrf.mxu0
    %v2146 = vadd.f32 0.0, %v2145
    %v2147 = vpop.f32.mrf.mxu0
    %v2148 = vadd.f32 0.0, %v2147
    %v2149 = vpop.f32.mrf.mxu0
    %v2150 = vadd.f32 0.0, %v2149
    %v2151 = vpop.f32.mrf.mxu0
    %v2152 = vadd.f32 0.0, %v2151
    %2153 = vmatprep.mubr.bf16.mxu0 %v1954
    %2154 = vmatmul.mubr.bf16.gmra.mxu0 %v1953
    %v2155 = vpop.f32.mrf.mxu0
    %v2156 = vadd.f32 0.0, %v2155
    %v2157 = vpop.f32.mrf.mxu0
    %v2158 = vadd.f32 0.0, %v2157
    %v2159 = vpop.f32.mrf.mxu0
    %v2160 = vadd.f32 0.0, %v2159
    %v2161 = vpop.f32.mrf.mxu0
    %v2162 = vadd.f32 0.0, %v2161
    %2163 = vmatprep.mubr.bf16.mxu0 %v1956
    %2164 = vmatmul.mubr.bf16.gmra.mxu0 %v1955
    %v2165 = vpop.f32.mrf.mxu0
    %v2166 = vadd.f32 0.0, %v2165
    %v2167 = vpop.f32.mrf.mxu0
    %v2168 = vadd.f32 0.0, %v2167
    %v2169 = vpop.f32.mrf.mxu0
    %v2170 = vadd.f32 0.0, %v2169
    %v2171 = vpop.f32.mrf.mxu0
    %v2172 = vadd.f32 0.0, %v2171
    %2173 = vmatprep.mubr.bf16.mxu0 %v1958
    %2174 = vmatmul.mubr.bf16.gmra.mxu0 %v1957
    %v2175 = vpop.f32.mrf.mxu0
    %v2176 = vadd.f32 0.0, %v2175
    %v2177 = vpop.f32.mrf.mxu0
    %v2178 = vadd.f32 0.0, %v2177
    %v2179 = vpop.f32.mrf.mxu0
    %v2180 = vadd.f32 0.0, %v2179
    %v2181 = vpop.f32.mrf.mxu0
    %v2182 = vadd.f32 0.0, %v2181
    %2183 = vdwg.mxu0
    %v2184 = vmul.f32 %v2026, %v2026
    %v2185 = vmul.f32 %v2028, %v2028
    %v2186 = vmul.f32 %v2030, %v2030
    %v2187 = vmul.f32 %v2032, %v2032
    %v2188 = vmul.f32 %v2036, %v2036
    %v2189 = vmul.f32 %v2038, %v2038
    %v2190 = vmul.f32 %v2040, %v2040
    %v2191 = vmul.f32 %v2042, %v2042
    %v2192 = vmul.f32 %v2046, %v2046
    %v2193 = vmul.f32 %v2048, %v2048
    %v2194 = vmul.f32 %v2050, %v2050
    %v2195 = vmul.f32 %v2052, %v2052
    %v2196 = vmul.f32 %v2056, %v2056
    %v2197 = vmul.f32 %v2058, %v2058
    %v2198 = vmul.f32 %v2060, %v2060
    %v2199 = vmul.f32 %v2062, %v2062
    %v2200 = vmul.f32 %v2066, %v2066
    %v2201 = vmul.f32 %v2068, %v2068
    %v2202 = vmul.f32 %v2070, %v2070
    %v2203 = vmul.f32 %v2072, %v2072
    %v2204 = vmul.f32 %v2076, %v2076
    %v2205 = vmul.f32 %v2078, %v2078
    %v2206 = vmul.f32 %v2080, %v2080
    %v2207 = vmul.f32 %v2082, %v2082
    %v2208 = vmul.f32 %v2086, %v2086
    %v2209 = vmul.f32 %v2088, %v2088
    %v2210 = vmul.f32 %v2090, %v2090
    %v2211 = vmul.f32 %v2092, %v2092
    %v2212 = vmul.f32 %v2096, %v2096
    %v2213 = vmul.f32 %v2098, %v2098
    %v2214 = vmul.f32 %v2100, %v2100
    %v2215 = vmul.f32 %v2102, %v2102
    %v2216 = vmul.f32 %v2106, %v2106
    %v2217 = vmul.f32 %v2108, %v2108
    %v2218 = vmul.f32 %v2110, %v2110
    %v2219 = vmul.f32 %v2112, %v2112
    %v2220 = vmul.f32 %v2116, %v2116
    %v2221 = vmul.f32 %v2118, %v2118
    %v2222 = vmul.f32 %v2120, %v2120
    %v2223 = vmul.f32 %v2122, %v2122
    %v2224 = vmul.f32 %v2126, %v2126
    %v2225 = vmul.f32 %v2128, %v2128
    %v2226 = vmul.f32 %v2130, %v2130
    %v2227 = vmul.f32 %v2132, %v2132
    %v2228 = vmul.f32 %v2136, %v2136
    %v2229 = vmul.f32 %v2138, %v2138
    %v2230 = vmul.f32 %v2140, %v2140
    %v2231 = vmul.f32 %v2142, %v2142
    %v2232 = vmul.f32 %v2146, %v2146
    %v2233 = vmul.f32 %v2148, %v2148
    %v2234 = vmul.f32 %v2150, %v2150
    %v2235 = vmul.f32 %v2152, %v2152
    %v2236 = vmul.f32 %v2156, %v2156
    %v2237 = vmul.f32 %v2158, %v2158
    %v2238 = vmul.f32 %v2160, %v2160
    %v2239 = vmul.f32 %v2162, %v2162
    %v2240 = vmul.f32 %v2166, %v2166
    %v2241 = vmul.f32 %v2168, %v2168
    %v2242 = vmul.f32 %v2170, %v2170
    %v2243 = vmul.f32 %v2172, %v2172
    %v2244 = vmul.f32 %v2176, %v2176
    %v2245 = vmul.f32 %v2178, %v2178
    %v2246 = vmul.f32 %v2180, %v2180
    %v2247 = vmul.f32 %v2182, %v2182
    %v2248 = vadd.f32 %v2184, %v2185
    %v2249 = vadd.f32 %v2248, %v2186
    %v2250 = vadd.f32 %v2249, %v2187
    %v2251 = vadd.f32 %v2250, %v2188
    %v2252 = vadd.f32 %v2251, %v2189
    %v2253 = vadd.f32 %v2252, %v2190
    %v2254 = vadd.f32 %v2253, %v2191
    %v2255 = vadd.f32 %v2254, %v2192
    %v2256 = vadd.f32 %v2255, %v2193
    %v2257 = vadd.f32 %v2256, %v2194
    %v2258 = vadd.f32 %v2257, %v2195
    %v2259 = vadd.f32 %v2258, %v2196
    %v2260 = vadd.f32 %v2259, %v2197
    %v2261 = vadd.f32 %v2260, %v2198
    %v2262 = vadd.f32 %v2261, %v2199
    %v2263 = vadd.f32 %v2262, %v2200
    %v2264 = vadd.f32 %v2263, %v2201
    %v2265 = vadd.f32 %v2264, %v2202
    %v2266 = vadd.f32 %v2265, %v2203
    %v2267 = vadd.f32 %v2266, %v2204
    %v2268 = vadd.f32 %v2267, %v2205
    %v2269 = vadd.f32 %v2268, %v2206
    %v2270 = vadd.f32 %v2269, %v2207
    %v2271 = vadd.f32 %v2270, %v2208
    %v2272 = vadd.f32 %v2271, %v2209
    %v2273 = vadd.f32 %v2272, %v2210
    %v2274 = vadd.f32 %v2273, %v2211
    %v2275 = vadd.f32 %v2274, %v2212
    %v2276 = vadd.f32 %v2275, %v2213
    %v2277 = vadd.f32 %v2276, %v2214
    %v2278 = vadd.f32 %v2277, %v2215
    %v2279 = vadd.f32 %v2278, %v2216
    %v2280 = vadd.f32 %v2279, %v2217
    %v2281 = vadd.f32 %v2280, %v2218
    %v2282 = vadd.f32 %v2281, %v2219
    %v2283 = vadd.f32 %v2282, %v2220
    %v2284 = vadd.f32 %v2283, %v2221
    %v2285 = vadd.f32 %v2284, %v2222
    %v2286 = vadd.f32 %v2285, %v2223
    %v2287 = vadd.f32 %v2286, %v2224
    %v2288 = vadd.f32 %v2287, %v2225
    %v2289 = vadd.f32 %v2288, %v2226
    %v2290 = vadd.f32 %v2289, %v2227
    %v2291 = vadd.f32 %v2290, %v2228
    %v2292 = vadd.f32 %v2291, %v2229
    %v2293 = vadd.f32 %v2292, %v2230
    %v2294 = vadd.f32 %v2293, %v2231
    %v2295 = vadd.f32 %v2294, %v2232
    %v2296 = vadd.f32 %v2295, %v2233
    %v2297 = vadd.f32 %v2296, %v2234
    %v2298 = vadd.f32 %v2297, %v2235
    %v2299 = vadd.f32 %v2298, %v2236
    %v2300 = vadd.f32 %v2299, %v2237
    %v2301 = vadd.f32 %v2300, %v2238
    %v2302 = vadd.f32 %v2301, %v2239
    %v2303 = vadd.f32 %v2302, %v2240
    %v2304 = vadd.f32 %v2303, %v2241
    %v2305 = vadd.f32 %v2304, %v2242
    %v2306 = vadd.f32 %v2305, %v2243
    %v2307 = vadd.f32 %v2306, %v2244
    %v2308 = vadd.f32 %v2307, %v2245
    %v2309 = vadd.f32 %v2308, %v2246
    %v2310 = vadd.f32 %v2309, %v2247
    %2311 = vadd.xlane.f32.xlu0 %v2310
    %v2312 = vpop.xlane.xlu0 %2311
    %v2313 = vrot.slane %v2312, 4
    %v2314 = vadd.f32 %v2312, %v2313
    %v2315 = vrot.slane %v2314, 2
    %v2316 = vadd.f32 %v2314, %v2315
    %v2317 = vrot.slane %v2316, 1
    %v2318 = vadd.f32 %v2316, %v2317
    %s2319 = vtos %v2318
    %v2320 = vstv %s2319
    %v2321 = vadd.f32 %v2320, 1e-30
    %v2322 = vrsqrt.pop %v2321
    %v2323 = vmul.f32 %v2026, %v2322
    %v2324 = vmul.f32 %v2028, %v2322
    %v2325 = vmul.f32 %v2030, %v2322
    %v2326 = vmul.f32 %v2032, %v2322
    %v2327 = vmul.f32 %v2036, %v2322
    %v2328 = vmul.f32 %v2038, %v2322
    %v2329 = vmul.f32 %v2040, %v2322
    %v2330 = vmul.f32 %v2042, %v2322
    %v2331 = vmul.f32 %v2046, %v2322
    %v2332 = vmul.f32 %v2048, %v2322
    %v2333 = vmul.f32 %v2050, %v2322
    %v2334 = vmul.f32 %v2052, %v2322
    %v2335 = vmul.f32 %v2056, %v2322
    %v2336 = vmul.f32 %v2058, %v2322
    %v2337 = vmul.f32 %v2060, %v2322
    %v2338 = vmul.f32 %v2062, %v2322
    %v2339 = vmul.f32 %v2066, %v2322
    %v2340 = vmul.f32 %v2068, %v2322
    %v2341 = vmul.f32 %v2070, %v2322
    %v2342 = vmul.f32 %v2072, %v2322
    %v2343 = vmul.f32 %v2076, %v2322
    %v2344 = vmul.f32 %v2078, %v2322
    %v2345 = vmul.f32 %v2080, %v2322
    %v2346 = vmul.f32 %v2082, %v2322
    %v2347 = vmul.f32 %v2086, %v2322
    %v2348 = vmul.f32 %v2088, %v2322
    %v2349 = vmul.f32 %v2090, %v2322
    %v2350 = vmul.f32 %v2092, %v2322
    %v2351 = vmul.f32 %v2096, %v2322
    %v2352 = vmul.f32 %v2098, %v2322
    %v2353 = vmul.f32 %v2100, %v2322
    %v2354 = vmul.f32 %v2102, %v2322
    %v2355 = vmul.f32 %v2106, %v2322
    %v2356 = vmul.f32 %v2108, %v2322
    %v2357 = vmul.f32 %v2110, %v2322
    %v2358 = vmul.f32 %v2112, %v2322
    %v2359 = vmul.f32 %v2116, %v2322
    %v2360 = vmul.f32 %v2118, %v2322
    %v2361 = vmul.f32 %v2120, %v2322
    %v2362 = vmul.f32 %v2122, %v2322
    %v2363 = vmul.f32 %v2126, %v2322
    %v2364 = vmul.f32 %v2128, %v2322
    %v2365 = vmul.f32 %v2130, %v2322
    %v2366 = vmul.f32 %v2132, %v2322
    %v2367 = vmul.f32 %v2136, %v2322
    %v2368 = vmul.f32 %v2138, %v2322
    %v2369 = vmul.f32 %v2140, %v2322
    %v2370 = vmul.f32 %v2142, %v2322
    %v2371 = vmul.f32 %v2146, %v2322
    %v2372 = vmul.f32 %v2148, %v2322
    %v2373 = vmul.f32 %v2150, %v2322
    %v2374 = vmul.f32 %v2152, %v2322
    %v2375 = vmul.f32 %v2156, %v2322
    %v2376 = vmul.f32 %v2158, %v2322
    %v2377 = vmul.f32 %v2160, %v2322
    %v2378 = vmul.f32 %v2162, %v2322
    %v2379 = vmul.f32 %v2166, %v2322
    %v2380 = vmul.f32 %v2168, %v2322
    %v2381 = vmul.f32 %v2170, %v2322
    %v2382 = vmul.f32 %v2172, %v2322
    %v2383 = vmul.f32 %v2176, %v2322
    %v2384 = vmul.f32 %v2178, %v2322
    %v2385 = vmul.f32 %v2180, %v2322
    %v2386 = vmul.f32 %v2182, %v2322
    %v2387 = vpack.c.bf16 %v2325, %v2323
    %v2388 = vpack.c.bf16 %v2326, %v2324
    %v2389 = vpack.c.bf16 %v2329, %v2327
    %v2390 = vpack.c.bf16 %v2330, %v2328
    %v2391 = vpack.c.bf16 %v2333, %v2331
    %v2392 = vpack.c.bf16 %v2334, %v2332
    %v2393 = vpack.c.bf16 %v2337, %v2335
    %v2394 = vpack.c.bf16 %v2338, %v2336
    %v2395 = vpack.c.bf16 %v2341, %v2339
    %v2396 = vpack.c.bf16 %v2342, %v2340
    %v2397 = vpack.c.bf16 %v2345, %v2343
    %v2398 = vpack.c.bf16 %v2346, %v2344
    %v2399 = vpack.c.bf16 %v2349, %v2347
    %v2400 = vpack.c.bf16 %v2350, %v2348
    %v2401 = vpack.c.bf16 %v2353, %v2351
    %v2402 = vpack.c.bf16 %v2354, %v2352
    %v2403 = vpack.c.bf16 %v2357, %v2355
    %v2404 = vpack.c.bf16 %v2358, %v2356
    %v2405 = vpack.c.bf16 %v2361, %v2359
    %v2406 = vpack.c.bf16 %v2362, %v2360
    %v2407 = vpack.c.bf16 %v2365, %v2363
    %v2408 = vpack.c.bf16 %v2366, %v2364
    %v2409 = vpack.c.bf16 %v2369, %v2367
    %v2410 = vpack.c.bf16 %v2370, %v2368
    %v2411 = vpack.c.bf16 %v2373, %v2371
    %v2412 = vpack.c.bf16 %v2374, %v2372
    %v2413 = vpack.c.bf16 %v2377, %v2375
    %v2414 = vpack.c.bf16 %v2378, %v2376
    %v2415 = vpack.c.bf16 %v2381, %v2379
    %v2416 = vpack.c.bf16 %v2382, %v2380
    %v2417 = vpack.c.bf16 %v2385, %v2383
    %v2418 = vpack.c.bf16 %v2386, %v2384
    %v2451 = vunpack.c.l.b16 %v2387
    %v2452 = vunpack.c.l.b16 %v2388
    %v2453 = vunpack.c.h.b16 %v2387
    %v2454 = vunpack.c.h.b16 %v2388
    %v2455 = vunpack.c.l.b16 %v2389
    %v2456 = vunpack.c.l.b16 %v2390
    %v2457 = vunpack.c.h.b16 %v2389
    %v2458 = vunpack.c.h.b16 %v2390
    %v2459 = vunpack.c.l.b16 %v2391
    %v2460 = vunpack.c.l.b16 %v2392
    %v2461 = vunpack.c.h.b16 %v2391
    %v2462 = vunpack.c.h.b16 %v2392
    %v2463 = vunpack.c.l.b16 %v2393
    %v2464 = vunpack.c.l.b16 %v2394
    %v2465 = vunpack.c.h.b16 %v2393
    %v2466 = vunpack.c.h.b16 %v2394
    %v2467 = vunpack.c.l.b16 %v2395
    %v2468 = vunpack.c.l.b16 %v2396
    %v2469 = vunpack.c.h.b16 %v2395
    %v2470 = vunpack.c.h.b16 %v2396
    %v2471 = vunpack.c.l.b16 %v2397
    %v2472 = vunpack.c.l.b16 %v2398
    %v2473 = vunpack.c.h.b16 %v2397
    %v2474 = vunpack.c.h.b16 %v2398
    %v2475 = vunpack.c.l.b16 %v2399
    %v2476 = vunpack.c.l.b16 %v2400
    %v2477 = vunpack.c.h.b16 %v2399
    %v2478 = vunpack.c.h.b16 %v2400
    %v2479 = vunpack.c.l.b16 %v2401
    %v2480 = vunpack.c.l.b16 %v2402
    %v2481 = vunpack.c.h.b16 %v2401
    %v2482 = vunpack.c.h.b16 %v2402
    %v2483 = vunpack.c.l.b16 %v2403
    %v2484 = vunpack.c.l.b16 %v2404
    %v2485 = vunpack.c.h.b16 %v2403
    %v2486 = vunpack.c.h.b16 %v2404
    %v2487 = vunpack.c.l.b16 %v2405
    %v2488 = vunpack.c.l.b16 %v2406
    %v2489 = vunpack.c.h.b16 %v2405
    %v2490 = vunpack.c.h.b16 %v2406
    %v2491 = vunpack.c.l.b16 %v2407
    %v2492 = vunpack.c.l.b16 %v2408
    %v2493 = vunpack.c.h.b16 %v2407
    %v2494 = vunpack.c.h.b16 %v2408
    %v2495 = vunpack.c.l.b16 %v2409
    %v2496 = vunpack.c.l.b16 %v2410
    %v2497 = vunpack.c.h.b16 %v2409
    %v2498 = vunpack.c.h.b16 %v2410
    %v2499 = vunpack.c.l.b16 %v2411
    %v2500 = vunpack.c.l.b16 %v2412
    %v2501 = vunpack.c.h.b16 %v2411
    %v2502 = vunpack.c.h.b16 %v2412
    %v2503 = vunpack.c.l.b16 %v2413
    %v2504 = vunpack.c.l.b16 %v2414
    %v2505 = vunpack.c.h.b16 %v2413
    %v2506 = vunpack.c.h.b16 %v2414
    %v2507 = vunpack.c.l.b16 %v2415
    %v2508 = vunpack.c.l.b16 %v2416
    %v2509 = vunpack.c.h.b16 %v2415
    %v2510 = vunpack.c.h.b16 %v2416
    %v2511 = vunpack.c.l.b16 %v2417
    %v2512 = vunpack.c.l.b16 %v2418
    %v2513 = vunpack.c.h.b16 %v2417
    %v2514 = vunpack.c.h.b16 %v2418
    %v2515 = vpack.c.b16 %v2452, %v2451
    %v2516 = vpack.c.b16 %v2454, %v2453
    %v2517 = vpack.c.b16 %v2456, %v2455
    %v2518 = vpack.c.b16 %v2458, %v2457
    %v2519 = vpack.c.b16 %v2460, %v2459
    %v2520 = vpack.c.b16 %v2462, %v2461
    %v2521 = vpack.c.b16 %v2464, %v2463
    %v2522 = vpack.c.b16 %v2466, %v2465
    %v2523 = vpack.c.b16 %v2468, %v2467
    %v2524 = vpack.c.b16 %v2470, %v2469
    %v2525 = vpack.c.b16 %v2472, %v2471
    %v2526 = vpack.c.b16 %v2474, %v2473
    %v2527 = vpack.c.b16 %v2476, %v2475
    %v2528 = vpack.c.b16 %v2478, %v2477
    %v2529 = vpack.c.b16 %v2480, %v2479
    %v2530 = vpack.c.b16 %v2482, %v2481
    %v2531 = vpack.c.b16 %v2484, %v2483
    %v2532 = vpack.c.b16 %v2486, %v2485
    %v2533 = vpack.c.b16 %v2488, %v2487
    %v2534 = vpack.c.b16 %v2490, %v2489
    %v2535 = vpack.c.b16 %v2492, %v2491
    %v2536 = vpack.c.b16 %v2494, %v2493
    %v2537 = vpack.c.b16 %v2496, %v2495
    %v2538 = vpack.c.b16 %v2498, %v2497
    %v2539 = vpack.c.b16 %v2500, %v2499
    %v2540 = vpack.c.b16 %v2502, %v2501
    %v2541 = vpack.c.b16 %v2504, %v2503
    %v2542 = vpack.c.b16 %v2506, %v2505
    %v2543 = vpack.c.b16 %v2508, %v2507
    %v2544 = vpack.c.b16 %v2510, %v2509
    %v2545 = vpack.c.b16 %v2512, %v2511
    %v2546 = vpack.c.b16 %v2514, %v2513
    %2579 = vst [vmem:[#allocation3] sm:$0xff] %v2515
    %2580 = vst [vmem:[#allocation3 + $0x8] sm:$0xff] %v2516
    %2581 = vst [vmem:[#allocation3 + $0x10] sm:$0xff] %v2517
    %2582 = vst [vmem:[#allocation3 + $0x18] sm:$0xff] %v2518
    %2583 = vst [vmem:[#allocation3 + $0x20] sm:$0xff] %v2519
    %2584 = vst [vmem:[#allocation3 + $0x28] sm:$0xff] %v2520
    %2585 = vst [vmem:[#allocation3 + $0x30] sm:$0xff] %v2521
    %2586 = vst [vmem:[#allocation3 + $0x38] sm:$0xff] %v2522
    %2587 = vst [vmem:[#allocation3 + $0x40] sm:$0xff] %v2523
    %2588 = vst [vmem:[#allocation3 + $0x48] sm:$0xff] %v2524
    %2589 = vst [vmem:[#allocation3 + $0x50] sm:$0xff] %v2525
    %2590 = vst [vmem:[#allocation3 + $0x58] sm:$0xff] %v2526
    %2591 = vst [vmem:[#allocation3 + $0x60] sm:$0xff] %v2527
    %2592 = vst [vmem:[#allocation3 + $0x68] sm:$0xff] %v2528
    %2593 = vst [vmem:[#allocation3 + $0x70] sm:$0xff] %v2529
    %2594 = vst [vmem:[#allocation3 + $0x78] sm:$0xff] %v2530
    %2595 = vst [vmem:[#allocation3 + $0x80] sm:$0xff] %v2531
    %2596 = vst [vmem:[#allocation3 + $0x88] sm:$0xff] %v2532
    %2597 = vst [vmem:[#allocation3 + $0x90] sm:$0xff] %v2533
    %2598 = vst [vmem:[#allocation3 + $0x98] sm:$0xff] %v2534
    %2599 = vst [vmem:[#allocation3 + $0xa0] sm:$0xff] %v2535
    %2600 = vst [vmem:[#allocation3 + $0xa8] sm:$0xff] %v2536
    %2601 = vst [vmem:[#allocation3 + $0xb0] sm:$0xff] %v2537
    %2602 = vst [vmem:[#allocation3 + $0xb8] sm:$0xff] %v2538
    %2603 = vst [vmem:[#allocation3 + $0xc0] sm:$0xff] %v2539
    %2604 = vst [vmem:[#allocation3 + $0xc8] sm:$0xff] %v2540
    %2605 = vst [vmem:[#allocation3 + $0xd0] sm:$0xff] %v2541
    %2606 = vst [vmem:[#allocation3 + $0xd8] sm:$0xff] %v2542
    %2607 = vst [vmem:[#allocation3 + $0xe0] sm:$0xff] %v2543
    %2608 = vst [vmem:[#allocation3 + $0xe8] sm:$0xff] %v2544
    %2609 = vst [vmem:[#allocation3 + $0xf0] sm:$0xff] %v2545
    %2610 = vst [vmem:[#allocation3 + $0xf8] sm:$0xff] %v2546
    %v2611 = vld [vmem:[#allocation3] sm:$0xff]
    %v2612 = vld [vmem:[#allocation3 + $0x8] sm:$0xff]
    %v2613 = vld [vmem:[#allocation3 + $0x10] sm:$0xff]
    %v2614 = vld [vmem:[#allocation3 + $0x18] sm:$0xff]
    %v2615 = vld [vmem:[#allocation3 + $0x20] sm:$0xff]
    %v2616 = vld [vmem:[#allocation3 + $0x28] sm:$0xff]
    %v2617 = vld [vmem:[#allocation3 + $0x30] sm:$0xff]
    %v2618 = vld [vmem:[#allocation3 + $0x38] sm:$0xff]
    %v2619 = vld [vmem:[#allocation3 + $0x40] sm:$0xff]
    %v2620 = vld [vmem:[#allocation3 + $0x48] sm:$0xff]
    %v2621 = vld [vmem:[#allocation3 + $0x50] sm:$0xff]
    %v2622 = vld [vmem:[#allocation3 + $0x58] sm:$0xff]
    %v2623 = vld [vmem:[#allocation3 + $0x60] sm:$0xff]
    %v2624 = vld [vmem:[#allocation3 + $0x68] sm:$0xff]
    %v2625 = vld [vmem:[#allocation3 + $0x70] sm:$0xff]
    %v2626 = vld [vmem:[#allocation3 + $0x78] sm:$0xff]
    %v2627 = vld [vmem:[#allocation3 + $0x80] sm:$0xff]
    %v2628 = vld [vmem:[#allocation3 + $0x88] sm:$0xff]
    %v2629 = vld [vmem:[#allocation3 + $0x90] sm:$0xff]
    %v2630 = vld [vmem:[#allocation3 + $0x98] sm:$0xff]
    %v2631 = vld [vmem:[#allocation3 + $0xa0] sm:$0xff]
    %v2632 = vld [vmem:[#allocation3 + $0xa8] sm:$0xff]
    %v2633 = vld [vmem:[#allocation3 + $0xb0] sm:$0xff]
    %v2634 = vld [vmem:[#allocation3 + $0xb8] sm:$0xff]
    %v2635 = vld [vmem:[#allocation3 + $0xc0] sm:$0xff]
    %v2636 = vld [vmem:[#allocation3 + $0xc8] sm:$0xff]
    %v2637 = vld [vmem:[#allocation3 + $0xd0] sm:$0xff]
    %v2638 = vld [vmem:[#allocation3 + $0xd8] sm:$0xff]
    %v2639 = vld [vmem:[#allocation3 + $0xe0] sm:$0xff]
    %v2640 = vld [vmem:[#allocation3 + $0xe8] sm:$0xff]
    %v2641 = vld [vmem:[#allocation3 + $0xf0] sm:$0xff]
    %v2642 = vld [vmem:[#allocation3 + $0xf8] sm:$0xff]
    %v2675 = vunpack.c.l.b16 %v2611
    %v2676 = vunpack.c.h.b16 %v2611
    %v2677 = vunpack.c.l.b16 %v2612
    %v2678 = vunpack.c.h.b16 %v2612
    %v2679 = vunpack.c.l.b16 %v2613
    %v2680 = vunpack.c.h.b16 %v2613
    %v2681 = vunpack.c.l.b16 %v2614
    %v2682 = vunpack.c.h.b16 %v2614
    %v2683 = vunpack.c.l.b16 %v2615
    %v2684 = vunpack.c.h.b16 %v2615
    %v2685 = vunpack.c.l.b16 %v2616
    %v2686 = vunpack.c.h.b16 %v2616
    %v2687 = vunpack.c.l.b16 %v2617
    %v2688 = vunpack.c.h.b16 %v2617
    %v2689 = vunpack.c.l.b16 %v2618
    %v2690 = vunpack.c.h.b16 %v2618
    %v2691 = vunpack.c.l.b16 %v2619
    %v2692 = vunpack.c.h.b16 %v2619
    %v2693 = vunpack.c.l.b16 %v2620
    %v2694 = vunpack.c.h.b16 %v2620
    %v2695 = vunpack.c.l.b16 %v2621
    %v2696 = vunpack.c.h.b16 %v2621
    %v2697 = vunpack.c.l.b16 %v2622
    %v2698 = vunpack.c.h.b16 %v2622
    %v2699 = vunpack.c.l.b16 %v2623
    %v2700 = vunpack.c.h.b16 %v2623
    %v2701 = vunpack.c.l.b16 %v2624
    %v2702 = vunpack.c.h.b16 %v2624
    %v2703 = vunpack.c.l.b16 %v2625
    %v2704 = vunpack.c.h.b16 %v2625
    %v2705 = vunpack.c.l.b16 %v2626
    %v2706 = vunpack.c.h.b16 %v2626
    %v2707 = vunpack.c.l.b16 %v2627
    %v2708 = vunpack.c.h.b16 %v2627
    %v2709 = vunpack.c.l.b16 %v2628
    %v2710 = vunpack.c.h.b16 %v2628
    %v2711 = vunpack.c.l.b16 %v2629
    %v2712 = vunpack.c.h.b16 %v2629
    %v2713 = vunpack.c.l.b16 %v2630
    %v2714 = vunpack.c.h.b16 %v2630
    %v2715 = vunpack.c.l.b16 %v2631
    %v2716 = vunpack.c.h.b16 %v2631
    %v2717 = vunpack.c.l.b16 %v2632
    %v2718 = vunpack.c.h.b16 %v2632
    %v2719 = vunpack.c.l.b16 %v2633
    %v2720 = vunpack.c.h.b16 %v2633
    %v2721 = vunpack.c.l.b16 %v2634
    %v2722 = vunpack.c.h.b16 %v2634
    %v2723 = vunpack.c.l.b16 %v2635
    %v2724 = vunpack.c.h.b16 %v2635
    %v2725 = vunpack.c.l.b16 %v2636
    %v2726 = vunpack.c.h.b16 %v2636
    %v2727 = vunpack.c.l.b16 %v2637
    %v2728 = vunpack.c.h.b16 %v2637
    %v2729 = vunpack.c.l.b16 %v2638
    %v2730 = vunpack.c.h.b16 %v2638
    %v2731 = vunpack.c.l.b16 %v2639
    %v2732 = vunpack.c.h.b16 %v2639
    %v2733 = vunpack.c.l.b16 %v2640
    %v2734 = vunpack.c.h.b16 %v2640
    %v2735 = vunpack.c.l.b16 %v2641
    %v2736 = vunpack.c.h.b16 %v2641
    %v2737 = vunpack.c.l.b16 %v2642
    %v2738 = vunpack.c.h.b16 %v2642
    %v2739 = vpack.c.b16 %v2677, %v2675
    %v2740 = vpack.c.b16 %v2678, %v2676
    %v2741 = vpack.c.b16 %v2681, %v2679
    %v2742 = vpack.c.b16 %v2682, %v2680
    %v2743 = vpack.c.b16 %v2685, %v2683
    %v2744 = vpack.c.b16 %v2686, %v2684
    %v2745 = vpack.c.b16 %v2689, %v2687
    %v2746 = vpack.c.b16 %v2690, %v2688
    %v2747 = vpack.c.b16 %v2693, %v2691
    %v2748 = vpack.c.b16 %v2694, %v2692
    %v2749 = vpack.c.b16 %v2697, %v2695
    %v2750 = vpack.c.b16 %v2698, %v2696
    %v2751 = vpack.c.b16 %v2701, %v2699
    %v2752 = vpack.c.b16 %v2702, %v2700
    %v2753 = vpack.c.b16 %v2705, %v2703
    %v2754 = vpack.c.b16 %v2706, %v2704
    %v2755 = vpack.c.b16 %v2709, %v2707
    %v2756 = vpack.c.b16 %v2710, %v2708
    %v2757 = vpack.c.b16 %v2713, %v2711
    %v2758 = vpack.c.b16 %v2714, %v2712
    %v2759 = vpack.c.b16 %v2717, %v2715
    %v2760 = vpack.c.b16 %v2718, %v2716
    %v2761 = vpack.c.b16 %v2721, %v2719
    %v2762 = vpack.c.b16 %v2722, %v2720
    %v2763 = vpack.c.b16 %v2725, %v2723
    %v2764 = vpack.c.b16 %v2726, %v2724
    %v2765 = vpack.c.b16 %v2729, %v2727
    %v2766 = vpack.c.b16 %v2730, %v2728
    %v2767 = vpack.c.b16 %v2733, %v2731
    %v2768 = vpack.c.b16 %v2734, %v2732
    %v2769 = vpack.c.b16 %v2737, %v2735
    %v2770 = vpack.c.b16 %v2738, %v2736
    %2803 = vmatprep.subr.bf16.mxu0 %v2754
    %2804 = vmatpush1.bf16.msra.mxu0 %v2753
    %2805 = vmatprep.subr.bf16.mxu0 %v2752
    %2806 = vmatpush1.bf16.msra.mxu0 %v2751
    %2807 = vmatprep.subr.bf16.mxu0 %v2750
    %2808 = vmatpush1.bf16.msra.mxu0 %v2749
    %2809 = vmatprep.subr.bf16.mxu0 %v2748
    %2810 = vmatpush1.bf16.msra.mxu0 %v2747
    %2811 = vmatprep.subr.bf16.mxu0 %v2746
    %2812 = vmatpush1.bf16.msra.mxu0 %v2745
    %2813 = vmatprep.subr.bf16.mxu0 %v2744
    %2814 = vmatpush1.bf16.msra.mxu0 %v2743
    %2815 = vmatprep.subr.bf16.mxu0 %v2742
    %2816 = vmatpush1.bf16.msra.mxu0 %v2741
    %2817 = vmatprep.subr.bf16.mxu0 %v2740
    %2818 = vmatpush1.bf16.msra.mxu0 %v2739
    %2819 = vmatprep.subr.bf16.mxu0 %v2770
    %2820 = vmatpush2.bf16.msra.mxu0 %v2769
    %2821 = vmatprep.subr.bf16.mxu0 %v2768
    %2822 = vmatpush2.bf16.msra.mxu0 %v2767
    %2823 = vmatprep.subr.bf16.mxu0 %v2766
    %2824 = vmatpush2.bf16.msra.mxu0 %v2765
    %2825 = vmatprep.subr.bf16.mxu0 %v2764
    %2826 = vmatpush2.bf16.msra.mxu0 %v2763
    %2827 = vmatprep.subr.bf16.mxu0 %v2762
    %2828 = vmatpush2.bf16.msra.mxu0 %v2761
    %2829 = vmatprep.subr.bf16.mxu0 %v2760
    %2830 = vmatpush2.bf16.msra.mxu0 %v2759
    %2831 = vmatprep.subr.bf16.mxu0 %v2758
    %2832 = vmatpush2.bf16.msra.mxu0 %v2757
    %2833 = vmatprep.subr.bf16.mxu0 %v2756
    %2834 = vmatpush2.bf16.msra.mxu0 %v2755
    %2835 = vmatprep.mubr.bf16.mxu0 %v2740
    %2836 = vmatmul.mubr.bf16.gmra.mxu0 %v2739
    %v2837 = vpop.f32.mrf.mxu0
    %v2838 = vadd.f32 0.0, %v2837
    %v2839 = vpop.f32.mrf.mxu0
    %v2840 = vadd.f32 0.0, %v2839
    %v2841 = vpop.f32.mrf.mxu0
    %v2842 = vadd.f32 0.0, %v2841
    %v2843 = vpop.f32.mrf.mxu0
    %v2844 = vadd.f32 0.0, %v2843
    %2845 = vmatprep.mubr.bf16.mxu0 %v2742
    %2846 = vmatmul.mubr.bf16.gmra.mxu0 %v2741
    %v2847 = vpop.f32.mrf.mxu0
    %v2848 = vadd.f32 0.0, %v2847
    %v2849 = vpop.f32.mrf.mxu0
    %v2850 = vadd.f32 0.0, %v2849
    %v2851 = vpop.f32.mrf.mxu0
    %v2852 = vadd.f32 0.0, %v2851
    %v2853 = vpop.f32.mrf.mxu0
    %v2854 = vadd.f32 0.0, %v2853
    %2855 = vmatprep.mubr.bf16.mxu0 %v2744
    %2856 = vmatmul.mubr.bf16.gmra.mxu0 %v2743
    %v2857 = vpop.f32.mrf.mxu0
    %v2858 = vadd.f32 0.0, %v2857
    %v2859 = vpop.f32.mrf.mxu0
    %v2860 = vadd.f32 0.0, %v2859
    %v2861 = vpop.f32.mrf.mxu0
    %v2862 = vadd.f32 0.0, %v2861
    %v2863 = vpop.f32.mrf.mxu0
    %v2864 = vadd.f32 0.0, %v2863
    %2865 = vmatprep.mubr.bf16.mxu0 %v2746
    %2866 = vmatmul.mubr.bf16.gmra.mxu0 %v2745
    %v2867 = vpop.f32.mrf.mxu0
    %v2868 = vadd.f32 0.0, %v2867
    %v2869 = vpop.f32.mrf.mxu0
    %v2870 = vadd.f32 0.0, %v2869
    %v2871 = vpop.f32.mrf.mxu0
    %v2872 = vadd.f32 0.0, %v2871
    %v2873 = vpop.f32.mrf.mxu0
    %v2874 = vadd.f32 0.0, %v2873
    %2875 = vmatprep.mubr.bf16.mxu0 %v2748
    %2876 = vmatmul.mubr.bf16.gmra.mxu0 %v2747
    %v2877 = vpop.f32.mrf.mxu0
    %v2878 = vadd.f32 0.0, %v2877
    %v2879 = vpop.f32.mrf.mxu0
    %v2880 = vadd.f32 0.0, %v2879
    %v2881 = vpop.f32.mrf.mxu0
    %v2882 = vadd.f32 0.0, %v2881
    %v2883 = vpop.f32.mrf.mxu0
    %v2884 = vadd.f32 0.0, %v2883
    %2885 = vmatprep.mubr.bf16.mxu0 %v2750
    %2886 = vmatmul.mubr.bf16.gmra.mxu0 %v2749
    %v2887 = vpop.f32.mrf.mxu0
    %v2888 = vadd.f32 0.0, %v2887
    %v2889 = vpop.f32.mrf.mxu0
    %v2890 = vadd.f32 0.0, %v2889
    %v2891 = vpop.f32.mrf.mxu0
    %v2892 = vadd.f32 0.0, %v2891
    %v2893 = vpop.f32.mrf.mxu0
    %v2894 = vadd.f32 0.0, %v2893
    %2895 = vmatprep.mubr.bf16.mxu0 %v2752
    %2896 = vmatmul.mubr.bf16.gmra.mxu0 %v2751
    %v2897 = vpop.f32.mrf.mxu0
    %v2898 = vadd.f32 0.0, %v2897
    %v2899 = vpop.f32.mrf.mxu0
    %v2900 = vadd.f32 0.0, %v2899
    %v2901 = vpop.f32.mrf.mxu0
    %v2902 = vadd.f32 0.0, %v2901
    %v2903 = vpop.f32.mrf.mxu0
    %v2904 = vadd.f32 0.0, %v2903
    %2905 = vmatprep.mubr.bf16.mxu0 %v2754
    %2906 = vmatmul.mubr.bf16.gmra.mxu0 %v2753
    %v2907 = vpop.f32.mrf.mxu0
    %v2908 = vadd.f32 0.0, %v2907
    %v2909 = vpop.f32.mrf.mxu0
    %v2910 = vadd.f32 0.0, %v2909
    %v2911 = vpop.f32.mrf.mxu0
    %v2912 = vadd.f32 0.0, %v2911
    %v2913 = vpop.f32.mrf.mxu0
    %v2914 = vadd.f32 0.0, %v2913
    %2915 = vmatprep.mubr.bf16.mxu0 %v2756
    %2916 = vmatmul.mubr.bf16.gmra.mxu0 %v2755
    %v2917 = vpop.f32.mrf.mxu0
    %v2918 = vadd.f32 0.0, %v2917
    %v2919 = vpop.f32.mrf.mxu0
    %v2920 = vadd.f32 0.0, %v2919
    %v2921 = vpop.f32.mrf.mxu0
    %v2922 = vadd.f32 0.0, %v2921
    %v2923 = vpop.f32.mrf.mxu0
    %v2924 = vadd.f32 0.0, %v2923
    %2925 = vmatprep.mubr.bf16.mxu0 %v2758
    %2926 = vmatmul.mubr.bf16.gmra.mxu0 %v2757
    %v2927 = vpop.f32.mrf.mxu0
    %v2928 = vadd.f32 0.0, %v2927
    %v2929 = vpop.f32.mrf.mxu0
    %v2930 = vadd.f32 0.0, %v2929
    %v2931 = vpop.f32.mrf.mxu0
    %v2932 = vadd.f32 0.0, %v2931
    %v2933 = vpop.f32.mrf.mxu0
    %v2934 = vadd.f32 0.0, %v2933
    %2935 = vmatprep.mubr.bf16.mxu0 %v2760
    %2936 = vmatmul.mubr.bf16.gmra.mxu0 %v2759
    %v2937 = vpop.f32.mrf.mxu0
    %v2938 = vadd.f32 0.0, %v2937
    %v2939 = vpop.f32.mrf.mxu0
    %v2940 = vadd.f32 0.0, %v2939
    %v2941 = vpop.f32.mrf.mxu0
    %v2942 = vadd.f32 0.0, %v2941
    %v2943 = vpop.f32.mrf.mxu0
    %v2944 = vadd.f32 0.0, %v2943
    %2945 = vmatprep.mubr.bf16.mxu0 %v2762
    %2946 = vmatmul.mubr.bf16.gmra.mxu0 %v2761
    %v2947 = vpop.f32.mrf.mxu0
    %v2948 = vadd.f32 0.0, %v2947
    %v2949 = vpop.f32.mrf.mxu0
    %v2950 = vadd.f32 0.0, %v2949
    %v2951 = vpop.f32.mrf.mxu0
    %v2952 = vadd.f32 0.0, %v2951
    %v2953 = vpop.f32.mrf.mxu0
    %v2954 = vadd.f32 0.0, %v2953
    %2955 = vmatprep.mubr.bf16.mxu0 %v2764
    %2956 = vmatmul.mubr.bf16.gmra.mxu0 %v2763
    %v2957 = vpop.f32.mrf.mxu0
    %v2958 = vadd.f32 0.0, %v2957
    %v2959 = vpop.f32.mrf.mxu0
    %v2960 = vadd.f32 0.0, %v2959
    %v2961 = vpop.f32.mrf.mxu0
    %v2962 = vadd.f32 0.0, %v2961
    %v2963 = vpop.f32.mrf.mxu0
    %v2964 = vadd.f32 0.0, %v2963
    %2965 = vmatprep.mubr.bf16.mxu0 %v2766
    %2966 = vmatmul.mubr.bf16.gmra.mxu0 %v2765
    %v2967 = vpop.f32.mrf.mxu0
    %v2968 = vadd.f32 0.0, %v2967
    %v2969 = vpop.f32.mrf.mxu0
    %v2970 = vadd.f32 0.0, %v2969
    %v2971 = vpop.f32.mrf.mxu0
    %v2972 = vadd.f32 0.0, %v2971
    %v2973 = vpop.f32.mrf.mxu0
    %v2974 = vadd.f32 0.0, %v2973
    %2975 = vmatprep.mubr.bf16.mxu0 %v2768
    %2976 = vmatmul.mubr.bf16.gmra.mxu0 %v2767
    %v2977 = vpop.f32.mrf.mxu0
    %v2978 = vadd.f32 0.0, %v2977
    %v2979 = vpop.f32.mrf.mxu0
    %v2980 = vadd.f32 0.0, %v2979
    %v2981 = vpop.f32.mrf.mxu0
    %v2982 = vadd.f32 0.0, %v2981
    %v2983 = vpop.f32.mrf.mxu0
    %v2984 = vadd.f32 0.0, %v2983
    %2985 = vmatprep.mubr.bf16.mxu0 %v2770
    %2986 = vmatmul.mubr.bf16.gmra.mxu0 %v2769
    %v2987 = vpop.f32.mrf.mxu0
    %v2988 = vadd.f32 0.0, %v2987
    %v2989 = vpop.f32.mrf.mxu0
    %v2990 = vadd.f32 0.0, %v2989
    %v2991 = vpop.f32.mrf.mxu0
    %v2992 = vadd.f32 0.0, %v2991
    %v2993 = vpop.f32.mrf.mxu0
    %v2994 = vadd.f32 0.0, %v2993
    %2995 = vdwg.mxu0
    %v2996 = vpack.c.bf16 %v2842, %v2838
    %v2997 = vpack.c.bf16 %v2844, %v2840
    %v2998 = vpack.c.bf16 %v2852, %v2848
    %v2999 = vpack.c.bf16 %v2854, %v2850
    %v3000 = vpack.c.bf16 %v2862, %v2858
    %v3001 = vpack.c.bf16 %v2864, %v2860
    %v3002 = vpack.c.bf16 %v2872, %v2868
    %v3003 = vpack.c.bf16 %v2874, %v2870
    %v3004 = vpack.c.bf16 %v2882, %v2878
    %v3005 = vpack.c.bf16 %v2884, %v2880
    %v3006 = vpack.c.bf16 %v2892, %v2888
    %v3007 = vpack.c.bf16 %v2894, %v2890
    %v3008 = vpack.c.bf16 %v2902, %v2898
    %v3009 = vpack.c.bf16 %v2904, %v2900
    %v3010 = vpack.c.bf16 %v2912, %v2908
    %v3011 = vpack.c.bf16 %v2914, %v2910
    %v3012 = vpack.c.bf16 %v2922, %v2918
    %v3013 = vpack.c.bf16 %v2924, %v2920
    %v3014 = vpack.c.bf16 %v2932, %v2928
    %v3015 = vpack.c.bf16 %v2934, %v2930
    %v3016 = vpack.c.bf16 %v2942, %v2938
    %v3017 = vpack.c.bf16 %v2944, %v2940
    %v3018 = vpack.c.bf16 %v2952, %v2948
    %v3019 = vpack.c.bf16 %v2954, %v2950
    %v3020 = vpack.c.bf16 %v2962, %v2958
    %v3021 = vpack.c.bf16 %v2964, %v2960
    %v3022 = vpack.c.bf16 %v2972, %v2968
    %v3023 = vpack.c.bf16 %v2974, %v2970
    %v3024 = vpack.c.bf16 %v2982, %v2978
    %v3025 = vpack.c.bf16 %v2984, %v2980
    %v3026 = vpack.c.bf16 %v2992, %v2988
    %v3027 = vpack.c.bf16 %v2994, %v2990
    %v3060 = vunpack.c.l.b16 %v2996
    %v3061 = vunpack.c.l.b16 %v2997
    %v3062 = vunpack.c.h.b16 %v2996
    %v3063 = vunpack.c.h.b16 %v2997
    %v3064 = vunpack.c.l.b16 %v2998
    %v3065 = vunpack.c.l.b16 %v2999
    %v3066 = vunpack.c.h.b16 %v2998
    %v3067 = vunpack.c.h.b16 %v2999
    %v3068 = vunpack.c.l.b16 %v3000
    %v3069 = vunpack.c.l.b16 %v3001
    %v3070 = vunpack.c.h.b16 %v3000
    %v3071 = vunpack.c.h.b16 %v3001
    %v3072 = vunpack.c.l.b16 %v3002
    %v3073 = vunpack.c.l.b16 %v3003
    %v3074 = vunpack.c.h.b16 %v3002
    %v3075 = vunpack.c.h.b16 %v3003
    %v3076 = vunpack.c.l.b16 %v3004
    %v3077 = vunpack.c.l.b16 %v3005
    %v3078 = vunpack.c.h.b16 %v3004
    %v3079 = vunpack.c.h.b16 %v3005
    %v3080 = vunpack.c.l.b16 %v3006
    %v3081 = vunpack.c.l.b16 %v3007
    %v3082 = vunpack.c.h.b16 %v3006
    %v3083 = vunpack.c.h.b16 %v3007
    %v3084 = vunpack.c.l.b16 %v3008
    %v3085 = vunpack.c.l.b16 %v3009
    %v3086 = vunpack.c.h.b16 %v3008
    %v3087 = vunpack.c.h.b16 %v3009
    %v3088 = vunpack.c.l.b16 %v3010
    %v3089 = vunpack.c.l.b16 %v3011
    %v3090 = vunpack.c.h.b16 %v3010
    %v3091 = vunpack.c.h.b16 %v3011
    %v3092 = vunpack.c.l.b16 %v3012
    %v3093 = vunpack.c.l.b16 %v3013
    %v3094 = vunpack.c.h.b16 %v3012
    %v3095 = vunpack.c.h.b16 %v3013
    %v3096 = vunpack.c.l.b16 %v3014
    %v3097 = vunpack.c.l.b16 %v3015
    %v3098 = vunpack.c.h.b16 %v3014
    %v3099 = vunpack.c.h.b16 %v3015
    %v3100 = vunpack.c.l.b16 %v3016
    %v3101 = vunpack.c.l.b16 %v3017
    %v3102 = vunpack.c.h.b16 %v3016
    %v3103 = vunpack.c.h.b16 %v3017
    %v3104 = vunpack.c.l.b16 %v3018
    %v3105 = vunpack.c.l.b16 %v3019
    %v3106 = vunpack.c.h.b16 %v3018
    %v3107 = vunpack.c.h.b16 %v3019
    %v3108 = vunpack.c.l.b16 %v3020
    %v3109 = vunpack.c.l.b16 %v3021
    %v3110 = vunpack.c.h.b16 %v3020
    %v3111 = vunpack.c.h.b16 %v3021
    %v3112 = vunpack.c.l.b16 %v3022
    %v3113 = vunpack.c.l.b16 %v3023
    %v3114 = vunpack.c.h.b16 %v3022
    %v3115 = vunpack.c.h.b16 %v3023
    %v3116 = vunpack.c.l.b16 %v3024
    %v3117 = vunpack.c.l.b16 %v3025
    %v3118 = vunpack.c.h.b16 %v3024
    %v3119 = vunpack.c.h.b16 %v3025
    %v3120 = vunpack.c.l.b16 %v3026
    %v3121 = vunpack.c.l.b16 %v3027
    %v3122 = vunpack.c.h.b16 %v3026
    %v3123 = vunpack.c.h.b16 %v3027
    %v3124 = vpack.c.b16 %v3061, %v3060
    %v3125 = vpack.c.b16 %v3063, %v3062
    %v3126 = vpack.c.b16 %v3065, %v3064
    %v3127 = vpack.c.b16 %v3067, %v3066
    %v3128 = vpack.c.b16 %v3069, %v3068
    %v3129 = vpack.c.b16 %v3071, %v3070
    %v3130 = vpack.c.b16 %v3073, %v3072
    %v3131 = vpack.c.b16 %v3075, %v3074
    %v3132 = vpack.c.b16 %v3077, %v3076
    %v3133 = vpack.c.b16 %v3079, %v3078
    %v3134 = vpack.c.b16 %v3081, %v3080
    %v3135 = vpack.c.b16 %v3083, %v3082
    %v3136 = vpack.c.b16 %v3085, %v3084
    %v3137 = vpack.c.b16 %v3087, %v3086
    %v3138 = vpack.c.b16 %v3089, %v3088
    %v3139 = vpack.c.b16 %v3091, %v3090
    %v3140 = vpack.c.b16 %v3093, %v3092
    %v3141 = vpack.c.b16 %v3095, %v3094
    %v3142 = vpack.c.b16 %v3097, %v3096
    %v3143 = vpack.c.b16 %v3099, %v3098
    %v3144 = vpack.c.b16 %v3101, %v3100
    %v3145 = vpack.c.b16 %v3103, %v3102
    %v3146 = vpack.c.b16 %v3105, %v3104
    %v3147 = vpack.c.b16 %v3107, %v3106
    %v3148 = vpack.c.b16 %v3109, %v3108
    %v3149 = vpack.c.b16 %v3111, %v3110
    %v3150 = vpack.c.b16 %v3113, %v3112
    %v3151 = vpack.c.b16 %v3115, %v3114
    %v3152 = vpack.c.b16 %v3117, %v3116
    %v3153 = vpack.c.b16 %v3119, %v3118
    %v3154 = vpack.c.b16 %v3121, %v3120
    %v3155 = vpack.c.b16 %v3123, %v3122
    %3188 = vst [vmem:[#allocation3] sm:$0xff] %v3124
    %3189 = vst [vmem:[#allocation3 + $0x8] sm:$0xff] %v3125
    %3190 = vst [vmem:[#allocation3 + $0x10] sm:$0xff] %v3126
    %3191 = vst [vmem:[#allocation3 + $0x18] sm:$0xff] %v3127
    %3192 = vst [vmem:[#allocation3 + $0x20] sm:$0xff] %v3128
    %3193 = vst [vmem:[#allocation3 + $0x28] sm:$0xff] %v3129
    %3194 = vst [vmem:[#allocation3 + $0x30] sm:$0xff] %v3130
    %3195 = vst [vmem:[#allocation3 + $0x38] sm:$0xff] %v3131
    %3196 = vst [vmem:[#allocation3 + $0x40] sm:$0xff] %v3132
    %3197 = vst [vmem:[#allocation3 + $0x48] sm:$0xff] %v3133
    %3198 = vst [vmem:[#allocation3 + $0x50] sm:$0xff] %v3134
    %3199 = vst [vmem:[#allocation3 + $0x58] sm:$0xff] %v3135
    %3200 = vst [vmem:[#allocation3 + $0x60] sm:$0xff] %v3136
    %3201 = vst [vmem:[#allocation3 + $0x68] sm:$0xff] %v3137
    %3202 = vst [vmem:[#allocation3 + $0x70] sm:$0xff] %v3138
    %3203 = vst [vmem:[#allocation3 + $0x78] sm:$0xff] %v3139
    %3204 = vst [vmem:[#allocation3 + $0x80] sm:$0xff] %v3140
    %3205 = vst [vmem:[#allocation3 + $0x88] sm:$0xff] %v3141
    %3206 = vst [vmem:[#allocation3 + $0x90] sm:$0xff] %v3142
    %3207 = vst [vmem:[#allocation3 + $0x98] sm:$0xff] %v3143
    %3208 = vst [vmem:[#allocation3 + $0xa0] sm:$0xff] %v3144
    %3209 = vst [vmem:[#allocation3 + $0xa8] sm:$0xff] %v3145
    %3210 = vst [vmem:[#allocation3 + $0xb0] sm:$0xff] %v3146
    %3211 = vst [vmem:[#allocation3 + $0xb8] sm:$0xff] %v3147
    %3212 = vst [vmem:[#allocation3 + $0xc0] sm:$0xff] %v3148
    %3213 = vst [vmem:[#allocation3 + $0xc8] sm:$0xff] %v3149
    %3214 = vst [vmem:[#allocation3 + $0xd0] sm:$0xff] %v3150
    %3215 = vst [vmem:[#allocation3 + $0xd8] sm:$0xff] %v3151
    %3216 = vst [vmem:[#allocation3 + $0xe0] sm:$0xff] %v3152
    %3217 = vst [vmem:[#allocation3 + $0xe8] sm:$0xff] %v3153
    %3218 = vst [vmem:[#allocation3 + $0xf0] sm:$0xff] %v3154
    %3219 = vst [vmem:[#allocation3 + $0xf8] sm:$0xff] %v3155
    %v3220 = vld [vmem:[#allocation3] sm:$0xff]
    %v3221 = vld [vmem:[#allocation3 + $0x8] sm:$0xff]
    %v3222 = vld [vmem:[#allocation3 + $0x10] sm:$0xff]
    %v3223 = vld [vmem:[#allocation3 + $0x18] sm:$0xff]
    %v3224 = vld [vmem:[#allocation3 + $0x20] sm:$0xff]
    %v3225 = vld [vmem:[#allocation3 + $0x28] sm:$0xff]
    %v3226 = vld [vmem:[#allocation3 + $0x30] sm:$0xff]
    %v3227 = vld [vmem:[#allocation3 + $0x38] sm:$0xff]
    %v3228 = vld [vmem:[#allocation3 + $0x40] sm:$0xff]
    %v3229 = vld [vmem:[#allocation3 + $0x48] sm:$0xff]
    %v3230 = vld [vmem:[#allocation3 + $0x50] sm:$0xff]
    %v3231 = vld [vmem:[#allocation3 + $0x58] sm:$0xff]
    %v3232 = vld [vmem:[#allocation3 + $0x60] sm:$0xff]
    %v3233 = vld [vmem:[#allocation3 + $0x68] sm:$0xff]
    %v3234 = vld [vmem:[#allocation3 + $0x70] sm:$0xff]
    %v3235 = vld [vmem:[#allocation3 + $0x78] sm:$0xff]
    %v3236 = vld [vmem:[#allocation3 + $0x80] sm:$0xff]
    %v3237 = vld [vmem:[#allocation3 + $0x88] sm:$0xff]
    %v3238 = vld [vmem:[#allocation3 + $0x90] sm:$0xff]
    %v3239 = vld [vmem:[#allocation3 + $0x98] sm:$0xff]
    %v3240 = vld [vmem:[#allocation3 + $0xa0] sm:$0xff]
    %v3241 = vld [vmem:[#allocation3 + $0xa8] sm:$0xff]
    %v3242 = vld [vmem:[#allocation3 + $0xb0] sm:$0xff]
    %v3243 = vld [vmem:[#allocation3 + $0xb8] sm:$0xff]
    %v3244 = vld [vmem:[#allocation3 + $0xc0] sm:$0xff]
    %v3245 = vld [vmem:[#allocation3 + $0xc8] sm:$0xff]
    %v3246 = vld [vmem:[#allocation3 + $0xd0] sm:$0xff]
    %v3247 = vld [vmem:[#allocation3 + $0xd8] sm:$0xff]
    %v3248 = vld [vmem:[#allocation3 + $0xe0] sm:$0xff]
    %v3249 = vld [vmem:[#allocation3 + $0xe8] sm:$0xff]
    %v3250 = vld [vmem:[#allocation3 + $0xf0] sm:$0xff]
    %v3251 = vld [vmem:[#allocation3 + $0xf8] sm:$0xff]
    %v3253 = vlaneseq
    %v3254 = vshrl.u32 %v3253, 7
    %v3255 = vsub.s32 0, %v3254
    %v3256 = vrot.slane %v1188, %v3255
    %v3257 = vlaneseq
    %v3258 = vshrl.u32 %v3257, 7
    %v3259 = vsub.s32 1, %v3258
    %v3260 = vrot.slane %v1188, %v3259
    %v3263 = vpack.c.bf16 %v3256, %v3256
    %v3264 = vpack.c.bf16 %v3260, %v3260
    %v3297 = vunpack.c.l.b16 %v3220
    %v3298 = vunpack.c.h.b16 %v3220
    %v3299 = vunpack.c.l.b16 %v3221
    %v3300 = vunpack.c.h.b16 %v3221
    %v3301 = vunpack.c.l.b16 %v3222
    %v3302 = vunpack.c.h.b16 %v3222
    %v3303 = vunpack.c.l.b16 %v3223
    %v3304 = vunpack.c.h.b16 %v3223
    %v3305 = vunpack.c.l.b16 %v3224
    %v3306 = vunpack.c.h.b16 %v3224
    %v3307 = vunpack.c.l.b16 %v3225
    %v3308 = vunpack.c.h.b16 %v3225
    %v3309 = vunpack.c.l.b16 %v3226
    %v3310 = vunpack.c.h.b16 %v3226
    %v3311 = vunpack.c.l.b16 %v3227
    %v3312 = vunpack.c.h.b16 %v3227
    %v3313 = vunpack.c.l.b16 %v3228
    %v3314 = vunpack.c.h.b16 %v3228
    %v3315 = vunpack.c.l.b16 %v3229
    %v3316 = vunpack.c.h.b16 %v3229
    %v3317 = vunpack.c.l.b16 %v3230
    %v3318 = vunpack.c.h.b16 %v3230
    %v3319 = vunpack.c.l.b16 %v3231
    %v3320 = vunpack.c.h.b16 %v3231
    %v3321 = vunpack.c.l.b16 %v3232
    %v3322 = vunpack.c.h.b16 %v3232
    %v3323 = vunpack.c.l.b16 %v3233
    %v3324 = vunpack.c.h.b16 %v3233
    %v3325 = vunpack.c.l.b16 %v3234
    %v3326 = vunpack.c.h.b16 %v3234
    %v3327 = vunpack.c.l.b16 %v3235
    %v3328 = vunpack.c.h.b16 %v3235
    %v3329 = vunpack.c.l.b16 %v3236
    %v3330 = vunpack.c.h.b16 %v3236
    %v3331 = vunpack.c.l.b16 %v3237
    %v3332 = vunpack.c.h.b16 %v3237
    %v3333 = vunpack.c.l.b16 %v3238
    %v3334 = vunpack.c.h.b16 %v3238
    %v3335 = vunpack.c.l.b16 %v3239
    %v3336 = vunpack.c.h.b16 %v3239
    %v3337 = vunpack.c.l.b16 %v3240
    %v3338 = vunpack.c.h.b16 %v3240
    %v3339 = vunpack.c.l.b16 %v3241
    %v3340 = vunpack.c.h.b16 %v3241
    %v3341 = vunpack.c.l.b16 %v3242
    %v3342 = vunpack.c.h.b16 %v3242
    %v3343 = vunpack.c.l.b16 %v3243
    %v3344 = vunpack.c.h.b16 %v3243
    %v3345 = vunpack.c.l.b16 %v3244
    %v3346 = vunpack.c.h.b16 %v3244
    %v3347 = vunpack.c.l.b16 %v3245
    %v3348 = vunpack.c.h.b16 %v3245
    %v3349 = vunpack.c.l.b16 %v3246
    %v3350 = vunpack.c.h.b16 %v3246
    %v3351 = vunpack.c.l.b16 %v3247
    %v3352 = vunpack.c.h.b16 %v3247
    %v3353 = vunpack.c.l.b16 %v3248
    %v3354 = vunpack.c.h.b16 %v3248
    %v3355 = vunpack.c.l.b16 %v3249
    %v3356 = vunpack.c.h.b16 %v3249
    %v3357 = vunpack.c.l.b16 %v3250
    %v3358 = vunpack.c.h.b16 %v3250
    %v3359 = vunpack.c.l.b16 %v3251
    %v3360 = vunpack.c.h.b16 %v3251
    %v3361 = vpack.c.b16 %v3299, %v3297
    %v3362 = vpack.c.b16 %v3300, %v3298
    %v3363 = vpack.c.b16 %v3303, %v3301
    %v3364 = vpack.c.b16 %v3304, %v3302
    %v3365 = vpack.c.b16 %v3307, %v3305
    %v3366 = vpack.c.b16 %v3308, %v3306
    %v3367 = vpack.c.b16 %v3311, %v3309
    %v3368 = vpack.c.b16 %v3312, %v3310
    %v3369 = vpack.c.b16 %v3315, %v3313
    %v3370 = vpack.c.b16 %v3316, %v3314
    %v3371 = vpack.c.b16 %v3319, %v3317
    %v3372 = vpack.c.b16 %v3320, %v3318
    %v3373 = vpack.c.b16 %v3323, %v3321
    %v3374 = vpack.c.b16 %v3324, %v3322
    %v3375 = vpack.c.b16 %v3327, %v3325
    %v3376 = vpack.c.b16 %v3328, %v3326
    %v3377 = vpack.c.b16 %v3331, %v3329
    %v3378 = vpack.c.b16 %v3332, %v3330
    %v3379 = vpack.c.b16 %v3335, %v3333
    %v3380 = vpack.c.b16 %v3336, %v3334
    %v3381 = vpack.c.b16 %v3339, %v3337
    %v3382 = vpack.c.b16 %v3340, %v3338
    %v3383 = vpack.c.b16 %v3343, %v3341
    %v3384 = vpack.c.b16 %v3344, %v3342
    %v3385 = vpack.c.b16 %v3347, %v3345
    %v3386 = vpack.c.b16 %v3348, %v3346
    %v3387 = vpack.c.b16 %v3351, %v3349
    %v3388 = vpack.c.b16 %v3352, %v3350
    %v3389 = vpack.c.b16 %v3355, %v3353
    %v3390 = vpack.c.b16 %v3356, %v3354
    %v3391 = vpack.c.b16 %v3359, %v3357
    %v3392 = vpack.c.b16 %v3360, %v3358
    %3425 = vmatprep.subr.bf16.mxu0 %v3376
    %3426 = vmatpush1.bf16.xpose.msra.mxu0 %v3375
    %3427 = vmatprep.subr.bf16.mxu0 %v3374
    %3428 = vmatpush1.bf16.xpose.msra.mxu0 %v3373
    %3429 = vmatprep.subr.bf16.mxu0 %v3372
    %3430 = vmatpush1.bf16.xpose.msra.mxu0 %v3371
    %3431 = vmatprep.subr.bf16.mxu0 %v3370
    %3432 = vmatpush1.bf16.xpose.msra.mxu0 %v3369
    %3433 = vmatprep.subr.bf16.mxu0 %v3368
    %3434 = vmatpush1.bf16.xpose.msra.mxu0 %v3367
    %3435 = vmatprep.subr.bf16.mxu0 %v3366
    %3436 = vmatpush1.bf16.xpose.msra.mxu0 %v3365
    %3437 = vmatprep.subr.bf16.mxu0 %v3364
    %3438 = vmatpush1.bf16.xpose.msra.mxu0 %v3363
    %3439 = vmatprep.subr.bf16.mxu0 %v3362
    %3440 = vmatpush1.bf16.xpose.msra.mxu0 %v3361
    %3441 = vmatprep.subr.bf16.mxu0 %v3392
    %3442 = vmatpush2.bf16.xpose.msra.mxu0 %v3391
    %3443 = vmatprep.subr.bf16.mxu0 %v3390
    %3444 = vmatpush2.bf16.xpose.msra.mxu0 %v3389
    %3445 = vmatprep.subr.bf16.mxu0 %v3388
    %3446 = vmatpush2.bf16.xpose.msra.mxu0 %v3387
    %3447 = vmatprep.subr.bf16.mxu0 %v3386
    %3448 = vmatpush2.bf16.xpose.msra.mxu0 %v3385
    %3449 = vmatprep.subr.bf16.mxu0 %v3384
    %3450 = vmatpush2.bf16.xpose.msra.mxu0 %v3383
    %3451 = vmatprep.subr.bf16.mxu0 %v3382
    %3452 = vmatpush2.bf16.xpose.msra.mxu0 %v3381
    %3453 = vmatprep.subr.bf16.mxu0 %v3380
    %3454 = vmatpush2.bf16.xpose.msra.mxu0 %v3379
    %3455 = vmatprep.subr.bf16.mxu0 %v3378
    %3456 = vmatpush2.bf16.xpose.msra.mxu0 %v3377
    %3457 = vmatprep.mubr.bf16.mxu0 %v3264
    %3458 = vmatmul.mubr.bf16.gmra.mxu0 %v3263
    %v3459 = vpop.f32.mrf.mxu0
    %v3460 = vadd.f32 0.0, %v3459
    %v3461 = vpop.f32.mrf.mxu0
    %v3462 = vadd.f32 0.0, %v3461
    %v3463 = vpop.f32.mrf.mxu0
    %v3464 = vpop.f32.mrf.mxu0
    %3465 = vdwg.mxu0
    %v3467 = vlaneseq
    %v3468 = vshrl.u32 %v3467, 7
    %v3469 = vsub.s32 0, %v3468
    %v3470 = vrot.slane %v1189, %v3469
    %v3471 = vlaneseq
    %v3472 = vshrl.u32 %v3471, 7
    %v3473 = vsub.s32 1, %v3472
    %v3474 = vrot.slane %v1189, %v3473
    %v3477 = vpack.c.bf16 %v3470, %v3470
    %v3478 = vpack.c.bf16 %v3474, %v3474
    %3479 = vmatprep.subr.bf16.mxu0 %v3376
    %3480 = vmatpush1.bf16.msra.mxu0 %v3375
    %3481 = vmatprep.subr.bf16.mxu0 %v3374
    %3482 = vmatpush1.bf16.msra.mxu0 %v3373
    %3483 = vmatprep.subr.bf16.mxu0 %v3372
    %3484 = vmatpush1.bf16.msra.mxu0 %v3371
    %3485 = vmatprep.subr.bf16.mxu0 %v3370
    %3486 = vmatpush1.bf16.msra.mxu0 %v3369
    %3487 = vmatprep.subr.bf16.mxu0 %v3368
    %3488 = vmatpush1.bf16.msra.mxu0 %v3367
    %3489 = vmatprep.subr.bf16.mxu0 %v3366
    %3490 = vmatpush1.bf16.msra.mxu0 %v3365
    %3491 = vmatprep.subr.bf16.mxu0 %v3364
    %3492 = vmatpush1.bf16.msra.mxu0 %v3363
    %3493 = vmatprep.subr.bf16.mxu0 %v3362
    %3494 = vmatpush1.bf16.msra.mxu0 %v3361
    %3495 = vmatprep.subr.bf16.mxu0 %v3392
    %3496 = vmatpush2.bf16.msra.mxu0 %v3391
    %3497 = vmatprep.subr.bf16.mxu0 %v3390
    %3498 = vmatpush2.bf16.msra.mxu0 %v3389
    %3499 = vmatprep.subr.bf16.mxu0 %v3388
    %3500 = vmatpush2.bf16.msra.mxu0 %v3387
    %3501 = vmatprep.subr.bf16.mxu0 %v3386
    %3502 = vmatpush2.bf16.msra.mxu0 %v3385
    %3503 = vmatprep.subr.bf16.mxu0 %v3384
    %3504 = vmatpush2.bf16.msra.mxu0 %v3383
    %3505 = vmatprep.subr.bf16.mxu0 %v3382
    %3506 = vmatpush2.bf16.msra.mxu0 %v3381
    %3507 = vmatprep.subr.bf16.mxu0 %v3380
    %3508 = vmatpush2.bf16.msra.mxu0 %v3379
    %3509 = vmatprep.subr.bf16.mxu0 %v3378
    %3510 = vmatpush2.bf16.msra.mxu0 %v3377
    %3511 = vmatprep.mubr.bf16.mxu0 %v3478
    %3512 = vmatmul.mubr.bf16.gmra.mxu0 %v3477
    %v3513 = vpop.f32.mrf.mxu0
    %v3514 = vadd.f32 0.0, %v3513
    %v3515 = vpop.f32.mrf.mxu0
    %v3516 = vadd.f32 0.0, %v3515
    %v3517 = vpop.f32.mrf.mxu0
    %v3518 = vpop.f32.mrf.mxu0
    %3519 = vdwg.mxu0
    %v3520 = vmul.f32 %v3460, %v3460
    %v3521 = vmul.f32 %v3462, %v3462
    %vm3522 = vcmask 1040384
    %v3523 = vsel %vm3522, %v3520, 0.0
    %v3524 = vsel %vm3522, %v3521, 0.0
    %v3525 = vadd.f32 %v3523, %v3524
    %3526 = vadd.xlane.f32.xlu0 %v3525
    %v3527 = vpop.xlane.xlu0 %3526
    %v3528 = vrot.slane %v3527, 4
    %v3529 = vadd.f32 %v3527, %v3528
    %v3530 = vrot.slane %v3529, 2
    %v3531 = vadd.f32 %v3529, %v3530
    %v3532 = vrot.slane %v3531, 1
    %v3533 = vadd.f32 %v3531, %v3532
    %s3534 = vtos %v3533
    %v3535 = vstv %s3534
    %v3536 = vadd.f32 %v3535, 1e-30
    %v3537 = vrsqrt.pop %v3536
    %v3538 = vmul.f32 %v3460, %v3537
    %v3539 = vmul.f32 %v3462, %v3537
    %v3540 = vmul.f32 %v3514, %v3514
    %v3541 = vmul.f32 %v3516, %v3516
    %v3542 = vsel %vm3522, %v3540, 0.0
    %v3543 = vsel %vm3522, %v3541, 0.0
    %v3544 = vadd.f32 %v3542, %v3543
    %3545 = vadd.xlane.f32.xlu0 %v3544
    %v3546 = vpop.xlane.xlu0 %3545
    %v3547 = vrot.slane %v3546, 4
    %v3548 = vadd.f32 %v3546, %v3547
    %v3549 = vrot.slane %v3548, 2
    %v3550 = vadd.f32 %v3548, %v3549
    %v3551 = vrot.slane %v3550, 1
    %v3552 = vadd.f32 %v3550, %v3551
    %s3553 = vtos %v3552
    %v3554 = vstv %s3553
    %v3555 = vadd.f32 %v3554, 1e-30
    %v3556 = vrsqrt.pop %v3555
    %v3557 = vmul.f32 %v3514, %v3556
    %v3558 = vmul.f32 %v3516, %v3556
    %3559 = vmatprep.subr.bf16.mxu0 %v3376
    %3560 = vmatpush1.bf16.msra.mxu0 %v3375
    %3561 = vmatprep.subr.bf16.mxu0 %v3374
    %3562 = vmatpush1.bf16.msra.mxu0 %v3373
    %3563 = vmatprep.subr.bf16.mxu0 %v3372
    %3564 = vmatpush1.bf16.msra.mxu0 %v3371
    %3565 = vmatprep.subr.bf16.mxu0 %v3370
    %3566 = vmatpush1.bf16.msra.mxu0 %v3369
    %3567 = vmatprep.subr.bf16.mxu0 %v3368
    %3568 = vmatpush1.bf16.msra.mxu0 %v3367
    %3569 = vmatprep.subr.bf16.mxu0 %v3366
    %3570 = vmatpush1.bf16.msra.mxu0 %v3365
    %3571 = vmatprep.subr.bf16.mxu0 %v3364
    %3572 = vmatpush1.bf16.msra.mxu0 %v3363
    %3573 = vmatprep.subr.bf16.mxu0 %v3362
    %3574 = vmatpush1.bf16.msra.mxu0 %v3361
    %3575 = vmatprep.subr.bf16.mxu0 %v3392
    %3576 = vmatpush2.bf16.msra.mxu0 %v3391
    %3577 = vmatprep.subr.bf16.mxu0 %v3390
    %3578 = vmatpush2.bf16.msra.mxu0 %v3389
    %3579 = vmatprep.subr.bf16.mxu0 %v3388
    %3580 = vmatpush2.bf16.msra.mxu0 %v3387
    %3581 = vmatprep.subr.bf16.mxu0 %v3386
    %3582 = vmatpush2.bf16.msra.mxu0 %v3385
    %3583 = vmatprep.subr.bf16.mxu0 %v3384
    %3584 = vmatpush2.bf16.msra.mxu0 %v3383
    %3585 = vmatprep.subr.bf16.mxu0 %v3382
    %3586 = vmatpush2.bf16.msra.mxu0 %v3381
    %3587 = vmatprep.subr.bf16.mxu0 %v3380
    %3588 = vmatpush2.bf16.msra.mxu0 %v3379
    %3589 = vmatprep.subr.bf16.mxu0 %v3378
    %3590 = vmatpush2.bf16.msra.mxu0 %v3377
    %3591 = vmatprep.mubr.bf16.mxu0 %v3362
    %3592 = vmatmul.mubr.bf16.gmra.mxu0 %v3361
    %v3593 = vpop.f32.mrf.mxu0
    %v3594 = vadd.f32 0.0, %v3593
    %v3595 = vpop.f32.mrf.mxu0
    %v3596 = vadd.f32 0.0, %v3595
    %v3597 = vpop.f32.mrf.mxu0
    %v3598 = vadd.f32 0.0, %v3597
    %v3599 = vpop.f32.mrf.mxu0
    %v3600 = vadd.f32 0.0, %v3599
    %3601 = vmatprep.mubr.bf16.mxu0 %v3364
    %3602 = vmatmul.mubr.bf16.gmra.mxu0 %v3363
    %v3603 = vpop.f32.mrf.mxu0
    %v3604 = vadd.f32 0.0, %v3603
    %v3605 = vpop.f32.mrf.mxu0
    %v3606 = vadd.f32 0.0, %v3605
    %v3607 = vpop.f32.mrf.mxu0
    %v3608 = vadd.f32 0.0, %v3607
    %v3609 = vpop.f32.mrf.mxu0
    %v3610 = vadd.f32 0.0, %v3609
    %3611 = vmatprep.mubr.bf16.mxu0 %v3366
    %3612 = vmatmul.mubr.bf16.gmra.mxu0 %v3365
    %v3613 = vpop.f32.mrf.mxu0
    %v3614 = vadd.f32 0.0, %v3613
    %v3615 = vpop.f32.mrf.mxu0
    %v3616 = vadd.f32 0.0, %v3615
    %v3617 = vpop.f32.mrf.mxu0
    %v3618 = vadd.f32 0.0, %v3617
    %v3619 = vpop.f32.mrf.mxu0
    %v3620 = vadd.f32 0.0, %v3619
    %3621 = vmatprep.mubr.bf16.mxu0 %v3368
    %3622 = vmatmul.mubr.bf16.gmra.mxu0 %v3367
    %v3623 = vpop.f32.mrf.mxu0
    %v3624 = vadd.f32 0.0, %v3623
    %v3625 = vpop.f32.mrf.mxu0
    %v3626 = vadd.f32 0.0, %v3625
    %v3627 = vpop.f32.mrf.mxu0
    %v3628 = vadd.f32 0.0, %v3627
    %v3629 = vpop.f32.mrf.mxu0
    %v3630 = vadd.f32 0.0, %v3629
    %3631 = vmatprep.mubr.bf16.mxu0 %v3370
    %3632 = vmatmul.mubr.bf16.gmra.mxu0 %v3369
    %v3633 = vpop.f32.mrf.mxu0
    %v3634 = vadd.f32 0.0, %v3633
    %v3635 = vpop.f32.mrf.mxu0
    %v3636 = vadd.f32 0.0, %v3635
    %v3637 = vpop.f32.mrf.mxu0
    %v3638 = vadd.f32 0.0, %v3637
    %v3639 = vpop.f32.mrf.mxu0
    %v3640 = vadd.f32 0.0, %v3639
    %3641 = vmatprep.mubr.bf16.mxu0 %v3372
    %3642 = vmatmul.mubr.bf16.gmra.mxu0 %v3371
    %v3643 = vpop.f32.mrf.mxu0
    %v3644 = vadd.f32 0.0, %v3643
    %v3645 = vpop.f32.mrf.mxu0
    %v3646 = vadd.f32 0.0, %v3645
    %v3647 = vpop.f32.mrf.mxu0
    %v3648 = vadd.f32 0.0, %v3647
    %v3649 = vpop.f32.mrf.mxu0
    %v3650 = vadd.f32 0.0, %v3649
    %3651 = vmatprep.mubr.bf16.mxu0 %v3374
    %3652 = vmatmul.mubr.bf16.gmra.mxu0 %v3373
    %v3653 = vpop.f32.mrf.mxu0
    %v3654 = vadd.f32 0.0, %v3653
    %v3655 = vpop.f32.mrf.mxu0
    %v3656 = vadd.f32 0.0, %v3655
    %v3657 = vpop.f32.mrf.mxu0
    %v3658 = vadd.f32 0.0, %v3657
    %v3659 = vpop.f32.mrf.mxu0
    %v3660 = vadd.f32 0.0, %v3659
    %3661 = vmatprep.mubr.bf16.mxu0 %v3376
    %3662 = vmatmul.mubr.bf16.gmra.mxu0 %v3375
    %v3663 = vpop.f32.mrf.mxu0
    %v3664 = vadd.f32 0.0, %v3663
    %v3665 = vpop.f32.mrf.mxu0
    %v3666 = vadd.f32 0.0, %v3665
    %v3667 = vpop.f32.mrf.mxu0
    %v3668 = vadd.f32 0.0, %v3667
    %v3669 = vpop.f32.mrf.mxu0
    %v3670 = vadd.f32 0.0, %v3669
    %3671 = vmatprep.mubr.bf16.mxu0 %v3378
    %3672 = vmatmul.mubr.bf16.gmra.mxu0 %v3377
    %v3673 = vpop.f32.mrf.mxu0
    %v3674 = vadd.f32 0.0, %v3673
    %v3675 = vpop.f32.mrf.mxu0
    %v3676 = vadd.f32 0.0, %v3675
    %v3677 = vpop.f32.mrf.mxu0
    %v3678 = vadd.f32 0.0, %v3677
    %v3679 = vpop.f32.mrf.mxu0
    %v3680 = vadd.f32 0.0, %v3679
    %3681 = vmatprep.mubr.bf16.mxu0 %v3380
    %3682 = vmatmul.mubr.bf16.gmra.mxu0 %v3379
    %v3683 = vpop.f32.mrf.mxu0
    %v3684 = vadd.f32 0.0, %v3683
    %v3685 = vpop.f32.mrf.mxu0
    %v3686 = vadd.f32 0.0, %v3685
    %v3687 = vpop.f32.mrf.mxu0
    %v3688 = vadd.f32 0.0, %v3687
    %v3689 = vpop.f32.mrf.mxu0
    %v3690 = vadd.f32 0.0, %v3689
    %3691 = vmatprep.mubr.bf16.mxu0 %v3382
    %3692 = vmatmul.mubr.bf16.gmra.mxu0 %v3381
    %v3693 = vpop.f32.mrf.mxu0
    %v3694 = vadd.f32 0.0, %v3693
    %v3695 = vpop.f32.mrf.mxu0
    %v3696 = vadd.f32 0.0, %v3695
    %v3697 = vpop.f32.mrf.mxu0
    %v3698 = vadd.f32 0.0, %v3697
    %v3699 = vpop.f32.mrf.mxu0
    %v3700 = vadd.f32 0.0, %v3699
    %3701 = vmatprep.mubr.bf16.mxu0 %v3384
    %3702 = vmatmul.mubr.bf16.gmra.mxu0 %v3383
    %v3703 = vpop.f32.mrf.mxu0
    %v3704 = vadd.f32 0.0, %v3703
    %v3705 = vpop.f32.mrf.mxu0
    %v3706 = vadd.f32 0.0, %v3705
    %v3707 = vpop.f32.mrf.mxu0
    %v3708 = vadd.f32 0.0, %v3707
    %v3709 = vpop.f32.mrf.mxu0
    %v3710 = vadd.f32 0.0, %v3709
    %3711 = vmatprep.mubr.bf16.mxu0 %v3386
    %3712 = vmatmul.mubr.bf16.gmra.mxu0 %v3385
    %v3713 = vpop.f32.mrf.mxu0
    %v3714 = vadd.f32 0.0, %v3713
    %v3715 = vpop.f32.mrf.mxu0
    %v3716 = vadd.f32 0.0, %v3715
    %v3717 = vpop.f32.mrf.mxu0
    %v3718 = vadd.f32 0.0, %v3717
    %v3719 = vpop.f32.mrf.mxu0
    %v3720 = vadd.f32 0.0, %v3719
    %3721 = vmatprep.mubr.bf16.mxu0 %v3388
    %3722 = vmatmul.mubr.bf16.gmra.mxu0 %v3387
    %v3723 = vpop.f32.mrf.mxu0
    %v3724 = vadd.f32 0.0, %v3723
    %v3725 = vpop.f32.mrf.mxu0
    %v3726 = vadd.f32 0.0, %v3725
    %v3727 = vpop.f32.mrf.mxu0
    %v3728 = vadd.f32 0.0, %v3727
    %v3729 = vpop.f32.mrf.mxu0
    %v3730 = vadd.f32 0.0, %v3729
    %3731 = vmatprep.mubr.bf16.mxu0 %v3390
    %3732 = vmatmul.mubr.bf16.gmra.mxu0 %v3389
    %v3733 = vpop.f32.mrf.mxu0
    %v3734 = vadd.f32 0.0, %v3733
    %v3735 = vpop.f32.mrf.mxu0
    %v3736 = vadd.f32 0.0, %v3735
    %v3737 = vpop.f32.mrf.mxu0
    %v3738 = vadd.f32 0.0, %v3737
    %v3739 = vpop.f32.mrf.mxu0
    %v3740 = vadd.f32 0.0, %v3739
    %3741 = vmatprep.mubr.bf16.mxu0 %v3392
    %3742 = vmatmul.mubr.bf16.gmra.mxu0 %v3391
    %v3743 = vpop.f32.mrf.mxu0
    %v3744 = vadd.f32 0.0, %v3743
    %v3745 = vpop.f32.mrf.mxu0
    %v3746 = vadd.f32 0.0, %v3745
    %v3747 = vpop.f32.mrf.mxu0
    %v3748 = vadd.f32 0.0, %v3747
    %v3749 = vpop.f32.mrf.mxu0
    %v3750 = vadd.f32 0.0, %v3749
    %3751 = vdwg.mxu0
    %v3752 = vmul.f32 %v3594, %v3594
    %v3753 = vmul.f32 %v3596, %v3596
    %v3754 = vmul.f32 %v3598, %v3598
    %v3755 = vmul.f32 %v3600, %v3600
    %v3756 = vmul.f32 %v3604, %v3604
    %v3757 = vmul.f32 %v3606, %v3606
    %v3758 = vmul.f32 %v3608, %v3608
    %v3759 = vmul.f32 %v3610, %v3610
    %v3760 = vmul.f32 %v3614, %v3614
    %v3761 = vmul.f32 %v3616, %v3616
    %v3762 = vmul.f32 %v3618, %v3618
    %v3763 = vmul.f32 %v3620, %v3620
    %v3764 = vmul.f32 %v3624, %v3624
    %v3765 = vmul.f32 %v3626, %v3626
    %v3766 = vmul.f32 %v3628, %v3628
    %v3767 = vmul.f32 %v3630, %v3630
    %v3768 = vmul.f32 %v3634, %v3634
    %v3769 = vmul.f32 %v3636, %v3636
    %v3770 = vmul.f32 %v3638, %v3638
    %v3771 = vmul.f32 %v3640, %v3640
    %v3772 = vmul.f32 %v3644, %v3644
    %v3773 = vmul.f32 %v3646, %v3646
    %v3774 = vmul.f32 %v3648, %v3648
    %v3775 = vmul.f32 %v3650, %v3650
    %v3776 = vmul.f32 %v3654, %v3654
    %v3777 = vmul.f32 %v3656, %v3656
    %v3778 = vmul.f32 %v3658, %v3658
    %v3779 = vmul.f32 %v3660, %v3660
    %v3780 = vmul.f32 %v3664, %v3664
    %v3781 = vmul.f32 %v3666, %v3666
    %v3782 = vmul.f32 %v3668, %v3668
    %v3783 = vmul.f32 %v3670, %v3670
    %v3784 = vmul.f32 %v3674, %v3674
    %v3785 = vmul.f32 %v3676, %v3676
    %v3786 = vmul.f32 %v3678, %v3678
    %v3787 = vmul.f32 %v3680, %v3680
    %v3788 = vmul.f32 %v3684, %v3684
    %v3789 = vmul.f32 %v3686, %v3686
    %v3790 = vmul.f32 %v3688, %v3688
    %v3791 = vmul.f32 %v3690, %v3690
    %v3792 = vmul.f32 %v3694, %v3694
    %v3793 = vmul.f32 %v3696, %v3696
    %v3794 = vmul.f32 %v3698, %v3698
    %v3795 = vmul.f32 %v3700, %v3700
    %v3796 = vmul.f32 %v3704, %v3704
    %v3797 = vmul.f32 %v3706, %v3706
    %v3798 = vmul.f32 %v3708, %v3708
    %v3799 = vmul.f32 %v3710, %v3710
    %v3800 = vmul.f32 %v3714, %v3714
    %v3801 = vmul.f32 %v3716, %v3716
    %v3802 = vmul.f32 %v3718, %v3718
    %v3803 = vmul.f32 %v3720, %v3720
    %v3804 = vmul.f32 %v3724, %v3724
    %v3805 = vmul.f32 %v3726, %v3726
    %v3806 = vmul.f32 %v3728, %v3728
    %v3807 = vmul.f32 %v3730, %v3730
    %v3808 = vmul.f32 %v3734, %v3734
    %v3809 = vmul.f32 %v3736, %v3736
    %v3810 = vmul.f32 %v3738, %v3738
    %v3811 = vmul.f32 %v3740, %v3740
    %v3812 = vmul.f32 %v3744, %v3744
    %v3813 = vmul.f32 %v3746, %v3746
    %v3814 = vmul.f32 %v3748, %v3748
    %v3815 = vmul.f32 %v3750, %v3750
    %v3816 = vadd.f32 %v3752, %v3753
    %v3817 = vadd.f32 %v3816, %v3754
    %v3818 = vadd.f32 %v3817, %v3755
    %v3819 = vadd.f32 %v3818, %v3756
    %v3820 = vadd.f32 %v3819, %v3757
    %v3821 = vadd.f32 %v3820, %v3758
    %v3822 = vadd.f32 %v3821, %v3759
    %v3823 = vadd.f32 %v3822, %v3760
    %v3824 = vadd.f32 %v3823, %v3761
    %v3825 = vadd.f32 %v3824, %v3762
    %v3826 = vadd.f32 %v3825, %v3763
    %v3827 = vadd.f32 %v3826, %v3764
    %v3828 = vadd.f32 %v3827, %v3765
    %v3829 = vadd.f32 %v3828, %v3766
    %v3830 = vadd.f32 %v3829, %v3767
    %v3831 = vadd.f32 %v3830, %v3768
    %v3832 = vadd.f32 %v3831, %v3769
    %v3833 = vadd.f32 %v3832, %v3770
    %v3834 = vadd.f32 %v3833, %v3771
    %v3835 = vadd.f32 %v3834, %v3772
    %v3836 = vadd.f32 %v3835, %v3773
    %v3837 = vadd.f32 %v3836, %v3774
    %v3838 = vadd.f32 %v3837, %v3775
    %v3839 = vadd.f32 %v3838, %v3776
    %v3840 = vadd.f32 %v3839, %v3777
    %v3841 = vadd.f32 %v3840, %v3778
    %v3842 = vadd.f32 %v3841, %v3779
    %v3843 = vadd.f32 %v3842, %v3780
    %v3844 = vadd.f32 %v3843, %v3781
    %v3845 = vadd.f32 %v3844, %v3782
    %v3846 = vadd.f32 %v3845, %v3783
    %v3847 = vadd.f32 %v3846, %v3784
    %v3848 = vadd.f32 %v3847, %v3785
    %v3849 = vadd.f32 %v3848, %v3786
    %v3850 = vadd.f32 %v3849, %v3787
    %v3851 = vadd.f32 %v3850, %v3788
    %v3852 = vadd.f32 %v3851, %v3789
    %v3853 = vadd.f32 %v3852, %v3790
    %v3854 = vadd.f32 %v3853, %v3791
    %v3855 = vadd.f32 %v3854, %v3792
    %v3856 = vadd.f32 %v3855, %v3793
    %v3857 = vadd.f32 %v3856, %v3794
    %v3858 = vadd.f32 %v3857, %v3795
    %v3859 = vadd.f32 %v3858, %v3796
    %v3860 = vadd.f32 %v3859, %v3797
    %v3861 = vadd.f32 %v3860, %v3798
    %v3862 = vadd.f32 %v3861, %v3799
    %v3863 = vadd.f32 %v3862, %v3800
    %v3864 = vadd.f32 %v3863, %v3801
    %v3865 = vadd.f32 %v3864, %v3802
    %v3866 = vadd.f32 %v3865, %v3803
    %v3867 = vadd.f32 %v3866, %v3804
    %v3868 = vadd.f32 %v3867, %v3805
    %v3869 = vadd.f32 %v3868, %v3806
    %v3870 = vadd.f32 %v3869, %v3807
    %v3871 = vadd.f32 %v3870, %v3808
    %v3872 = vadd.f32 %v3871, %v3809
    %v3873 = vadd.f32 %v3872, %v3810
    %v3874 = vadd.f32 %v3873, %v3811
    %v3875 = vadd.f32 %v3874, %v3812
    %v3876 = vadd.f32 %v3875, %v3813
    %v3877 = vadd.f32 %v3876, %v3814
    %v3878 = vadd.f32 %v3877, %v3815
    %3879 = vadd.xlane.f32.xlu0 %v3878
    %v3880 = vpop.xlane.xlu0 %3879
    %v3881 = vrot.slane %v3880, 4
    %v3882 = vadd.f32 %v3880, %v3881
    %v3883 = vrot.slane %v3882, 2
    %v3884 = vadd.f32 %v3882, %v3883
    %v3885 = vrot.slane %v3884, 1
    %v3886 = vadd.f32 %v3884, %v3885
    %s3887 = vtos %v3886
    %v3888 = vstv %s3887
    %v3889 = vadd.f32 %v3888, 1e-30
    %v3890 = vrsqrt.pop %v3889
    %v3891 = vmul.f32 %v3594, %v3890
    %v3892 = vmul.f32 %v3596, %v3890
    %v3893 = vmul.f32 %v3598, %v3890
    %v3894 = vmul.f32 %v3600, %v3890
    %v3895 = vmul.f32 %v3604, %v3890
    %v3896 = vmul.f32 %v3606, %v3890
    %v3897 = vmul.f32 %v3608, %v3890
    %v3898 = vmul.f32 %v3610, %v3890
    %v3899 = vmul.f32 %v3614, %v3890
    %v3900 = vmul.f32 %v3616, %v3890
    %v3901 = vmul.f32 %v3618, %v3890
    %v3902 = vmul.f32 %v3620, %v3890
    %v3903 = vmul.f32 %v3624, %v3890
    %v3904 = vmul.f32 %v3626, %v3890
    %v3905 = vmul.f32 %v3628, %v3890
    %v3906 = vmul.f32 %v3630, %v3890
    %v3907 = vmul.f32 %v3634, %v3890
    %v3908 = vmul.f32 %v3636, %v3890
    %v3909 = vmul.f32 %v3638, %v3890
    %v3910 = vmul.f32 %v3640, %v3890
    %v3911 = vmul.f32 %v3644, %v3890
    %v3912 = vmul.f32 %v3646, %v3890
    %v3913 = vmul.f32 %v3648, %v3890
    %v3914 = vmul.f32 %v3650, %v3890
    %v3915 = vmul.f32 %v3654, %v3890
    %v3916 = vmul.f32 %v3656, %v3890
    %v3917 = vmul.f32 %v3658, %v3890
    %v3918 = vmul.f32 %v3660, %v3890
    %v3919 = vmul.f32 %v3664, %v3890
    %v3920 = vmul.f32 %v3666, %v3890
    %v3921 = vmul.f32 %v3668, %v3890
    %v3922 = vmul.f32 %v3670, %v3890
    %v3923 = vmul.f32 %v3674, %v3890
    %v3924 = vmul.f32 %v3676, %v3890
    %v3925 = vmul.f32 %v3678, %v3890
    %v3926 = vmul.f32 %v3680, %v3890
    %v3927 = vmul.f32 %v3684, %v3890
    %v3928 = vmul.f32 %v3686, %v3890
    %v3929 = vmul.f32 %v3688, %v3890
    %v3930 = vmul.f32 %v3690, %v3890
    %v3931 = vmul.f32 %v3694, %v3890
    %v3932 = vmul.f32 %v3696, %v3890
    %v3933 = vmul.f32 %v3698, %v3890
    %v3934 = vmul.f32 %v3700, %v3890
    %v3935 = vmul.f32 %v3704, %v3890
    %v3936 = vmul.f32 %v3706, %v3890
    %v3937 = vmul.f32 %v3708, %v3890
    %v3938 = vmul.f32 %v3710, %v3890
    %v3939 = vmul.f32 %v3714, %v3890
    %v3940 = vmul.f32 %v3716, %v3890
    %v3941 = vmul.f32 %v3718, %v3890
    %v3942 = vmul.f32 %v3720, %v3890
    %v3943 = vmul.f32 %v3724, %v3890
    %v3944 = vmul.f32 %v3726, %v3890
    %v3945 = vmul.f32 %v3728, %v3890
    %v3946 = vmul.f32 %v3730, %v3890
    %v3947 = vmul.f32 %v3734, %v3890
    %v3948 = vmul.f32 %v3736, %v3890
    %v3949 = vmul.f32 %v3738, %v3890
    %v3950 = vmul.f32 %v3740, %v3890
    %v3951 = vmul.f32 %v3744, %v3890
    %v3952 = vmul.f32 %v3746, %v3890
    %v3953 = vmul.f32 %v3748, %v3890
    %v3954 = vmul.f32 %v3750, %v3890
    %v3955 = vpack.c.bf16 %v3893, %v3891
    %v3956 = vpack.c.bf16 %v3894, %v3892
    %v3957 = vpack.c.bf16 %v3897, %v3895
    %v3958 = vpack.c.bf16 %v3898, %v3896
    %v3959 = vpack.c.bf16 %v3901, %v3899
    %v3960 = vpack.c.bf16 %v3902, %v3900
    %v3961 = vpack.c.bf16 %v3905, %v3903
    %v3962 = vpack.c.bf16 %v3906, %v3904
    %v3963 = vpack.c.bf16 %v3909, %v3907
    %v3964 = vpack.c.bf16 %v3910, %v3908
    %v3965 = vpack.c.bf16 %v3913, %v3911
    %v3966 = vpack.c.bf16 %v3914, %v3912
    %v3967 = vpack.c.bf16 %v3917, %v3915
    %v3968 = vpack.c.bf16 %v3918, %v3916
    %v3969 = vpack.c.bf16 %v3921, %v3919
    %v3970 = vpack.c.bf16 %v3922, %v3920
    %v3971 = vpack.c.bf16 %v3925, %v3923
    %v3972 = vpack.c.bf16 %v3926, %v3924
    %v3973 = vpack.c.bf16 %v3929, %v3927
    %v3974 = vpack.c.bf16 %v3930, %v3928
    %v3975 = vpack.c.bf16 %v3933, %v3931
    %v3976 = vpack.c.bf16 %v3934, %v3932
    %v3977 = vpack.c.bf16 %v3937, %v3935
    %v3978 = vpack.c.bf16 %v3938, %v3936
    %v3979 = vpack.c.bf16 %v3941, %v3939
    %v3980 = vpack.c.bf16 %v3942, %v3940
    %v3981 = vpack.c.bf16 %v3945, %v3943
    %v3982 = vpack.c.bf16 %v3946, %v3944
    %v3983 = vpack.c.bf16 %v3949, %v3947
    %v3984 = vpack.c.bf16 %v3950, %v3948
    %v3985 = vpack.c.bf16 %v3953, %v3951
    %v3986 = vpack.c.bf16 %v3954, %v3952
    %v4019 = vunpack.c.l.b16 %v3955
    %v4020 = vunpack.c.l.b16 %v3956
    %v4021 = vunpack.c.h.b16 %v3955
    %v4022 = vunpack.c.h.b16 %v3956
    %v4023 = vunpack.c.l.b16 %v3957
    %v4024 = vunpack.c.l.b16 %v3958
    %v4025 = vunpack.c.h.b16 %v3957
    %v4026 = vunpack.c.h.b16 %v3958
    %v4027 = vunpack.c.l.b16 %v3959
    %v4028 = vunpack.c.l.b16 %v3960
    %v4029 = vunpack.c.h.b16 %v3959
    %v4030 = vunpack.c.h.b16 %v3960
    %v4031 = vunpack.c.l.b16 %v3961
    %v4032 = vunpack.c.l.b16 %v3962
    %v4033 = vunpack.c.h.b16 %v3961
    %v4034 = vunpack.c.h.b16 %v3962
    %v4035 = vunpack.c.l.b16 %v3963
    %v4036 = vunpack.c.l.b16 %v3964
    %v4037 = vunpack.c.h.b16 %v3963
    %v4038 = vunpack.c.h.b16 %v3964
    %v4039 = vunpack.c.l.b16 %v3965
    %v4040 = vunpack.c.l.b16 %v3966
    %v4041 = vunpack.c.h.b16 %v3965
    %v4042 = vunpack.c.h.b16 %v3966
    %v4043 = vunpack.c.l.b16 %v3967
    %v4044 = vunpack.c.l.b16 %v3968
    %v4045 = vunpack.c.h.b16 %v3967
    %v4046 = vunpack.c.h.b16 %v3968
    %v4047 = vunpack.c.l.b16 %v3969
    %v4048 = vunpack.c.l.b16 %v3970
    %v4049 = vunpack.c.h.b16 %v3969
    %v4050 = vunpack.c.h.b16 %v3970
    %v4051 = vunpack.c.l.b16 %v3971
    %v4052 = vunpack.c.l.b16 %v3972
    %v4053 = vunpack.c.h.b16 %v3971
    %v4054 = vunpack.c.h.b16 %v3972
    %v4055 = vunpack.c.l.b16 %v3973
    %v4056 = vunpack.c.l.b16 %v3974
    %v4057 = vunpack.c.h.b16 %v3973
    %v4058 = vunpack.c.h.b16 %v3974
    %v4059 = vunpack.c.l.b16 %v3975
    %v4060 = vunpack.c.l.b16 %v3976
    %v4061 = vunpack.c.h.b16 %v3975
    %v4062 = vunpack.c.h.b16 %v3976
    %v4063 = vunpack.c.l.b16 %v3977
    %v4064 = vunpack.c.l.b16 %v3978
    %v4065 = vunpack.c.h.b16 %v3977
    %v4066 = vunpack.c.h.b16 %v3978
    %v4067 = vunpack.c.l.b16 %v3979
    %v4068 = vunpack.c.l.b16 %v3980
    %v4069 = vunpack.c.h.b16 %v3979
    %v4070 = vunpack.c.h.b16 %v3980
    %v4071 = vunpack.c.l.b16 %v3981
    %v4072 = vunpack.c.l.b16 %v3982
    %v4073 = vunpack.c.h.b16 %v3981
    %v4074 = vunpack.c.h.b16 %v3982
    %v4075 = vunpack.c.l.b16 %v3983
    %v4076 = vunpack.c.l.b16 %v3984
    %v4077 = vunpack.c.h.b16 %v3983
    %v4078 = vunpack.c.h.b16 %v3984
    %v4079 = vunpack.c.l.b16 %v3985
    %v4080 = vunpack.c.l.b16 %v3986
    %v4081 = vunpack.c.h.b16 %v3985
    %v4082 = vunpack.c.h.b16 %v3986
    %v4083 = vpack.c.b16 %v4020, %v4019
    %v4084 = vpack.c.b16 %v4022, %v4021
    %v4085 = vpack.c.b16 %v4024, %v4023
    %v4086 = vpack.c.b16 %v4026, %v4025
    %v4087 = vpack.c.b16 %v4028, %v4027
    %v4088 = vpack.c.b16 %v4030, %v4029
    %v4089 = vpack.c.b16 %v4032, %v4031
    %v4090 = vpack.c.b16 %v4034, %v4033
    %v4091 = vpack.c.b16 %v4036, %v4035
    %v4092 = vpack.c.b16 %v4038, %v4037
    %v4093 = vpack.c.b16 %v4040, %v4039
    %v4094 = vpack.c.b16 %v4042, %v4041
    %v4095 = vpack.c.b16 %v4044, %v4043
    %v4096 = vpack.c.b16 %v4046, %v4045
    %v4097 = vpack.c.b16 %v4048, %v4047
    %v4098 = vpack.c.b16 %v4050, %v4049
    %v4099 = vpack.c.b16 %v4052, %v4051
    %v4100 = vpack.c.b16 %v4054, %v4053
    %v4101 = vpack.c.b16 %v4056, %v4055
    %v4102 = vpack.c.b16 %v4058, %v4057
    %v4103 = vpack.c.b16 %v4060, %v4059
    %v4104 = vpack.c.b16 %v4062, %v4061
    %v4105 = vpack.c.b16 %v4064, %v4063
    %v4106 = vpack.c.b16 %v4066, %v4065
    %v4107 = vpack.c.b16 %v4068, %v4067
    %v4108 = vpack.c.b16 %v4070, %v4069
    %v4109 = vpack.c.b16 %v4072, %v4071
    %v4110 = vpack.c.b16 %v4074, %v4073
    %v4111 = vpack.c.b16 %v4076, %v4075
    %v4112 = vpack.c.b16 %v4078, %v4077
    %v4113 = vpack.c.b16 %v4080, %v4079
    %v4114 = vpack.c.b16 %v4082, %v4081
    %4147 = vst [vmem:[#allocation3] sm:$0xff] %v4083
    %4148 = vst [vmem:[#allocation3 + $0x8] sm:$0xff] %v4084
    %4149 = vst [vmem:[#allocation3 + $0x10] sm:$0xff] %v4085
    %4150 = vst [vmem:[#allocation3 + $0x18] sm:$0xff] %v4086
    %4151 = vst [vmem:[#allocation3 + $0x20] sm:$0xff] %v4087
    %4152 = vst [vmem:[#allocation3 + $0x28] sm:$0xff] %v4088
    %4153 = vst [vmem:[#allocation3 + $0x30] sm:$0xff] %v4089
    %4154 = vst [vmem:[#allocation3 + $0x38] sm:$0xff] %v4090
    %4155 = vst [vmem:[#allocation3 + $0x40] sm:$0xff] %v4091
    %4156 = vst [vmem:[#allocation3 + $0x48] sm:$0xff] %v4092
    %4157 = vst [vmem:[#allocation3 + $0x50] sm:$0xff] %v4093
    %4158 = vst [vmem:[#allocation3 + $0x58] sm:$0xff] %v4094
    %4159 = vst [vmem:[#allocation3 + $0x60] sm:$0xff] %v4095
    %4160 = vst [vmem:[#allocation3 + $0x68] sm:$0xff] %v4096
    %4161 = vst [vmem:[#allocation3 + $0x70] sm:$0xff] %v4097
    %4162 = vst [vmem:[#allocation3 + $0x78] sm:$0xff] %v4098
    %4163 = vst [vmem:[#allocation3 + $0x80] sm:$0xff] %v4099
    %4164 = vst [vmem:[#allocation3 + $0x88] sm:$0xff] %v4100
    %4165 = vst [vmem:[#allocation3 + $0x90] sm:$0xff] %v4101
    %4166 = vst [vmem:[#allocation3 + $0x98] sm:$0xff] %v4102
    %4167 = vst [vmem:[#allocation3 + $0xa0] sm:$0xff] %v4103
    %4168 = vst [vmem:[#allocation3 + $0xa8] sm:$0xff] %v4104
    %4169 = vst [vmem:[#allocation3 + $0xb0] sm:$0xff] %v4105
    %4170 = vst [vmem:[#allocation3 + $0xb8] sm:$0xff] %v4106
    %4171 = vst [vmem:[#allocation3 + $0xc0] sm:$0xff] %v4107
    %4172 = vst [vmem:[#allocation3 + $0xc8] sm:$0xff] %v4108
    %4173 = vst [vmem:[#allocation3 + $0xd0] sm:$0xff] %v4109
    %4174 = vst [vmem:[#allocation3 + $0xd8] sm:$0xff] %v4110
    %4175 = vst [vmem:[#allocation3 + $0xe0] sm:$0xff] %v4111
    %4176 = vst [vmem:[#allocation3 + $0xe8] sm:$0xff] %v4112
    %4177 = vst [vmem:[#allocation3 + $0xf0] sm:$0xff] %v4113
    %4178 = vst [vmem:[#allocation3 + $0xf8] sm:$0xff] %v4114
    %v4179 = vld [vmem:[#allocation3] sm:$0xff]
    %v4180 = vld [vmem:[#allocation3 + $0x8] sm:$0xff]
    %v4181 = vld [vmem:[#allocation3 + $0x10] sm:$0xff]
    %v4182 = vld [vmem:[#allocation3 + $0x18] sm:$0xff]
    %v4183 = vld [vmem:[#allocation3 + $0x20] sm:$0xff]
    %v4184 = vld [vmem:[#allocation3 + $0x28] sm:$0xff]
    %v4185 = vld [vmem:[#allocation3 + $0x30] sm:$0xff]
    %v4186 = vld [vmem:[#allocation3 + $0x38] sm:$0xff]
    %v4187 = vld [vmem:[#allocation3 + $0x40] sm:$0xff]
    %v4188 = vld [vmem:[#allocation3 + $0x48] sm:$0xff]
    %v4189 = vld [vmem:[#allocation3 + $0x50] sm:$0xff]
    %v4190 = vld [vmem:[#allocation3 + $0x58] sm:$0xff]
    %v4191 = vld [vmem:[#allocation3 + $0x60] sm:$0xff]
    %v4192 = vld [vmem:[#allocation3 + $0x68] sm:$0xff]
    %v4193 = vld [vmem:[#allocation3 + $0x70] sm:$0xff]
    %v4194 = vld [vmem:[#allocation3 + $0x78] sm:$0xff]
    %v4195 = vld [vmem:[#allocation3 + $0x80] sm:$0xff]
    %v4196 = vld [vmem:[#allocation3 + $0x88] sm:$0xff]
    %v4197 = vld [vmem:[#allocation3 + $0x90] sm:$0xff]
    %v4198 = vld [vmem:[#allocation3 + $0x98] sm:$0xff]
    %v4199 = vld [vmem:[#allocation3 + $0xa0] sm:$0xff]
    %v4200 = vld [vmem:[#allocation3 + $0xa8] sm:$0xff]
    %v4201 = vld [vmem:[#allocation3 + $0xb0] sm:$0xff]
    %v4202 = vld [vmem:[#allocation3 + $0xb8] sm:$0xff]
    %v4203 = vld [vmem:[#allocation3 + $0xc0] sm:$0xff]
    %v4204 = vld [vmem:[#allocation3 + $0xc8] sm:$0xff]
    %v4205 = vld [vmem:[#allocation3 + $0xd0] sm:$0xff]
    %v4206 = vld [vmem:[#allocation3 + $0xd8] sm:$0xff]
    %v4207 = vld [vmem:[#allocation3 + $0xe0] sm:$0xff]
    %v4208 = vld [vmem:[#allocation3 + $0xe8] sm:$0xff]
    %v4209 = vld [vmem:[#allocation3 + $0xf0] sm:$0xff]
    %v4210 = vld [vmem:[#allocation3 + $0xf8] sm:$0xff]
    %v4243 = vunpack.c.l.b16 %v4179
    %v4244 = vunpack.c.h.b16 %v4179
    %v4245 = vunpack.c.l.b16 %v4180
    %v4246 = vunpack.c.h.b16 %v4180
    %v4247 = vunpack.c.l.b16 %v4181
    %v4248 = vunpack.c.h.b16 %v4181
    %v4249 = vunpack.c.l.b16 %v4182
    %v4250 = vunpack.c.h.b16 %v4182
    %v4251 = vunpack.c.l.b16 %v4183
    %v4252 = vunpack.c.h.b16 %v4183
    %v4253 = vunpack.c.l.b16 %v4184
    %v4254 = vunpack.c.h.b16 %v4184
    %v4255 = vunpack.c.l.b16 %v4185
    %v4256 = vunpack.c.h.b16 %v4185
    %v4257 = vunpack.c.l.b16 %v4186
    %v4258 = vunpack.c.h.b16 %v4186
    %v4259 = vunpack.c.l.b16 %v4187
    %v4260 = vunpack.c.h.b16 %v4187
    %v4261 = vunpack.c.l.b16 %v4188
    %v4262 = vunpack.c.h.b16 %v4188
    %v4263 = vunpack.c.l.b16 %v4189
    %v4264 = vunpack.c.h.b16 %v4189
    %v4265 = vunpack.c.l.b16 %v4190
    %v4266 = vunpack.c.h.b16 %v4190
    %v4267 = vunpack.c.l.b16 %v4191
    %v4268 = vunpack.c.h.b16 %v4191
    %v4269 = vunpack.c.l.b16 %v4192
    %v4270 = vunpack.c.h.b16 %v4192
    %v4271 = vunpack.c.l.b16 %v4193
    %v4272 = vunpack.c.h.b16 %v4193
    %v4273 = vunpack.c.l.b16 %v4194
    %v4274 = vunpack.c.h.b16 %v4194
    %v4275 = vunpack.c.l.b16 %v4195
    %v4276 = vunpack.c.h.b16 %v4195
    %v4277 = vunpack.c.l.b16 %v4196
    %v4278 = vunpack.c.h.b16 %v4196
    %v4279 = vunpack.c.l.b16 %v4197
    %v4280 = vunpack.c.h.b16 %v4197
    %v4281 = vunpack.c.l.b16 %v4198
    %v4282 = vunpack.c.h.b16 %v4198
    %v4283 = vunpack.c.l.b16 %v4199
    %v4284 = vunpack.c.h.b16 %v4199
    %v4285 = vunpack.c.l.b16 %v4200
    %v4286 = vunpack.c.h.b16 %v4200
    %v4287 = vunpack.c.l.b16 %v4201
    %v4288 = vunpack.c.h.b16 %v4201
    %v4289 = vunpack.c.l.b16 %v4202
    %v4290 = vunpack.c.h.b16 %v4202
    %v4291 = vunpack.c.l.b16 %v4203
    %v4292 = vunpack.c.h.b16 %v4203
    %v4293 = vunpack.c.l.b16 %v4204
    %v4294 = vunpack.c.h.b16 %v4204
    %v4295 = vunpack.c.l.b16 %v4205
    %v4296 = vunpack.c.h.b16 %v4205
    %v4297 = vunpack.c.l.b16 %v4206
    %v4298 = vunpack.c.h.b16 %v4206
    %v4299 = vunpack.c.l.b16 %v4207
    %v4300 = vunpack.c.h.b16 %v4207
    %v4301 = vunpack.c.l.b16 %v4208
    %v4302 = vunpack.c.h.b16 %v4208
    %v4303 = vunpack.c.l.b16 %v4209
    %v4304 = vunpack.c.h.b16 %v4209
    %v4305 = vunpack.c.l.b16 %v4210
    %v4306 = vunpack.c.h.b16 %v4210
    %v4307 = vpack.c.b16 %v4245, %v4243
    %v4308 = vpack.c.b16 %v4246, %v4244
    %v4309 = vpack.c.b16 %v4249, %v4247
    %v4310 = vpack.c.b16 %v4250, %v4248
    %v4311 = vpack.c.b16 %v4253, %v4251
    %v4312 = vpack.c.b16 %v4254, %v4252
    %v4313 = vpack.c.b16 %v4257, %v4255
    %v4314 = vpack.c.b16 %v4258, %v4256
    %v4315 = vpack.c.b16 %v4261, %v4259
    %v4316 = vpack.c.b16 %v4262, %v4260
    %v4317 = vpack.c.b16 %v4265, %v4263
    %v4318 = vpack.c.b16 %v4266, %v4264
    %v4319 = vpack.c.b16 %v4269, %v4267
    %v4320 = vpack.c.b16 %v4270, %v4268
    %v4321 = vpack.c.b16 %v4273, %v4271
    %v4322 = vpack.c.b16 %v4274, %v4272
    %v4323 = vpack.c.b16 %v4277, %v4275
    %v4324 = vpack.c.b16 %v4278, %v4276
    %v4325 = vpack.c.b16 %v4281, %v4279
    %v4326 = vpack.c.b16 %v4282, %v4280
    %v4327 = vpack.c.b16 %v4285, %v4283
    %v4328 = vpack.c.b16 %v4286, %v4284
    %v4329 = vpack.c.b16 %v4289, %v4287
    %v4330 = vpack.c.b16 %v4290, %v4288
    %v4331 = vpack.c.b16 %v4293, %v4291
    %v4332 = vpack.c.b16 %v4294, %v4292
    %v4333 = vpack.c.b16 %v4297, %v4295
    %v4334 = vpack.c.b16 %v4298, %v4296
    %v4335 = vpack.c.b16 %v4301, %v4299
    %v4336 = vpack.c.b16 %v4302, %v4300
    %v4337 = vpack.c.b16 %v4305, %v4303
    %v4338 = vpack.c.b16 %v4306, %v4304
    %4371 = vmatprep.subr.bf16.mxu0 %v4322
    %4372 = vmatpush1.bf16.msra.mxu0 %v4321
    %4373 = vmatprep.subr.bf16.mxu0 %v4320
    %4374 = vmatpush1.bf16.msra.mxu0 %v4319
    %4375 = vmatprep.subr.bf16.mxu0 %v4318
    %4376 = vmatpush1.bf16.msra.mxu0 %v4317
    %4377 = vmatprep.subr.bf16.mxu0 %v4316
    %4378 = vmatpush1.bf16.msra.mxu0 %v4315
    %4379 = vmatprep.subr.bf16.mxu0 %v4314
    %4380 = vmatpush1.bf16.msra.mxu0 %v4313
    %4381 = vmatprep.subr.bf16.mxu0 %v4312
    %4382 = vmatpush1.bf16.msra.mxu0 %v4311
    %4383 = vmatprep.subr.bf16.mxu0 %v4310
    %4384 = vmatpush1.bf16.msra.mxu0 %v4309
    %4385 = vmatprep.subr.bf16.mxu0 %v4308
    %4386 = vmatpush1.bf16.msra.mxu0 %v4307
    %4387 = vmatprep.subr.bf16.mxu0 %v4338
    %4388 = vmatpush2.bf16.msra.mxu0 %v4337
    %4389 = vmatprep.subr.bf16.mxu0 %v4336
    %4390 = vmatpush2.bf16.msra.mxu0 %v4335
    %4391 = vmatprep.subr.bf16.mxu0 %v4334
    %4392 = vmatpush2.bf16.msra.mxu0 %v4333
    %4393 = vmatprep.subr.bf16.mxu0 %v4332
    %4394 = vmatpush2.bf16.msra.mxu0 %v4331
    %4395 = vmatprep.subr.bf16.mxu0 %v4330
    %4396 = vmatpush2.bf16.msra.mxu0 %v4329
    %4397 = vmatprep.subr.bf16.mxu0 %v4328
    %4398 = vmatpush2.bf16.msra.mxu0 %v4327
    %4399 = vmatprep.subr.bf16.mxu0 %v4326
    %4400 = vmatpush2.bf16.msra.mxu0 %v4325
    %4401 = vmatprep.subr.bf16.mxu0 %v4324
    %4402 = vmatpush2.bf16.msra.mxu0 %v4323
    %4403 = vmatprep.mubr.bf16.mxu0 %v4308
    %4404 = vmatmul.mubr.bf16.gmra.mxu0 %v4307
    %v4405 = vpop.f32.mrf.mxu0
    %v4406 = vadd.f32 0.0, %v4405
    %v4407 = vpop.f32.mrf.mxu0
    %v4408 = vadd.f32 0.0, %v4407
    %v4409 = vpop.f32.mrf.mxu0
    %v4410 = vadd.f32 0.0, %v4409
    %v4411 = vpop.f32.mrf.mxu0
    %v4412 = vadd.f32 0.0, %v4411
    %4413 = vmatprep.mubr.bf16.mxu0 %v4310
    %4414 = vmatmul.mubr.bf16.gmra.mxu0 %v4309
    %v4415 = vpop.f32.mrf.mxu0
    %v4416 = vadd.f32 0.0, %v4415
    %v4417 = vpop.f32.mrf.mxu0
    %v4418 = vadd.f32 0.0, %v4417
    %v4419 = vpop.f32.mrf.mxu0
    %v4420 = vadd.f32 0.0, %v4419
    %v4421 = vpop.f32.mrf.mxu0
    %v4422 = vadd.f32 0.0, %v4421
    %4423 = vmatprep.mubr.bf16.mxu0 %v4312
    %4424 = vmatmul.mubr.bf16.gmra.mxu0 %v4311
    %v4425 = vpop.f32.mrf.mxu0
    %v4426 = vadd.f32 0.0, %v4425
    %v4427 = vpop.f32.mrf.mxu0
    %v4428 = vadd.f32 0.0, %v4427
    %v4429 = vpop.f32.mrf.mxu0
    %v4430 = vadd.f32 0.0, %v4429
    %v4431 = vpop.f32.mrf.mxu0
    %v4432 = vadd.f32 0.0, %v4431
    %4433 = vmatprep.mubr.bf16.mxu0 %v4314
    %4434 = vmatmul.mubr.bf16.gmra.mxu0 %v4313
    %v4435 = vpop.f32.mrf.mxu0
    %v4436 = vadd.f32 0.0, %v4435
    %v4437 = vpop.f32.mrf.mxu0
    %v4438 = vadd.f32 0.0, %v4437
    %v4439 = vpop.f32.mrf.mxu0
    %v4440 = vadd.f32 0.0, %v4439
    %v4441 = vpop.f32.mrf.mxu0
    %v4442 = vadd.f32 0.0, %v4441
    %4443 = vmatprep.mubr.bf16.mxu0 %v4316
    %4444 = vmatmul.mubr.bf16.gmra.mxu0 %v4315
    %v4445 = vpop.f32.mrf.mxu0
    %v4446 = vadd.f32 0.0, %v4445
    %v4447 = vpop.f32.mrf.mxu0
    %v4448 = vadd.f32 0.0, %v4447
    %v4449 = vpop.f32.mrf.mxu0
    %v4450 = vadd.f32 0.0, %v4449
    %v4451 = vpop.f32.mrf.mxu0
    %v4452 = vadd.f32 0.0, %v4451
    %4453 = vmatprep.mubr.bf16.mxu0 %v4318
    %4454 = vmatmul.mubr.bf16.gmra.mxu0 %v4317
    %v4455 = vpop.f32.mrf.mxu0
    %v4456 = vadd.f32 0.0, %v4455
    %v4457 = vpop.f32.mrf.mxu0
    %v4458 = vadd.f32 0.0, %v4457
    %v4459 = vpop.f32.mrf.mxu0
    %v4460 = vadd.f32 0.0, %v4459
    %v4461 = vpop.f32.mrf.mxu0
    %v4462 = vadd.f32 0.0, %v4461
    %4463 = vmatprep.mubr.bf16.mxu0 %v4320
    %4464 = vmatmul.mubr.bf16.gmra.mxu0 %v4319
    %v4465 = vpop.f32.mrf.mxu0
    %v4466 = vadd.f32 0.0, %v4465
    %v4467 = vpop.f32.mrf.mxu0
    %v4468 = vadd.f32 0.0, %v4467
    %v4469 = vpop.f32.mrf.mxu0
    %v4470 = vadd.f32 0.0, %v4469
    %v4471 = vpop.f32.mrf.mxu0
    %v4472 = vadd.f32 0.0, %v4471
    %4473 = vmatprep.mubr.bf16.mxu0 %v4322
    %4474 = vmatmul.mubr.bf16.gmra.mxu0 %v4321
    %v4475 = vpop.f32.mrf.mxu0
    %v4476 = vadd.f32 0.0, %v4475
    %v4477 = vpop.f32.mrf.mxu0
    %v4478 = vadd.f32 0.0, %v4477
    %v4479 = vpop.f32.mrf.mxu0
    %v4480 = vadd.f32 0.0, %v4479
    %v4481 = vpop.f32.mrf.mxu0
    %v4482 = vadd.f32 0.0, %v4481
    %4483 = vmatprep.mubr.bf16.mxu0 %v4324
    %4484 = vmatmul.mubr.bf16.gmra.mxu0 %v4323
    %v4485 = vpop.f32.mrf.mxu0
    %v4486 = vadd.f32 0.0, %v4485
    %v4487 = vpop.f32.mrf.mxu0
    %v4488 = vadd.f32 0.0, %v4487
    %v4489 = vpop.f32.mrf.mxu0
    %v4490 = vadd.f32 0.0, %v4489
    %v4491 = vpop.f32.mrf.mxu0
    %v4492 = vadd.f32 0.0, %v4491
    %4493 = vmatprep.mubr.bf16.mxu0 %v4326
    %4494 = vmatmul.mubr.bf16.gmra.mxu0 %v4325
    %v4495 = vpop.f32.mrf.mxu0
    %v4496 = vadd.f32 0.0, %v4495
    %v4497 = vpop.f32.mrf.mxu0
    %v4498 = vadd.f32 0.0, %v4497
    %v4499 = vpop.f32.mrf.mxu0
    %v4500 = vadd.f32 0.0, %v4499
    %v4501 = vpop.f32.mrf.mxu0
    %v4502 = vadd.f32 0.0, %v4501
    %4503 = vmatprep.mubr.bf16.mxu0 %v4328
    %4504 = vmatmul.mubr.bf16.gmra.mxu0 %v4327
    %v4505 = vpop.f32.mrf.mxu0
    %v4506 = vadd.f32 0.0, %v4505
    %v4507 = vpop.f32.mrf.mxu0
    %v4508 = vadd.f32 0.0, %v4507
    %v4509 = vpop.f32.mrf.mxu0
    %v4510 = vadd.f32 0.0, %v4509
    %v4511 = vpop.f32.mrf.mxu0
    %v4512 = vadd.f32 0.0, %v4511
    %4513 = vmatprep.mubr.bf16.mxu0 %v4330
    %4514 = vmatmul.mubr.bf16.gmra.mxu0 %v4329
    %v4515 = vpop.f32.mrf.mxu0
    %v4516 = vadd.f32 0.0, %v4515
    %v4517 = vpop.f32.mrf.mxu0
    %v4518 = vadd.f32 0.0, %v4517
    %v4519 = vpop.f32.mrf.mxu0
    %v4520 = vadd.f32 0.0, %v4519
    %v4521 = vpop.f32.mrf.mxu0
    %v4522 = vadd.f32 0.0, %v4521
    %4523 = vmatprep.mubr.bf16.mxu0 %v4332
    %4524 = vmatmul.mubr.bf16.gmra.mxu0 %v4331
    %v4525 = vpop.f32.mrf.mxu0
    %v4526 = vadd.f32 0.0, %v4525
    %v4527 = vpop.f32.mrf.mxu0
    %v4528 = vadd.f32 0.0, %v4527
    %v4529 = vpop.f32.mrf.mxu0
    %v4530 = vadd.f32 0.0, %v4529
    %v4531 = vpop.f32.mrf.mxu0
    %v4532 = vadd.f32 0.0, %v4531
    %4533 = vmatprep.mubr.bf16.mxu0 %v4334
    %4534 = vmatmul.mubr.bf16.gmra.mxu0 %v4333
    %v4535 = vpop.f32.mrf.mxu0
    %v4536 = vadd.f32 0.0, %v4535
    %v4537 = vpop.f32.mrf.mxu0
    %v4538 = vadd.f32 0.0, %v4537
    %v4539 = vpop.f32.mrf.mxu0
    %v4540 = vadd.f32 0.0, %v4539
    %v4541 = vpop.f32.mrf.mxu0
    %v4542 = vadd.f32 0.0, %v4541
    %4543 = vmatprep.mubr.bf16.mxu0 %v4336
    %4544 = vmatmul.mubr.bf16.gmra.mxu0 %v4335
    %v4545 = vpop.f32.mrf.mxu0
    %v4546 = vadd.f32 0.0, %v4545
    %v4547 = vpop.f32.mrf.mxu0
    %v4548 = vadd.f32 0.0, %v4547
    %v4549 = vpop.f32.mrf.mxu0
    %v4550 = vadd.f32 0.0, %v4549
    %v4551 = vpop.f32.mrf.mxu0
    %v4552 = vadd.f32 0.0, %v4551
    %4553 = vmatprep.mubr.bf16.mxu0 %v4338
    %4554 = vmatmul.mubr.bf16.gmra.mxu0 %v4337
    %v4555 = vpop.f32.mrf.mxu0
    %v4556 = vadd.f32 0.0, %v4555
    %v4557 = vpop.f32.mrf.mxu0
    %v4558 = vadd.f32 0.0, %v4557
    %v4559 = vpop.f32.mrf.mxu0
    %v4560 = vadd.f32 0.0, %v4559
    %v4561 = vpop.f32.mrf.mxu0
    %v4562 = vadd.f32 0.0, %v4561
    %4563 = vdwg.mxu0
    %v4564 = vpack.c.bf16 %v4410, %v4406
    %v4565 = vpack.c.bf16 %v4412, %v4408
    %v4566 = vpack.c.bf16 %v4420, %v4416
    %v4567 = vpack.c.bf16 %v4422, %v4418
    %v4568 = vpack.c.bf16 %v4430, %v4426
    %v4569 = vpack.c.bf16 %v4432, %v4428
    %v4570 = vpack.c.bf16 %v4440, %v4436
    %v4571 = vpack.c.bf16 %v4442, %v4438
    %v4572 = vpack.c.bf16 %v4450, %v4446
    %v4573 = vpack.c.bf16 %v4452, %v4448
    %v4574 = vpack.c.bf16 %v4460, %v4456
    %v4575 = vpack.c.bf16 %v4462, %v4458
    %v4576 = vpack.c.bf16 %v4470, %v4466
    %v4577 = vpack.c.bf16 %v4472, %v4468
    %v4578 = vpack.c.bf16 %v4480, %v4476
    %v4579 = vpack.c.bf16 %v4482, %v4478
    %v4580 = vpack.c.bf16 %v4490, %v4486
    %v4581 = vpack.c.bf16 %v4492, %v4488
    %v4582 = vpack.c.bf16 %v4500, %v4496
    %v4583 = vpack.c.bf16 %v4502, %v4498
    %v4584 = vpack.c.bf16 %v4510, %v4506
    %v4585 = vpack.c.bf16 %v4512, %v4508
    %v4586 = vpack.c.bf16 %v4520, %v4516
    %v4587 = vpack.c.bf16 %v4522, %v4518
    %v4588 = vpack.c.bf16 %v4530, %v4526
    %v4589 = vpack.c.bf16 %v4532, %v4528
    %v4590 = vpack.c.bf16 %v4540, %v4536
    %v4591 = vpack.c.bf16 %v4542, %v4538
    %v4592 = vpack.c.bf16 %v4550, %v4546
    %v4593 = vpack.c.bf16 %v4552, %v4548
    %v4594 = vpack.c.bf16 %v4560, %v4556
    %v4595 = vpack.c.bf16 %v4562, %v4558
    %v4628 = vunpack.c.l.b16 %v4564
    %v4629 = vunpack.c.l.b16 %v4565
    %v4630 = vunpack.c.h.b16 %v4564
    %v4631 = vunpack.c.h.b16 %v4565
    %v4632 = vunpack.c.l.b16 %v4566
    %v4633 = vunpack.c.l.b16 %v4567
    %v4634 = vunpack.c.h.b16 %v4566
    %v4635 = vunpack.c.h.b16 %v4567
    %v4636 = vunpack.c.l.b16 %v4568
    %v4637 = vunpack.c.l.b16 %v4569
    %v4638 = vunpack.c.h.b16 %v4568
    %v4639 = vunpack.c.h.b16 %v4569
    %v4640 = vunpack.c.l.b16 %v4570
    %v4641 = vunpack.c.l.b16 %v4571
    %v4642 = vunpack.c.h.b16 %v4570
    %v4643 = vunpack.c.h.b16 %v4571
    %v4644 = vunpack.c.l.b16 %v4572
    %v4645 = vunpack.c.l.b16 %v4573
    %v4646 = vunpack.c.h.b16 %v4572
    %v4647 = vunpack.c.h.b16 %v4573
    %v4648 = vunpack.c.l.b16 %v4574
    %v4649 = vunpack.c.l.b16 %v4575
    %v4650 = vunpack.c.h.b16 %v4574
    %v4651 = vunpack.c.h.b16 %v4575
    %v4652 = vunpack.c.l.b16 %v4576
    %v4653 = vunpack.c.l.b16 %v4577
    %v4654 = vunpack.c.h.b16 %v4576
    %v4655 = vunpack.c.h.b16 %v4577
    %v4656 = vunpack.c.l.b16 %v4578
    %v4657 = vunpack.c.l.b16 %v4579
    %v4658 = vunpack.c.h.b16 %v4578
    %v4659 = vunpack.c.h.b16 %v4579
    %v4660 = vunpack.c.l.b16 %v4580
    %v4661 = vunpack.c.l.b16 %v4581
    %v4662 = vunpack.c.h.b16 %v4580
    %v4663 = vunpack.c.h.b16 %v4581
    %v4664 = vunpack.c.l.b16 %v4582
    %v4665 = vunpack.c.l.b16 %v4583
    %v4666 = vunpack.c.h.b16 %v4582
    %v4667 = vunpack.c.h.b16 %v4583
    %v4668 = vunpack.c.l.b16 %v4584
    %v4669 = vunpack.c.l.b16 %v4585
    %v4670 = vunpack.c.h.b16 %v4584
    %v4671 = vunpack.c.h.b16 %v4585
    %v4672 = vunpack.c.l.b16 %v4586
    %v4673 = vunpack.c.l.b16 %v4587
    %v4674 = vunpack.c.h.b16 %v4586
    %v4675 = vunpack.c.h.b16 %v4587
    %v4676 = vunpack.c.l.b16 %v4588
    %v4677 = vunpack.c.l.b16 %v4589
    %v4678 = vunpack.c.h.b16 %v4588
    %v4679 = vunpack.c.h.b16 %v4589
    %v4680 = vunpack.c.l.b16 %v4590
    %v4681 = vunpack.c.l.b16 %v4591
    %v4682 = vunpack.c.h.b16 %v4590
    %v4683 = vunpack.c.h.b16 %v4591
    %v4684 = vunpack.c.l.b16 %v4592
    %v4685 = vunpack.c.l.b16 %v4593
    %v4686 = vunpack.c.h.b16 %v4592
    %v4687 = vunpack.c.h.b16 %v4593
    %v4688 = vunpack.c.l.b16 %v4594
    %v4689 = vunpack.c.l.b16 %v4595
    %v4690 = vunpack.c.h.b16 %v4594
    %v4691 = vunpack.c.h.b16 %v4595
    %v4692 = vpack.c.b16 %v4629, %v4628
    %v4693 = vpack.c.b16 %v4631, %v4630
    %v4694 = vpack.c.b16 %v4633, %v4632
    %v4695 = vpack.c.b16 %v4635, %v4634
    %v4696 = vpack.c.b16 %v4637, %v4636
    %v4697 = vpack.c.b16 %v4639, %v4638
    %v4698 = vpack.c.b16 %v4641, %v4640
    %v4699 = vpack.c.b16 %v4643, %v4642
    %v4700 = vpack.c.b16 %v4645, %v4644
    %v4701 = vpack.c.b16 %v4647, %v4646
    %v4702 = vpack.c.b16 %v4649, %v4648
    %v4703 = vpack.c.b16 %v4651, %v4650
    %v4704 = vpack.c.b16 %v4653, %v4652
    %v4705 = vpack.c.b16 %v4655, %v4654
    %v4706 = vpack.c.b16 %v4657, %v4656
    %v4707 = vpack.c.b16 %v4659, %v4658
    %v4708 = vpack.c.b16 %v4661, %v4660
    %v4709 = vpack.c.b16 %v4663, %v4662
    %v4710 = vpack.c.b16 %v4665, %v4664
    %v4711 = vpack.c.b16 %v4667, %v4666
    %v4712 = vpack.c.b16 %v4669, %v4668
    %v4713 = vpack.c.b16 %v4671, %v4670
    %v4714 = vpack.c.b16 %v4673, %v4672
    %v4715 = vpack.c.b16 %v4675, %v4674
    %v4716 = vpack.c.b16 %v4677, %v4676
    %v4717 = vpack.c.b16 %v4679, %v4678
    %v4718 = vpack.c.b16 %v4681, %v4680
    %v4719 = vpack.c.b16 %v4683, %v4682
    %v4720 = vpack.c.b16 %v4685, %v4684
    %v4721 = vpack.c.b16 %v4687, %v4686
    %v4722 = vpack.c.b16 %v4689, %v4688
    %v4723 = vpack.c.b16 %v4691, %v4690
    %4756 = vst [vmem:[#allocation3] sm:$0xff] %v4692
    %4757 = vst [vmem:[#allocation3 + $0x8] sm:$0xff] %v4693
    %4758 = vst [vmem:[#allocation3 + $0x10] sm:$0xff] %v4694
    %4759 = vst [vmem:[#allocation3 + $0x18] sm:$0xff] %v4695
    %4760 = vst [vmem:[#allocation3 + $0x20] sm:$0xff] %v4696
    %4761 = vst [vmem:[#allocation3 + $0x28] sm:$0xff] %v4697
    %4762 = vst [vmem:[#allocation3 + $0x30] sm:$0xff] %v4698
    %4763 = vst [vmem:[#allocation3 + $0x38] sm:$0xff] %v4699
    %4764 = vst [vmem:[#allocation3 + $0x40] sm:$0xff] %v4700
    %4765 = vst [vmem:[#allocation3 + $0x48] sm:$0xff] %v4701
    %4766 = vst [vmem:[#allocation3 + $0x50] sm:$0xff] %v4702
    %4767 = vst [vmem:[#allocation3 + $0x58] sm:$0xff] %v4703
    %4768 = vst [vmem:[#allocation3 + $0x60] sm:$0xff] %v4704
    %4769 = vst [vmem:[#allocation3 + $0x68] sm:$0xff] %v4705
    %4770 = vst [vmem:[#allocation3 + $0x70] sm:$0xff] %v4706
    %4771 = vst [vmem:[#allocation3 + $0x78] sm:$0xff] %v4707
    %4772 = vst [vmem:[#allocation3 + $0x80] sm:$0xff] %v4708
    %4773 = vst [vmem:[#allocation3 + $0x88] sm:$0xff] %v4709
    %4774 = vst [vmem:[#allocation3 + $0x90] sm:$0xff] %v4710
    %4775 = vst [vmem:[#allocation3 + $0x98] sm:$0xff] %v4711
    %4776 = vst [vmem:[#allocation3 + $0xa0] sm:$0xff] %v4712
    %4777 = vst [vmem:[#allocation3 + $0xa8] sm:$0xff] %v4713
    %4778 = vst [vmem:[#allocation3 + $0xb0] sm:$0xff] %v4714
    %4779 = vst [vmem:[#allocation3 + $0xb8] sm:$0xff] %v4715
    %4780 = vst [vmem:[#allocation3 + $0xc0] sm:$0xff] %v4716
    %4781 = vst [vmem:[#allocation3 + $0xc8] sm:$0xff] %v4717
    %4782 = vst [vmem:[#allocation3 + $0xd0] sm:$0xff] %v4718
    %4783 = vst [vmem:[#allocation3 + $0xd8] sm:$0xff] %v4719
    %4784 = vst [vmem:[#allocation3 + $0xe0] sm:$0xff] %v4720
    %4785 = vst [vmem:[#allocation3 + $0xe8] sm:$0xff] %v4721
    %4786 = vst [vmem:[#allocation3 + $0xf0] sm:$0xff] %v4722
    %4787 = vst [vmem:[#allocation3 + $0xf8] sm:$0xff] %v4723
    %v4788 = vld [vmem:[#allocation3] sm:$0xff]
    %v4789 = vld [vmem:[#allocation3 + $0x8] sm:$0xff]
    %v4790 = vld [vmem:[#allocation3 + $0x10] sm:$0xff]
    %v4791 = vld [vmem:[#allocation3 + $0x18] sm:$0xff]
    %v4792 = vld [vmem:[#allocation3 + $0x20] sm:$0xff]
    %v4793 = vld [vmem:[#allocation3 + $0x28] sm:$0xff]
    %v4794 = vld [vmem:[#allocation3 + $0x30] sm:$0xff]
    %v4795 = vld [vmem:[#allocation3 + $0x38] sm:$0xff]
    %v4796 = vld [vmem:[#allocation3 + $0x40] sm:$0xff]
    %v4797 = vld [vmem:[#allocation3 + $0x48] sm:$0xff]
    %v4798 = vld [vmem:[#allocation3 + $0x50] sm:$0xff]
    %v4799 = vld [vmem:[#allocation3 + $0x58] sm:$0xff]
    %v4800 = vld [vmem:[#allocation3 + $0x60] sm:$0xff]
    %v4801 = vld [vmem:[#allocation3 + $0x68] sm:$0xff]
    %v4802 = vld [vmem:[#allocation3 + $0x70] sm:$0xff]
    %v4803 = vld [vmem:[#allocation3 + $0x78] sm:$0xff]
    %v4804 = vld [vmem:[#allocation3 + $0x80] sm:$0xff]
    %v4805 = vld [vmem:[#allocation3 + $0x88] sm:$0xff]
    %v4806 = vld [vmem:[#allocation3 + $0x90] sm:$0xff]
    %v4807 = vld [vmem:[#allocation3 + $0x98] sm:$0xff]
    %v4808 = vld [vmem:[#allocation3 + $0xa0] sm:$0xff]
    %v4809 = vld [vmem:[#allocation3 + $0xa8] sm:$0xff]
    %v4810 = vld [vmem:[#allocation3 + $0xb0] sm:$0xff]
    %v4811 = vld [vmem:[#allocation3 + $0xb8] sm:$0xff]
    %v4812 = vld [vmem:[#allocation3 + $0xc0] sm:$0xff]
    %v4813 = vld [vmem:[#allocation3 + $0xc8] sm:$0xff]
    %v4814 = vld [vmem:[#allocation3 + $0xd0] sm:$0xff]
    %v4815 = vld [vmem:[#allocation3 + $0xd8] sm:$0xff]
    %v4816 = vld [vmem:[#allocation3 + $0xe0] sm:$0xff]
    %v4817 = vld [vmem:[#allocation3 + $0xe8] sm:$0xff]
    %v4818 = vld [vmem:[#allocation3 + $0xf0] sm:$0xff]
    %v4819 = vld [vmem:[#allocation3 + $0xf8] sm:$0xff]
    %v4820 = vpack.c.bf16 %v3538, %v3538
    %v4821 = vpack.c.bf16 %v3539, %v3539
    %v4854 = vunpack.c.l.b16 %v4788
    %v4855 = vunpack.c.h.b16 %v4788
    %v4856 = vunpack.c.l.b16 %v4789
    %v4857 = vunpack.c.h.b16 %v4789
    %v4858 = vunpack.c.l.b16 %v4790
    %v4859 = vunpack.c.h.b16 %v4790
    %v4860 = vunpack.c.l.b16 %v4791
    %v4861 = vunpack.c.h.b16 %v4791
    %v4862 = vunpack.c.l.b16 %v4792
    %v4863 = vunpack.c.h.b16 %v4792
    %v4864 = vunpack.c.l.b16 %v4793
    %v4865 = vunpack.c.h.b16 %v4793
    %v4866 = vunpack.c.l.b16 %v4794
    %v4867 = vunpack.c.h.b16 %v4794
    %v4868 = vunpack.c.l.b16 %v4795
    %v4869 = vunpack.c.h.b16 %v4795
    %v4870 = vunpack.c.l.b16 %v4796
    %v4871 = vunpack.c.h.b16 %v4796
    %v4872 = vunpack.c.l.b16 %v4797
    %v4873 = vunpack.c.h.b16 %v4797
    %v4874 = vunpack.c.l.b16 %v4798
    %v4875 = vunpack.c.h.b16 %v4798
    %v4876 = vunpack.c.l.b16 %v4799
    %v4877 = vunpack.c.h.b16 %v4799
    %v4878 = vunpack.c.l.b16 %v4800
    %v4879 = vunpack.c.h.b16 %v4800
    %v4880 = vunpack.c.l.b16 %v4801
    %v4881 = vunpack.c.h.b16 %v4801
    %v4882 = vunpack.c.l.b16 %v4802
    %v4883 = vunpack.c.h.b16 %v4802
    %v4884 = vunpack.c.l.b16 %v4803
    %v4885 = vunpack.c.h.b16 %v4803
    %v4886 = vunpack.c.l.b16 %v4804
    %v4887 = vunpack.c.h.b16 %v4804
    %v4888 = vunpack.c.l.b16 %v4805
    %v4889 = vunpack.c.h.b16 %v4805
    %v4890 = vunpack.c.l.b16 %v4806
    %v4891 = vunpack.c.h.b16 %v4806
    %v4892 = vunpack.c.l.b16 %v4807
    %v4893 = vunpack.c.h.b16 %v4807
    %v4894 = vunpack.c.l.b16 %v4808
    %v4895 = vunpack.c.h.b16 %v4808
    %v4896 = vunpack.c.l.b16 %v4809
    %v4897 = vunpack.c.h.b16 %v4809
    %v4898 = vunpack.c.l.b16 %v4810
    %v4899 = vunpack.c.h.b16 %v4810
    %v4900 = vunpack.c.l.b16 %v4811
    %v4901 = vunpack.c.h.b16 %v4811
    %v4902 = vunpack.c.l.b16 %v4812
    %v4903 = vunpack.c.h.b16 %v4812
    %v4904 = vunpack.c.l.b16 %v4813
    %v4905 = vunpack.c.h.b16 %v4813
    %v4906 = vunpack.c.l.b16 %v4814
    %v4907 = vunpack.c.h.b16 %v4814
    %v4908 = vunpack.c.l.b16 %v4815
    %v4909 = vunpack.c.h.b16 %v4815
    %v4910 = vunpack.c.l.b16 %v4816
    %v4911 = vunpack.c.h.b16 %v4816
    %v4912 = vunpack.c.l.b16 %v4817
    %v4913 = vunpack.c.h.b16 %v4817
    %v4914 = vunpack.c.l.b16 %v4818
    %v4915 = vunpack.c.h.b16 %v4818
    %v4916 = vunpack.c.l.b16 %v4819
    %v4917 = vunpack.c.h.b16 %v4819
    %v4918 = vpack.c.b16 %v4856, %v4854
    %v4919 = vpack.c.b16 %v4857, %v4855
    %v4920 = vpack.c.b16 %v4860, %v4858
    %v4921 = vpack.c.b16 %v4861, %v4859
    %v4922 = vpack.c.b16 %v4864, %v4862
    %v4923 = vpack.c.b16 %v4865, %v4863
    %v4924 = vpack.c.b16 %v4868, %v4866
    %v4925 = vpack.c.b16 %v4869, %v4867
    %v4926 = vpack.c.b16 %v4872, %v4870
    %v4927 = vpack.c.b16 %v4873, %v4871
    %v4928 = vpack.c.b16 %v4876, %v4874
    %v4929 = vpack.c.b16 %v4877, %v4875
    %v4930 = vpack.c.b16 %v4880, %v4878
    %v4931 = vpack.c.b16 %v4881, %v4879
    %v4932 = vpack.c.b16 %v4884, %v4882
    %v4933 = vpack.c.b16 %v4885, %v4883
    %v4934 = vpack.c.b16 %v4888, %v4886
    %v4935 = vpack.c.b16 %v4889, %v4887
    %v4936 = vpack.c.b16 %v4892, %v4890
    %v4937 = vpack.c.b16 %v4893, %v4891
    %v4938 = vpack.c.b16 %v4896, %v4894
    %v4939 = vpack.c.b16 %v4897, %v4895
    %v4940 = vpack.c.b16 %v4900, %v4898
    %v4941 = vpack.c.b16 %v4901, %v4899
    %v4942 = vpack.c.b16 %v4904, %v4902
    %v4943 = vpack.c.b16 %v4905, %v4903
    %v4944 = vpack.c.b16 %v4908, %v4906
    %v4945 = vpack.c.b16 %v4909, %v4907
    %v4946 = vpack.c.b16 %v4912, %v4910
    %v4947 = vpack.c.b16 %v4913, %v4911
    %v4948 = vpack.c.b16 %v4916, %v4914
    %v4949 = vpack.c.b16 %v4917, %v4915
    %4982 = vmatprep.subr.bf16.mxu0 %v4933
    %4983 = vmatpush1.bf16.xpose.msra.mxu0 %v4932
    %4984 = vmatprep.subr.bf16.mxu0 %v4931
    %4985 = vmatpush1.bf16.xpose.msra.mxu0 %v4930
    %4986 = vmatprep.subr.bf16.mxu0 %v4929
    %4987 = vmatpush1.bf16.xpose.msra.mxu0 %v4928
    %4988 = vmatprep.subr.bf16.mxu0 %v4927
    %4989 = vmatpush1.bf16.xpose.msra.mxu0 %v4926
    %4990 = vmatprep.subr.bf16.mxu0 %v4925
    %4991 = vmatpush1.bf16.xpose.msra.mxu0 %v4924
    %4992 = vmatprep.subr.bf16.mxu0 %v4923
    %4993 = vmatpush1.bf16.xpose.msra.mxu0 %v4922
    %4994 = vmatprep.subr.bf16.mxu0 %v4921
    %4995 = vmatpush1.bf16.xpose.msra.mxu0 %v4920
    %4996 = vmatprep.subr.bf16.mxu0 %v4919
    %4997 = vmatpush1.bf16.xpose.msra.mxu0 %v4918
    %4998 = vmatprep.subr.bf16.mxu0 %v4949
    %4999 = vmatpush2.bf16.xpose.msra.mxu0 %v4948
    %5000 = vmatprep.subr.bf16.mxu0 %v4947
    %5001 = vmatpush2.bf16.xpose.msra.mxu0 %v4946
    %5002 = vmatprep.subr.bf16.mxu0 %v4945
    %5003 = vmatpush2.bf16.xpose.msra.mxu0 %v4944
    %5004 = vmatprep.subr.bf16.mxu0 %v4943
    %5005 = vmatpush2.bf16.xpose.msra.mxu0 %v4942
    %5006 = vmatprep.subr.bf16.mxu0 %v4941
    %5007 = vmatpush2.bf16.xpose.msra.mxu0 %v4940
    %5008 = vmatprep.subr.bf16.mxu0 %v4939
    %5009 = vmatpush2.bf16.xpose.msra.mxu0 %v4938
    %5010 = vmatprep.subr.bf16.mxu0 %v4937
    %5011 = vmatpush2.bf16.xpose.msra.mxu0 %v4936
    %5012 = vmatprep.subr.bf16.mxu0 %v4935
    %5013 = vmatpush2.bf16.xpose.msra.mxu0 %v4934
    %5014 = vmatprep.mubr.bf16.mxu0 %v4821
    %5015 = vmatmul.mubr.bf16.gmra.mxu0 %v4820
    %v5016 = vpop.f32.mrf.mxu0
    %v5017 = vadd.f32 0.0, %v5016
    %v5018 = vpop.f32.mrf.mxu0
    %v5019 = vadd.f32 0.0, %v5018
    %v5020 = vpop.f32.mrf.mxu0
    %v5021 = vpop.f32.mrf.mxu0
    %5022 = vdwg.mxu0
    %v5023 = vpack.c.bf16 %v3557, %v3557
    %v5024 = vpack.c.bf16 %v3558, %v3558
    %5025 = vmatprep.subr.bf16.mxu0 %v4933
    %5026 = vmatpush1.bf16.msra.mxu0 %v4932
    %5027 = vmatprep.subr.bf16.mxu0 %v4931
    %5028 = vmatpush1.bf16.msra.mxu0 %v4930
    %5029 = vmatprep.subr.bf16.mxu0 %v4929
    %5030 = vmatpush1.bf16.msra.mxu0 %v4928
    %5031 = vmatprep.subr.bf16.mxu0 %v4927
    %5032 = vmatpush1.bf16.msra.mxu0 %v4926
    %5033 = vmatprep.subr.bf16.mxu0 %v4925
    %5034 = vmatpush1.bf16.msra.mxu0 %v4924
    %5035 = vmatprep.subr.bf16.mxu0 %v4923
    %5036 = vmatpush1.bf16.msra.mxu0 %v4922
    %5037 = vmatprep.subr.bf16.mxu0 %v4921
    %5038 = vmatpush1.bf16.msra.mxu0 %v4920
    %5039 = vmatprep.subr.bf16.mxu0 %v4919
    %5040 = vmatpush1.bf16.msra.mxu0 %v4918
    %5041 = vmatprep.subr.bf16.mxu0 %v4949
    %5042 = vmatpush2.bf16.msra.mxu0 %v4948
    %5043 = vmatprep.subr.bf16.mxu0 %v4947
    %5044 = vmatpush2.bf16.msra.mxu0 %v4946
    %5045 = vmatprep.subr.bf16.mxu0 %v4945
    %5046 = vmatpush2.bf16.msra.mxu0 %v4944
    %5047 = vmatprep.subr.bf16.mxu0 %v4943
    %5048 = vmatpush2.bf16.msra.mxu0 %v4942
    %5049 = vmatprep.subr.bf16.mxu0 %v4941
    %5050 = vmatpush2.bf16.msra.mxu0 %v4940
    %5051 = vmatprep.subr.bf16.mxu0 %v4939
    %5052 = vmatpush2.bf16.msra.mxu0 %v4938
    %5053 = vmatprep.subr.bf16.mxu0 %v4937
    %5054 = vmatpush2.bf16.msra.mxu0 %v4936
    %5055 = vmatprep.subr.bf16.mxu0 %v4935
    %5056 = vmatpush2.bf16.msra.mxu0 %v4934
    %5057 = vmatprep.mubr.bf16.mxu0 %v5024
    %5058 = vmatmul.mubr.bf16.gmra.mxu0 %v5023
    %v5059 = vpop.f32.mrf.mxu0
    %v5060 = vadd.f32 0.0, %v5059
    %v5061 = vpop.f32.mrf.mxu0
    %v5062 = vadd.f32 0.0, %v5061
    %v5063 = vpop.f32.mrf.mxu0
    %v5064 = vpop.f32.mrf.mxu0
    %5065 = vdwg.mxu0
    %v5066 = vmul.f32 %v5017, %v5017
    %v5067 = vmul.f32 %v5019, %v5019
    %v5068 = vsel %vm3522, %v5066, 0.0
    %v5069 = vsel %vm3522, %v5067, 0.0
    %v5070 = vadd.f32 %v5068, %v5069
    %5071 = vadd.xlane.f32.xlu0 %v5070
    %v5072 = vpop.xlane.xlu0 %5071
    %v5073 = vrot.slane %v5072, 4
    %v5074 = vadd.f32 %v5072, %v5073
    %v5075 = vrot.slane %v5074, 2
    %v5076 = vadd.f32 %v5074, %v5075
    %v5077 = vrot.slane %v5076, 1
    %v5078 = vadd.f32 %v5076, %v5077
    %s5079 = vtos %v5078
    %v5080 = vstv %s5079
    %v5081 = vadd.f32 %v5080, 1e-30
    %v5082 = vrsqrt.pop %v5081
    %v5083 = vmul.f32 %v5017, %v5082
    %v5084 = vmul.f32 %v5019, %v5082
    %v5085 = vmul.f32 %v5060, %v5060
    %v5086 = vmul.f32 %v5062, %v5062
    %v5087 = vsel %vm3522, %v5085, 0.0
    %v5088 = vsel %vm3522, %v5086, 0.0
    %v5089 = vadd.f32 %v5087, %v5088
    %5090 = vadd.xlane.f32.xlu0 %v5089
    %v5091 = vpop.xlane.xlu0 %5090
    %v5092 = vrot.slane %v5091, 4
    %v5093 = vadd.f32 %v5091, %v5092
    %v5094 = vrot.slane %v5093, 2
    %v5095 = vadd.f32 %v5093, %v5094
    %v5096 = vrot.slane %v5095, 1
    %v5097 = vadd.f32 %v5095, %v5096
    %s5098 = vtos %v5097
    %v5099 = vstv %s5098
    %v5100 = vadd.f32 %v5099, 1e-30
    %v5101 = vrsqrt.pop %v5100
    %v5102 = vmul.f32 %v5060, %v5101
    %v5103 = vmul.f32 %v5062, %v5101
    %5104 = vmatprep.subr.bf16.mxu0 %v4933
    %5105 = vmatpush1.bf16.msra.mxu0 %v4932
    %5106 = vmatprep.subr.bf16.mxu0 %v4931
    %5107 = vmatpush1.bf16.msra.mxu0 %v4930
    %5108 = vmatprep.subr.bf16.mxu0 %v4929
    %5109 = vmatpush1.bf16.msra.mxu0 %v4928
    %5110 = vmatprep.subr.bf16.mxu0 %v4927
    %5111 = vmatpush1.bf16.msra.mxu0 %v4926
    %5112 = vmatprep.subr.bf16.mxu0 %v4925
    %5113 = vmatpush1.bf16.msra.mxu0 %v4924
    %5114 = vmatprep.subr.bf16.mxu0 %v4923
    %5115 = vmatpush1.bf16.msra.mxu0 %v4922
    %5116 = vmatprep.subr.bf16.mxu0 %v4921
    %5117 = vmatpush1.bf16.msra.mxu0 %v4920
    %5118 = vmatprep.subr.bf16.mxu0 %v4919
    %5119 = vmatpush1.bf16.msra.mxu0 %v4918
    %5120 = vmatprep.subr.bf16.mxu0 %v4949
    %5121 = vmatpush2.bf16.msra.mxu0 %v4948
    %5122 = vmatprep.subr.bf16.mxu0 %v4947
    %5123 = vmatpush2.bf16.msra.mxu0 %v4946
    %5124 = vmatprep.subr.bf16.mxu0 %v4945
    %5125 = vmatpush2.bf16.msra.mxu0 %v4944
    %5126 = vmatprep.subr.bf16.mxu0 %v4943
    %5127 = vmatpush2.bf16.msra.mxu0 %v4942
    %5128 = vmatprep.subr.bf16.mxu0 %v4941
    %5129 = vmatpush2.bf16.msra.mxu0 %v4940
    %5130 = vmatprep.subr.bf16.mxu0 %v4939
    %5131 = vmatpush2.bf16.msra.mxu0 %v4938
    %5132 = vmatprep.subr.bf16.mxu0 %v4937
    %5133 = vmatpush2.bf16.msra.mxu0 %v4936
    %5134 = vmatprep.subr.bf16.mxu0 %v4935
    %5135 = vmatpush2.bf16.msra.mxu0 %v4934
    %5136 = vmatprep.mubr.bf16.mxu0 %v4919
    %5137 = vmatmul.mubr.bf16.gmra.mxu0 %v4918
    %v5138 = vpop.f32.mrf.mxu0
    %v5139 = vadd.f32 0.0, %v5138
    %v5140 = vpop.f32.mrf.mxu0
    %v5141 = vadd.f32 0.0, %v5140
    %v5142 = vpop.f32.mrf.mxu0
    %v5143 = vadd.f32 0.0, %v5142
    %v5144 = vpop.f32.mrf.mxu0
    %v5145 = vadd.f32 0.0, %v5144
    %5146 = vmatprep.mubr.bf16.mxu0 %v4921
    %5147 = vmatmul.mubr.bf16.gmra.mxu0 %v4920
    %v5148 = vpop.f32.mrf.mxu0
    %v5149 = vadd.f32 0.0, %v5148
    %v5150 = vpop.f32.mrf.mxu0
    %v5151 = vadd.f32 0.0, %v5150
    %v5152 = vpop.f32.mrf.mxu0
    %v5153 = vadd.f32 0.0, %v5152
    %v5154 = vpop.f32.mrf.mxu0
    %v5155 = vadd.f32 0.0, %v5154
    %5156 = vmatprep.mubr.bf16.mxu0 %v4923
    %5157 = vmatmul.mubr.bf16.gmra.mxu0 %v4922
    %v5158 = vpop.f32.mrf.mxu0
    %v5159 = vadd.f32 0.0, %v5158
    %v5160 = vpop.f32.mrf.mxu0
    %v5161 = vadd.f32 0.0, %v5160
    %v5162 = vpop.f32.mrf.mxu0
    %v5163 = vadd.f32 0.0, %v5162
    %v5164 = vpop.f32.mrf.mxu0
    %v5165 = vadd.f32 0.0, %v5164
    %5166 = vmatprep.mubr.bf16.mxu0 %v4925
    %5167 = vmatmul.mubr.bf16.gmra.mxu0 %v4924
    %v5168 = vpop.f32.mrf.mxu0
    %v5169 = vadd.f32 0.0, %v5168
    %v5170 = vpop.f32.mrf.mxu0
    %v5171 = vadd.f32 0.0, %v5170
    %v5172 = vpop.f32.mrf.mxu0
    %v5173 = vadd.f32 0.0, %v5172
    %v5174 = vpop.f32.mrf.mxu0
    %v5175 = vadd.f32 0.0, %v5174
    %5176 = vmatprep.mubr.bf16.mxu0 %v4927
    %5177 = vmatmul.mubr.bf16.gmra.mxu0 %v4926
    %v5178 = vpop.f32.mrf.mxu0
    %v5179 = vadd.f32 0.0, %v5178
    %v5180 = vpop.f32.mrf.mxu0
    %v5181 = vadd.f32 0.0, %v5180
    %v5182 = vpop.f32.mrf.mxu0
    %v5183 = vadd.f32 0.0, %v5182
    %v5184 = vpop.f32.mrf.mxu0
    %v5185 = vadd.f32 0.0, %v5184
    %5186 = vmatprep.mubr.bf16.mxu0 %v4929
    %5187 = vmatmul.mubr.bf16.gmra.mxu0 %v4928
    %v5188 = vpop.f32.mrf.mxu0
    %v5189 = vadd.f32 0.0, %v5188
    %v5190 = vpop.f32.mrf.mxu0
    %v5191 = vadd.f32 0.0, %v5190
    %v5192 = vpop.f32.mrf.mxu0
    %v5193 = vadd.f32 0.0, %v5192
    %v5194 = vpop.f32.mrf.mxu0
    %v5195 = vadd.f32 0.0, %v5194
    %5196 = vmatprep.mubr.bf16.mxu0 %v4931
    %5197 = vmatmul.mubr.bf16.gmra.mxu0 %v4930
    %v5198 = vpop.f32.mrf.mxu0
    %v5199 = vadd.f32 0.0, %v5198
    %v5200 = vpop.f32.mrf.mxu0
    %v5201 = vadd.f32 0.0, %v5200
    %v5202 = vpop.f32.mrf.mxu0
    %v5203 = vadd.f32 0.0, %v5202
    %v5204 = vpop.f32.mrf.mxu0
    %v5205 = vadd.f32 0.0, %v5204
    %5206 = vmatprep.mubr.bf16.mxu0 %v4933
    %5207 = vmatmul.mubr.bf16.gmra.mxu0 %v4932
    %v5208 = vpop.f32.mrf.mxu0
    %v5209 = vadd.f32 0.0, %v5208
    %v5210 = vpop.f32.mrf.mxu0
    %v5211 = vadd.f32 0.0, %v5210
    %v5212 = vpop.f32.mrf.mxu0
    %v5213 = vadd.f32 0.0, %v5212
    %v5214 = vpop.f32.mrf.mxu0
    %v5215 = vadd.f32 0.0, %v5214
    %5216 = vmatprep.mubr.bf16.mxu0 %v4935
    %5217 = vmatmul.mubr.bf16.gmra.mxu0 %v4934
    %v5218 = vpop.f32.mrf.mxu0
    %v5219 = vadd.f32 0.0, %v5218
    %v5220 = vpop.f32.mrf.mxu0
    %v5221 = vadd.f32 0.0, %v5220
    %v5222 = vpop.f32.mrf.mxu0
    %v5223 = vadd.f32 0.0, %v5222
    %v5224 = vpop.f32.mrf.mxu0
    %v5225 = vadd.f32 0.0, %v5224
    %5226 = vmatprep.mubr.bf16.mxu0 %v4937
    %5227 = vmatmul.mubr.bf16.gmra.mxu0 %v4936
    %v5228 = vpop.f32.mrf.mxu0
    %v5229 = vadd.f32 0.0, %v5228
    %v5230 = vpop.f32.mrf.mxu0
    %v5231 = vadd.f32 0.0, %v5230
    %v5232 = vpop.f32.mrf.mxu0
    %v5233 = vadd.f32 0.0, %v5232
    %v5234 = vpop.f32.mrf.mxu0
    %v5235 = vadd.f32 0.0, %v5234
    %5236 = vmatprep.mubr.bf16.mxu0 %v4939
    %5237 = vmatmul.mubr.bf16.gmra.mxu0 %v4938
    %v5238 = vpop.f32.mrf.mxu0
    %v5239 = vadd.f32 0.0, %v5238
    %v5240 = vpop.f32.mrf.mxu0
    %v5241 = vadd.f32 0.0, %v5240
    %v5242 = vpop.f32.mrf.mxu0
    %v5243 = vadd.f32 0.0, %v5242
    %v5244 = vpop.f32.mrf.mxu0
    %v5245 = vadd.f32 0.0, %v5244
    %5246 = vmatprep.mubr.bf16.mxu0 %v4941
    %5247 = vmatmul.mubr.bf16.gmra.mxu0 %v4940
    %v5248 = vpop.f32.mrf.mxu0
    %v5249 = vadd.f32 0.0, %v5248
    %v5250 = vpop.f32.mrf.mxu0
    %v5251 = vadd.f32 0.0, %v5250
    %v5252 = vpop.f32.mrf.mxu0
    %v5253 = vadd.f32 0.0, %v5252
    %v5254 = vpop.f32.mrf.mxu0
    %v5255 = vadd.f32 0.0, %v5254
    %5256 = vmatprep.mubr.bf16.mxu0 %v4943
    %5257 = vmatmul.mubr.bf16.gmra.mxu0 %v4942
    %v5258 = vpop.f32.mrf.mxu0
    %v5259 = vadd.f32 0.0, %v5258
    %v5260 = vpop.f32.mrf.mxu0
    %v5261 = vadd.f32 0.0, %v5260
    %v5262 = vpop.f32.mrf.mxu0
    %v5263 = vadd.f32 0.0, %v5262
    %v5264 = vpop.f32.mrf.mxu0
    %v5265 = vadd.f32 0.0, %v5264
    %5266 = vmatprep.mubr.bf16.mxu0 %v4945
    %5267 = vmatmul.mubr.bf16.gmra.mxu0 %v4944
    %v5268 = vpop.f32.mrf.mxu0
    %v5269 = vadd.f32 0.0, %v5268
    %v5270 = vpop.f32.mrf.mxu0
    %v5271 = vadd.f32 0.0, %v5270
    %v5272 = vpop.f32.mrf.mxu0
    %v5273 = vadd.f32 0.0, %v5272
    %v5274 = vpop.f32.mrf.mxu0
    %v5275 = vadd.f32 0.0, %v5274
    %5276 = vmatprep.mubr.bf16.mxu0 %v4947
    %5277 = vmatmul.mubr.bf16.gmra.mxu0 %v4946
    %v5278 = vpop.f32.mrf.mxu0
    %v5279 = vadd.f32 0.0, %v5278
    %v5280 = vpop.f32.mrf.mxu0
    %v5281 = vadd.f32 0.0, %v5280
    %v5282 = vpop.f32.mrf.mxu0
    %v5283 = vadd.f32 0.0, %v5282
    %v5284 = vpop.f32.mrf.mxu0
    %v5285 = vadd.f32 0.0, %v5284
    %5286 = vmatprep.mubr.bf16.mxu0 %v4949
    %5287 = vmatmul.mubr.bf16.gmra.mxu0 %v4948
    %v5288 = vpop.f32.mrf.mxu0
    %v5289 = vadd.f32 0.0, %v5288
    %v5290 = vpop.f32.mrf.mxu0
    %v5291 = vadd.f32 0.0, %v5290
    %v5292 = vpop.f32.mrf.mxu0
    %v5293 = vadd.f32 0.0, %v5292
    %v5294 = vpop.f32.mrf.mxu0
    %v5295 = vadd.f32 0.0, %v5294
    %5296 = vdwg.mxu0
    %v5297 = vmul.f32 %v5139, %v5139
    %v5298 = vmul.f32 %v5141, %v5141
    %v5299 = vmul.f32 %v5143, %v5143
    %v5300 = vmul.f32 %v5145, %v5145
    %v5301 = vmul.f32 %v5149, %v5149
    %v5302 = vmul.f32 %v5151, %v5151
    %v5303 = vmul.f32 %v5153, %v5153
    %v5304 = vmul.f32 %v5155, %v5155
    %v5305 = vmul.f32 %v5159, %v5159
    %v5306 = vmul.f32 %v5161, %v5161
    %v5307 = vmul.f32 %v5163, %v5163
    %v5308 = vmul.f32 %v5165, %v5165
    %v5309 = vmul.f32 %v5169, %v5169
    %v5310 = vmul.f32 %v5171, %v5171
    %v5311 = vmul.f32 %v5173, %v5173
    %v5312 = vmul.f32 %v5175, %v5175
    %v5313 = vmul.f32 %v5179, %v5179
    %v5314 = vmul.f32 %v5181, %v5181
    %v5315 = vmul.f32 %v5183, %v5183
    %v5316 = vmul.f32 %v5185, %v5185
    %v5317 = vmul.f32 %v5189, %v5189
    %v5318 = vmul.f32 %v5191, %v5191
    %v5319 = vmul.f32 %v5193, %v5193
    %v5320 = vmul.f32 %v5195, %v5195
    %v5321 = vmul.f32 %v5199, %v5199
    %v5322 = vmul.f32 %v5201, %v5201
    %v5323 = vmul.f32 %v5203, %v5203
    %v5324 = vmul.f32 %v5205, %v5205
    %v5325 = vmul.f32 %v5209, %v5209
    %v5326 = vmul.f32 %v5211, %v5211
    %v5327 = vmul.f32 %v5213, %v5213
    %v5328 = vmul.f32 %v5215, %v5215
    %v5329 = vmul.f32 %v5219, %v5219
    %v5330 = vmul.f32 %v5221, %v5221
    %v5331 = vmul.f32 %v5223, %v5223
    %v5332 = vmul.f32 %v5225, %v5225
    %v5333 = vmul.f32 %v5229, %v5229
    %v5334 = vmul.f32 %v5231, %v5231
    %v5335 = vmul.f32 %v5233, %v5233
    %v5336 = vmul.f32 %v5235, %v5235
    %v5337 = vmul.f32 %v5239, %v5239
    %v5338 = vmul.f32 %v5241, %v5241
    %v5339 = vmul.f32 %v5243, %v5243
    %v5340 = vmul.f32 %v5245, %v5245
    %v5341 = vmul.f32 %v5249, %v5249
    %v5342 = vmul.f32 %v5251, %v5251
    %v5343 = vmul.f32 %v5253, %v5253
    %v5344 = vmul.f32 %v5255, %v5255
    %v5345 = vmul.f32 %v5259, %v5259
    %v5346 = vmul.f32 %v5261, %v5261
    %v5347 = vmul.f32 %v5263, %v5263
    %v5348 = vmul.f32 %v5265, %v5265
    %v5349 = vmul.f32 %v5269, %v5269
    %v5350 = vmul.f32 %v5271, %v5271
    %v5351 = vmul.f32 %v5273, %v5273
    %v5352 = vmul.f32 %v5275, %v5275
    %v5353 = vmul.f32 %v5279, %v5279
    %v5354 = vmul.f32 %v5281, %v5281
    %v5355 = vmul.f32 %v5283, %v5283
    %v5356 = vmul.f32 %v5285, %v5285
    %v5357 = vmul.f32 %v5289, %v5289
    %v5358 = vmul.f32 %v5291, %v5291
    %v5359 = vmul.f32 %v5293, %v5293
    %v5360 = vmul.f32 %v5295, %v5295
    %v5361 = vadd.f32 %v5297, %v5298
    %v5362 = vadd.f32 %v5361, %v5299
    %v5363 = vadd.f32 %v5362, %v5300
    %v5364 = vadd.f32 %v5363, %v5301
    %v5365 = vadd.f32 %v5364, %v5302
    %v5366 = vadd.f32 %v5365, %v5303
    %v5367 = vadd.f32 %v5366, %v5304
    %v5368 = vadd.f32 %v5367, %v5305
    %v5369 = vadd.f32 %v5368, %v5306
    %v5370 = vadd.f32 %v5369, %v5307
    %v5371 = vadd.f32 %v5370, %v5308
    %v5372 = vadd.f32 %v5371, %v5309
    %v5373 = vadd.f32 %v5372, %v5310
    %v5374 = vadd.f32 %v5373, %v5311
    %v5375 = vadd.f32 %v5374, %v5312
    %v5376 = vadd.f32 %v5375, %v5313
    %v5377 = vadd.f32 %v5376, %v5314
    %v5378 = vadd.f32 %v5377, %v5315
    %v5379 = vadd.f32 %v5378, %v5316
    %v5380 = vadd.f32 %v5379, %v5317
    %v5381 = vadd.f32 %v5380, %v5318
    %v5382 = vadd.f32 %v5381, %v5319
    %v5383 = vadd.f32 %v5382, %v5320
    %v5384 = vadd.f32 %v5383, %v5321
    %v5385 = vadd.f32 %v5384, %v5322
    %v5386 = vadd.f32 %v5385, %v5323
    %v5387 = vadd.f32 %v5386, %v5324
    %v5388 = vadd.f32 %v5387, %v5325
    %v5389 = vadd.f32 %v5388, %v5326
    %v5390 = vadd.f32 %v5389, %v5327
    %v5391 = vadd.f32 %v5390, %v5328
    %v5392 = vadd.f32 %v5391, %v5329
    %v5393 = vadd.f32 %v5392, %v5330
    %v5394 = vadd.f32 %v5393, %v5331
    %v5395 = vadd.f32 %v5394, %v5332
    %v5396 = vadd.f32 %v5395, %v5333
    %v5397 = vadd.f32 %v5396, %v5334
    %v5398 = vadd.f32 %v5397, %v5335
    %v5399 = vadd.f32 %v5398, %v5336
    %v5400 = vadd.f32 %v5399, %v5337
    %v5401 = vadd.f32 %v5400, %v5338
    %v5402 = vadd.f32 %v5401, %v5339
    %v5403 = vadd.f32 %v5402, %v5340
    %v5404 = vadd.f32 %v5403, %v5341
    %v5405 = vadd.f32 %v5404, %v5342
    %v5406 = vadd.f32 %v5405, %v5343
    %v5407 = vadd.f32 %v5406, %v5344
    %v5408 = vadd.f32 %v5407, %v5345
    %v5409 = vadd.f32 %v5408, %v5346
    %v5410 = vadd.f32 %v5409, %v5347
    %v5411 = vadd.f32 %v5410, %v5348
    %v5412 = vadd.f32 %v5411, %v5349
    %v5413 = vadd.f32 %v5412, %v5350
    %v5414 = vadd.f32 %v5413, %v5351
    %v5415 = vadd.f32 %v5414, %v5352
    %v5416 = vadd.f32 %v5415, %v5353
    %v5417 = vadd.f32 %v5416, %v5354
    %v5418 = vadd.f32 %v5417, %v5355
    %v5419 = vadd.f32 %v5418, %v5356
    %v5420 = vadd.f32 %v5419, %v5357
    %v5421 = vadd.f32 %v5420, %v5358
    %v5422 = vadd.f32 %v5421, %v5359
    %v5423 = vadd.f32 %v5422, %v5360
    %5424 = vadd.xlane.f32.xlu0 %v5423
    %v5425 = vpop.xlane.xlu0 %5424
    %v5426 = vrot.slane %v5425, 4
    %v5427 = vadd.f32 %v5425, %v5426
    %v5428 = vrot.slane %v5427, 2
    %v5429 = vadd.f32 %v5427, %v5428
    %v5430 = vrot.slane %v5429, 1
    %v5431 = vadd.f32 %v5429, %v5430
    %s5432 = vtos %v5431
    %v5433 = vstv %s5432
    %v5434 = vadd.f32 %v5433, 1e-30
    %v5435 = vrsqrt.pop %v5434
    %v5436 = vmul.f32 %v5139, %v5435
    %v5437 = vmul.f32 %v5141, %v5435
    %v5438 = vmul.f32 %v5143, %v5435
    %v5439 = vmul.f32 %v5145, %v5435
    %v5440 = vmul.f32 %v5149, %v5435
    %v5441 = vmul.f32 %v5151, %v5435
    %v5442 = vmul.f32 %v5153, %v5435
    %v5443 = vmul.f32 %v5155, %v5435
    %v5444 = vmul.f32 %v5159, %v5435
    %v5445 = vmul.f32 %v5161, %v5435
    %v5446 = vmul.f32 %v5163, %v5435
    %v5447 = vmul.f32 %v5165, %v5435
    %v5448 = vmul.f32 %v5169, %v5435
    %v5449 = vmul.f32 %v5171, %v5435
    %v5450 = vmul.f32 %v5173, %v5435
    %v5451 = vmul.f32 %v5175, %v5435
    %v5452 = vmul.f32 %v5179, %v5435
    %v5453 = vmul.f32 %v5181, %v5435
    %v5454 = vmul.f32 %v5183, %v5435
    %v5455 = vmul.f32 %v5185, %v5435
    %v5456 = vmul.f32 %v5189, %v5435
    %v5457 = vmul.f32 %v5191, %v5435
    %v5458 = vmul.f32 %v5193, %v5435
    %v5459 = vmul.f32 %v5195, %v5435
    %v5460 = vmul.f32 %v5199, %v5435
    %v5461 = vmul.f32 %v5201, %v5435
    %v5462 = vmul.f32 %v5203, %v5435
    %v5463 = vmul.f32 %v5205, %v5435
    %v5464 = vmul.f32 %v5209, %v5435
    %v5465 = vmul.f32 %v5211, %v5435
    %v5466 = vmul.f32 %v5213, %v5435
    %v5467 = vmul.f32 %v5215, %v5435
    %v5468 = vmul.f32 %v5219, %v5435
    %v5469 = vmul.f32 %v5221, %v5435
    %v5470 = vmul.f32 %v5223, %v5435
    %v5471 = vmul.f32 %v5225, %v5435
    %v5472 = vmul.f32 %v5229, %v5435
    %v5473 = vmul.f32 %v5231, %v5435
    %v5474 = vmul.f32 %v5233, %v5435
    %v5475 = vmul.f32 %v5235, %v5435
    %v5476 = vmul.f32 %v5239, %v5435
    %v5477 = vmul.f32 %v5241, %v5435
    %v5478 = vmul.f32 %v5243, %v5435
    %v5479 = vmul.f32 %v5245, %v5435
    %v5480 = vmul.f32 %v5249, %v5435
    %v5481 = vmul.f32 %v5251, %v5435
    %v5482 = vmul.f32 %v5253, %v5435
    %v5483 = vmul.f32 %v5255, %v5435
    %v5484 = vmul.f32 %v5259, %v5435
    %v5485 = vmul.f32 %v5261, %v5435
    %v5486 = vmul.f32 %v5263, %v5435
    %v5487 = vmul.f32 %v5265, %v5435
    %v5488 = vmul.f32 %v5269, %v5435
    %v5489 = vmul.f32 %v5271, %v5435
    %v5490 = vmul.f32 %v5273, %v5435
    %v5491 = vmul.f32 %v5275, %v5435
    %v5492 = vmul.f32 %v5279, %v5435
    %v5493 = vmul.f32 %v5281, %v5435
    %v5494 = vmul.f32 %v5283, %v5435
    %v5495 = vmul.f32 %v5285, %v5435
    %v5496 = vmul.f32 %v5289, %v5435
    %v5497 = vmul.f32 %v5291, %v5435
    %v5498 = vmul.f32 %v5293, %v5435
    %v5499 = vmul.f32 %v5295, %v5435
    %v5500 = vpack.c.bf16 %v5438, %v5436
    %v5501 = vpack.c.bf16 %v5439, %v5437
    %v5502 = vpack.c.bf16 %v5442, %v5440
    %v5503 = vpack.c.bf16 %v5443, %v5441
    %v5504 = vpack.c.bf16 %v5446, %v5444
    %v5505 = vpack.c.bf16 %v5447, %v5445
    %v5506 = vpack.c.bf16 %v5450, %v5448
    %v5507 = vpack.c.bf16 %v5451, %v5449
    %v5508 = vpack.c.bf16 %v5454, %v5452
    %v5509 = vpack.c.bf16 %v5455, %v5453
    %v5510 = vpack.c.bf16 %v5458, %v5456
    %v5511 = vpack.c.bf16 %v5459, %v5457
    %v5512 = vpack.c.bf16 %v5462, %v5460
    %v5513 = vpack.c.bf16 %v5463, %v5461
    %v5514 = vpack.c.bf16 %v5466, %v5464
    %v5515 = vpack.c.bf16 %v5467, %v5465
    %v5516 = vpack.c.bf16 %v5470, %v5468
    %v5517 = vpack.c.bf16 %v5471, %v5469
    %v5518 = vpack.c.bf16 %v5474, %v5472
    %v5519 = vpack.c.bf16 %v5475, %v5473
    %v5520 = vpack.c.bf16 %v5478, %v5476
    %v5521 = vpack.c.bf16 %v5479, %v5477
    %v5522 = vpack.c.bf16 %v5482, %v5480
    %v5523 = vpack.c.bf16 %v5483, %v5481
    %v5524 = vpack.c.bf16 %v5486, %v5484
    %v5525 = vpack.c.bf16 %v5487, %v5485
    %v5526 = vpack.c.bf16 %v5490, %v5488
    %v5527 = vpack.c.bf16 %v5491, %v5489
    %v5528 = vpack.c.bf16 %v5494, %v5492
    %v5529 = vpack.c.bf16 %v5495, %v5493
    %v5530 = vpack.c.bf16 %v5498, %v5496
    %v5531 = vpack.c.bf16 %v5499, %v5497
    %v5564 = vunpack.c.l.b16 %v5500
    %v5565 = vunpack.c.l.b16 %v5501
    %v5566 = vunpack.c.h.b16 %v5500
    %v5567 = vunpack.c.h.b16 %v5501
    %v5568 = vunpack.c.l.b16 %v5502
    %v5569 = vunpack.c.l.b16 %v5503
    %v5570 = vunpack.c.h.b16 %v5502
    %v5571 = vunpack.c.h.b16 %v5503
    %v5572 = vunpack.c.l.b16 %v5504
    %v5573 = vunpack.c.l.b16 %v5505
    %v5574 = vunpack.c.h.b16 %v5504
    %v5575 = vunpack.c.h.b16 %v5505
    %v5576 = vunpack.c.l.b16 %v5506
    %v5577 = vunpack.c.l.b16 %v5507
    %v5578 = vunpack.c.h.b16 %v5506
    %v5579 = vunpack.c.h.b16 %v5507
    %v5580 = vunpack.c.l.b16 %v5508
    %v5581 = vunpack.c.l.b16 %v5509
    %v5582 = vunpack.c.h.b16 %v5508
    %v5583 = vunpack.c.h.b16 %v5509
    %v5584 = vunpack.c.l.b16 %v5510
    %v5585 = vunpack.c.l.b16 %v5511
    %v5586 = vunpack.c.h.b16 %v5510
    %v5587 = vunpack.c.h.b16 %v5511
    %v5588 = vunpack.c.l.b16 %v5512
    %v5589 = vunpack.c.l.b16 %v5513
    %v5590 = vunpack.c.h.b16 %v5512
    %v5591 = vunpack.c.h.b16 %v5513
    %v5592 = vunpack.c.l.b16 %v5514
    %v5593 = vunpack.c.l.b16 %v5515
    %v5594 = vunpack.c.h.b16 %v5514
    %v5595 = vunpack.c.h.b16 %v5515
    %v5596 = vunpack.c.l.b16 %v5516
    %v5597 = vunpack.c.l.b16 %v5517
    %v5598 = vunpack.c.h.b16 %v5516
    %v5599 = vunpack.c.h.b16 %v5517
    %v5600 = vunpack.c.l.b16 %v5518
    %v5601 = vunpack.c.l.b16 %v5519
    %v5602 = vunpack.c.h.b16 %v5518
    %v5603 = vunpack.c.h.b16 %v5519
    %v5604 = vunpack.c.l.b16 %v5520
    %v5605 = vunpack.c.l.b16 %v5521
    %v5606 = vunpack.c.h.b16 %v5520
    %v5607 = vunpack.c.h.b16 %v5521
    %v5608 = vunpack.c.l.b16 %v5522
    %v5609 = vunpack.c.l.b16 %v5523
    %v5610 = vunpack.c.h.b16 %v5522
    %v5611 = vunpack.c.h.b16 %v5523
    %v5612 = vunpack.c.l.b16 %v5524
    %v5613 = vunpack.c.l.b16 %v5525
    %v5614 = vunpack.c.h.b16 %v5524
    %v5615 = vunpack.c.h.b16 %v5525
    %v5616 = vunpack.c.l.b16 %v5526
    %v5617 = vunpack.c.l.b16 %v5527
    %v5618 = vunpack.c.h.b16 %v5526
    %v5619 = vunpack.c.h.b16 %v5527
    %v5620 = vunpack.c.l.b16 %v5528
    %v5621 = vunpack.c.l.b16 %v5529
    %v5622 = vunpack.c.h.b16 %v5528
    %v5623 = vunpack.c.h.b16 %v5529
    %v5624 = vunpack.c.l.b16 %v5530
    %v5625 = vunpack.c.l.b16 %v5531
    %v5626 = vunpack.c.h.b16 %v5530
    %v5627 = vunpack.c.h.b16 %v5531
    %v5628 = vpack.c.b16 %v5565, %v5564
    %v5629 = vpack.c.b16 %v5567, %v5566
    %v5630 = vpack.c.b16 %v5569, %v5568
    %v5631 = vpack.c.b16 %v5571, %v5570
    %v5632 = vpack.c.b16 %v5573, %v5572
    %v5633 = vpack.c.b16 %v5575, %v5574
    %v5634 = vpack.c.b16 %v5577, %v5576
    %v5635 = vpack.c.b16 %v5579, %v5578
    %v5636 = vpack.c.b16 %v5581, %v5580
    %v5637 = vpack.c.b16 %v5583, %v5582
    %v5638 = vpack.c.b16 %v5585, %v5584
    %v5639 = vpack.c.b16 %v5587, %v5586
    %v5640 = vpack.c.b16 %v5589, %v5588
    %v5641 = vpack.c.b16 %v5591, %v5590
    %v5642 = vpack.c.b16 %v5593, %v5592
    %v5643 = vpack.c.b16 %v5595, %v5594
    %v5644 = vpack.c.b16 %v5597, %v5596
    %v5645 = vpack.c.b16 %v5599, %v5598
    %v5646 = vpack.c.b16 %v5601, %v5600
    %v5647 = vpack.c.b16 %v5603, %v5602
    %v5648 = vpack.c.b16 %v5605, %v5604
    %v5649 = vpack.c.b16 %v5607, %v5606
    %v5650 = vpack.c.b16 %v5609, %v5608
    %v5651 = vpack.c.b16 %v5611, %v5610
    %v5652 = vpack.c.b16 %v5613, %v5612
    %v5653 = vpack.c.b16 %v5615, %v5614
    %v5654 = vpack.c.b16 %v5617, %v5616
    %v5655 = vpack.c.b16 %v5619, %v5618
    %v5656 = vpack.c.b16 %v5621, %v5620
    %v5657 = vpack.c.b16 %v5623, %v5622
    %v5658 = vpack.c.b16 %v5625, %v5624
    %v5659 = vpack.c.b16 %v5627, %v5626
    %5692 = vst [vmem:[#allocation3] sm:$0xff] %v5628
    %5693 = vst [vmem:[#allocation3 + $0x8] sm:$0xff] %v5629
    %5694 = vst [vmem:[#allocation3 + $0x10] sm:$0xff] %v5630
    %5695 = vst [vmem:[#allocation3 + $0x18] sm:$0xff] %v5631
    %5696 = vst [vmem:[#allocation3 + $0x20] sm:$0xff] %v5632
    %5697 = vst [vmem:[#allocation3 + $0x28] sm:$0xff] %v5633
    %5698 = vst [vmem:[#allocation3 + $0x30] sm:$0xff] %v5634
    %5699 = vst [vmem:[#allocation3 + $0x38] sm:$0xff] %v5635
    %5700 = vst [vmem:[#allocation3 + $0x40] sm:$0xff] %v5636
    %5701 = vst [vmem:[#allocation3 + $0x48] sm:$0xff] %v5637
    %5702 = vst [vmem:[#allocation3 + $0x50] sm:$0xff] %v5638
    %5703 = vst [vmem:[#allocation3 + $0x58] sm:$0xff] %v5639
    %5704 = vst [vmem:[#allocation3 + $0x60] sm:$0xff] %v5640
    %5705 = vst [vmem:[#allocation3 + $0x68] sm:$0xff] %v5641
    %5706 = vst [vmem:[#allocation3 + $0x70] sm:$0xff] %v5642
    %5707 = vst [vmem:[#allocation3 + $0x78] sm:$0xff] %v5643
    %5708 = vst [vmem:[#allocation3 + $0x80] sm:$0xff] %v5644
    %5709 = vst [vmem:[#allocation3 + $0x88] sm:$0xff] %v5645
    %5710 = vst [vmem:[#allocation3 + $0x90] sm:$0xff] %v5646
    %5711 = vst [vmem:[#allocation3 + $0x98] sm:$0xff] %v5647
    %5712 = vst [vmem:[#allocation3 + $0xa0] sm:$0xff] %v5648
    %5713 = vst [vmem:[#allocation3 + $0xa8] sm:$0xff] %v5649
    %5714 = vst [vmem:[#allocation3 + $0xb0] sm:$0xff] %v5650
    %5715 = vst [vmem:[#allocation3 + $0xb8] sm:$0xff] %v5651
    %5716 = vst [vmem:[#allocation3 + $0xc0] sm:$0xff] %v5652
    %5717 = vst [vmem:[#allocation3 + $0xc8] sm:$0xff] %v5653
    %5718 = vst [vmem:[#allocation3 + $0xd0] sm:$0xff] %v5654
    %5719 = vst [vmem:[#allocation3 + $0xd8] sm:$0xff] %v5655
    %5720 = vst [vmem:[#allocation3 + $0xe0] sm:$0xff] %v5656
    %5721 = vst [vmem:[#allocation3 + $0xe8] sm:$0xff] %v5657
    %5722 = vst [vmem:[#allocation3 + $0xf0] sm:$0xff] %v5658
    %5723 = vst [vmem:[#allocation3 + $0xf8] sm:$0xff] %v5659
    %v5724 = vld [vmem:[#allocation3] sm:$0xff]
    %v5725 = vld [vmem:[#allocation3 + $0x8] sm:$0xff]
    %v5726 = vld [vmem:[#allocation3 + $0x10] sm:$0xff]
    %v5727 = vld [vmem:[#allocation3 + $0x18] sm:$0xff]
    %v5728 = vld [vmem:[#allocation3 + $0x20] sm:$0xff]
    %v5729 = vld [vmem:[#allocation3 + $0x28] sm:$0xff]
    %v5730 = vld [vmem:[#allocation3 + $0x30] sm:$0xff]
    %v5731 = vld [vmem:[#allocation3 + $0x38] sm:$0xff]
    %v5732 = vld [vmem:[#allocation3 + $0x40] sm:$0xff]
    %v5733 = vld [vmem:[#allocation3 + $0x48] sm:$0xff]
    %v5734 = vld [vmem:[#allocation3 + $0x50] sm:$0xff]
    %v5735 = vld [vmem:[#allocation3 + $0x58] sm:$0xff]
    %v5736 = vld [vmem:[#allocation3 + $0x60] sm:$0xff]
    %v5737 = vld [vmem:[#allocation3 + $0x68] sm:$0xff]
    %v5738 = vld [vmem:[#allocation3 + $0x70] sm:$0xff]
    %v5739 = vld [vmem:[#allocation3 + $0x78] sm:$0xff]
    %v5740 = vld [vmem:[#allocation3 + $0x80] sm:$0xff]
    %v5741 = vld [vmem:[#allocation3 + $0x88] sm:$0xff]
    %v5742 = vld [vmem:[#allocation3 + $0x90] sm:$0xff]
    %v5743 = vld [vmem:[#allocation3 + $0x98] sm:$0xff]
    %v5744 = vld [vmem:[#allocation3 + $0xa0] sm:$0xff]
    %v5745 = vld [vmem:[#allocation3 + $0xa8] sm:$0xff]
    %v5746 = vld [vmem:[#allocation3 + $0xb0] sm:$0xff]
    %v5747 = vld [vmem:[#allocation3 + $0xb8] sm:$0xff]
    %v5748 = vld [vmem:[#allocation3 + $0xc0] sm:$0xff]
    %v5749 = vld [vmem:[#allocation3 + $0xc8] sm:$0xff]
    %v5750 = vld [vmem:[#allocation3 + $0xd0] sm:$0xff]
    %v5751 = vld [vmem:[#allocation3 + $0xd8] sm:$0xff]
    %v5752 = vld [vmem:[#allocation3 + $0xe0] sm:$0xff]
    %v5753 = vld [vmem:[#allocation3 + $0xe8] sm:$0xff]
    %v5754 = vld [vmem:[#allocation3 + $0xf0] sm:$0xff]
    %v5755 = vld [vmem:[#allocation3 + $0xf8] sm:$0xff]
    %v5756 = vpack.c.bf16 %v5083, %v5083
    %v5757 = vpack.c.bf16 %v5084, %v5084
    %v5790 = vunpack.c.l.b16 %v5724
    %v5791 = vunpack.c.h.b16 %v5724
    %v5792 = vunpack.c.l.b16 %v5725
    %v5793 = vunpack.c.h.b16 %v5725
    %v5794 = vunpack.c.l.b16 %v5726
    %v5795 = vunpack.c.h.b16 %v5726
    %v5796 = vunpack.c.l.b16 %v5727
    %v5797 = vunpack.c.h.b16 %v5727
    %v5798 = vunpack.c.l.b16 %v5728
    %v5799 = vunpack.c.h.b16 %v5728
    %v5800 = vunpack.c.l.b16 %v5729
    %v5801 = vunpack.c.h.b16 %v5729
    %v5802 = vunpack.c.l.b16 %v5730
    %v5803 = vunpack.c.h.b16 %v5730
    %v5804 = vunpack.c.l.b16 %v5731
    %v5805 = vunpack.c.h.b16 %v5731
    %v5806 = vunpack.c.l.b16 %v5732
    %v5807 = vunpack.c.h.b16 %v5732
    %v5808 = vunpack.c.l.b16 %v5733
    %v5809 = vunpack.c.h.b16 %v5733
    %v5810 = vunpack.c.l.b16 %v5734
    %v5811 = vunpack.c.h.b16 %v5734
    %v5812 = vunpack.c.l.b16 %v5735
    %v5813 = vunpack.c.h.b16 %v5735
    %v5814 = vunpack.c.l.b16 %v5736
    %v5815 = vunpack.c.h.b16 %v5736
    %v5816 = vunpack.c.l.b16 %v5737
    %v5817 = vunpack.c.h.b16 %v5737
    %v5818 = vunpack.c.l.b16 %v5738
    %v5819 = vunpack.c.h.b16 %v5738
    %v5820 = vunpack.c.l.b16 %v5739
    %v5821 = vunpack.c.h.b16 %v5739
    %v5822 = vunpack.c.l.b16 %v5740
    %v5823 = vunpack.c.h.b16 %v5740
    %v5824 = vunpack.c.l.b16 %v5741
    %v5825 = vunpack.c.h.b16 %v5741
    %v5826 = vunpack.c.l.b16 %v5742
    %v5827 = vunpack.c.h.b16 %v5742
    %v5828 = vunpack.c.l.b16 %v5743
    %v5829 = vunpack.c.h.b16 %v5743
    %v5830 = vunpack.c.l.b16 %v5744
    %v5831 = vunpack.c.h.b16 %v5744
    %v5832 = vunpack.c.l.b16 %v5745
    %v5833 = vunpack.c.h.b16 %v5745
    %v5834 = vunpack.c.l.b16 %v5746
    %v5835 = vunpack.c.h.b16 %v5746
    %v5836 = vunpack.c.l.b16 %v5747
    %v5837 = vunpack.c.h.b16 %v5747
    %v5838 = vunpack.c.l.b16 %v5748
    %v5839 = vunpack.c.h.b16 %v5748
    %v5840 = vunpack.c.l.b16 %v5749
    %v5841 = vunpack.c.h.b16 %v5749
    %v5842 = vunpack.c.l.b16 %v5750
    %v5843 = vunpack.c.h.b16 %v5750
    %v5844 = vunpack.c.l.b16 %v5751
    %v5845 = vunpack.c.h.b16 %v5751
    %v5846 = vunpack.c.l.b16 %v5752
    %v5847 = vunpack.c.h.b16 %v5752
    %v5848 = vunpack.c.l.b16 %v5753
    %v5849 = vunpack.c.h.b16 %v5753
    %v5850 = vunpack.c.l.b16 %v5754
    %v5851 = vunpack.c.h.b16 %v5754
    %v5852 = vunpack.c.l.b16 %v5755
    %v5853 = vunpack.c.h.b16 %v5755
    %v5854 = vpack.c.b16 %v5792, %v5790
    %v5855 = vpack.c.b16 %v5793, %v5791
    %v5856 = vpack.c.b16 %v5796, %v5794
    %v5857 = vpack.c.b16 %v5797, %v5795
    %v5858 = vpack.c.b16 %v5800, %v5798
    %v5859 = vpack.c.b16 %v5801, %v5799
    %v5860 = vpack.c.b16 %v5804, %v5802
    %v5861 = vpack.c.b16 %v5805, %v5803
    %v5862 = vpack.c.b16 %v5808, %v5806
    %v5863 = vpack.c.b16 %v5809, %v5807
    %v5864 = vpack.c.b16 %v5812, %v5810
    %v5865 = vpack.c.b16 %v5813, %v5811
    %v5866 = vpack.c.b16 %v5816, %v5814
    %v5867 = vpack.c.b16 %v5817, %v5815
    %v5868 = vpack.c.b16 %v5820, %v5818
    %v5869 = vpack.c.b16 %v5821, %v5819
    %v5870 = vpack.c.b16 %v5824, %v5822
    %v5871 = vpack.c.b16 %v5825, %v5823
    %v5872 = vpack.c.b16 %v5828, %v5826
    %v5873 = vpack.c.b16 %v5829, %v5827
    %v5874 = vpack.c.b16 %v5832, %v5830
    %v5875 = vpack.c.b16 %v5833, %v5831
    %v5876 = vpack.c.b16 %v5836, %v5834
    %v5877 = vpack.c.b16 %v5837, %v5835
    %v5878 = vpack.c.b16 %v5840, %v5838
    %v5879 = vpack.c.b16 %v5841, %v5839
    %v5880 = vpack.c.b16 %v5844, %v5842
    %v5881 = vpack.c.b16 %v5845, %v5843
    %v5882 = vpack.c.b16 %v5848, %v5846
    %v5883 = vpack.c.b16 %v5849, %v5847
    %v5884 = vpack.c.b16 %v5852, %v5850
    %v5885 = vpack.c.b16 %v5853, %v5851
    %5918 = vmatprep.subr.bf16.mxu0 %v5869
    %5919 = vmatpush1.bf16.xpose.msra.mxu0 %v5868
    %5920 = vmatprep.subr.bf16.mxu0 %v5867
    %5921 = vmatpush1.bf16.xpose.msra.mxu0 %v5866
    %5922 = vmatprep.subr.bf16.mxu0 %v5865
    %5923 = vmatpush1.bf16.xpose.msra.mxu0 %v5864
    %5924 = vmatprep.subr.bf16.mxu0 %v5863
    %5925 = vmatpush1.bf16.xpose.msra.mxu0 %v5862
    %5926 = vmatprep.subr.bf16.mxu0 %v5861
    %5927 = vmatpush1.bf16.xpose.msra.mxu0 %v5860
    %5928 = vmatprep.subr.bf16.mxu0 %v5859
    %5929 = vmatpush1.bf16.xpose.msra.mxu0 %v5858
    %5930 = vmatprep.subr.bf16.mxu0 %v5857
    %5931 = vmatpush1.bf16.xpose.msra.mxu0 %v5856
    %5932 = vmatprep.subr.bf16.mxu0 %v5855
    %5933 = vmatpush1.bf16.xpose.msra.mxu0 %v5854
    %5934 = vmatprep.subr.bf16.mxu0 %v5885
    %5935 = vmatpush2.bf16.xpose.msra.mxu0 %v5884
    %5936 = vmatprep.subr.bf16.mxu0 %v5883
    %5937 = vmatpush2.bf16.xpose.msra.mxu0 %v5882
    %5938 = vmatprep.subr.bf16.mxu0 %v5881
    %5939 = vmatpush2.bf16.xpose.msra.mxu0 %v5880
    %5940 = vmatprep.subr.bf16.mxu0 %v5879
    %5941 = vmatpush2.bf16.xpose.msra.mxu0 %v5878
    %5942 = vmatprep.subr.bf16.mxu0 %v5877
    %5943 = vmatpush2.bf16.xpose.msra.mxu0 %v5876
    %5944 = vmatprep.subr.bf16.mxu0 %v5875
    %5945 = vmatpush2.bf16.xpose.msra.mxu0 %v5874
    %5946 = vmatprep.subr.bf16.mxu0 %v5873
    %5947 = vmatpush2.bf16.xpose.msra.mxu0 %v5872
    %5948 = vmatprep.subr.bf16.mxu0 %v5871
    %5949 = vmatpush2.bf16.xpose.msra.mxu0 %v5870
    %5950 = vmatprep.mubr.bf16.mxu0 %v5757
    %5951 = vmatmul.mubr.bf16.gmra.mxu0 %v5756
    %v5952 = vpop.f32.mrf.mxu0
    %v5953 = vadd.f32 0.0, %v5952
    %v5954 = vpop.f32.mrf.mxu0
    %v5955 = vadd.f32 0.0, %v5954
    %v5956 = vpop.f32.mrf.mxu0
    %v5957 = vpop.f32.mrf.mxu0
    %5958 = vdwg.mxu0
    %v5959 = vpack.c.bf16 %v5102, %v5102
    %v5960 = vpack.c.bf16 %v5103, %v5103
    %5961 = vmatprep.subr.bf16.mxu0 %v5869
    %5962 = vmatpush1.bf16.msra.mxu0 %v5868
    %5963 = vmatprep.subr.bf16.mxu0 %v5867
    %5964 = vmatpush1.bf16.msra.mxu0 %v5866
    %5965 = vmatprep.subr.bf16.mxu0 %v5865
    %5966 = vmatpush1.bf16.msra.mxu0 %v5864
    %5967 = vmatprep.subr.bf16.mxu0 %v5863
    %5968 = vmatpush1.bf16.msra.mxu0 %v5862
    %5969 = vmatprep.subr.bf16.mxu0 %v5861
    %5970 = vmatpush1.bf16.msra.mxu0 %v5860
    %5971 = vmatprep.subr.bf16.mxu0 %v5859
    %5972 = vmatpush1.bf16.msra.mxu0 %v5858
    %5973 = vmatprep.subr.bf16.mxu0 %v5857
    %5974 = vmatpush1.bf16.msra.mxu0 %v5856
    %5975 = vmatprep.subr.bf16.mxu0 %v5855
    %5976 = vmatpush1.bf16.msra.mxu0 %v5854
    %5977 = vmatprep.subr.bf16.mxu0 %v5885
    %5978 = vmatpush2.bf16.msra.mxu0 %v5884
    %5979 = vmatprep.subr.bf16.mxu0 %v5883
    %5980 = vmatpush2.bf16.msra.mxu0 %v5882
    %5981 = vmatprep.subr.bf16.mxu0 %v5881
    %5982 = vmatpush2.bf16.msra.mxu0 %v5880
    %5983 = vmatprep.subr.bf16.mxu0 %v5879
    %5984 = vmatpush2.bf16.msra.mxu0 %v5878
    %5985 = vmatprep.subr.bf16.mxu0 %v5877
    %5986 = vmatpush2.bf16.msra.mxu0 %v5876
    %5987 = vmatprep.subr.bf16.mxu0 %v5875
    %5988 = vmatpush2.bf16.msra.mxu0 %v5874
    %5989 = vmatprep.subr.bf16.mxu0 %v5873
    %5990 = vmatpush2.bf16.msra.mxu0 %v5872
    %5991 = vmatprep.subr.bf16.mxu0 %v5871
    %5992 = vmatpush2.bf16.msra.mxu0 %v5870
    %5993 = vmatprep.mubr.bf16.mxu0 %v5960
    %5994 = vmatmul.mubr.bf16.gmra.mxu0 %v5959
    %v5995 = vpop.f32.mrf.mxu0
    %v5996 = vadd.f32 0.0, %v5995
    %v5997 = vpop.f32.mrf.mxu0
    %v5998 = vadd.f32 0.0, %v5997
    %v5999 = vpop.f32.mrf.mxu0
    %v6000 = vpop.f32.mrf.mxu0
    %6001 = vdwg.mxu0
    %v6002 = vmul.f32 %v5953, %v5953
    %v6003 = vmul.f32 %v5955, %v5955
    %v6004 = vsel %vm3522, %v6002, 0.0
    %v6005 = vsel %vm3522, %v6003, 0.0
    %v6006 = vadd.f32 %v6004, %v6005
    %6007 = vadd.xlane.f32.xlu0 %v6006
    %v6008 = vpop.xlane.xlu0 %6007
    %v6009 = vrot.slane %v6008, 4
    %v6010 = vadd.f32 %v6008, %v6009
    %v6011 = vrot.slane %v6010, 2
    %v6012 = vadd.f32 %v6010, %v6011
    %v6013 = vrot.slane %v6012, 1
    %v6014 = vadd.f32 %v6012, %v6013
    %s6015 = vtos %v6014
    %v6016 = vstv %s6015
    %v6017 = vadd.f32 %v6016, 1e-30
    %v6018 = vrsqrt.pop %v6017
    %v6019 = vmul.f32 %v5953, %v6018
    %v6020 = vmul.f32 %v5955, %v6018
    %v6021 = vmul.f32 %v5996, %v5996
    %v6022 = vmul.f32 %v5998, %v5998
    %v6023 = vsel %vm3522, %v6021, 0.0
    %v6024 = vsel %vm3522, %v6022, 0.0
    %v6025 = vadd.f32 %v6023, %v6024
    %6026 = vadd.xlane.f32.xlu0 %v6025
    %v6027 = vpop.xlane.xlu0 %6026
    %v6028 = vrot.slane %v6027, 4
    %v6029 = vadd.f32 %v6027, %v6028
    %v6030 = vrot.slane %v6029, 2
    %v6031 = vadd.f32 %v6029, %v6030
    %v6032 = vrot.slane %v6031, 1
    %v6033 = vadd.f32 %v6031, %v6032
    %s6034 = vtos %v6033
    %v6035 = vstv %s6034
    %v6036 = vadd.f32 %v6035, 1e-30
    %v6037 = vrsqrt.pop %v6036
    %v6038 = vmul.f32 %v5996, %v6037
    %v6039 = vmul.f32 %v5998, %v6037
    %6040 = vmatprep.subr.bf16.mxu0 %v5869
    %6041 = vmatpush1.bf16.msra.mxu0 %v5868
    %6042 = vmatprep.subr.bf16.mxu0 %v5867
    %6043 = vmatpush1.bf16.msra.mxu0 %v5866
    %6044 = vmatprep.subr.bf16.mxu0 %v5865
    %6045 = vmatpush1.bf16.msra.mxu0 %v5864
    %6046 = vmatprep.subr.bf16.mxu0 %v5863
    %6047 = vmatpush1.bf16.msra.mxu0 %v5862
    %6048 = vmatprep.subr.bf16.mxu0 %v5861
    %6049 = vmatpush1.bf16.msra.mxu0 %v5860
    %6050 = vmatprep.subr.bf16.mxu0 %v5859
    %6051 = vmatpush1.bf16.msra.mxu0 %v5858
    %6052 = vmatprep.subr.bf16.mxu0 %v5857
    %6053 = vmatpush1.bf16.msra.mxu0 %v5856
    %6054 = vmatprep.subr.bf16.mxu0 %v5855
    %6055 = vmatpush1.bf16.msra.mxu0 %v5854
    %6056 = vmatprep.subr.bf16.mxu0 %v5885
    %6057 = vmatpush2.bf16.msra.mxu0 %v5884
    %6058 = vmatprep.subr.bf16.mxu0 %v5883
    %6059 = vmatpush2.bf16.msra.mxu0 %v5882
    %6060 = vmatprep.subr.bf16.mxu0 %v5881
    %6061 = vmatpush2.bf16.msra.mxu0 %v5880
    %6062 = vmatprep.subr.bf16.mxu0 %v5879
    %6063 = vmatpush2.bf16.msra.mxu0 %v5878
    %6064 = vmatprep.subr.bf16.mxu0 %v5877
    %6065 = vmatpush2.bf16.msra.mxu0 %v5876
    %6066 = vmatprep.subr.bf16.mxu0 %v5875
    %6067 = vmatpush2.bf16.msra.mxu0 %v5874
    %6068 = vmatprep.subr.bf16.mxu0 %v5873
    %6069 = vmatpush2.bf16.msra.mxu0 %v5872
    %6070 = vmatprep.subr.bf16.mxu0 %v5871
    %6071 = vmatpush2.bf16.msra.mxu0 %v5870
    %6072 = vmatprep.mubr.bf16.mxu0 %v5855
    %6073 = vmatmul.mubr.bf16.gmra.mxu0 %v5854
    %v6074 = vpop.f32.mrf.mxu0
    %v6075 = vadd.f32 0.0, %v6074
    %v6076 = vpop.f32.mrf.mxu0
    %v6077 = vadd.f32 0.0, %v6076
    %v6078 = vpop.f32.mrf.mxu0
    %v6079 = vadd.f32 0.0, %v6078
    %v6080 = vpop.f32.mrf.mxu0
    %v6081 = vadd.f32 0.0, %v6080
    %6082 = vmatprep.mubr.bf16.mxu0 %v5857
    %6083 = vmatmul.mubr.bf16.gmra.mxu0 %v5856
    %v6084 = vpop.f32.mrf.mxu0
    %v6085 = vadd.f32 0.0, %v6084
    %v6086 = vpop.f32.mrf.mxu0
    %v6087 = vadd.f32 0.0, %v6086
    %v6088 = vpop.f32.mrf.mxu0
    %v6089 = vadd.f32 0.0, %v6088
    %v6090 = vpop.f32.mrf.mxu0
    %v6091 = vadd.f32 0.0, %v6090
    %6092 = vmatprep.mubr.bf16.mxu0 %v5859
    %6093 = vmatmul.mubr.bf16.gmra.mxu0 %v5858
    %v6094 = vpop.f32.mrf.mxu0
    %v6095 = vadd.f32 0.0, %v6094
    %v6096 = vpop.f32.mrf.mxu0
    %v6097 = vadd.f32 0.0, %v6096
    %v6098 = vpop.f32.mrf.mxu0
    %v6099 = vadd.f32 0.0, %v6098
    %v6100 = vpop.f32.mrf.mxu0
    %v6101 = vadd.f32 0.0, %v6100
    %6102 = vmatprep.mubr.bf16.mxu0 %v5861
    %6103 = vmatmul.mubr.bf16.gmra.mxu0 %v5860
    %v6104 = vpop.f32.mrf.mxu0
    %v6105 = vadd.f32 0.0, %v6104
    %v6106 = vpop.f32.mrf.mxu0
    %v6107 = vadd.f32 0.0, %v6106
    %v6108 = vpop.f32.mrf.mxu0
    %v6109 = vadd.f32 0.0, %v6108
    %v6110 = vpop.f32.mrf.mxu0
    %v6111 = vadd.f32 0.0, %v6110
    %6112 = vmatprep.mubr.bf16.mxu0 %v5863
    %6113 = vmatmul.mubr.bf16.gmra.mxu0 %v5862
    %v6114 = vpop.f32.mrf.mxu0
    %v6115 = vadd.f32 0.0, %v6114
    %v6116 = vpop.f32.mrf.mxu0
    %v6117 = vadd.f32 0.0, %v6116
    %v6118 = vpop.f32.mrf.mxu0
    %v6119 = vadd.f32 0.0, %v6118
    %v6120 = vpop.f32.mrf.mxu0
    %v6121 = vadd.f32 0.0, %v6120
    %6122 = vmatprep.mubr.bf16.mxu0 %v5865
    %6123 = vmatmul.mubr.bf16.gmra.mxu0 %v5864
    %v6124 = vpop.f32.mrf.mxu0
    %v6125 = vadd.f32 0.0, %v6124
    %v6126 = vpop.f32.mrf.mxu0
    %v6127 = vadd.f32 0.0, %v6126
    %v6128 = vpop.f32.mrf.mxu0
    %v6129 = vadd.f32 0.0, %v6128
    %v6130 = vpop.f32.mrf.mxu0
    %v6131 = vadd.f32 0.0, %v6130
    %6132 = vmatprep.mubr.bf16.mxu0 %v5867
    %6133 = vmatmul.mubr.bf16.gmra.mxu0 %v5866
    %v6134 = vpop.f32.mrf.mxu0
    %v6135 = vadd.f32 0.0, %v6134
    %v6136 = vpop.f32.mrf.mxu0
    %v6137 = vadd.f32 0.0, %v6136
    %v6138 = vpop.f32.mrf.mxu0
    %v6139 = vadd.f32 0.0, %v6138
    %v6140 = vpop.f32.mrf.mxu0
    %v6141 = vadd.f32 0.0, %v6140
    %6142 = vmatprep.mubr.bf16.mxu0 %v5869
    %6143 = vmatmul.mubr.bf16.gmra.mxu0 %v5868
    %v6144 = vpop.f32.mrf.mxu0
    %v6145 = vadd.f32 0.0, %v6144
    %v6146 = vpop.f32.mrf.mxu0
    %v6147 = vadd.f32 0.0, %v6146
    %v6148 = vpop.f32.mrf.mxu0
    %v6149 = vadd.f32 0.0, %v6148
    %v6150 = vpop.f32.mrf.mxu0
    %v6151 = vadd.f32 0.0, %v6150
    %6152 = vmatprep.mubr.bf16.mxu0 %v5871
    %6153 = vmatmul.mubr.bf16.gmra.mxu0 %v5870
    %v6154 = vpop.f32.mrf.mxu0
    %v6155 = vadd.f32 0.0, %v6154
    %v6156 = vpop.f32.mrf.mxu0
    %v6157 = vadd.f32 0.0, %v6156
    %v6158 = vpop.f32.mrf.mxu0
    %v6159 = vadd.f32 0.0, %v6158
    %v6160 = vpop.f32.mrf.mxu0
    %v6161 = vadd.f32 0.0, %v6160
    %6162 = vmatprep.mubr.bf16.mxu0 %v5873
    %6163 = vmatmul.mubr.bf16.gmra.mxu0 %v5872
    %v6164 = vpop.f32.mrf.mxu0
    %v6165 = vadd.f32 0.0, %v6164
    %v6166 = vpop.f32.mrf.mxu0
    %v6167 = vadd.f32 0.0, %v6166
    %v6168 = vpop.f32.mrf.mxu0
    %v6169 = vadd.f32 0.0, %v6168
    %v6170 = vpop.f32.mrf.mxu0
    %v6171 = vadd.f32 0.0, %v6170
    %6172 = vmatprep.mubr.bf16.mxu0 %v5875
    %6173 = vmatmul.mubr.bf16.gmra.mxu0 %v5874
    %v6174 = vpop.f32.mrf.mxu0
    %v6175 = vadd.f32 0.0, %v6174
    %v6176 = vpop.f32.mrf.mxu0
    %v6177 = vadd.f32 0.0, %v6176
    %v6178 = vpop.f32.mrf.mxu0
    %v6179 = vadd.f32 0.0, %v6178
    %v6180 = vpop.f32.mrf.mxu0
    %v6181 = vadd.f32 0.0, %v6180
    %6182 = vmatprep.mubr.bf16.mxu0 %v5877
    %6183 = vmatmul.mubr.bf16.gmra.mxu0 %v5876
    %v6184 = vpop.f32.mrf.mxu0
    %v6185 = vadd.f32 0.0, %v6184
    %v6186 = vpop.f32.mrf.mxu0
    %v6187 = vadd.f32 0.0, %v6186
    %v6188 = vpop.f32.mrf.mxu0
    %v6189 = vadd.f32 0.0, %v6188
    %v6190 = vpop.f32.mrf.mxu0
    %v6191 = vadd.f32 0.0, %v6190
    %6192 = vmatprep.mubr.bf16.mxu0 %v5879
    %6193 = vmatmul.mubr.bf16.gmra.mxu0 %v5878
    %v6194 = vpop.f32.mrf.mxu0
    %v6195 = vadd.f32 0.0, %v6194
    %v6196 = vpop.f32.mrf.mxu0
    %v6197 = vadd.f32 0.0, %v6196
    %v6198 = vpop.f32.mrf.mxu0
    %v6199 = vadd.f32 0.0, %v6198
    %v6200 = vpop.f32.mrf.mxu0
    %v6201 = vadd.f32 0.0, %v6200
    %6202 = vmatprep.mubr.bf16.mxu0 %v5881
    %6203 = vmatmul.mubr.bf16.gmra.mxu0 %v5880
    %v6204 = vpop.f32.mrf.mxu0
    %v6205 = vadd.f32 0.0, %v6204
    %v6206 = vpop.f32.mrf.mxu0
    %v6207 = vadd.f32 0.0, %v6206
    %v6208 = vpop.f32.mrf.mxu0
    %v6209 = vadd.f32 0.0, %v6208
    %v6210 = vpop.f32.mrf.mxu0
    %v6211 = vadd.f32 0.0, %v6210
    %6212 = vmatprep.mubr.bf16.mxu0 %v5883
    %6213 = vmatmul.mubr.bf16.gmra.mxu0 %v5882
    %v6214 = vpop.f32.mrf.mxu0
    %v6215 = vadd.f32 0.0, %v6214
    %v6216 = vpop.f32.mrf.mxu0
    %v6217 = vadd.f32 0.0, %v6216
    %v6218 = vpop.f32.mrf.mxu0
    %v6219 = vadd.f32 0.0, %v6218
    %v6220 = vpop.f32.mrf.mxu0
    %v6221 = vadd.f32 0.0, %v6220
    %6222 = vmatprep.mubr.bf16.mxu0 %v5885
    %6223 = vmatmul.mubr.bf16.gmra.mxu0 %v5884
    %v6224 = vpop.f32.mrf.mxu0
    %v6225 = vadd.f32 0.0, %v6224
    %v6226 = vpop.f32.mrf.mxu0
    %v6227 = vadd.f32 0.0, %v6226
    %v6228 = vpop.f32.mrf.mxu0
    %v6229 = vadd.f32 0.0, %v6228
    %v6230 = vpop.f32.mrf.mxu0
    %v6231 = vadd.f32 0.0, %v6230
    %6232 = vdwg.mxu0
    %v6233 = vpack.c.bf16 %v6079, %v6075
    %v6234 = vpack.c.bf16 %v6081, %v6077
    %v6235 = vpack.c.bf16 %v6089, %v6085
    %v6236 = vpack.c.bf16 %v6091, %v6087
    %v6237 = vpack.c.bf16 %v6099, %v6095
    %v6238 = vpack.c.bf16 %v6101, %v6097
    %v6239 = vpack.c.bf16 %v6109, %v6105
    %v6240 = vpack.c.bf16 %v6111, %v6107
    %v6241 = vpack.c.bf16 %v6119, %v6115
    %v6242 = vpack.c.bf16 %v6121, %v6117
    %v6243 = vpack.c.bf16 %v6129, %v6125
    %v6244 = vpack.c.bf16 %v6131, %v6127
    %v6245 = vpack.c.bf16 %v6139, %v6135
    %v6246 = vpack.c.bf16 %v6141, %v6137
    %v6247 = vpack.c.bf16 %v6149, %v6145
    %v6248 = vpack.c.bf16 %v6151, %v6147
    %v6249 = vpack.c.bf16 %v6159, %v6155
    %v6250 = vpack.c.bf16 %v6161, %v6157
    %v6251 = vpack.c.bf16 %v6169, %v6165
    %v6252 = vpack.c.bf16 %v6171, %v6167
    %v6253 = vpack.c.bf16 %v6179, %v6175
    %v6254 = vpack.c.bf16 %v6181, %v6177
    %v6255 = vpack.c.bf16 %v6189, %v6185
    %v6256 = vpack.c.bf16 %v6191, %v6187
    %v6257 = vpack.c.bf16 %v6199, %v6195
    %v6258 = vpack.c.bf16 %v6201, %v6197
    %v6259 = vpack.c.bf16 %v6209, %v6205
    %v6260 = vpack.c.bf16 %v6211, %v6207
    %v6261 = vpack.c.bf16 %v6219, %v6215
    %v6262 = vpack.c.bf16 %v6221, %v6217
    %v6263 = vpack.c.bf16 %v6229, %v6225
    %v6264 = vpack.c.bf16 %v6231, %v6227
    %v6297 = vunpack.c.l.b16 %v6233
    %v6298 = vunpack.c.l.b16 %v6234
    %v6299 = vunpack.c.h.b16 %v6233
    %v6300 = vunpack.c.h.b16 %v6234
    %v6301 = vunpack.c.l.b16 %v6235
    %v6302 = vunpack.c.l.b16 %v6236
    %v6303 = vunpack.c.h.b16 %v6235
    %v6304 = vunpack.c.h.b16 %v6236
    %v6305 = vunpack.c.l.b16 %v6237
    %v6306 = vunpack.c.l.b16 %v6238
    %v6307 = vunpack.c.h.b16 %v6237
    %v6308 = vunpack.c.h.b16 %v6238
    %v6309 = vunpack.c.l.b16 %v6239
    %v6310 = vunpack.c.l.b16 %v6240
    %v6311 = vunpack.c.h.b16 %v6239
    %v6312 = vunpack.c.h.b16 %v6240
    %v6313 = vunpack.c.l.b16 %v6241
    %v6314 = vunpack.c.l.b16 %v6242
    %v6315 = vunpack.c.h.b16 %v6241
    %v6316 = vunpack.c.h.b16 %v6242
    %v6317 = vunpack.c.l.b16 %v6243
    %v6318 = vunpack.c.l.b16 %v6244
    %v6319 = vunpack.c.h.b16 %v6243
    %v6320 = vunpack.c.h.b16 %v6244
    %v6321 = vunpack.c.l.b16 %v6245
    %v6322 = vunpack.c.l.b16 %v6246
    %v6323 = vunpack.c.h.b16 %v6245
    %v6324 = vunpack.c.h.b16 %v6246
    %v6325 = vunpack.c.l.b16 %v6247
    %v6326 = vunpack.c.l.b16 %v6248
    %v6327 = vunpack.c.h.b16 %v6247
    %v6328 = vunpack.c.h.b16 %v6248
    %v6329 = vunpack.c.l.b16 %v6249
    %v6330 = vunpack.c.l.b16 %v6250
    %v6331 = vunpack.c.h.b16 %v6249
    %v6332 = vunpack.c.h.b16 %v6250
    %v6333 = vunpack.c.l.b16 %v6251
    %v6334 = vunpack.c.l.b16 %v6252
    %v6335 = vunpack.c.h.b16 %v6251
    %v6336 = vunpack.c.h.b16 %v6252
    %v6337 = vunpack.c.l.b16 %v6253
    %v6338 = vunpack.c.l.b16 %v6254
    %v6339 = vunpack.c.h.b16 %v6253
    %v6340 = vunpack.c.h.b16 %v6254
    %v6341 = vunpack.c.l.b16 %v6255
    %v6342 = vunpack.c.l.b16 %v6256
    %v6343 = vunpack.c.h.b16 %v6255
    %v6344 = vunpack.c.h.b16 %v6256
    %v6345 = vunpack.c.l.b16 %v6257
    %v6346 = vunpack.c.l.b16 %v6258
    %v6347 = vunpack.c.h.b16 %v6257
    %v6348 = vunpack.c.h.b16 %v6258
    %v6349 = vunpack.c.l.b16 %v6259
    %v6350 = vunpack.c.l.b16 %v6260
    %v6351 = vunpack.c.h.b16 %v6259
    %v6352 = vunpack.c.h.b16 %v6260
    %v6353 = vunpack.c.l.b16 %v6261
    %v6354 = vunpack.c.l.b16 %v6262
    %v6355 = vunpack.c.h.b16 %v6261
    %v6356 = vunpack.c.h.b16 %v6262
    %v6357 = vunpack.c.l.b16 %v6263
    %v6358 = vunpack.c.l.b16 %v6264
    %v6359 = vunpack.c.h.b16 %v6263
    %v6360 = vunpack.c.h.b16 %v6264
    %v6361 = vpack.c.b16 %v6298, %v6297
    %v6362 = vpack.c.b16 %v6300, %v6299
    %v6363 = vpack.c.b16 %v6302, %v6301
    %v6364 = vpack.c.b16 %v6304, %v6303
    %v6365 = vpack.c.b16 %v6306, %v6305
    %v6366 = vpack.c.b16 %v6308, %v6307
    %v6367 = vpack.c.b16 %v6310, %v6309
    %v6368 = vpack.c.b16 %v6312, %v6311
    %v6369 = vpack.c.b16 %v6314, %v6313
    %v6370 = vpack.c.b16 %v6316, %v6315
    %v6371 = vpack.c.b16 %v6318, %v6317
    %v6372 = vpack.c.b16 %v6320, %v6319
    %v6373 = vpack.c.b16 %v6322, %v6321
    %v6374 = vpack.c.b16 %v6324, %v6323
    %v6375 = vpack.c.b16 %v6326, %v6325
    %v6376 = vpack.c.b16 %v6328, %v6327
    %v6377 = vpack.c.b16 %v6330, %v6329
    %v6378 = vpack.c.b16 %v6332, %v6331
    %v6379 = vpack.c.b16 %v6334, %v6333
    %v6380 = vpack.c.b16 %v6336, %v6335
    %v6381 = vpack.c.b16 %v6338, %v6337
    %v6382 = vpack.c.b16 %v6340, %v6339
    %v6383 = vpack.c.b16 %v6342, %v6341
    %v6384 = vpack.c.b16 %v6344, %v6343
    %v6385 = vpack.c.b16 %v6346, %v6345
    %v6386 = vpack.c.b16 %v6348, %v6347
    %v6387 = vpack.c.b16 %v6350, %v6349
    %v6388 = vpack.c.b16 %v6352, %v6351
    %v6389 = vpack.c.b16 %v6354, %v6353
    %v6390 = vpack.c.b16 %v6356, %v6355
    %v6391 = vpack.c.b16 %v6358, %v6357
    %v6392 = vpack.c.b16 %v6360, %v6359
    %6425 = vst [vmem:[#allocation3] sm:$0xff] %v6361
    %6426 = vst [vmem:[#allocation3 + $0x8] sm:$0xff] %v6362
    %6427 = vst [vmem:[#allocation3 + $0x10] sm:$0xff] %v6363
    %6428 = vst [vmem:[#allocation3 + $0x18] sm:$0xff] %v6364
    %6429 = vst [vmem:[#allocation3 + $0x20] sm:$0xff] %v6365
    %6430 = vst [vmem:[#allocation3 + $0x28] sm:$0xff] %v6366
    %6431 = vst [vmem:[#allocation3 + $0x30] sm:$0xff] %v6367
    %6432 = vst [vmem:[#allocation3 + $0x38] sm:$0xff] %v6368
    %6433 = vst [vmem:[#allocation3 + $0x40] sm:$0xff] %v6369
    %6434 = vst [vmem:[#allocation3 + $0x48] sm:$0xff] %v6370
    %6435 = vst [vmem:[#allocation3 + $0x50] sm:$0xff] %v6371
    %6436 = vst [vmem:[#allocation3 + $0x58] sm:$0xff] %v6372
    %6437 = vst [vmem:[#allocation3 + $0x60] sm:$0xff] %v6373
    %6438 = vst [vmem:[#allocation3 + $0x68] sm:$0xff] %v6374
    %6439 = vst [vmem:[#allocation3 + $0x70] sm:$0xff] %v6375
    %6440 = vst [vmem:[#allocation3 + $0x78] sm:$0xff] %v6376
    %6441 = vst [vmem:[#allocation3 + $0x80] sm:$0xff] %v6377
    %6442 = vst [vmem:[#allocation3 + $0x88] sm:$0xff] %v6378
    %6443 = vst [vmem:[#allocation3 + $0x90] sm:$0xff] %v6379
    %6444 = vst [vmem:[#allocation3 + $0x98] sm:$0xff] %v6380
    %6445 = vst [vmem:[#allocation3 + $0xa0] sm:$0xff] %v6381
    %6446 = vst [vmem:[#allocation3 + $0xa8] sm:$0xff] %v6382
    %6447 = vst [vmem:[#allocation3 + $0xb0] sm:$0xff] %v6383
    %6448 = vst [vmem:[#allocation3 + $0xb8] sm:$0xff] %v6384
    %6449 = vst [vmem:[#allocation3 + $0xc0] sm:$0xff] %v6385
    %6450 = vst [vmem:[#allocation3 + $0xc8] sm:$0xff] %v6386
    %6451 = vst [vmem:[#allocation3 + $0xd0] sm:$0xff] %v6387
    %6452 = vst [vmem:[#allocation3 + $0xd8] sm:$0xff] %v6388
    %6453 = vst [vmem:[#allocation3 + $0xe0] sm:$0xff] %v6389
    %6454 = vst [vmem:[#allocation3 + $0xe8] sm:$0xff] %v6390
    %6455 = vst [vmem:[#allocation3 + $0xf0] sm:$0xff] %v6391
    %6456 = vst [vmem:[#allocation3 + $0xf8] sm:$0xff] %v6392
    %v6457 = vld [vmem:[#allocation3] sm:$0xff]
    %v6458 = vld [vmem:[#allocation3 + $0x8] sm:$0xff]
    %v6459 = vld [vmem:[#allocation3 + $0x10] sm:$0xff]
    %v6460 = vld [vmem:[#allocation3 + $0x18] sm:$0xff]
    %v6461 = vld [vmem:[#allocation3 + $0x20] sm:$0xff]
    %v6462 = vld [vmem:[#allocation3 + $0x28] sm:$0xff]
    %v6463 = vld [vmem:[#allocation3 + $0x30] sm:$0xff]
    %v6464 = vld [vmem:[#allocation3 + $0x38] sm:$0xff]
    %v6465 = vld [vmem:[#allocation3 + $0x40] sm:$0xff]
    %v6466 = vld [vmem:[#allocation3 + $0x48] sm:$0xff]
    %v6467 = vld [vmem:[#allocation3 + $0x50] sm:$0xff]
    %v6468 = vld [vmem:[#allocation3 + $0x58] sm:$0xff]
    %v6469 = vld [vmem:[#allocation3 + $0x60] sm:$0xff]
    %v6470 = vld [vmem:[#allocation3 + $0x68] sm:$0xff]
    %v6471 = vld [vmem:[#allocation3 + $0x70] sm:$0xff]
    %v6472 = vld [vmem:[#allocation3 + $0x78] sm:$0xff]
    %v6473 = vld [vmem:[#allocation3 + $0x80] sm:$0xff]
    %v6474 = vld [vmem:[#allocation3 + $0x88] sm:$0xff]
    %v6475 = vld [vmem:[#allocation3 + $0x90] sm:$0xff]
    %v6476 = vld [vmem:[#allocation3 + $0x98] sm:$0xff]
    %v6477 = vld [vmem:[#allocation3 + $0xa0] sm:$0xff]
    %v6478 = vld [vmem:[#allocation3 + $0xa8] sm:$0xff]
    %v6479 = vld [vmem:[#allocation3 + $0xb0] sm:$0xff]
    %v6480 = vld [vmem:[#allocation3 + $0xb8] sm:$0xff]
    %v6481 = vld [vmem:[#allocation3 + $0xc0] sm:$0xff]
    %v6482 = vld [vmem:[#allocation3 + $0xc8] sm:$0xff]
    %v6483 = vld [vmem:[#allocation3 + $0xd0] sm:$0xff]
    %v6484 = vld [vmem:[#allocation3 + $0xd8] sm:$0xff]
    %v6485 = vld [vmem:[#allocation3 + $0xe0] sm:$0xff]
    %v6486 = vld [vmem:[#allocation3 + $0xe8] sm:$0xff]
    %v6487 = vld [vmem:[#allocation3 + $0xf0] sm:$0xff]
    %v6488 = vld [vmem:[#allocation3 + $0xf8] sm:$0xff]
    %v6489 = vpack.c.bf16 %v6019, %v6019
    %v6490 = vpack.c.bf16 %v6020, %v6020
    %v6523 = vunpack.c.l.b16 %v6457
    %v6524 = vunpack.c.h.b16 %v6457
    %v6525 = vunpack.c.l.b16 %v6458
    %v6526 = vunpack.c.h.b16 %v6458
    %v6527 = vunpack.c.l.b16 %v6459
    %v6528 = vunpack.c.h.b16 %v6459
    %v6529 = vunpack.c.l.b16 %v6460
    %v6530 = vunpack.c.h.b16 %v6460
    %v6531 = vunpack.c.l.b16 %v6461
    %v6532 = vunpack.c.h.b16 %v6461
    %v6533 = vunpack.c.l.b16 %v6462
    %v6534 = vunpack.c.h.b16 %v6462
    %v6535 = vunpack.c.l.b16 %v6463
    %v6536 = vunpack.c.h.b16 %v6463
    %v6537 = vunpack.c.l.b16 %v6464
    %v6538 = vunpack.c.h.b16 %v6464
    %v6539 = vunpack.c.l.b16 %v6465
    %v6540 = vunpack.c.h.b16 %v6465
    %v6541 = vunpack.c.l.b16 %v6466
    %v6542 = vunpack.c.h.b16 %v6466
    %v6543 = vunpack.c.l.b16 %v6467
    %v6544 = vunpack.c.h.b16 %v6467
    %v6545 = vunpack.c.l.b16 %v6468
    %v6546 = vunpack.c.h.b16 %v6468
    %v6547 = vunpack.c.l.b16 %v6469
    %v6548 = vunpack.c.h.b16 %v6469
    %v6549 = vunpack.c.l.b16 %v6470
    %v6550 = vunpack.c.h.b16 %v6470
    %v6551 = vunpack.c.l.b16 %v6471
    %v6552 = vunpack.c.h.b16 %v6471
    %v6553 = vunpack.c.l.b16 %v6472
    %v6554 = vunpack.c.h.b16 %v6472
    %v6555 = vunpack.c.l.b16 %v6473
    %v6556 = vunpack.c.h.b16 %v6473
    %v6557 = vunpack.c.l.b16 %v6474
    %v6558 = vunpack.c.h.b16 %v6474
    %v6559 = vunpack.c.l.b16 %v6475
    %v6560 = vunpack.c.h.b16 %v6475
    %v6561 = vunpack.c.l.b16 %v6476
    %v6562 = vunpack.c.h.b16 %v6476
    %v6563 = vunpack.c.l.b16 %v6477
    %v6564 = vunpack.c.h.b16 %v6477
    %v6565 = vunpack.c.l.b16 %v6478
    %v6566 = vunpack.c.h.b16 %v6478
    %v6567 = vunpack.c.l.b16 %v6479
    %v6568 = vunpack.c.h.b16 %v6479
    %v6569 = vunpack.c.l.b16 %v6480
    %v6570 = vunpack.c.h.b16 %v6480
    %v6571 = vunpack.c.l.b16 %v6481
    %v6572 = vunpack.c.h.b16 %v6481
    %v6573 = vunpack.c.l.b16 %v6482
    %v6574 = vunpack.c.h.b16 %v6482
    %v6575 = vunpack.c.l.b16 %v6483
    %v6576 = vunpack.c.h.b16 %v6483
    %v6577 = vunpack.c.l.b16 %v6484
    %v6578 = vunpack.c.h.b16 %v6484
    %v6579 = vunpack.c.l.b16 %v6485
    %v6580 = vunpack.c.h.b16 %v6485
    %v6581 = vunpack.c.l.b16 %v6486
    %v6582 = vunpack.c.h.b16 %v6486
    %v6583 = vunpack.c.l.b16 %v6487
    %v6584 = vunpack.c.h.b16 %v6487
    %v6585 = vunpack.c.l.b16 %v6488
    %v6586 = vunpack.c.h.b16 %v6488
    %v6587 = vpack.c.b16 %v6525, %v6523
    %v6588 = vpack.c.b16 %v6526, %v6524
    %v6589 = vpack.c.b16 %v6529, %v6527
    %v6590 = vpack.c.b16 %v6530, %v6528
    %v6591 = vpack.c.b16 %v6533, %v6531
    %v6592 = vpack.c.b16 %v6534, %v6532
    %v6593 = vpack.c.b16 %v6537, %v6535
    %v6594 = vpack.c.b16 %v6538, %v6536
    %v6595 = vpack.c.b16 %v6541, %v6539
    %v6596 = vpack.c.b16 %v6542, %v6540
    %v6597 = vpack.c.b16 %v6545, %v6543
    %v6598 = vpack.c.b16 %v6546, %v6544
    %v6599 = vpack.c.b16 %v6549, %v6547
    %v6600 = vpack.c.b16 %v6550, %v6548
    %v6601 = vpack.c.b16 %v6553, %v6551
    %v6602 = vpack.c.b16 %v6554, %v6552
    %v6603 = vpack.c.b16 %v6557, %v6555
    %v6604 = vpack.c.b16 %v6558, %v6556
    %v6605 = vpack.c.b16 %v6561, %v6559
    %v6606 = vpack.c.b16 %v6562, %v6560
    %v6607 = vpack.c.b16 %v6565, %v6563
    %v6608 = vpack.c.b16 %v6566, %v6564
    %v6609 = vpack.c.b16 %v6569, %v6567
    %v6610 = vpack.c.b16 %v6570, %v6568
    %v6611 = vpack.c.b16 %v6573, %v6571
    %v6612 = vpack.c.b16 %v6574, %v6572
    %v6613 = vpack.c.b16 %v6577, %v6575
    %v6614 = vpack.c.b16 %v6578, %v6576
    %v6615 = vpack.c.b16 %v6581, %v6579
    %v6616 = vpack.c.b16 %v6582, %v6580
    %v6617 = vpack.c.b16 %v6585, %v6583
    %v6618 = vpack.c.b16 %v6586, %v6584
    %6651 = vmatprep.subr.bf16.mxu0 %v6602
    %6652 = vmatpush1.bf16.xpose.msra.mxu0 %v6601
    %6653 = vmatprep.subr.bf16.mxu0 %v6600
    %6654 = vmatpush1.bf16.xpose.msra.mxu0 %v6599
    %6655 = vmatprep.subr.bf16.mxu0 %v6598
    %6656 = vmatpush1.bf16.xpose.msra.mxu0 %v6597
    %6657 = vmatprep.subr.bf16.mxu0 %v6596
    %6658 = vmatpush1.bf16.xpose.msra.mxu0 %v6595
    %6659 = vmatprep.subr.bf16.mxu0 %v6594
    %6660 = vmatpush1.bf16.xpose.msra.mxu0 %v6593
    %6661 = vmatprep.subr.bf16.mxu0 %v6592
    %6662 = vmatpush1.bf16.xpose.msra.mxu0 %v6591
    %6663 = vmatprep.subr.bf16.mxu0 %v6590
    %6664 = vmatpush1.bf16.xpose.msra.mxu0 %v6589
    %6665 = vmatprep.subr.bf16.mxu0 %v6588
    %6666 = vmatpush1.bf16.xpose.msra.mxu0 %v6587
    %6667 = vmatprep.subr.bf16.mxu0 %v6618
    %6668 = vmatpush2.bf16.xpose.msra.mxu0 %v6617
    %6669 = vmatprep.subr.bf16.mxu0 %v6616
    %6670 = vmatpush2.bf16.xpose.msra.mxu0 %v6615
    %6671 = vmatprep.subr.bf16.mxu0 %v6614
    %6672 = vmatpush2.bf16.xpose.msra.mxu0 %v6613
    %6673 = vmatprep.subr.bf16.mxu0 %v6612
    %6674 = vmatpush2.bf16.xpose.msra.mxu0 %v6611
    %6675 = vmatprep.subr.bf16.mxu0 %v6610
    %6676 = vmatpush2.bf16.xpose.msra.mxu0 %v6609
    %6677 = vmatprep.subr.bf16.mxu0 %v6608
    %6678 = vmatpush2.bf16.xpose.msra.mxu0 %v6607
    %6679 = vmatprep.subr.bf16.mxu0 %v6606
    %6680 = vmatpush2.bf16.xpose.msra.mxu0 %v6605
    %6681 = vmatprep.subr.bf16.mxu0 %v6604
    %6682 = vmatpush2.bf16.xpose.msra.mxu0 %v6603
    %6683 = vmatprep.mubr.bf16.mxu0 %v6490
    %6684 = vmatmul.mubr.bf16.gmra.mxu0 %v6489
    %v6685 = vpop.f32.mrf.mxu0
    %v6686 = vadd.f32 0.0, %v6685
    %v6687 = vpop.f32.mrf.mxu0
    %v6688 = vadd.f32 0.0, %v6687
    %v6689 = vpop.f32.mrf.mxu0
    %v6690 = vpop.f32.mrf.mxu0
    %6691 = vdwg.mxu0
    %v6692 = vpack.c.bf16 %v6038, %v6038
    %v6693 = vpack.c.bf16 %v6039, %v6039
    %6694 = vmatprep.subr.bf16.mxu0 %v6602
    %6695 = vmatpush1.bf16.msra.mxu0 %v6601
    %6696 = vmatprep.subr.bf16.mxu0 %v6600
    %6697 = vmatpush1.bf16.msra.mxu0 %v6599
    %6698 = vmatprep.subr.bf16.mxu0 %v6598
    %6699 = vmatpush1.bf16.msra.mxu0 %v6597
    %6700 = vmatprep.subr.bf16.mxu0 %v6596
    %6701 = vmatpush1.bf16.msra.mxu0 %v6595
    %6702 = vmatprep.subr.bf16.mxu0 %v6594
    %6703 = vmatpush1.bf16.msra.mxu0 %v6593
    %6704 = vmatprep.subr.bf16.mxu0 %v6592
    %6705 = vmatpush1.bf16.msra.mxu0 %v6591
    %6706 = vmatprep.subr.bf16.mxu0 %v6590
    %6707 = vmatpush1.bf16.msra.mxu0 %v6589
    %6708 = vmatprep.subr.bf16.mxu0 %v6588
    %6709 = vmatpush1.bf16.msra.mxu0 %v6587
    %6710 = vmatprep.subr.bf16.mxu0 %v6618
    %6711 = vmatpush2.bf16.msra.mxu0 %v6617
    %6712 = vmatprep.subr.bf16.mxu0 %v6616
    %6713 = vmatpush2.bf16.msra.mxu0 %v6615
    %6714 = vmatprep.subr.bf16.mxu0 %v6614
    %6715 = vmatpush2.bf16.msra.mxu0 %v6613
    %6716 = vmatprep.subr.bf16.mxu0 %v6612
    %6717 = vmatpush2.bf16.msra.mxu0 %v6611
    %6718 = vmatprep.subr.bf16.mxu0 %v6610
    %6719 = vmatpush2.bf16.msra.mxu0 %v6609
    %6720 = vmatprep.subr.bf16.mxu0 %v6608
    %6721 = vmatpush2.bf16.msra.mxu0 %v6607
    %6722 = vmatprep.subr.bf16.mxu0 %v6606
    %6723 = vmatpush2.bf16.msra.mxu0 %v6605
    %6724 = vmatprep.subr.bf16.mxu0 %v6604
    %6725 = vmatpush2.bf16.msra.mxu0 %v6603
    %6726 = vmatprep.mubr.bf16.mxu0 %v6693
    %6727 = vmatmul.mubr.bf16.gmra.mxu0 %v6692
    %v6728 = vpop.f32.mrf.mxu0
    %v6729 = vadd.f32 0.0, %v6728
    %v6730 = vpop.f32.mrf.mxu0
    %v6731 = vadd.f32 0.0, %v6730
    %v6732 = vpop.f32.mrf.mxu0
    %v6733 = vpop.f32.mrf.mxu0
    %6734 = vdwg.mxu0
    %v6735 = vmul.f32 %v6686, %v6686
    %v6736 = vmul.f32 %v6688, %v6688
    %v6737 = vsel %vm3522, %v6735, 0.0
    %v6738 = vsel %vm3522, %v6736, 0.0
    %v6739 = vadd.f32 %v6737, %v6738
    %6740 = vadd.xlane.f32.xlu0 %v6739
    %v6741 = vpop.xlane.xlu0 %6740
    %v6742 = vrot.slane %v6741, 4
    %v6743 = vadd.f32 %v6741, %v6742
    %v6744 = vrot.slane %v6743, 2
    %v6745 = vadd.f32 %v6743, %v6744
    %v6746 = vrot.slane %v6745, 1
    %v6747 = vadd.f32 %v6745, %v6746
    %s6748 = vtos %v6747
    %v6749 = vstv %s6748
    %v6750 = vadd.f32 %v6749, 1e-30
    %v6751 = vrsqrt.pop %v6750
    %v6752 = vmul.f32 %v6686, %v6751
    %v6753 = vmul.f32 %v6688, %v6751
    %v6754 = vmul.f32 %v6729, %v6729
    %v6755 = vmul.f32 %v6731, %v6731
    %v6756 = vsel %vm3522, %v6754, 0.0
    %v6757 = vsel %vm3522, %v6755, 0.0
    %v6758 = vadd.f32 %v6756, %v6757
    %6759 = vadd.xlane.f32.xlu0 %v6758
    %v6760 = vpop.xlane.xlu0 %6759
    %v6761 = vrot.slane %v6760, 4
    %v6762 = vadd.f32 %v6760, %v6761
    %v6763 = vrot.slane %v6762, 2
    %v6764 = vadd.f32 %v6762, %v6763
    %v6765 = vrot.slane %v6764, 1
    %v6766 = vadd.f32 %v6764, %v6765
    %s6767 = vtos %v6766
    %v6768 = vstv %s6767
    %v6769 = vadd.f32 %v6768, 1e-30
    %v6770 = vrsqrt.pop %v6769
    %v6771 = vmul.f32 %v6729, %v6770
    %v6772 = vmul.f32 %v6731, %v6770
    %6773 = vmatprep.subr.bf16.mxu0 %v6602
    %6774 = vmatpush1.bf16.msra.mxu0 %v6601
    %6775 = vmatprep.subr.bf16.mxu0 %v6600
    %6776 = vmatpush1.bf16.msra.mxu0 %v6599
    %6777 = vmatprep.subr.bf16.mxu0 %v6598
    %6778 = vmatpush1.bf16.msra.mxu0 %v6597
    %6779 = vmatprep.subr.bf16.mxu0 %v6596
    %6780 = vmatpush1.bf16.msra.mxu0 %v6595
    %6781 = vmatprep.subr.bf16.mxu0 %v6594
    %6782 = vmatpush1.bf16.msra.mxu0 %v6593
    %6783 = vmatprep.subr.bf16.mxu0 %v6592
    %6784 = vmatpush1.bf16.msra.mxu0 %v6591
    %6785 = vmatprep.subr.bf16.mxu0 %v6590
    %6786 = vmatpush1.bf16.msra.mxu0 %v6589
    %6787 = vmatprep.subr.bf16.mxu0 %v6588
    %6788 = vmatpush1.bf16.msra.mxu0 %v6587
    %6789 = vmatprep.subr.bf16.mxu0 %v6618
    %6790 = vmatpush2.bf16.msra.mxu0 %v6617
    %6791 = vmatprep.subr.bf16.mxu0 %v6616
    %6792 = vmatpush2.bf16.msra.mxu0 %v6615
    %6793 = vmatprep.subr.bf16.mxu0 %v6614
    %6794 = vmatpush2.bf16.msra.mxu0 %v6613
    %6795 = vmatprep.subr.bf16.mxu0 %v6612
    %6796 = vmatpush2.bf16.msra.mxu0 %v6611
    %6797 = vmatprep.subr.bf16.mxu0 %v6610
    %6798 = vmatpush2.bf16.msra.mxu0 %v6609
    %6799 = vmatprep.subr.bf16.mxu0 %v6608
    %6800 = vmatpush2.bf16.msra.mxu0 %v6607
    %6801 = vmatprep.subr.bf16.mxu0 %v6606
    %6802 = vmatpush2.bf16.msra.mxu0 %v6605
    %6803 = vmatprep.subr.bf16.mxu0 %v6604
    %6804 = vmatpush2.bf16.msra.mxu0 %v6603
    %6805 = vmatprep.mubr.bf16.mxu0 %v6588
    %6806 = vmatmul.mubr.bf16.gmra.mxu0 %v6587
    %v6807 = vpop.f32.mrf.mxu0
    %v6808 = vadd.f32 0.0, %v6807
    %v6809 = vpop.f32.mrf.mxu0
    %v6810 = vadd.f32 0.0, %v6809
    %v6811 = vpop.f32.mrf.mxu0
    %v6812 = vadd.f32 0.0, %v6811
    %v6813 = vpop.f32.mrf.mxu0
    %v6814 = vadd.f32 0.0, %v6813
    %6815 = vmatprep.mubr.bf16.mxu0 %v6590
    %6816 = vmatmul.mubr.bf16.gmra.mxu0 %v6589
    %v6817 = vpop.f32.mrf.mxu0
    %v6818 = vadd.f32 0.0, %v6817
    %v6819 = vpop.f32.mrf.mxu0
    %v6820 = vadd.f32 0.0, %v6819
    %v6821 = vpop.f32.mrf.mxu0
    %v6822 = vadd.f32 0.0, %v6821
    %v6823 = vpop.f32.mrf.mxu0
    %v6824 = vadd.f32 0.0, %v6823
    %6825 = vmatprep.mubr.bf16.mxu0 %v6592
    %6826 = vmatmul.mubr.bf16.gmra.mxu0 %v6591
    %v6827 = vpop.f32.mrf.mxu0
    %v6828 = vadd.f32 0.0, %v6827
    %v6829 = vpop.f32.mrf.mxu0
    %v6830 = vadd.f32 0.0, %v6829
    %v6831 = vpop.f32.mrf.mxu0
    %v6832 = vadd.f32 0.0, %v6831
    %v6833 = vpop.f32.mrf.mxu0
    %v6834 = vadd.f32 0.0, %v6833
    %6835 = vmatprep.mubr.bf16.mxu0 %v6594
    %6836 = vmatmul.mubr.bf16.gmra.mxu0 %v6593
    %v6837 = vpop.f32.mrf.mxu0
    %v6838 = vadd.f32 0.0, %v6837
    %v6839 = vpop.f32.mrf.mxu0
    %v6840 = vadd.f32 0.0, %v6839
    %v6841 = vpop.f32.mrf.mxu0
    %v6842 = vadd.f32 0.0, %v6841
    %v6843 = vpop.f32.mrf.mxu0
    %v6844 = vadd.f32 0.0, %v6843
    %6845 = vmatprep.mubr.bf16.mxu0 %v6596
    %6846 = vmatmul.mubr.bf16.gmra.mxu0 %v6595
    %v6847 = vpop.f32.mrf.mxu0
    %v6848 = vadd.f32 0.0, %v6847
    %v6849 = vpop.f32.mrf.mxu0
    %v6850 = vadd.f32 0.0, %v6849
    %v6851 = vpop.f32.mrf.mxu0
    %v6852 = vadd.f32 0.0, %v6851
    %v6853 = vpop.f32.mrf.mxu0
    %v6854 = vadd.f32 0.0, %v6853
    %6855 = vmatprep.mubr.bf16.mxu0 %v6598
    %6856 = vmatmul.mubr.bf16.gmra.mxu0 %v6597
    %v6857 = vpop.f32.mrf.mxu0
    %v6858 = vadd.f32 0.0, %v6857
    %v6859 = vpop.f32.mrf.mxu0
    %v6860 = vadd.f32 0.0, %v6859
    %v6861 = vpop.f32.mrf.mxu0
    %v6862 = vadd.f32 0.0, %v6861
    %v6863 = vpop.f32.mrf.mxu0
    %v6864 = vadd.f32 0.0, %v6863
    %6865 = vmatprep.mubr.bf16.mxu0 %v6600
    %6866 = vmatmul.mubr.bf16.gmra.mxu0 %v6599
    %v6867 = vpop.f32.mrf.mxu0
    %v6868 = vadd.f32 0.0, %v6867
    %v6869 = vpop.f32.mrf.mxu0
    %v6870 = vadd.f32 0.0, %v6869
    %v6871 = vpop.f32.mrf.mxu0
    %v6872 = vadd.f32 0.0, %v6871
    %v6873 = vpop.f32.mrf.mxu0
    %v6874 = vadd.f32 0.0, %v6873
    %6875 = vmatprep.mubr.bf16.mxu0 %v6602
    %6876 = vmatmul.mubr.bf16.gmra.mxu0 %v6601
    %v6877 = vpop.f32.mrf.mxu0
    %v6878 = vadd.f32 0.0, %v6877
    %v6879 = vpop.f32.mrf.mxu0
    %v6880 = vadd.f32 0.0, %v6879
    %v6881 = vpop.f32.mrf.mxu0
    %v6882 = vadd.f32 0.0, %v6881
    %v6883 = vpop.f32.mrf.mxu0
    %v6884 = vadd.f32 0.0, %v6883
    %6885 = vmatprep.mubr.bf16.mxu0 %v6604
    %6886 = vmatmul.mubr.bf16.gmra.mxu0 %v6603
    %v6887 = vpop.f32.mrf.mxu0
    %v6888 = vadd.f32 0.0, %v6887
    %v6889 = vpop.f32.mrf.mxu0
    %v6890 = vadd.f32 0.0, %v6889
    %v6891 = vpop.f32.mrf.mxu0
    %v6892 = vadd.f32 0.0, %v6891
    %v6893 = vpop.f32.mrf.mxu0
    %v6894 = vadd.f32 0.0, %v6893
    %6895 = vmatprep.mubr.bf16.mxu0 %v6606
    %6896 = vmatmul.mubr.bf16.gmra.mxu0 %v6605
    %v6897 = vpop.f32.mrf.mxu0
    %v6898 = vadd.f32 0.0, %v6897
    %v6899 = vpop.f32.mrf.mxu0
    %v6900 = vadd.f32 0.0, %v6899
    %v6901 = vpop.f32.mrf.mxu0
    %v6902 = vadd.f32 0.0, %v6901
    %v6903 = vpop.f32.mrf.mxu0
    %v6904 = vadd.f32 0.0, %v6903
    %6905 = vmatprep.mubr.bf16.mxu0 %v6608
    %6906 = vmatmul.mubr.bf16.gmra.mxu0 %v6607
    %v6907 = vpop.f32.mrf.mxu0
    %v6908 = vadd.f32 0.0, %v6907
    %v6909 = vpop.f32.mrf.mxu0
    %v6910 = vadd.f32 0.0, %v6909
    %v6911 = vpop.f32.mrf.mxu0
    %v6912 = vadd.f32 0.0, %v6911
    %v6913 = vpop.f32.mrf.mxu0
    %v6914 = vadd.f32 0.0, %v6913
    %6915 = vmatprep.mubr.bf16.mxu0 %v6610
    %6916 = vmatmul.mubr.bf16.gmra.mxu0 %v6609
    %v6917 = vpop.f32.mrf.mxu0
    %v6918 = vadd.f32 0.0, %v6917
    %v6919 = vpop.f32.mrf.mxu0
    %v6920 = vadd.f32 0.0, %v6919
    %v6921 = vpop.f32.mrf.mxu0
    %v6922 = vadd.f32 0.0, %v6921
    %v6923 = vpop.f32.mrf.mxu0
    %v6924 = vadd.f32 0.0, %v6923
    %6925 = vmatprep.mubr.bf16.mxu0 %v6612
    %6926 = vmatmul.mubr.bf16.gmra.mxu0 %v6611
    %v6927 = vpop.f32.mrf.mxu0
    %v6928 = vadd.f32 0.0, %v6927
    %v6929 = vpop.f32.mrf.mxu0
    %v6930 = vadd.f32 0.0, %v6929
    %v6931 = vpop.f32.mrf.mxu0
    %v6932 = vadd.f32 0.0, %v6931
    %v6933 = vpop.f32.mrf.mxu0
    %v6934 = vadd.f32 0.0, %v6933
    %6935 = vmatprep.mubr.bf16.mxu0 %v6614
    %6936 = vmatmul.mubr.bf16.gmra.mxu0 %v6613
    %v6937 = vpop.f32.mrf.mxu0
    %v6938 = vadd.f32 0.0, %v6937
    %v6939 = vpop.f32.mrf.mxu0
    %v6940 = vadd.f32 0.0, %v6939
    %v6941 = vpop.f32.mrf.mxu0
    %v6942 = vadd.f32 0.0, %v6941
    %v6943 = vpop.f32.mrf.mxu0
    %v6944 = vadd.f32 0.0, %v6943
    %6945 = vmatprep.mubr.bf16.mxu0 %v6616
    %6946 = vmatmul.mubr.bf16.gmra.mxu0 %v6615
    %v6947 = vpop.f32.mrf.mxu0
    %v6948 = vadd.f32 0.0, %v6947
    %v6949 = vpop.f32.mrf.mxu0
    %v6950 = vadd.f32 0.0, %v6949
    %v6951 = vpop.f32.mrf.mxu0
    %v6952 = vadd.f32 0.0, %v6951
    %v6953 = vpop.f32.mrf.mxu0
    %v6954 = vadd.f32 0.0, %v6953
    %6955 = vmatprep.mubr.bf16.mxu0 %v6618
    %6956 = vmatmul.mubr.bf16.gmra.mxu0 %v6617
    %v6957 = vpop.f32.mrf.mxu0
    %v6958 = vadd.f32 0.0, %v6957
    %v6959 = vpop.f32.mrf.mxu0
    %v6960 = vadd.f32 0.0, %v6959
    %v6961 = vpop.f32.mrf.mxu0
    %v6962 = vadd.f32 0.0, %v6961
    %v6963 = vpop.f32.mrf.mxu0
    %v6964 = vadd.f32 0.0, %v6963
    %6965 = vdwg.mxu0
    %v6966 = vmul.f32 %v6808, %v6808
    %v6967 = vmul.f32 %v6810, %v6810
    %v6968 = vmul.f32 %v6812, %v6812
    %v6969 = vmul.f32 %v6814, %v6814
    %v6970 = vmul.f32 %v6818, %v6818
    %v6971 = vmul.f32 %v6820, %v6820
    %v6972 = vmul.f32 %v6822, %v6822
    %v6973 = vmul.f32 %v6824, %v6824
    %v6974 = vmul.f32 %v6828, %v6828
    %v6975 = vmul.f32 %v6830, %v6830
    %v6976 = vmul.f32 %v6832, %v6832
    %v6977 = vmul.f32 %v6834, %v6834
    %v6978 = vmul.f32 %v6838, %v6838
    %v6979 = vmul.f32 %v6840, %v6840
    %v6980 = vmul.f32 %v6842, %v6842
    %v6981 = vmul.f32 %v6844, %v6844
    %v6982 = vmul.f32 %v6848, %v6848
    %v6983 = vmul.f32 %v6850, %v6850
    %v6984 = vmul.f32 %v6852, %v6852
    %v6985 = vmul.f32 %v6854, %v6854
    %v6986 = vmul.f32 %v6858, %v6858
    %v6987 = vmul.f32 %v6860, %v6860
    %v6988 = vmul.f32 %v6862, %v6862
    %v6989 = vmul.f32 %v6864, %v6864
    %v6990 = vmul.f32 %v6868, %v6868
    %v6991 = vmul.f32 %v6870, %v6870
    %v6992 = vmul.f32 %v6872, %v6872
    %v6993 = vmul.f32 %v6874, %v6874
    %v6994 = vmul.f32 %v6878, %v6878
    %v6995 = vmul.f32 %v6880, %v6880
    %v6996 = vmul.f32 %v6882, %v6882
    %v6997 = vmul.f32 %v6884, %v6884
    %v6998 = vmul.f32 %v6888, %v6888
    %v6999 = vmul.f32 %v6890, %v6890
    %v7000 = vmul.f32 %v6892, %v6892
    %v7001 = vmul.f32 %v6894, %v6894
    %v7002 = vmul.f32 %v6898, %v6898
    %v7003 = vmul.f32 %v6900, %v6900
    %v7004 = vmul.f32 %v6902, %v6902
    %v7005 = vmul.f32 %v6904, %v6904
    %v7006 = vmul.f32 %v6908, %v6908
    %v7007 = vmul.f32 %v6910, %v6910
    %v7008 = vmul.f32 %v6912, %v6912
    %v7009 = vmul.f32 %v6914, %v6914
    %v7010 = vmul.f32 %v6918, %v6918
    %v7011 = vmul.f32 %v6920, %v6920
    %v7012 = vmul.f32 %v6922, %v6922
    %v7013 = vmul.f32 %v6924, %v6924
    %v7014 = vmul.f32 %v6928, %v6928
    %v7015 = vmul.f32 %v6930, %v6930
    %v7016 = vmul.f32 %v6932, %v6932
    %v7017 = vmul.f32 %v6934, %v6934
    %v7018 = vmul.f32 %v6938, %v6938
    %v7019 = vmul.f32 %v6940, %v6940
    %v7020 = vmul.f32 %v6942, %v6942
    %v7021 = vmul.f32 %v6944, %v6944
    %v7022 = vmul.f32 %v6948, %v6948
    %v7023 = vmul.f32 %v6950, %v6950
    %v7024 = vmul.f32 %v6952, %v6952
    %v7025 = vmul.f32 %v6954, %v6954
    %v7026 = vmul.f32 %v6958, %v6958
    %v7027 = vmul.f32 %v6960, %v6960
    %v7028 = vmul.f32 %v6962, %v6962
    %v7029 = vmul.f32 %v6964, %v6964
    %v7030 = vadd.f32 %v6966, %v6967
    %v7031 = vadd.f32 %v7030, %v6968
    %v7032 = vadd.f32 %v7031, %v6969
    %v7033 = vadd.f32 %v7032, %v6970
    %v7034 = vadd.f32 %v7033, %v6971
    %v7035 = vadd.f32 %v7034, %v6972
    %v7036 = vadd.f32 %v7035, %v6973
    %v7037 = vadd.f32 %v7036, %v6974
    %v7038 = vadd.f32 %v7037, %v6975
    %v7039 = vadd.f32 %v7038, %v6976
    %v7040 = vadd.f32 %v7039, %v6977
    %v7041 = vadd.f32 %v7040, %v6978
    %v7042 = vadd.f32 %v7041, %v6979
    %v7043 = vadd.f32 %v7042, %v6980
    %v7044 = vadd.f32 %v7043, %v6981
    %v7045 = vadd.f32 %v7044, %v6982
    %v7046 = vadd.f32 %v7045, %v6983
    %v7047 = vadd.f32 %v7046, %v6984
    %v7048 = vadd.f32 %v7047, %v6985
    %v7049 = vadd.f32 %v7048, %v6986
    %v7050 = vadd.f32 %v7049, %v6987
    %v7051 = vadd.f32 %v7050, %v6988
    %v7052 = vadd.f32 %v7051, %v6989
    %v7053 = vadd.f32 %v7052, %v6990
    %v7054 = vadd.f32 %v7053, %v6991
    %v7055 = vadd.f32 %v7054, %v6992
    %v7056 = vadd.f32 %v7055, %v6993
    %v7057 = vadd.f32 %v7056, %v6994
    %v7058 = vadd.f32 %v7057, %v6995
    %v7059 = vadd.f32 %v7058, %v6996
    %v7060 = vadd.f32 %v7059, %v6997
    %v7061 = vadd.f32 %v7060, %v6998
    %v7062 = vadd.f32 %v7061, %v6999
    %v7063 = vadd.f32 %v7062, %v7000
    %v7064 = vadd.f32 %v7063, %v7001
    %v7065 = vadd.f32 %v7064, %v7002
    %v7066 = vadd.f32 %v7065, %v7003
    %v7067 = vadd.f32 %v7066, %v7004
    %v7068 = vadd.f32 %v7067, %v7005
    %v7069 = vadd.f32 %v7068, %v7006
    %v7070 = vadd.f32 %v7069, %v7007
    %v7071 = vadd.f32 %v7070, %v7008
    %v7072 = vadd.f32 %v7071, %v7009
    %v7073 = vadd.f32 %v7072, %v7010
    %v7074 = vadd.f32 %v7073, %v7011
    %v7075 = vadd.f32 %v7074, %v7012
    %v7076 = vadd.f32 %v7075, %v7013
    %v7077 = vadd.f32 %v7076, %v7014
    %v7078 = vadd.f32 %v7077, %v7015
    %v7079 = vadd.f32 %v7078, %v7016
    %v7080 = vadd.f32 %v7079, %v7017
    %v7081 = vadd.f32 %v7080, %v7018
    %v7082 = vadd.f32 %v7081, %v7019
    %v7083 = vadd.f32 %v7082, %v7020
    %v7084 = vadd.f32 %v7083, %v7021
    %v7085 = vadd.f32 %v7084, %v7022
    %v7086 = vadd.f32 %v7085, %v7023
    %v7087 = vadd.f32 %v7086, %v7024
    %v7088 = vadd.f32 %v7087, %v7025
    %v7089 = vadd.f32 %v7088, %v7026
    %v7090 = vadd.f32 %v7089, %v7027
    %v7091 = vadd.f32 %v7090, %v7028
    %v7092 = vadd.f32 %v7091, %v7029
    %7093 = vadd.xlane.f32.xlu0 %v7092
    %v7094 = vpop.xlane.xlu0 %7093
    %v7095 = vrot.slane %v7094, 4
    %v7096 = vadd.f32 %v7094, %v7095
    %v7097 = vrot.slane %v7096, 2
    %v7098 = vadd.f32 %v7096, %v7097
    %v7099 = vrot.slane %v7098, 1
    %v7100 = vadd.f32 %v7098, %v7099
    %s7101 = vtos %v7100
    %v7102 = vstv %s7101
    %v7103 = vadd.f32 %v7102, 1e-30
    %v7104 = vrsqrt.pop %v7103
    %v7105 = vmul.f32 %v6808, %v7104
    %v7106 = vmul.f32 %v6810, %v7104
    %v7107 = vmul.f32 %v6812, %v7104
    %v7108 = vmul.f32 %v6814, %v7104
    %v7109 = vmul.f32 %v6818, %v7104
    %v7110 = vmul.f32 %v6820, %v7104
    %v7111 = vmul.f32 %v6822, %v7104
    %v7112 = vmul.f32 %v6824, %v7104
    %v7113 = vmul.f32 %v6828, %v7104
    %v7114 = vmul.f32 %v6830, %v7104
    %v7115 = vmul.f32 %v6832, %v7104
    %v7116 = vmul.f32 %v6834, %v7104
    %v7117 = vmul.f32 %v6838, %v7104
    %v7118 = vmul.f32 %v6840, %v7104
    %v7119 = vmul.f32 %v6842, %v7104
    %v7120 = vmul.f32 %v6844, %v7104
    %v7121 = vmul.f32 %v6848, %v7104
    %v7122 = vmul.f32 %v6850, %v7104
    %v7123 = vmul.f32 %v6852, %v7104
    %v7124 = vmul.f32 %v6854, %v7104
    %v7125 = vmul.f32 %v6858, %v7104
    %v7126 = vmul.f32 %v6860, %v7104
    %v7127 = vmul.f32 %v6862, %v7104
    %v7128 = vmul.f32 %v6864, %v7104
    %v7129 = vmul.f32 %v6868, %v7104
    %v7130 = vmul.f32 %v6870, %v7104
    %v7131 = vmul.f32 %v6872, %v7104
    %v7132 = vmul.f32 %v6874, %v7104
    %v7133 = vmul.f32 %v6878, %v7104
    %v7134 = vmul.f32 %v6880, %v7104
    %v7135 = vmul.f32 %v6882, %v7104
    %v7136 = vmul.f32 %v6884, %v7104
    %v7137 = vmul.f32 %v6888, %v7104
    %v7138 = vmul.f32 %v6890, %v7104
    %v7139 = vmul.f32 %v6892, %v7104
    %v7140 = vmul.f32 %v6894, %v7104
    %v7141 = vmul.f32 %v6898, %v7104
    %v7142 = vmul.f32 %v6900, %v7104
    %v7143 = vmul.f32 %v6902, %v7104
    %v7144 = vmul.f32 %v6904, %v7104
    %v7145 = vmul.f32 %v6908, %v7104
    %v7146 = vmul.f32 %v6910, %v7104
    %v7147 = vmul.f32 %v6912, %v7104
    %v7148 = vmul.f32 %v6914, %v7104
    %v7149 = vmul.f32 %v6918, %v7104
    %v7150 = vmul.f32 %v6920, %v7104
    %v7151 = vmul.f32 %v6922, %v7104
    %v7152 = vmul.f32 %v6924, %v7104
    %v7153 = vmul.f32 %v6928, %v7104
    %v7154 = vmul.f32 %v6930, %v7104
    %v7155 = vmul.f32 %v6932, %v7104
    %v7156 = vmul.f32 %v6934, %v7104
    %v7157 = vmul.f32 %v6938, %v7104
    %v7158 = vmul.f32 %v6940, %v7104
    %v7159 = vmul.f32 %v6942, %v7104
    %v7160 = vmul.f32 %v6944, %v7104
    %v7161 = vmul.f32 %v6948, %v7104
    %v7162 = vmul.f32 %v6950, %v7104
    %v7163 = vmul.f32 %v6952, %v7104
    %v7164 = vmul.f32 %v6954, %v7104
    %v7165 = vmul.f32 %v6958, %v7104
    %v7166 = vmul.f32 %v6960, %v7104
    %v7167 = vmul.f32 %v6962, %v7104
    %v7168 = vmul.f32 %v6964, %v7104
    %v7169 = vpack.c.bf16 %v7107, %v7105
    %v7170 = vpack.c.bf16 %v7108, %v7106
    %v7171 = vpack.c.bf16 %v7111, %v7109
    %v7172 = vpack.c.bf16 %v7112, %v7110
    %v7173 = vpack.c.bf16 %v7115, %v7113
    %v7174 = vpack.c.bf16 %v7116, %v7114
    %v7175 = vpack.c.bf16 %v7119, %v7117
    %v7176 = vpack.c.bf16 %v7120, %v7118
    %v7177 = vpack.c.bf16 %v7123, %v7121
    %v7178 = vpack.c.bf16 %v7124, %v7122
    %v7179 = vpack.c.bf16 %v7127, %v7125
    %v7180 = vpack.c.bf16 %v7128, %v7126
    %v7181 = vpack.c.bf16 %v7131, %v7129
    %v7182 = vpack.c.bf16 %v7132, %v7130
    %v7183 = vpack.c.bf16 %v7135, %v7133
    %v7184 = vpack.c.bf16 %v7136, %v7134
    %v7185 = vpack.c.bf16 %v7139, %v7137
    %v7186 = vpack.c.bf16 %v7140, %v7138
    %v7187 = vpack.c.bf16 %v7143, %v7141
    %v7188 = vpack.c.bf16 %v7144, %v7142
    %v7189 = vpack.c.bf16 %v7147, %v7145
    %v7190 = vpack.c.bf16 %v7148, %v7146
    %v7191 = vpack.c.bf16 %v7151, %v7149
    %v7192 = vpack.c.bf16 %v7152, %v7150
    %v7193 = vpack.c.bf16 %v7155, %v7153
    %v7194 = vpack.c.bf16 %v7156, %v7154
    %v7195 = vpack.c.bf16 %v7159, %v7157
    %v7196 = vpack.c.bf16 %v7160, %v7158
    %v7197 = vpack.c.bf16 %v7163, %v7161
    %v7198 = vpack.c.bf16 %v7164, %v7162
    %v7199 = vpack.c.bf16 %v7167, %v7165
    %v7200 = vpack.c.bf16 %v7168, %v7166
    %v7233 = vunpack.c.l.b16 %v7169
    %v7234 = vunpack.c.l.b16 %v7170
    %v7235 = vunpack.c.h.b16 %v7169
    %v7236 = vunpack.c.h.b16 %v7170
    %v7237 = vunpack.c.l.b16 %v7171
    %v7238 = vunpack.c.l.b16 %v7172
    %v7239 = vunpack.c.h.b16 %v7171
    %v7240 = vunpack.c.h.b16 %v7172
    %v7241 = vunpack.c.l.b16 %v7173
    %v7242 = vunpack.c.l.b16 %v7174
    %v7243 = vunpack.c.h.b16 %v7173
    %v7244 = vunpack.c.h.b16 %v7174
    %v7245 = vunpack.c.l.b16 %v7175
    %v7246 = vunpack.c.l.b16 %v7176
    %v7247 = vunpack.c.h.b16 %v7175
    %v7248 = vunpack.c.h.b16 %v7176
    %v7249 = vunpack.c.l.b16 %v7177
    %v7250 = vunpack.c.l.b16 %v7178
    %v7251 = vunpack.c.h.b16 %v7177
    %v7252 = vunpack.c.h.b16 %v7178
    %v7253 = vunpack.c.l.b16 %v7179
    %v7254 = vunpack.c.l.b16 %v7180
    %v7255 = vunpack.c.h.b16 %v7179
    %v7256 = vunpack.c.h.b16 %v7180
    %v7257 = vunpack.c.l.b16 %v7181
    %v7258 = vunpack.c.l.b16 %v7182
    %v7259 = vunpack.c.h.b16 %v7181
    %v7260 = vunpack.c.h.b16 %v7182
    %v7261 = vunpack.c.l.b16 %v7183
    %v7262 = vunpack.c.l.b16 %v7184
    %v7263 = vunpack.c.h.b16 %v7183
    %v7264 = vunpack.c.h.b16 %v7184
    %v7265 = vunpack.c.l.b16 %v7185
    %v7266 = vunpack.c.l.b16 %v7186
    %v7267 = vunpack.c.h.b16 %v7185
    %v7268 = vunpack.c.h.b16 %v7186
    %v7269 = vunpack.c.l.b16 %v7187
    %v7270 = vunpack.c.l.b16 %v7188
    %v7271 = vunpack.c.h.b16 %v7187
    %v7272 = vunpack.c.h.b16 %v7188
    %v7273 = vunpack.c.l.b16 %v7189
    %v7274 = vunpack.c.l.b16 %v7190
    %v7275 = vunpack.c.h.b16 %v7189
    %v7276 = vunpack.c.h.b16 %v7190
    %v7277 = vunpack.c.l.b16 %v7191
    %v7278 = vunpack.c.l.b16 %v7192
    %v7279 = vunpack.c.h.b16 %v7191
    %v7280 = vunpack.c.h.b16 %v7192
    %v7281 = vunpack.c.l.b16 %v7193
    %v7282 = vunpack.c.l.b16 %v7194
    %v7283 = vunpack.c.h.b16 %v7193
    %v7284 = vunpack.c.h.b16 %v7194
    %v7285 = vunpack.c.l.b16 %v7195
    %v7286 = vunpack.c.l.b16 %v7196
    %v7287 = vunpack.c.h.b16 %v7195
    %v7288 = vunpack.c.h.b16 %v7196
    %v7289 = vunpack.c.l.b16 %v7197
    %v7290 = vunpack.c.l.b16 %v7198
    %v7291 = vunpack.c.h.b16 %v7197
    %v7292 = vunpack.c.h.b16 %v7198
    %v7293 = vunpack.c.l.b16 %v7199
    %v7294 = vunpack.c.l.b16 %v7200
    %v7295 = vunpack.c.h.b16 %v7199
    %v7296 = vunpack.c.h.b16 %v7200
    %v7297 = vpack.c.b16 %v7234, %v7233
    %v7298 = vpack.c.b16 %v7236, %v7235
    %v7299 = vpack.c.b16 %v7238, %v7237
    %v7300 = vpack.c.b16 %v7240, %v7239
    %v7301 = vpack.c.b16 %v7242, %v7241
    %v7302 = vpack.c.b16 %v7244, %v7243
    %v7303 = vpack.c.b16 %v7246, %v7245
    %v7304 = vpack.c.b16 %v7248, %v7247
    %v7305 = vpack.c.b16 %v7250, %v7249
    %v7306 = vpack.c.b16 %v7252, %v7251
    %v7307 = vpack.c.b16 %v7254, %v7253
    %v7308 = vpack.c.b16 %v7256, %v7255
    %v7309 = vpack.c.b16 %v7258, %v7257
    %v7310 = vpack.c.b16 %v7260, %v7259
    %v7311 = vpack.c.b16 %v7262, %v7261
    %v7312 = vpack.c.b16 %v7264, %v7263
    %v7313 = vpack.c.b16 %v7266, %v7265
    %v7314 = vpack.c.b16 %v7268, %v7267
    %v7315 = vpack.c.b16 %v7270, %v7269
    %v7316 = vpack.c.b16 %v7272, %v7271
    %v7317 = vpack.c.b16 %v7274, %v7273
    %v7318 = vpack.c.b16 %v7276, %v7275
    %v7319 = vpack.c.b16 %v7278, %v7277
    %v7320 = vpack.c.b16 %v7280, %v7279
    %v7321 = vpack.c.b16 %v7282, %v7281
    %v7322 = vpack.c.b16 %v7284, %v7283
    %v7323 = vpack.c.b16 %v7286, %v7285
    %v7324 = vpack.c.b16 %v7288, %v7287
    %v7325 = vpack.c.b16 %v7290, %v7289
    %v7326 = vpack.c.b16 %v7292, %v7291
    %v7327 = vpack.c.b16 %v7294, %v7293
    %v7328 = vpack.c.b16 %v7296, %v7295
    %7361 = vst [vmem:[#allocation3] sm:$0xff] %v7297
    %7362 = vst [vmem:[#allocation3 + $0x8] sm:$0xff] %v7298
    %7363 = vst [vmem:[#allocation3 + $0x10] sm:$0xff] %v7299
    %7364 = vst [vmem:[#allocation3 + $0x18] sm:$0xff] %v7300
    %7365 = vst [vmem:[#allocation3 + $0x20] sm:$0xff] %v7301
    %7366 = vst [vmem:[#allocation3 + $0x28] sm:$0xff] %v7302
    %7367 = vst [vmem:[#allocation3 + $0x30] sm:$0xff] %v7303
    %7368 = vst [vmem:[#allocation3 + $0x38] sm:$0xff] %v7304
    %7369 = vst [vmem:[#allocation3 + $0x40] sm:$0xff] %v7305
    %7370 = vst [vmem:[#allocation3 + $0x48] sm:$0xff] %v7306
    %7371 = vst [vmem:[#allocation3 + $0x50] sm:$0xff] %v7307
    %7372 = vst [vmem:[#allocation3 + $0x58] sm:$0xff] %v7308
    %7373 = vst [vmem:[#allocation3 + $0x60] sm:$0xff] %v7309
    %7374 = vst [vmem:[#allocation3 + $0x68] sm:$0xff] %v7310
    %7375 = vst [vmem:[#allocation3 + $0x70] sm:$0xff] %v7311
    %7376 = vst [vmem:[#allocation3 + $0x78] sm:$0xff] %v7312
    %7377 = vst [vmem:[#allocation3 + $0x80] sm:$0xff] %v7313
    %7378 = vst [vmem:[#allocation3 + $0x88] sm:$0xff] %v7314
    %7379 = vst [vmem:[#allocation3 + $0x90] sm:$0xff] %v7315
    %7380 = vst [vmem:[#allocation3 + $0x98] sm:$0xff] %v7316
    %7381 = vst [vmem:[#allocation3 + $0xa0] sm:$0xff] %v7317
    %7382 = vst [vmem:[#allocation3 + $0xa8] sm:$0xff] %v7318
    %7383 = vst [vmem:[#allocation3 + $0xb0] sm:$0xff] %v7319
    %7384 = vst [vmem:[#allocation3 + $0xb8] sm:$0xff] %v7320
    %7385 = vst [vmem:[#allocation3 + $0xc0] sm:$0xff] %v7321
    %7386 = vst [vmem:[#allocation3 + $0xc8] sm:$0xff] %v7322
    %7387 = vst [vmem:[#allocation3 + $0xd0] sm:$0xff] %v7323
    %7388 = vst [vmem:[#allocation3 + $0xd8] sm:$0xff] %v7324
    %7389 = vst [vmem:[#allocation3 + $0xe0] sm:$0xff] %v7325
    %7390 = vst [vmem:[#allocation3 + $0xe8] sm:$0xff] %v7326
    %7391 = vst [vmem:[#allocation3 + $0xf0] sm:$0xff] %v7327
    %7392 = vst [vmem:[#allocation3 + $0xf8] sm:$0xff] %v7328
    %v7393 = vld [vmem:[#allocation3] sm:$0xff]
    %v7394 = vld [vmem:[#allocation3 + $0x8] sm:$0xff]
    %v7395 = vld [vmem:[#allocation3 + $0x10] sm:$0xff]
    %v7396 = vld [vmem:[#allocation3 + $0x18] sm:$0xff]
    %v7397 = vld [vmem:[#allocation3 + $0x20] sm:$0xff]
    %v7398 = vld [vmem:[#allocation3 + $0x28] sm:$0xff]
    %v7399 = vld [vmem:[#allocation3 + $0x30] sm:$0xff]
    %v7400 = vld [vmem:[#allocation3 + $0x38] sm:$0xff]
    %v7401 = vld [vmem:[#allocation3 + $0x40] sm:$0xff]
    %v7402 = vld [vmem:[#allocation3 + $0x48] sm:$0xff]
    %v7403 = vld [vmem:[#allocation3 + $0x50] sm:$0xff]
    %v7404 = vld [vmem:[#allocation3 + $0x58] sm:$0xff]
    %v7405 = vld [vmem:[#allocation3 + $0x60] sm:$0xff]
    %v7406 = vld [vmem:[#allocation3 + $0x68] sm:$0xff]
    %v7407 = vld [vmem:[#allocation3 + $0x70] sm:$0xff]
    %v7408 = vld [vmem:[#allocation3 + $0x78] sm:$0xff]
    %v7409 = vld [vmem:[#allocation3 + $0x80] sm:$0xff]
    %v7410 = vld [vmem:[#allocation3 + $0x88] sm:$0xff]
    %v7411 = vld [vmem:[#allocation3 + $0x90] sm:$0xff]
    %v7412 = vld [vmem:[#allocation3 + $0x98] sm:$0xff]
    %v7413 = vld [vmem:[#allocation3 + $0xa0] sm:$0xff]
    %v7414 = vld [vmem:[#allocation3 + $0xa8] sm:$0xff]
    %v7415 = vld [vmem:[#allocation3 + $0xb0] sm:$0xff]
    %v7416 = vld [vmem:[#allocation3 + $0xb8] sm:$0xff]
    %v7417 = vld [vmem:[#allocation3 + $0xc0] sm:$0xff]
    %v7418 = vld [vmem:[#allocation3 + $0xc8] sm:$0xff]
    %v7419 = vld [vmem:[#allocation3 + $0xd0] sm:$0xff]
    %v7420 = vld [vmem:[#allocation3 + $0xd8] sm:$0xff]
    %v7421 = vld [vmem:[#allocation3 + $0xe0] sm:$0xff]
    %v7422 = vld [vmem:[#allocation3 + $0xe8] sm:$0xff]
    %v7423 = vld [vmem:[#allocation3 + $0xf0] sm:$0xff]
    %v7424 = vld [vmem:[#allocation3 + $0xf8] sm:$0xff]
    %v7425 = vpack.c.bf16 %v6752, %v6752
    %v7426 = vpack.c.bf16 %v6753, %v6753
    %v7459 = vunpack.c.l.b16 %v7393
    %v7460 = vunpack.c.h.b16 %v7393
    %v7461 = vunpack.c.l.b16 %v7394
    %v7462 = vunpack.c.h.b16 %v7394
    %v7463 = vunpack.c.l.b16 %v7395
    %v7464 = vunpack.c.h.b16 %v7395
    %v7465 = vunpack.c.l.b16 %v7396
    %v7466 = vunpack.c.h.b16 %v7396
    %v7467 = vunpack.c.l.b16 %v7397
    %v7468 = vunpack.c.h.b16 %v7397
    %v7469 = vunpack.c.l.b16 %v7398
    %v7470 = vunpack.c.h.b16 %v7398
    %v7471 = vunpack.c.l.b16 %v7399
    %v7472 = vunpack.c.h.b16 %v7399
    %v7473 = vunpack.c.l.b16 %v7400
    %v7474 = vunpack.c.h.b16 %v7400
    %v7475 = vunpack.c.l.b16 %v7401
    %v7476 = vunpack.c.h.b16 %v7401
    %v7477 = vunpack.c.l.b16 %v7402
    %v7478 = vunpack.c.h.b16 %v7402
    %v7479 = vunpack.c.l.b16 %v7403
    %v7480 = vunpack.c.h.b16 %v7403
    %v7481 = vunpack.c.l.b16 %v7404
    %v7482 = vunpack.c.h.b16 %v7404
    %v7483 = vunpack.c.l.b16 %v7405
    %v7484 = vunpack.c.h.b16 %v7405
    %v7485 = vunpack.c.l.b16 %v7406
    %v7486 = vunpack.c.h.b16 %v7406
    %v7487 = vunpack.c.l.b16 %v7407
    %v7488 = vunpack.c.h.b16 %v7407
    %v7489 = vunpack.c.l.b16 %v7408
    %v7490 = vunpack.c.h.b16 %v7408
    %v7491 = vunpack.c.l.b16 %v7409
    %v7492 = vunpack.c.h.b16 %v7409
    %v7493 = vunpack.c.l.b16 %v7410
    %v7494 = vunpack.c.h.b16 %v7410
    %v7495 = vunpack.c.l.b16 %v7411
    %v7496 = vunpack.c.h.b16 %v7411
    %v7497 = vunpack.c.l.b16 %v7412
    %v7498 = vunpack.c.h.b16 %v7412
    %v7499 = vunpack.c.l.b16 %v7413
    %v7500 = vunpack.c.h.b16 %v7413
    %v7501 = vunpack.c.l.b16 %v7414
    %v7502 = vunpack.c.h.b16 %v7414
    %v7503 = vunpack.c.l.b16 %v7415
    %v7504 = vunpack.c.h.b16 %v7415
    %v7505 = vunpack.c.l.b16 %v7416
    %v7506 = vunpack.c.h.b16 %v7416
    %v7507 = vunpack.c.l.b16 %v7417
    %v7508 = vunpack.c.h.b16 %v7417
    %v7509 = vunpack.c.l.b16 %v7418
    %v7510 = vunpack.c.h.b16 %v7418
    %v7511 = vunpack.c.l.b16 %v7419
    %v7512 = vunpack.c.h.b16 %v7419
    %v7513 = vunpack.c.l.b16 %v7420
    %v7514 = vunpack.c.h.b16 %v7420
    %v7515 = vunpack.c.l.b16 %v7421
    %v7516 = vunpack.c.h.b16 %v7421
    %v7517 = vunpack.c.l.b16 %v7422
    %v7518 = vunpack.c.h.b16 %v7422
    %v7519 = vunpack.c.l.b16 %v7423
    %v7520 = vunpack.c.h.b16 %v7423
    %v7521 = vunpack.c.l.b16 %v7424
    %v7522 = vunpack.c.h.b16 %v7424
    %v7523 = vpack.c.b16 %v7461, %v7459
    %v7524 = vpack.c.b16 %v7462, %v7460
    %v7525 = vpack.c.b16 %v7465, %v7463
    %v7526 = vpack.c.b16 %v7466, %v7464
    %v7527 = vpack.c.b16 %v7469, %v7467
    %v7528 = vpack.c.b16 %v7470, %v7468
    %v7529 = vpack.c.b16 %v7473, %v7471
    %v7530 = vpack.c.b16 %v7474, %v7472
    %v7531 = vpack.c.b16 %v7477, %v7475
    %v7532 = vpack.c.b16 %v7478, %v7476
    %v7533 = vpack.c.b16 %v7481, %v7479
    %v7534 = vpack.c.b16 %v7482, %v7480
    %v7535 = vpack.c.b16 %v7485, %v7483
    %v7536 = vpack.c.b16 %v7486, %v7484
    %v7537 = vpack.c.b16 %v7489, %v7487
    %v7538 = vpack.c.b16 %v7490, %v7488
    %v7539 = vpack.c.b16 %v7493, %v7491
    %v7540 = vpack.c.b16 %v7494, %v7492
    %v7541 = vpack.c.b16 %v7497, %v7495
    %v7542 = vpack.c.b16 %v7498, %v7496
    %v7543 = vpack.c.b16 %v7501, %v7499
    %v7544 = vpack.c.b16 %v7502, %v7500
    %v7545 = vpack.c.b16 %v7505, %v7503
    %v7546 = vpack.c.b16 %v7506, %v7504
    %v7547 = vpack.c.b16 %v7509, %v7507
    %v7548 = vpack.c.b16 %v7510, %v7508
    %v7549 = vpack.c.b16 %v7513, %v7511
    %v7550 = vpack.c.b16 %v7514, %v7512
    %v7551 = vpack.c.b16 %v7517, %v7515
    %v7552 = vpack.c.b16 %v7518, %v7516
    %v7553 = vpack.c.b16 %v7521, %v7519
    %v7554 = vpack.c.b16 %v7522, %v7520
    %7587 = vmatprep.subr.bf16.mxu0 %v7538
    %7588 = vmatpush1.bf16.xpose.msra.mxu0 %v7537
    %7589 = vmatprep.subr.bf16.mxu0 %v7536
    %7590 = vmatpush1.bf16.xpose.msra.mxu0 %v7535
    %7591 = vmatprep.subr.bf16.mxu0 %v7534
    %7592 = vmatpush1.bf16.xpose.msra.mxu0 %v7533
    %7593 = vmatprep.subr.bf16.mxu0 %v7532
    %7594 = vmatpush1.bf16.xpose.msra.mxu0 %v7531
    %7595 = vmatprep.subr.bf16.mxu0 %v7530
    %7596 = vmatpush1.bf16.xpose.msra.mxu0 %v7529
    %7597 = vmatprep.subr.bf16.mxu0 %v7528
    %7598 = vmatpush1.bf16.xpose.msra.mxu0 %v7527
    %7599 = vmatprep.subr.bf16.mxu0 %v7526
    %7600 = vmatpush1.bf16.xpose.msra.mxu0 %v7525
    %7601 = vmatprep.subr.bf16.mxu0 %v7524
    %7602 = vmatpush1.bf16.xpose.msra.mxu0 %v7523
    %7603 = vmatprep.subr.bf16.mxu0 %v7554
    %7604 = vmatpush2.bf16.xpose.msra.mxu0 %v7553
    %7605 = vmatprep.subr.bf16.mxu0 %v7552
    %7606 = vmatpush2.bf16.xpose.msra.mxu0 %v7551
    %7607 = vmatprep.subr.bf16.mxu0 %v7550
    %7608 = vmatpush2.bf16.xpose.msra.mxu0 %v7549
    %7609 = vmatprep.subr.bf16.mxu0 %v7548
    %7610 = vmatpush2.bf16.xpose.msra.mxu0 %v7547
    %7611 = vmatprep.subr.bf16.mxu0 %v7546
    %7612 = vmatpush2.bf16.xpose.msra.mxu0 %v7545
    %7613 = vmatprep.subr.bf16.mxu0 %v7544
    %7614 = vmatpush2.bf16.xpose.msra.mxu0 %v7543
    %7615 = vmatprep.subr.bf16.mxu0 %v7542
    %7616 = vmatpush2.bf16.xpose.msra.mxu0 %v7541
    %7617 = vmatprep.subr.bf16.mxu0 %v7540
    %7618 = vmatpush2.bf16.xpose.msra.mxu0 %v7539
    %7619 = vmatprep.mubr.bf16.mxu0 %v7426
    %7620 = vmatmul.mubr.bf16.gmra.mxu0 %v7425
    %v7621 = vpop.f32.mrf.mxu0
    %v7622 = vadd.f32 0.0, %v7621
    %v7623 = vpop.f32.mrf.mxu0
    %v7624 = vadd.f32 0.0, %v7623
    %v7625 = vpop.f32.mrf.mxu0
    %v7626 = vpop.f32.mrf.mxu0
    %7627 = vdwg.mxu0
    %v7628 = vpack.c.bf16 %v6771, %v6771
    %v7629 = vpack.c.bf16 %v6772, %v6772
    %7630 = vmatprep.subr.bf16.mxu0 %v7538
    %7631 = vmatpush1.bf16.msra.mxu0 %v7537
    %7632 = vmatprep.subr.bf16.mxu0 %v7536
    %7633 = vmatpush1.bf16.msra.mxu0 %v7535
    %7634 = vmatprep.subr.bf16.mxu0 %v7534
    %7635 = vmatpush1.bf16.msra.mxu0 %v7533
    %7636 = vmatprep.subr.bf16.mxu0 %v7532
    %7637 = vmatpush1.bf16.msra.mxu0 %v7531
    %7638 = vmatprep.subr.bf16.mxu0 %v7530
    %7639 = vmatpush1.bf16.msra.mxu0 %v7529
    %7640 = vmatprep.subr.bf16.mxu0 %v7528
    %7641 = vmatpush1.bf16.msra.mxu0 %v7527
    %7642 = vmatprep.subr.bf16.mxu0 %v7526
    %7643 = vmatpush1.bf16.msra.mxu0 %v7525
    %7644 = vmatprep.subr.bf16.mxu0 %v7524
    %7645 = vmatpush1.bf16.msra.mxu0 %v7523
    %7646 = vmatprep.subr.bf16.mxu0 %v7554
    %7647 = vmatpush2.bf16.msra.mxu0 %v7553
    %7648 = vmatprep.subr.bf16.mxu0 %v7552
    %7649 = vmatpush2.bf16.msra.mxu0 %v7551
    %7650 = vmatprep.subr.bf16.mxu0 %v7550
    %7651 = vmatpush2.bf16.msra.mxu0 %v7549
    %7652 = vmatprep.subr.bf16.mxu0 %v7548
    %7653 = vmatpush2.bf16.msra.mxu0 %v7547
    %7654 = vmatprep.subr.bf16.mxu0 %v7546
    %7655 = vmatpush2.bf16.msra.mxu0 %v7545
    %7656 = vmatprep.subr.bf16.mxu0 %v7544
    %7657 = vmatpush2.bf16.msra.mxu0 %v7543
    %7658 = vmatprep.subr.bf16.mxu0 %v7542
    %7659 = vmatpush2.bf16.msra.mxu0 %v7541
    %7660 = vmatprep.subr.bf16.mxu0 %v7540
    %7661 = vmatpush2.bf16.msra.mxu0 %v7539
    %7662 = vmatprep.mubr.bf16.mxu0 %v7629
    %7663 = vmatmul.mubr.bf16.gmra.mxu0 %v7628
    %v7664 = vpop.f32.mrf.mxu0
    %v7665 = vadd.f32 0.0, %v7664
    %v7666 = vpop.f32.mrf.mxu0
    %v7667 = vadd.f32 0.0, %v7666
    %v7668 = vpop.f32.mrf.mxu0
    %v7669 = vpop.f32.mrf.mxu0
    %7670 = vdwg.mxu0
    %v7671 = vmul.f32 %v7622, %v7622
    %v7672 = vmul.f32 %v7624, %v7624
    %v7673 = vsel %vm3522, %v7671, 0.0
    %v7674 = vsel %vm3522, %v7672, 0.0
    %v7675 = vadd.f32 %v7673, %v7674
    %7676 = vadd.xlane.f32.xlu0 %v7675
    %v7677 = vpop.xlane.xlu0 %7676
    %v7678 = vrot.slane %v7677, 4
    %v7679 = vadd.f32 %v7677, %v7678
    %v7680 = vrot.slane %v7679, 2
    %v7681 = vadd.f32 %v7679, %v7680
    %v7682 = vrot.slane %v7681, 1
    %v7683 = vadd.f32 %v7681, %v7682
    %s7684 = vtos %v7683
    %v7685 = vstv %s7684
    %v7686 = vadd.f32 %v7685, 1e-30
    %v7687 = vrsqrt.pop %v7686
    %v7688 = vmul.f32 %v7622, %v7687
    %v7689 = vmul.f32 %v7624, %v7687
    %v7690 = vmul.f32 %v7665, %v7665
    %v7691 = vmul.f32 %v7667, %v7667
    %v7692 = vsel %vm3522, %v7690, 0.0
    %v7693 = vsel %vm3522, %v7691, 0.0
    %v7694 = vadd.f32 %v7692, %v7693
    %7695 = vadd.xlane.f32.xlu0 %v7694
    %v7696 = vpop.xlane.xlu0 %7695
    %v7697 = vrot.slane %v7696, 4
    %v7698 = vadd.f32 %v7696, %v7697
    %v7699 = vrot.slane %v7698, 2
    %v7700 = vadd.f32 %v7698, %v7699
    %v7701 = vrot.slane %v7700, 1
    %v7702 = vadd.f32 %v7700, %v7701
    %s7703 = vtos %v7702
    %v7704 = vstv %s7703
    %v7705 = vadd.f32 %v7704, 1e-30
    %v7706 = vrsqrt.pop %v7705
    %v7707 = vmul.f32 %v7665, %v7706
    %v7708 = vmul.f32 %v7667, %v7706
    %7709 = vmatprep.subr.bf16.mxu0 %v7538
    %7710 = vmatpush1.bf16.msra.mxu0 %v7537
    %7711 = vmatprep.subr.bf16.mxu0 %v7536
    %7712 = vmatpush1.bf16.msra.mxu0 %v7535
    %7713 = vmatprep.subr.bf16.mxu0 %v7534
    %7714 = vmatpush1.bf16.msra.mxu0 %v7533
    %7715 = vmatprep.subr.bf16.mxu0 %v7532
    %7716 = vmatpush1.bf16.msra.mxu0 %v7531
    %7717 = vmatprep.subr.bf16.mxu0 %v7530
    %7718 = vmatpush1.bf16.msra.mxu0 %v7529
    %7719 = vmatprep.subr.bf16.mxu0 %v7528
    %7720 = vmatpush1.bf16.msra.mxu0 %v7527
    %7721 = vmatprep.subr.bf16.mxu0 %v7526
    %7722 = vmatpush1.bf16.msra.mxu0 %v7525
    %7723 = vmatprep.subr.bf16.mxu0 %v7524
    %7724 = vmatpush1.bf16.msra.mxu0 %v7523
    %7725 = vmatprep.subr.bf16.mxu0 %v7554
    %7726 = vmatpush2.bf16.msra.mxu0 %v7553
    %7727 = vmatprep.subr.bf16.mxu0 %v7552
    %7728 = vmatpush2.bf16.msra.mxu0 %v7551
    %7729 = vmatprep.subr.bf16.mxu0 %v7550
    %7730 = vmatpush2.bf16.msra.mxu0 %v7549
    %7731 = vmatprep.subr.bf16.mxu0 %v7548
    %7732 = vmatpush2.bf16.msra.mxu0 %v7547
    %7733 = vmatprep.subr.bf16.mxu0 %v7546
    %7734 = vmatpush2.bf16.msra.mxu0 %v7545
    %7735 = vmatprep.subr.bf16.mxu0 %v7544
    %7736 = vmatpush2.bf16.msra.mxu0 %v7543
    %7737 = vmatprep.subr.bf16.mxu0 %v7542
    %7738 = vmatpush2.bf16.msra.mxu0 %v7541
    %7739 = vmatprep.subr.bf16.mxu0 %v7540
    %7740 = vmatpush2.bf16.msra.mxu0 %v7539
    %7741 = vmatprep.mubr.bf16.mxu0 %v7524
    %7742 = vmatmul.mubr.bf16.gmra.mxu0 %v7523
    %v7743 = vpop.f32.mrf.mxu0
    %v7744 = vadd.f32 0.0, %v7743
    %v7745 = vpop.f32.mrf.mxu0
    %v7746 = vadd.f32 0.0, %v7745
    %v7747 = vpop.f32.mrf.mxu0
    %v7748 = vadd.f32 0.0, %v7747
    %v7749 = vpop.f32.mrf.mxu0
    %v7750 = vadd.f32 0.0, %v7749
    %7751 = vmatprep.mubr.bf16.mxu0 %v7526
    %7752 = vmatmul.mubr.bf16.gmra.mxu0 %v7525
    %v7753 = vpop.f32.mrf.mxu0
    %v7754 = vadd.f32 0.0, %v7753
    %v7755 = vpop.f32.mrf.mxu0
    %v7756 = vadd.f32 0.0, %v7755
    %v7757 = vpop.f32.mrf.mxu0
    %v7758 = vadd.f32 0.0, %v7757
    %v7759 = vpop.f32.mrf.mxu0
    %v7760 = vadd.f32 0.0, %v7759
    %7761 = vmatprep.mubr.bf16.mxu0 %v7528
    %7762 = vmatmul.mubr.bf16.gmra.mxu0 %v7527
    %v7763 = vpop.f32.mrf.mxu0
    %v7764 = vadd.f32 0.0, %v7763
    %v7765 = vpop.f32.mrf.mxu0
    %v7766 = vadd.f32 0.0, %v7765
    %v7767 = vpop.f32.mrf.mxu0
    %v7768 = vadd.f32 0.0, %v7767
    %v7769 = vpop.f32.mrf.mxu0
    %v7770 = vadd.f32 0.0, %v7769
    %7771 = vmatprep.mubr.bf16.mxu0 %v7530
    %7772 = vmatmul.mubr.bf16.gmra.mxu0 %v7529
    %v7773 = vpop.f32.mrf.mxu0
    %v7774 = vadd.f32 0.0, %v7773
    %v7775 = vpop.f32.mrf.mxu0
    %v7776 = vadd.f32 0.0, %v7775
    %v7777 = vpop.f32.mrf.mxu0
    %v7778 = vadd.f32 0.0, %v7777
    %v7779 = vpop.f32.mrf.mxu0
    %v7780 = vadd.f32 0.0, %v7779
    %7781 = vmatprep.mubr.bf16.mxu0 %v7532
    %7782 = vmatmul.mubr.bf16.gmra.mxu0 %v7531
    %v7783 = vpop.f32.mrf.mxu0
    %v7784 = vadd.f32 0.0, %v7783
    %v7785 = vpop.f32.mrf.mxu0
    %v7786 = vadd.f32 0.0, %v7785
    %v7787 = vpop.f32.mrf.mxu0
    %v7788 = vadd.f32 0.0, %v7787
    %v7789 = vpop.f32.mrf.mxu0
    %v7790 = vadd.f32 0.0, %v7789
    %7791 = vmatprep.mubr.bf16.mxu0 %v7534
    %7792 = vmatmul.mubr.bf16.gmra.mxu0 %v7533
    %v7793 = vpop.f32.mrf.mxu0
    %v7794 = vadd.f32 0.0, %v7793
    %v7795 = vpop.f32.mrf.mxu0
    %v7796 = vadd.f32 0.0, %v7795
    %v7797 = vpop.f32.mrf.mxu0
    %v7798 = vadd.f32 0.0, %v7797
    %v7799 = vpop.f32.mrf.mxu0
    %v7800 = vadd.f32 0.0, %v7799
    %7801 = vmatprep.mubr.bf16.mxu0 %v7536
    %7802 = vmatmul.mubr.bf16.gmra.mxu0 %v7535
    %v7803 = vpop.f32.mrf.mxu0
    %v7804 = vadd.f32 0.0, %v7803
    %v7805 = vpop.f32.mrf.mxu0
    %v7806 = vadd.f32 0.0, %v7805
    %v7807 = vpop.f32.mrf.mxu0
    %v7808 = vadd.f32 0.0, %v7807
    %v7809 = vpop.f32.mrf.mxu0
    %v7810 = vadd.f32 0.0, %v7809
    %7811 = vmatprep.mubr.bf16.mxu0 %v7538
    %7812 = vmatmul.mubr.bf16.gmra.mxu0 %v7537
    %v7813 = vpop.f32.mrf.mxu0
    %v7814 = vadd.f32 0.0, %v7813
    %v7815 = vpop.f32.mrf.mxu0
    %v7816 = vadd.f32 0.0, %v7815
    %v7817 = vpop.f32.mrf.mxu0
    %v7818 = vadd.f32 0.0, %v7817
    %v7819 = vpop.f32.mrf.mxu0
    %v7820 = vadd.f32 0.0, %v7819
    %7821 = vmatprep.mubr.bf16.mxu0 %v7540
    %7822 = vmatmul.mubr.bf16.gmra.mxu0 %v7539
    %v7823 = vpop.f32.mrf.mxu0
    %v7824 = vadd.f32 0.0, %v7823
    %v7825 = vpop.f32.mrf.mxu0
    %v7826 = vadd.f32 0.0, %v7825
    %v7827 = vpop.f32.mrf.mxu0
    %v7828 = vadd.f32 0.0, %v7827
    %v7829 = vpop.f32.mrf.mxu0
    %v7830 = vadd.f32 0.0, %v7829
    %7831 = vmatprep.mubr.bf16.mxu0 %v7542
    %7832 = vmatmul.mubr.bf16.gmra.mxu0 %v7541
    %v7833 = vpop.f32.mrf.mxu0
    %v7834 = vadd.f32 0.0, %v7833
    %v7835 = vpop.f32.mrf.mxu0
    %v7836 = vadd.f32 0.0, %v7835
    %v7837 = vpop.f32.mrf.mxu0
    %v7838 = vadd.f32 0.0, %v7837
    %v7839 = vpop.f32.mrf.mxu0
    %v7840 = vadd.f32 0.0, %v7839
    %7841 = vmatprep.mubr.bf16.mxu0 %v7544
    %7842 = vmatmul.mubr.bf16.gmra.mxu0 %v7543
    %v7843 = vpop.f32.mrf.mxu0
    %v7844 = vadd.f32 0.0, %v7843
    %v7845 = vpop.f32.mrf.mxu0
    %v7846 = vadd.f32 0.0, %v7845
    %v7847 = vpop.f32.mrf.mxu0
    %v7848 = vadd.f32 0.0, %v7847
    %v7849 = vpop.f32.mrf.mxu0
    %v7850 = vadd.f32 0.0, %v7849
    %7851 = vmatprep.mubr.bf16.mxu0 %v7546
    %7852 = vmatmul.mubr.bf16.gmra.mxu0 %v7545
    %v7853 = vpop.f32.mrf.mxu0
    %v7854 = vadd.f32 0.0, %v7853
    %v7855 = vpop.f32.mrf.mxu0
    %v7856 = vadd.f32 0.0, %v7855
    %v7857 = vpop.f32.mrf.mxu0
    %v7858 = vadd.f32 0.0, %v7857
    %v7859 = vpop.f32.mrf.mxu0
    %v7860 = vadd.f32 0.0, %v7859
    %7861 = vmatprep.mubr.bf16.mxu0 %v7548
    %7862 = vmatmul.mubr.bf16.gmra.mxu0 %v7547
    %v7863 = vpop.f32.mrf.mxu0
    %v7864 = vadd.f32 0.0, %v7863
    %v7865 = vpop.f32.mrf.mxu0
    %v7866 = vadd.f32 0.0, %v7865
    %v7867 = vpop.f32.mrf.mxu0
    %v7868 = vadd.f32 0.0, %v7867
    %v7869 = vpop.f32.mrf.mxu0
    %v7870 = vadd.f32 0.0, %v7869
    %7871 = vmatprep.mubr.bf16.mxu0 %v7550
    %7872 = vmatmul.mubr.bf16.gmra.mxu0 %v7549
    %v7873 = vpop.f32.mrf.mxu0
    %v7874 = vadd.f32 0.0, %v7873
    %v7875 = vpop.f32.mrf.mxu0
    %v7876 = vadd.f32 0.0, %v7875
    %v7877 = vpop.f32.mrf.mxu0
    %v7878 = vadd.f32 0.0, %v7877
    %v7879 = vpop.f32.mrf.mxu0
    %v7880 = vadd.f32 0.0, %v7879
    %7881 = vmatprep.mubr.bf16.mxu0 %v7552
    %7882 = vmatmul.mubr.bf16.gmra.mxu0 %v7551
    %v7883 = vpop.f32.mrf.mxu0
    %v7884 = vadd.f32 0.0, %v7883
    %v7885 = vpop.f32.mrf.mxu0
    %v7886 = vadd.f32 0.0, %v7885
    %v7887 = vpop.f32.mrf.mxu0
    %v7888 = vadd.f32 0.0, %v7887
    %v7889 = vpop.f32.mrf.mxu0
    %v7890 = vadd.f32 0.0, %v7889
    %7891 = vmatprep.mubr.bf16.mxu0 %v7554
    %7892 = vmatmul.mubr.bf16.gmra.mxu0 %v7553
    %v7893 = vpop.f32.mrf.mxu0
    %v7894 = vadd.f32 0.0, %v7893
    %v7895 = vpop.f32.mrf.mxu0
    %v7896 = vadd.f32 0.0, %v7895
    %v7897 = vpop.f32.mrf.mxu0
    %v7898 = vadd.f32 0.0, %v7897
    %v7899 = vpop.f32.mrf.mxu0
    %v7900 = vadd.f32 0.0, %v7899
    %7901 = vdwg.mxu0
    %v7902 = vpack.c.bf16 %v7748, %v7744
    %v7903 = vpack.c.bf16 %v7750, %v7746
    %v7904 = vpack.c.bf16 %v7758, %v7754
    %v7905 = vpack.c.bf16 %v7760, %v7756
    %v7906 = vpack.c.bf16 %v7768, %v7764
    %v7907 = vpack.c.bf16 %v7770, %v7766
    %v7908 = vpack.c.bf16 %v7778, %v7774
    %v7909 = vpack.c.bf16 %v7780, %v7776
    %v7910 = vpack.c.bf16 %v7788, %v7784
    %v7911 = vpack.c.bf16 %v7790, %v7786
    %v7912 = vpack.c.bf16 %v7798, %v7794
    %v7913 = vpack.c.bf16 %v7800, %v7796
    %v7914 = vpack.c.bf16 %v7808, %v7804
    %v7915 = vpack.c.bf16 %v7810, %v7806
    %v7916 = vpack.c.bf16 %v7818, %v7814
    %v7917 = vpack.c.bf16 %v7820, %v7816
    %v7918 = vpack.c.bf16 %v7828, %v7824
    %v7919 = vpack.c.bf16 %v7830, %v7826
    %v7920 = vpack.c.bf16 %v7838, %v7834
    %v7921 = vpack.c.bf16 %v7840, %v7836
    %v7922 = vpack.c.bf16 %v7848, %v7844
    %v7923 = vpack.c.bf16 %v7850, %v7846
    %v7924 = vpack.c.bf16 %v7858, %v7854
    %v7925 = vpack.c.bf16 %v7860, %v7856
    %v7926 = vpack.c.bf16 %v7868, %v7864
    %v7927 = vpack.c.bf16 %v7870, %v7866
    %v7928 = vpack.c.bf16 %v7878, %v7874
    %v7929 = vpack.c.bf16 %v7880, %v7876
    %v7930 = vpack.c.bf16 %v7888, %v7884
    %v7931 = vpack.c.bf16 %v7890, %v7886
    %v7932 = vpack.c.bf16 %v7898, %v7894
    %v7933 = vpack.c.bf16 %v7900, %v7896
    %v7966 = vunpack.c.l.b16 %v7902
    %v7967 = vunpack.c.l.b16 %v7903
    %v7968 = vunpack.c.h.b16 %v7902
    %v7969 = vunpack.c.h.b16 %v7903
    %v7970 = vunpack.c.l.b16 %v7904
    %v7971 = vunpack.c.l.b16 %v7905
    %v7972 = vunpack.c.h.b16 %v7904
    %v7973 = vunpack.c.h.b16 %v7905
    %v7974 = vunpack.c.l.b16 %v7906
    %v7975 = vunpack.c.l.b16 %v7907
    %v7976 = vunpack.c.h.b16 %v7906
    %v7977 = vunpack.c.h.b16 %v7907
    %v7978 = vunpack.c.l.b16 %v7908
    %v7979 = vunpack.c.l.b16 %v7909
    %v7980 = vunpack.c.h.b16 %v7908
    %v7981 = vunpack.c.h.b16 %v7909
    %v7982 = vunpack.c.l.b16 %v7910
    %v7983 = vunpack.c.l.b16 %v7911
    %v7984 = vunpack.c.h.b16 %v7910
    %v7985 = vunpack.c.h.b16 %v7911
    %v7986 = vunpack.c.l.b16 %v7912
    %v7987 = vunpack.c.l.b16 %v7913
    %v7988 = vunpack.c.h.b16 %v7912
    %v7989 = vunpack.c.h.b16 %v7913
    %v7990 = vunpack.c.l.b16 %v7914
    %v7991 = vunpack.c.l.b16 %v7915
    %v7992 = vunpack.c.h.b16 %v7914
    %v7993 = vunpack.c.h.b16 %v7915
    %v7994 = vunpack.c.l.b16 %v7916
    %v7995 = vunpack.c.l.b16 %v7917
    %v7996 = vunpack.c.h.b16 %v7916
    %v7997 = vunpack.c.h.b16 %v7917
    %v7998 = vunpack.c.l.b16 %v7918
    %v7999 = vunpack.c.l.b16 %v7919
    %v8000 = vunpack.c.h.b16 %v7918
    %v8001 = vunpack.c.h.b16 %v7919
    %v8002 = vunpack.c.l.b16 %v7920
    %v8003 = vunpack.c.l.b16 %v7921
    %v8004 = vunpack.c.h.b16 %v7920
    %v8005 = vunpack.c.h.b16 %v7921
    %v8006 = vunpack.c.l.b16 %v7922
    %v8007 = vunpack.c.l.b16 %v7923
    %v8008 = vunpack.c.h.b16 %v7922
    %v8009 = vunpack.c.h.b16 %v7923
    %v8010 = vunpack.c.l.b16 %v7924
    %v8011 = vunpack.c.l.b16 %v7925
    %v8012 = vunpack.c.h.b16 %v7924
    %v8013 = vunpack.c.h.b16 %v7925
    %v8014 = vunpack.c.l.b16 %v7926
    %v8015 = vunpack.c.l.b16 %v7927
    %v8016 = vunpack.c.h.b16 %v7926
    %v8017 = vunpack.c.h.b16 %v7927
    %v8018 = vunpack.c.l.b16 %v7928
    %v8019 = vunpack.c.l.b16 %v7929
    %v8020 = vunpack.c.h.b16 %v7928
    %v8021 = vunpack.c.h.b16 %v7929
    %v8022 = vunpack.c.l.b16 %v7930
    %v8023 = vunpack.c.l.b16 %v7931
    %v8024 = vunpack.c.h.b16 %v7930
    %v8025 = vunpack.c.h.b16 %v7931
    %v8026 = vunpack.c.l.b16 %v7932
    %v8027 = vunpack.c.l.b16 %v7933
    %v8028 = vunpack.c.h.b16 %v7932
    %v8029 = vunpack.c.h.b16 %v7933
    %v8030 = vpack.c.b16 %v7967, %v7966
    %v8031 = vpack.c.b16 %v7969, %v7968
    %v8032 = vpack.c.b16 %v7971, %v7970
    %v8033 = vpack.c.b16 %v7973, %v7972
    %v8034 = vpack.c.b16 %v7975, %v7974
    %v8035 = vpack.c.b16 %v7977, %v7976
    %v8036 = vpack.c.b16 %v7979, %v7978
    %v8037 = vpack.c.b16 %v7981, %v7980
    %v8038 = vpack.c.b16 %v7983, %v7982
    %v8039 = vpack.c.b16 %v7985, %v7984
    %v8040 = vpack.c.b16 %v7987, %v7986
    %v8041 = vpack.c.b16 %v7989, %v7988
    %v8042 = vpack.c.b16 %v7991, %v7990
    %v8043 = vpack.c.b16 %v7993, %v7992
    %v8044 = vpack.c.b16 %v7995, %v7994
    %v8045 = vpack.c.b16 %v7997, %v7996
    %v8046 = vpack.c.b16 %v7999, %v7998
    %v8047 = vpack.c.b16 %v8001, %v8000
    %v8048 = vpack.c.b16 %v8003, %v8002
    %v8049 = vpack.c.b16 %v8005, %v8004
    %v8050 = vpack.c.b16 %v8007, %v8006
    %v8051 = vpack.c.b16 %v8009, %v8008
    %v8052 = vpack.c.b16 %v8011, %v8010
    %v8053 = vpack.c.b16 %v8013, %v8012
    %v8054 = vpack.c.b16 %v8015, %v8014
    %v8055 = vpack.c.b16 %v8017, %v8016
    %v8056 = vpack.c.b16 %v8019, %v8018
    %v8057 = vpack.c.b16 %v8021, %v8020
    %v8058 = vpack.c.b16 %v8023, %v8022
    %v8059 = vpack.c.b16 %v8025, %v8024
    %v8060 = vpack.c.b16 %v8027, %v8026
    %v8061 = vpack.c.b16 %v8029, %v8028
    %8094 = vst [vmem:[#allocation3] sm:$0xff] %v8030
    %8095 = vst [vmem:[#allocation3 + $0x8] sm:$0xff] %v8031
    %8096 = vst [vmem:[#allocation3 + $0x10] sm:$0xff] %v8032
    %8097 = vst [vmem:[#allocation3 + $0x18] sm:$0xff] %v8033
    %8098 = vst [vmem:[#allocation3 + $0x20] sm:$0xff] %v8034
    %8099 = vst [vmem:[#allocation3 + $0x28] sm:$0xff] %v8035
    %8100 = vst [vmem:[#allocation3 + $0x30] sm:$0xff] %v8036
    %8101 = vst [vmem:[#allocation3 + $0x38] sm:$0xff] %v8037
    %8102 = vst [vmem:[#allocation3 + $0x40] sm:$0xff] %v8038
    %8103 = vst [vmem:[#allocation3 + $0x48] sm:$0xff] %v8039
    %8104 = vst [vmem:[#allocation3 + $0x50] sm:$0xff] %v8040
    %8105 = vst [vmem:[#allocation3 + $0x58] sm:$0xff] %v8041
    %8106 = vst [vmem:[#allocation3 + $0x60] sm:$0xff] %v8042
    %8107 = vst [vmem:[#allocation3 + $0x68] sm:$0xff] %v8043
    %8108 = vst [vmem:[#allocation3 + $0x70] sm:$0xff] %v8044
    %8109 = vst [vmem:[#allocation3 + $0x78] sm:$0xff] %v8045
    %8110 = vst [vmem:[#allocation3 + $0x80] sm:$0xff] %v8046
    %8111 = vst [vmem:[#allocation3 + $0x88] sm:$0xff] %v8047
    %8112 = vst [vmem:[#allocation3 + $0x90] sm:$0xff] %v8048
    %8113 = vst [vmem:[#allocation3 + $0x98] sm:$0xff] %v8049
    %8114 = vst [vmem:[#allocation3 + $0xa0] sm:$0xff] %v8050
    %8115 = vst [vmem:[#allocation3 + $0xa8] sm:$0xff] %v8051
    %8116 = vst [vmem:[#allocation3 + $0xb0] sm:$0xff] %v8052
    %8117 = vst [vmem:[#allocation3 + $0xb8] sm:$0xff] %v8053
    %8118 = vst [vmem:[#allocation3 + $0xc0] sm:$0xff] %v8054
    %8119 = vst [vmem:[#allocation3 + $0xc8] sm:$0xff] %v8055
    %8120 = vst [vmem:[#allocation3 + $0xd0] sm:$0xff] %v8056
    %8121 = vst [vmem:[#allocation3 + $0xd8] sm:$0xff] %v8057
    %8122 = vst [vmem:[#allocation3 + $0xe0] sm:$0xff] %v8058
    %8123 = vst [vmem:[#allocation3 + $0xe8] sm:$0xff] %v8059
    %8124 = vst [vmem:[#allocation3 + $0xf0] sm:$0xff] %v8060
    %8125 = vst [vmem:[#allocation3 + $0xf8] sm:$0xff] %v8061
    %v8126 = vld [vmem:[#allocation3] sm:$0xff]
    %v8127 = vld [vmem:[#allocation3 + $0x8] sm:$0xff]
    %v8128 = vld [vmem:[#allocation3 + $0x10] sm:$0xff]
    %v8129 = vld [vmem:[#allocation3 + $0x18] sm:$0xff]
    %v8130 = vld [vmem:[#allocation3 + $0x20] sm:$0xff]
    %v8131 = vld [vmem:[#allocation3 + $0x28] sm:$0xff]
    %v8132 = vld [vmem:[#allocation3 + $0x30] sm:$0xff]
    %v8133 = vld [vmem:[#allocation3 + $0x38] sm:$0xff]
    %v8134 = vld [vmem:[#allocation3 + $0x40] sm:$0xff]
    %v8135 = vld [vmem:[#allocation3 + $0x48] sm:$0xff]
    %v8136 = vld [vmem:[#allocation3 + $0x50] sm:$0xff]
    %v8137 = vld [vmem:[#allocation3 + $0x58] sm:$0xff]
    %v8138 = vld [vmem:[#allocation3 + $0x60] sm:$0xff]
    %v8139 = vld [vmem:[#allocation3 + $0x68] sm:$0xff]
    %v8140 = vld [vmem:[#allocation3 + $0x70] sm:$0xff]
    %v8141 = vld [vmem:[#allocation3 + $0x78] sm:$0xff]
    %v8142 = vld [vmem:[#allocation3 + $0x80] sm:$0xff]
    %v8143 = vld [vmem:[#allocation3 + $0x88] sm:$0xff]
    %v8144 = vld [vmem:[#allocation3 + $0x90] sm:$0xff]
    %v8145 = vld [vmem:[#allocation3 + $0x98] sm:$0xff]
    %v8146 = vld [vmem:[#allocation3 + $0xa0] sm:$0xff]
    %v8147 = vld [vmem:[#allocation3 + $0xa8] sm:$0xff]
    %v8148 = vld [vmem:[#allocation3 + $0xb0] sm:$0xff]
    %v8149 = vld [vmem:[#allocation3 + $0xb8] sm:$0xff]
    %v8150 = vld [vmem:[#allocation3 + $0xc0] sm:$0xff]
    %v8151 = vld [vmem:[#allocation3 + $0xc8] sm:$0xff]
    %v8152 = vld [vmem:[#allocation3 + $0xd0] sm:$0xff]
    %v8153 = vld [vmem:[#allocation3 + $0xd8] sm:$0xff]
    %v8154 = vld [vmem:[#allocation3 + $0xe0] sm:$0xff]
    %v8155 = vld [vmem:[#allocation3 + $0xe8] sm:$0xff]
    %v8156 = vld [vmem:[#allocation3 + $0xf0] sm:$0xff]
    %v8157 = vld [vmem:[#allocation3 + $0xf8] sm:$0xff]
    %v8158 = vpack.c.bf16 %v7688, %v7688
    %v8159 = vpack.c.bf16 %v7689, %v7689
    %v8192 = vunpack.c.l.b16 %v8126
    %v8193 = vunpack.c.h.b16 %v8126
    %v8194 = vunpack.c.l.b16 %v8127
    %v8195 = vunpack.c.h.b16 %v8127
    %v8196 = vunpack.c.l.b16 %v8128
    %v8197 = vunpack.c.h.b16 %v8128
    %v8198 = vunpack.c.l.b16 %v8129
    %v8199 = vunpack.c.h.b16 %v8129
    %v8200 = vunpack.c.l.b16 %v8130
    %v8201 = vunpack.c.h.b16 %v8130
    %v8202 = vunpack.c.l.b16 %v8131
    %v8203 = vunpack.c.h.b16 %v8131
    %v8204 = vunpack.c.l.b16 %v8132
    %v8205 = vunpack.c.h.b16 %v8132
    %v8206 = vunpack.c.l.b16 %v8133
    %v8207 = vunpack.c.h.b16 %v8133
    %v8208 = vunpack.c.l.b16 %v8134
    %v8209 = vunpack.c.h.b16 %v8134
    %v8210 = vunpack.c.l.b16 %v8135
    %v8211 = vunpack.c.h.b16 %v8135
    %v8212 = vunpack.c.l.b16 %v8136
    %v8213 = vunpack.c.h.b16 %v8136
    %v8214 = vunpack.c.l.b16 %v8137
    %v8215 = vunpack.c.h.b16 %v8137
    %v8216 = vunpack.c.l.b16 %v8138
    %v8217 = vunpack.c.h.b16 %v8138
    %v8218 = vunpack.c.l.b16 %v8139
    %v8219 = vunpack.c.h.b16 %v8139
    %v8220 = vunpack.c.l.b16 %v8140
    %v8221 = vunpack.c.h.b16 %v8140
    %v8222 = vunpack.c.l.b16 %v8141
    %v8223 = vunpack.c.h.b16 %v8141
    %v8224 = vunpack.c.l.b16 %v8142
    %v8225 = vunpack.c.h.b16 %v8142
    %v8226 = vunpack.c.l.b16 %v8143
    %v8227 = vunpack.c.h.b16 %v8143
    %v8228 = vunpack.c.l.b16 %v8144
    %v8229 = vunpack.c.h.b16 %v8144
    %v8230 = vunpack.c.l.b16 %v8145
    %v8231 = vunpack.c.h.b16 %v8145
    %v8232 = vunpack.c.l.b16 %v8146
    %v8233 = vunpack.c.h.b16 %v8146
    %v8234 = vunpack.c.l.b16 %v8147
    %v8235 = vunpack.c.h.b16 %v8147
    %v8236 = vunpack.c.l.b16 %v8148
    %v8237 = vunpack.c.h.b16 %v8148
    %v8238 = vunpack.c.l.b16 %v8149
    %v8239 = vunpack.c.h.b16 %v8149
    %v8240 = vunpack.c.l.b16 %v8150
    %v8241 = vunpack.c.h.b16 %v8150
    %v8242 = vunpack.c.l.b16 %v8151
    %v8243 = vunpack.c.h.b16 %v8151
    %v8244 = vunpack.c.l.b16 %v8152
    %v8245 = vunpack.c.h.b16 %v8152
    %v8246 = vunpack.c.l.b16 %v8153
    %v8247 = vunpack.c.h.b16 %v8153
    %v8248 = vunpack.c.l.b16 %v8154
    %v8249 = vunpack.c.h.b16 %v8154
    %v8250 = vunpack.c.l.b16 %v8155
    %v8251 = vunpack.c.h.b16 %v8155
    %v8252 = vunpack.c.l.b16 %v8156
    %v8253 = vunpack.c.h.b16 %v8156
    %v8254 = vunpack.c.l.b16 %v8157
    %v8255 = vunpack.c.h.b16 %v8157
    %v8256 = vpack.c.b16 %v8194, %v8192
    %v8257 = vpack.c.b16 %v8195, %v8193
    %v8258 = vpack.c.b16 %v8198, %v8196
    %v8259 = vpack.c.b16 %v8199, %v8197
    %v8260 = vpack.c.b16 %v8202, %v8200
    %v8261 = vpack.c.b16 %v8203, %v8201
    %v8262 = vpack.c.b16 %v8206, %v8204
    %v8263 = vpack.c.b16 %v8207, %v8205
    %v8264 = vpack.c.b16 %v8210, %v8208
    %v8265 = vpack.c.b16 %v8211, %v8209
    %v8266 = vpack.c.b16 %v8214, %v8212
    %v8267 = vpack.c.b16 %v8215, %v8213
    %v8268 = vpack.c.b16 %v8218, %v8216
    %v8269 = vpack.c.b16 %v8219, %v8217
    %v8270 = vpack.c.b16 %v8222, %v8220
    %v8271 = vpack.c.b16 %v8223, %v8221
    %v8272 = vpack.c.b16 %v8226, %v8224
    %v8273 = vpack.c.b16 %v8227, %v8225
    %v8274 = vpack.c.b16 %v8230, %v8228
    %v8275 = vpack.c.b16 %v8231, %v8229
    %v8276 = vpack.c.b16 %v8234, %v8232
    %v8277 = vpack.c.b16 %v8235, %v8233
    %v8278 = vpack.c.b16 %v8238, %v8236
    %v8279 = vpack.c.b16 %v8239, %v8237
    %v8280 = vpack.c.b16 %v8242, %v8240
    %v8281 = vpack.c.b16 %v8243, %v8241
    %v8282 = vpack.c.b16 %v8246, %v8244
    %v8283 = vpack.c.b16 %v8247, %v8245
    %v8284 = vpack.c.b16 %v8250, %v8248
    %v8285 = vpack.c.b16 %v8251, %v8249
    %v8286 = vpack.c.b16 %v8254, %v8252
    %v8287 = vpack.c.b16 %v8255, %v8253
    %8320 = vmatprep.subr.bf16.mxu0 %v8271
    %8321 = vmatpush1.bf16.xpose.msra.mxu0 %v8270
    %8322 = vmatprep.subr.bf16.mxu0 %v8269
    %8323 = vmatpush1.bf16.xpose.msra.mxu0 %v8268
    %8324 = vmatprep.subr.bf16.mxu0 %v8267
    %8325 = vmatpush1.bf16.xpose.msra.mxu0 %v8266
    %8326 = vmatprep.subr.bf16.mxu0 %v8265
    %8327 = vmatpush1.bf16.xpose.msra.mxu0 %v8264
    %8328 = vmatprep.subr.bf16.mxu0 %v8263
    %8329 = vmatpush1.bf16.xpose.msra.mxu0 %v8262
    %8330 = vmatprep.subr.bf16.mxu0 %v8261
    %8331 = vmatpush1.bf16.xpose.msra.mxu0 %v8260
    %8332 = vmatprep.subr.bf16.mxu0 %v8259
    %8333 = vmatpush1.bf16.xpose.msra.mxu0 %v8258
    %8334 = vmatprep.subr.bf16.mxu0 %v8257
    %8335 = vmatpush1.bf16.xpose.msra.mxu0 %v8256
    %8336 = vmatprep.subr.bf16.mxu0 %v8287
    %8337 = vmatpush2.bf16.xpose.msra.mxu0 %v8286
    %8338 = vmatprep.subr.bf16.mxu0 %v8285
    %8339 = vmatpush2.bf16.xpose.msra.mxu0 %v8284
    %8340 = vmatprep.subr.bf16.mxu0 %v8283
    %8341 = vmatpush2.bf16.xpose.msra.mxu0 %v8282
    %8342 = vmatprep.subr.bf16.mxu0 %v8281
    %8343 = vmatpush2.bf16.xpose.msra.mxu0 %v8280
    %8344 = vmatprep.subr.bf16.mxu0 %v8279
    %8345 = vmatpush2.bf16.xpose.msra.mxu0 %v8278
    %8346 = vmatprep.subr.bf16.mxu0 %v8277
    %8347 = vmatpush2.bf16.xpose.msra.mxu0 %v8276
    %8348 = vmatprep.subr.bf16.mxu0 %v8275
    %8349 = vmatpush2.bf16.xpose.msra.mxu0 %v8274
    %8350 = vmatprep.subr.bf16.mxu0 %v8273
    %8351 = vmatpush2.bf16.xpose.msra.mxu0 %v8272
    %8352 = vmatprep.mubr.bf16.mxu0 %v8159
    %8353 = vmatmul.mubr.bf16.gmra.mxu0 %v8158
    %v8354 = vpop.f32.mrf.mxu0
    %v8355 = vadd.f32 0.0, %v8354
    %v8356 = vpop.f32.mrf.mxu0
    %v8357 = vadd.f32 0.0, %v8356
    %v8358 = vpop.f32.mrf.mxu0
    %v8359 = vpop.f32.mrf.mxu0
    %8360 = vdwg.mxu0
    %v8361 = vpack.c.bf16 %v7707, %v7707
    %v8362 = vpack.c.bf16 %v7708, %v7708
    %8363 = vmatprep.subr.bf16.mxu0 %v8271
    %8364 = vmatpush1.bf16.msra.mxu0 %v8270
    %8365 = vmatprep.subr.bf16.mxu0 %v8269
    %8366 = vmatpush1.bf16.msra.mxu0 %v8268
    %8367 = vmatprep.subr.bf16.mxu0 %v8267
    %8368 = vmatpush1.bf16.msra.mxu0 %v8266
    %8369 = vmatprep.subr.bf16.mxu0 %v8265
    %8370 = vmatpush1.bf16.msra.mxu0 %v8264
    %8371 = vmatprep.subr.bf16.mxu0 %v8263
    %8372 = vmatpush1.bf16.msra.mxu0 %v8262
    %8373 = vmatprep.subr.bf16.mxu0 %v8261
    %8374 = vmatpush1.bf16.msra.mxu0 %v8260
    %8375 = vmatprep.subr.bf16.mxu0 %v8259
    %8376 = vmatpush1.bf16.msra.mxu0 %v8258
    %8377 = vmatprep.subr.bf16.mxu0 %v8257
    %8378 = vmatpush1.bf16.msra.mxu0 %v8256
    %8379 = vmatprep.subr.bf16.mxu0 %v8287
    %8380 = vmatpush2.bf16.msra.mxu0 %v8286
    %8381 = vmatprep.subr.bf16.mxu0 %v8285
    %8382 = vmatpush2.bf16.msra.mxu0 %v8284
    %8383 = vmatprep.subr.bf16.mxu0 %v8283
    %8384 = vmatpush2.bf16.msra.mxu0 %v8282
    %8385 = vmatprep.subr.bf16.mxu0 %v8281
    %8386 = vmatpush2.bf16.msra.mxu0 %v8280
    %8387 = vmatprep.subr.bf16.mxu0 %v8279
    %8388 = vmatpush2.bf16.msra.mxu0 %v8278
    %8389 = vmatprep.subr.bf16.mxu0 %v8277
    %8390 = vmatpush2.bf16.msra.mxu0 %v8276
    %8391 = vmatprep.subr.bf16.mxu0 %v8275
    %8392 = vmatpush2.bf16.msra.mxu0 %v8274
    %8393 = vmatprep.subr.bf16.mxu0 %v8273
    %8394 = vmatpush2.bf16.msra.mxu0 %v8272
    %8395 = vmatprep.mubr.bf16.mxu0 %v8362
    %8396 = vmatmul.mubr.bf16.gmra.mxu0 %v8361
    %v8397 = vpop.f32.mrf.mxu0
    %v8398 = vadd.f32 0.0, %v8397
    %v8399 = vpop.f32.mrf.mxu0
    %v8400 = vadd.f32 0.0, %v8399
    %v8401 = vpop.f32.mrf.mxu0
    %v8402 = vpop.f32.mrf.mxu0
    %8403 = vdwg.mxu0
    %v8404 = vmul.f32 %v8355, %v8355
    %v8405 = vmul.f32 %v8357, %v8357
    %v8406 = vsel %vm3522, %v8404, 0.0
    %v8407 = vsel %vm3522, %v8405, 0.0
    %v8408 = vadd.f32 %v8406, %v8407
    %8409 = vadd.xlane.f32.xlu0 %v8408
    %v8410 = vpop.xlane.xlu0 %8409
    %v8411 = vrot.slane %v8410, 4
    %v8412 = vadd.f32 %v8410, %v8411
    %v8413 = vrot.slane %v8412, 2
    %v8414 = vadd.f32 %v8412, %v8413
    %v8415 = vrot.slane %v8414, 1
    %v8416 = vadd.f32 %v8414, %v8415
    %s8417 = vtos %v8416
    %v8418 = vstv %s8417
    %v8419 = vadd.f32 %v8418, 1e-30
    %v8420 = vrsqrt.pop %v8419
    %v8421 = vmul.f32 %v8355, %v8420
    %v8422 = vmul.f32 %v8357, %v8420
    %v8423 = vmul.f32 %v8398, %v8398
    %v8424 = vmul.f32 %v8400, %v8400
    %v8425 = vsel %vm3522, %v8423, 0.0
    %v8426 = vsel %vm3522, %v8424, 0.0
    %v8427 = vadd.f32 %v8425, %v8426
    %8428 = vadd.xlane.f32.xlu0 %v8427
    %v8429 = vpop.xlane.xlu0 %8428
    %v8430 = vrot.slane %v8429, 4
    %v8431 = vadd.f32 %v8429, %v8430
    %v8432 = vrot.slane %v8431, 2
    %v8433 = vadd.f32 %v8431, %v8432
    %v8434 = vrot.slane %v8433, 1
    %v8435 = vadd.f32 %v8433, %v8434
    %s8436 = vtos %v8435
    %v8437 = vstv %s8436
    %v8438 = vadd.f32 %v8437, 1e-30
    %v8439 = vrsqrt.pop %v8438
    %v8440 = vmul.f32 %v8398, %v8439
    %v8441 = vmul.f32 %v8400, %v8439
    %v8444 = vcombine.low %v8421, %v8422
    %v8446 = vunpack.c.l.s4 1966171168
    %v8447 = vunpack.c.0.s8 %v8446
    %v8448 = vlaneseq
    %v8449 = vshrl.u32 %v8448, 7
    %v8450 = vsub.s32 %v8447, %v8449
    %v8451 = vrot.slane %v8444, %v8450
    %v8453 = vunpack.c.l.s4 1966171168
    %v8454 = vunpack.c.0.s8 %v8453
    %v8455 = vlaneseq
    %v8456 = vshrl.u32 %v8455, 7
    %v8457 = vsub.s32 %v8454, %v8456
    %v8458 = vrot.slane %v8451, %v8457
    %v8460 = vlaneseq
    %vm8461 = vcmp.ge.s32.totalorder %v8460, 0
    %vm8462 = vcmp.lt.s32.totalorder %v8460, 256
    %vm8463 = vmand %vm8461, %vm8462
    %8464 = vst.msk [vmem:[#allocation14] sm:$0x3] %vm8463, %v8458
    %v8467 = vcombine.low %v8440, %v8441
    %v8469 = vunpack.c.l.s4 1966171168
    %v8470 = vunpack.c.0.s8 %v8469
    %v8471 = vlaneseq
    %v8472 = vshrl.u32 %v8471, 7
    %v8473 = vsub.s32 %v8470, %v8472
    %v8474 = vrot.slane %v8467, %v8473
    %v8476 = vunpack.c.l.s4 1966171168
    %v8477 = vunpack.c.0.s8 %v8476
    %v8478 = vlaneseq
    %v8479 = vshrl.u32 %v8478, 7
    %v8480 = vsub.s32 %v8477, %v8479
    %v8481 = vrot.slane %v8474, %v8480
    %8483 = vst.msk [vmem:[#allocation16] sm:$0x3] %vm8463, %v8481
    %v8484 = vld [vmem:[#allocation2] sm:$0xff]
    %v8485 = vld [vmem:[#allocation2 + $0x8] sm:$0xff]
    %v8486 = vld [vmem:[#allocation2 + $0x10] sm:$0xff]
    %v8487 = vld [vmem:[#allocation2 + $0x18] sm:$0xff]
    %v8488 = vld [vmem:[#allocation2 + $0x20] sm:$0xff]
    %v8489 = vld [vmem:[#allocation2 + $0x28] sm:$0xff]
    %v8490 = vld [vmem:[#allocation2 + $0x30] sm:$0xff]
    %v8491 = vld [vmem:[#allocation2 + $0x38] sm:$0xff]
    %v8492 = vld [vmem:[#allocation2 + $0x40] sm:$0xff]
    %v8493 = vld [vmem:[#allocation2 + $0x48] sm:$0xff]
    %v8494 = vld [vmem:[#allocation2 + $0x50] sm:$0xff]
    %v8495 = vld [vmem:[#allocation2 + $0x58] sm:$0xff]
    %v8496 = vld [vmem:[#allocation2 + $0x60] sm:$0xff]
    %v8497 = vld [vmem:[#allocation2 + $0x68] sm:$0xff]
    %v8498 = vld [vmem:[#allocation2 + $0x70] sm:$0xff]
    %v8499 = vld [vmem:[#allocation2 + $0x78] sm:$0xff]
    %v8500 = vld [vmem:[#allocation2 + $0x80] sm:$0xff]
    %v8501 = vld [vmem:[#allocation2 + $0x88] sm:$0xff]
    %v8502 = vld [vmem:[#allocation2 + $0x90] sm:$0xff]
    %v8503 = vld [vmem:[#allocation2 + $0x98] sm:$0xff]
    %v8504 = vld [vmem:[#allocation2 + $0xa0] sm:$0xff]
    %v8505 = vld [vmem:[#allocation2 + $0xa8] sm:$0xff]
    %v8506 = vld [vmem:[#allocation2 + $0xb0] sm:$0xff]
    %v8507 = vld [vmem:[#allocation2 + $0xb8] sm:$0xff]
    %v8508 = vld [vmem:[#allocation2 + $0xc0] sm:$0xff]
    %v8509 = vld [vmem:[#allocation2 + $0xc8] sm:$0xff]
    %v8510 = vld [vmem:[#allocation2 + $0xd0] sm:$0xff]
    %v8511 = vld [vmem:[#allocation2 + $0xd8] sm:$0xff]
    %v8512 = vld [vmem:[#allocation2 + $0xe0] sm:$0xff]
    %v8513 = vld [vmem:[#allocation2 + $0xe8] sm:$0xff]
    %v8514 = vld [vmem:[#allocation2 + $0xf0] sm:$0xff]
    %v8515 = vld [vmem:[#allocation2 + $0xf8] sm:$0xff]
    %v8516 = vld [vmem:[#allocation2 + $0x100] sm:$0xff]
    %v8517 = vld [vmem:[#allocation2 + $0x108] sm:$0xff]
    %v8518 = vld [vmem:[#allocation2 + $0x110] sm:$0xff]
    %v8519 = vld [vmem:[#allocation2 + $0x118] sm:$0xff]
    %v8520 = vld [vmem:[#allocation2 + $0x120] sm:$0xff]
    %v8521 = vld [vmem:[#allocation2 + $0x128] sm:$0xff]
    %v8522 = vld [vmem:[#allocation2 + $0x130] sm:$0xff]
    %v8523 = vld [vmem:[#allocation2 + $0x138] sm:$0xff]
    %v8524 = vld [vmem:[#allocation2 + $0x140] sm:$0xff]
    %v8525 = vld [vmem:[#allocation2 + $0x148] sm:$0xff]
    %v8526 = vld [vmem:[#allocation2 + $0x150] sm:$0xff]
    %v8527 = vld [vmem:[#allocation2 + $0x158] sm:$0xff]
    %v8528 = vld [vmem:[#allocation2 + $0x160] sm:$0xff]
    %v8529 = vld [vmem:[#allocation2 + $0x168] sm:$0xff]
    %v8530 = vld [vmem:[#allocation2 + $0x170] sm:$0xff]
    %v8531 = vld [vmem:[#allocation2 + $0x178] sm:$0xff]
    %v8532 = vld [vmem:[#allocation2 + $0x180] sm:$0xff]
    %v8533 = vld [vmem:[#allocation2 + $0x188] sm:$0xff]
    %v8534 = vld [vmem:[#allocation2 + $0x190] sm:$0xff]
    %v8535 = vld [vmem:[#allocation2 + $0x198] sm:$0xff]
    %v8536 = vld [vmem:[#allocation2 + $0x1a0] sm:$0xff]
    %v8537 = vld [vmem:[#allocation2 + $0x1a8] sm:$0xff]
    %v8538 = vld [vmem:[#allocation2 + $0x1b0] sm:$0xff]
    %v8539 = vld [vmem:[#allocation2 + $0x1b8] sm:$0xff]
    %v8540 = vld [vmem:[#allocation2 + $0x1c0] sm:$0xff]
    %v8541 = vld [vmem:[#allocation2 + $0x1c8] sm:$0xff]
    %v8542 = vld [vmem:[#allocation2 + $0x1d0] sm:$0xff]
    %v8543 = vld [vmem:[#allocation2 + $0x1d8] sm:$0xff]
    %v8544 = vld [vmem:[#allocation2 + $0x1e0] sm:$0xff]
    %v8545 = vld [vmem:[#allocation2 + $0x1e8] sm:$0xff]
    %v8546 = vld [vmem:[#allocation2 + $0x1f0] sm:$0xff]
    %v8547 = vld [vmem:[#allocation2 + $0x1f8] sm:$0xff]
    %8548 = vmatprep.subr.mxu0 %v8515
    %8549 = vmatpush1.msra.mxu0 %v8514
    %8550 = vmatprep.subr.mxu0 %v8513
    %8551 = vmatpush1.msra.mxu0 %v8512
    %8552 = vmatprep.subr.mxu0 %v8511
    %8553 = vmatpush1.msra.mxu0 %v8510
    %8554 = vmatprep.subr.mxu0 %v8509
    %8555 = vmatpush1.msra.mxu0 %v8508
    %8556 = vmatprep.subr.mxu0 %v8507
    %8557 = vmatpush1.msra.mxu0 %v8506
    %8558 = vmatprep.subr.mxu0 %v8505
    %8559 = vmatpush1.msra.mxu0 %v8504
    %8560 = vmatprep.subr.mxu0 %v8503
    %8561 = vmatpush1.msra.mxu0 %v8502
    %8562 = vmatprep.subr.mxu0 %v8501
    %8563 = vmatpush1.msra.mxu0 %v8500
    %8564 = vmatprep.subr.mxu0 %v8499
    %8565 = vmatpush1.msra.mxu0 %v8498
    %8566 = vmatprep.subr.mxu0 %v8497
    %8567 = vmatpush1.msra.mxu0 %v8496
    %8568 = vmatprep.subr.mxu0 %v8495
    %8569 = vmatpush1.msra.mxu0 %v8494
    %8570 = vmatprep.subr.mxu0 %v8493
    %8571 = vmatpush1.msra.mxu0 %v8492
    %8572 = vmatprep.subr.mxu0 %v8491
    %8573 = vmatpush1.msra.mxu0 %v8490
    %8574 = vmatprep.subr.mxu0 %v8489
    %8575 = vmatpush1.msra.mxu0 %v8488
    %8576 = vmatprep.subr.mxu0 %v8487
    %8577 = vmatpush1.msra.mxu0 %v8486
    %8578 = vmatprep.subr.mxu0 %v8485
    %8579 = vmatpush1.msra.mxu0 %v8484
    %8580 = vmatprep.subr.mxu0 %v8547
    %8581 = vmatpush2.msra.mxu0 %v8546
    %8582 = vmatprep.subr.mxu0 %v8545
    %8583 = vmatpush2.msra.mxu0 %v8544
    %8584 = vmatprep.subr.mxu0 %v8543
    %8585 = vmatpush2.msra.mxu0 %v8542
    %8586 = vmatprep.subr.mxu0 %v8541
    %8587 = vmatpush2.msra.mxu0 %v8540
    %8588 = vmatprep.subr.mxu0 %v8539
    %8589 = vmatpush2.msra.mxu0 %v8538
    %8590 = vmatprep.subr.mxu0 %v8537
    %8591 = vmatpush2.msra.mxu0 %v8536
    %8592 = vmatprep.subr.mxu0 %v8535
    %8593 = vmatpush2.msra.mxu0 %v8534
    %8594 = vmatprep.subr.mxu0 %v8533
    %8595 = vmatpush2.msra.mxu0 %v8532
    %8596 = vmatprep.subr.mxu0 %v8531
    %8597 = vmatpush2.msra.mxu0 %v8530
    %8598 = vmatprep.subr.mxu0 %v8529
    %8599 = vmatpush2.msra.mxu0 %v8528
    %8600 = vmatprep.subr.mxu0 %v8527
    %8601 = vmatpush2.msra.mxu0 %v8526
    %8602 = vmatprep.subr.mxu0 %v8525
    %8603 = vmatpush2.msra.mxu0 %v8524
    %8604 = vmatprep.subr.mxu0 %v8523
    %8605 = vmatpush2.msra.mxu0 %v8522
    %8606 = vmatprep.subr.mxu0 %v8521
    %8607 = vmatpush2.msra.mxu0 %v8520
    %8608 = vmatprep.subr.mxu0 %v8519
    %8609 = vmatpush2.msra.mxu0 %v8518
    %8610 = vmatprep.subr.mxu0 %v8517
    %8611 = vmatpush2.msra.mxu0 %v8516
    %8612 = vmatprep.mubr.f32.mxu0 %v8441
    %8613 = vmatmul.mubr.f32.gmra.mxu0 %v8440
    %v8614 = vpop.f32.mrf.mxu0
    %v8615 = vadd.f32 0.0, %v8614
    %v8616 = vpop.f32.mrf.mxu0
    %v8617 = vadd.f32 0.0, %v8616
    %8618 = vdwg.mxu0
    %v8619 = vmul.f32 %v8615, %v8421
    %v8620 = vmul.f32 %v8617, %v8422
    %v8621 = vsel %vm3522, %v8619, 0.0
    %v8622 = vsel %vm3522, %v8620, 0.0
    %v8623 = vadd.f32 %v8621, %v8622
    %8624 = vadd.xlane.f32.xlu0 %v8623
    %v8625 = vpop.xlane.xlu0 %8624
    %v8626 = vrot.slane %v8625, 4
    %v8627 = vadd.f32 %v8625, %v8626
    %v8628 = vrot.slane %v8627, 2
    %v8629 = vadd.f32 %v8627, %v8628
    %v8630 = vrot.slane %v8629, 1
    %v8631 = vadd.f32 %v8629, %v8630
    %s8632 = vtos %v8631
    %v8633 = vstv %s8632
    %v8634 = vmul.f32 %v8440, %v8421
    %v8635 = vmul.f32 %v8441, %v8422
    %v8636 = vsel %vm3522, %v8634, 0.0
    %v8637 = vsel %vm3522, %v8635, 0.0
    %v8638 = vadd.f32 %v8636, %v8637
    %8639 = vadd.xlane.f32.xlu0 %v8638
    %v8640 = vpop.xlane.xlu0 %8639
    %v8641 = vrot.slane %v8640, 4
    %v8642 = vadd.f32 %v8640, %v8641
    %v8643 = vrot.slane %v8642, 2
    %v8644 = vadd.f32 %v8642, %v8643
    %v8645 = vrot.slane %v8644, 1
    %v8646 = vadd.f32 %v8644, %v8645
    %s8647 = vtos %v8646
    %v8648 = vstv %s8647
    %v8649 = vrcp.pop %v8648
    %v8650 = vmul.f32 %v8633, %v8649
    %v8651 = vand.u32 2147483647, %v8650
    %vm8652 = vcmp.eq.s32.totalorder %v168, 0
    %v8653 = vsel %vm8652, %v242, 0.0
    %vm8654 = vcmp.eq.s32.totalorder %v168, 1
    %v8655 = vsel %vm8654, %v8651, 0.0
    %v8656 = vadd.f32 %v8653, %v8655
    %8657 = vst [vmem:[#allocation13] sm:$0x1] %v8656
    // Predicated region
    $region46: #{tpu_custom_call.1} parent=1 // pred_check
      _
    $region47: #{tpu_custom_call.1} parent=1 // pred_check_branch
      %8659 = sbr.rel (0) target = $region49
    $region48: #{tpu_custom_call.1} parent=1 // pred_region
      %s8661 = ssub.s32 16, 16
      %8662 = vsyncadd [#allocation7], %s8661
      %s8664 = sshll.u32 [#allocation13], 4
      %s8665 = int_to_ptr.vmem [resolvable:$true] %s8664
      %8667 = dma.vmem_to_hbm [thread:$0]  %s8665, 16, %s7, [#allocation7]
    $region49: #{tpu_custom_call.1} parent=1 // pred_fallthru
      _
    // Predicated region
    $region50: #{tpu_custom_call.1} parent=1 // pred_check
      _
    $region51: #{tpu_custom_call.1} parent=1 // pred_check_branch
      %8669 = sbr.rel (0) target = $region53
    $region52: #{tpu_custom_call.1} parent=1 // pred_region
      %s8671 = ssub.s32 32, 32
      %8672 = vsyncadd [#allocation15], %s8671
      %s8674 = sshll.u32 [#allocation14], 4
      %s8675 = int_to_ptr.vmem [resolvable:$true] %s8674
      %8677 = dma.vmem_to_hbm [thread:$0]  %s8675, 32, %s8, [#allocation15]
    $region53: #{tpu_custom_call.1} parent=1 // pred_fallthru
      _
    // Predicated region
    $region54: #{tpu_custom_call.1} parent=1 // pred_check
      _
    $region55: #{tpu_custom_call.1} parent=1 // pred_check_branch
      %8679 = sbr.rel (0) target = $region57
    $region56: #{tpu_custom_call.1} parent=1 // pred_region
      %s8681 = ssub.s32 32, 32
      %8682 = vsyncadd [#allocation15], %s8681
      %s8684 = sshll.u32 [#allocation16], 4
      %s8685 = int_to_ptr.vmem [resolvable:$true] %s8684
      %8687 = dma.vmem_to_hbm [thread:$0]  %s8685, 32, %s9, [#allocation15]
    $region57: #{tpu_custom_call.1} parent=1 // pred_fallthru
      _
    // Predicated region
    $region58: #{tpu_custom_call.1} parent=1 // pred_check
      _
    $region59: #{tpu_custom_call.1} parent=1 // pred_check_branch
      %8689 = sbr.rel (0) target = $region61
    $region60: #{tpu_custom_call.1} parent=1 // pred_region
      %8690 = dma.done [#allocation7], 16
    $region61: #{tpu_custom_call.1} parent=1 // pred_fallthru
      _
    // Predicated region
    $region62: #{tpu_custom_call.1} parent=1 // pred_check
      _
    $region63: #{tpu_custom_call.1} parent=1 // pred_check_branch
      %8692 = sbr.rel (0) target = $region65
    $region64: #{tpu_custom_call.1} parent=1 // pred_region
      %8693 = dma.done [#allocation15], 32
    $region65: #{tpu_custom_call.1} parent=1 // pred_fallthru
      _
    // Predicated region
    $region66: #{tpu_custom_call.1} parent=1 // pred_check
      _
    $region67: #{tpu_custom_call.1} parent=1 // pred_check_branch
      %8695 = sbr.rel (0) target = $region69
    $region68: #{tpu_custom_call.1} parent=1 // pred_region
      %8696 = dma.done [#allocation15], 32
    $region69: #{tpu_custom_call.1} parent=1 // pred_fallthru
      _
    %8697 = vsyncpa [#allocation6], 1
    %8698 = vsyncpa [#allocation9], 1
    %8699 = vsyncpa [#allocation12], 1
    %8700 = vsyncpa [#allocation7], 1
    %8701 = vsyncpa [#allocation15], 1

</llo_original>
